<compile_context>
chip_gen: v5e
topology: v5e:2x2
jax: 0.10.0
libtpu: 0.0.40
codegen_flags: <defaults>
</compile_context>

<pallas_src>
import jax
import jax.numpy as jnp
from jax import lax
from jax.experimental import pallas as pl
from jax.experimental.pallas import tpu as pltpu

OCP = 128          # padded output-channel / fc width (lane-dense stores)


def _round_up(a, b):
    return (a + b - 1) // b * b


def _pick_tile(m, tile_max, align=16):
    """Tile size: multiple of `align`, <= tile_max, and (when m allows) small
    enough that the grid has >= 2 steps so both v7x TensorCores get work."""
    half = _round_up(-(-m // 2), align)
    return max(align, min(tile_max, half))


# ----------------------------------------------------------------------------
# Pallas kernels
# ----------------------------------------------------------------------------
def _conv_pool_kernel(x_ref, w_ref, b_ref, o_ref):
    # x: (4, tile_m, K) bf16 -- leading axis is the 2x2 pool-window offset.
    # w: (K, 128) bf16, b: (1, 128) f32, o: (tile_m, 128) bf16.
    # pool(relu(conv+b)) == relu(max_p(dot_p) + b) since relu/+b commute w/ max.
    w = w_ref[...]
    acc = jnp.dot(x_ref[0], w, preferred_element_type=jnp.float32)
    for p in range(1, 4):
        acc = jnp.maximum(acc, jnp.dot(x_ref[p], w,
                                       preferred_element_type=jnp.float32))
    o_ref[...] = jnp.maximum(acc + b_ref[...], 0.0).astype(o_ref.dtype)


def _conv2_fc_kernel(c2_ref, w2_ref, b2_ref, wf1_ref, bf1_ref,
                     wf2_ref, bf2_ref, wf3_ref, bf3_ref, o_ref):
    # c2: (4, 25, tile_n, 150) bf16  -> (parity, s=(i2,j2), image, (kh,kw,c)).
    # Fused: conv2 + bias + ReLU + 2x2 maxpool + fc1 + ReLU + fc2 + ReLU + fc3.
    tile_n = c2_ref.shape[2]
    k2 = c2_ref.shape[3]
    w2 = w2_ref[...]
    acc = None
    for p in range(4):                                 # 2x2 pool parities
        xp = c2_ref[p].reshape(25 * tile_n, k2)        # collapse leading dims
        d = jnp.dot(xp, w2, preferred_element_type=jnp.float32)
        acc = d if acc is None else jnp.maximum(acc, d)
    h2 = jnp.maximum(acc + b2_ref[...], 0.0)           # (25*tile_n, 128) f32

    # fc1: contract over spatial position s (25 aligned row blocks) + channels.
    accf = jnp.zeros((tile_n, OCP), jnp.float32)
    for s in range(25):
        hs = h2[s * tile_n:(s + 1) * tile_n, :].astype(wf1_ref.dtype)
        accf = accf + jnp.dot(hs, wf1_ref[s],
                              preferred_element_type=jnp.float32)
    h3 = jnp.maximum(accf + bf1_ref[...], 0.0)

    h4 = jnp.dot(h3.astype(wf2_ref.dtype), wf2_ref[...],
                 preferred_element_type=jnp.float32)
    h4 = jnp.maximum(h4 + bf2_ref[...], 0.0)
    out = jnp.dot(h4.astype(wf3_ref.dtype), wf3_ref[...],
                  preferred_element_type=jnp.float32)
    o_ref[...] = (out + bf3_ref[...]).astype(o_ref.dtype)


# ----------------------------------------------------------------------------
# Pallas wrappers
# ----------------------------------------------------------------------------
def conv_pool(cols, w, b, *, tile_m_max=1024):
    # cols: (4, M, K) bf16 (K unpadded), w: (K, 128) bf16, b: (1, 128) f32
    # returns (M, 128) bf16
    _, m, k = cols.shape
    tile_m = _pick_tile(m, tile_m_max)
    m_pad = _round_up(m, tile_m)
    if m_pad != m:
        cols = jnp.pad(cols, ((0, 0), (0, m_pad - m), (0, 0)))
    out = pl.pallas_call(
        _conv_pool_kernel,
        out_shape=jax.ShapeDtypeStruct((m_pad, OCP), jnp.bfloat16),
        grid=(m_pad // tile_m,),
        in_specs=[
            pl.BlockSpec((4, tile_m, k), lambda i: (0, i, 0)),
            pl.BlockSpec((k, OCP), lambda i: (0, 0)),
            pl.BlockSpec((1, OCP), lambda i: (0, 0)),
        ],
        out_specs=pl.BlockSpec((tile_m, OCP), lambda i: (i, 0)),
        compiler_params=pltpu.CompilerParams(
            dimension_semantics=("parallel",)),
    )(cols, w, b)
    return out[:m]


def conv2_fc_fused(cols2, kp, *, tile_n_max=64):
    # cols2: (4, 25, N, 150) bf16 -> logits-padded (N, 128) f32
    _, _, n, k2 = cols2.shape
    tile_n = _pick_tile(n, tile_n_max)
    n_pad = _round_up(n, tile_n)
    if n_pad != n:
        cols2 = jnp.pad(cols2, ((0, 0), (0, 0), (0, n_pad - n), (0, 0)))
    out = pl.pallas_call(
        _conv2_fc_kernel,
        out_shape=jax.ShapeDtypeStruct((n_pad, OCP), jnp.float32),
        grid=(n_pad // tile_n,),
        in_specs=[
            pl.BlockSpec((4, 25, tile_n, k2), lambda i: (0, 0, i, 0)),
            pl.BlockSpec(kp["c2_w"].shape, lambda i: (0, 0)),
            pl.BlockSpec(kp["c2_b"].shape, lambda i: (0, 0)),
            pl.BlockSpec(kp["f1_w"].shape, lambda i: (0, 0, 0)),
            pl.BlockSpec(kp["f1_b"].shape, lambda i: (0, 0)),
            pl.BlockSpec(kp["f2_w"].shape, lambda i: (0, 0)),
            pl.BlockSpec(kp["f2_b"].shape, lambda i: (0, 0)),
            pl.BlockSpec(kp["f3_w"].shape, lambda i: (0, 0)),
            pl.BlockSpec(kp["f3_b"].shape, lambda i: (0, 0)),
        ],
        out_specs=pl.BlockSpec((tile_n, OCP), lambda i: (i, 0)),
        compiler_params=pltpu.CompilerParams(
            dimension_semantics=("parallel",)),
    )(cols2, kp["c2_w"], kp["c2_b"], kp["f1_w"], kp["f1_b"],
      kp["f2_w"], kp["f2_b"], kp["f3_w"], kp["f3_b"])
    return out[:n]


# ----------------------------------------------------------------------------
# im2col glue (plain JAX; NHWC; 2x2 pool window hoisted to a leading axis of 4)
# ----------------------------------------------------------------------------
def im2col_pool(x, k, *, row_major_batch=True):
    # x: (N, H, W, C).  Column order is (kh, kw, c), K = k*k*C (unpadded).
    # row_major_batch=True : rows = (n, i, j)        -> (4, N*Hp*Wp, K)
    # row_major_batch=False: rows = (s=(i,j), n)     -> (4, Hp*Wp, N, K)
    n, h, w, c = x.shape
    ho, wo = h - k + 1, w - k + 1
    assert ho % 2 == 0 and wo % 2 == 0, "2x2 maxpool requires even conv output"
    hp, wp = ho // 2, wo // 2
    pats = [x[:, kh:kh + ho, kw:kw + wo, :] for kh in range(k) for kw in range(k)]
    p = jnp.stack(pats, axis=3)                       # (N, Ho, Wo, k*k, C)
    p = p.reshape(n, hp, 2, wp, 2, k * k, c)          # (N, i, dy, j, dx, kk, C)
    if row_major_batch:
        p = p.transpose(2, 4, 0, 1, 3, 5, 6)          # (dy, dx, N, i, j, kk, C)
        return p.reshape(4, n * hp * wp, k * k * c)
    p = p.transpose(2, 4, 1, 3, 0, 5, 6)              # (dy, dx, i, j, N, kk, C)
    return p.reshape(4, hp * wp, n, k * k * c)


# ----------------------------------------------------------------------------
# Parameters (torch layout) + one-time kernel-ready preparation
# ----------------------------------------------------------------------------
def init_params(key):
    ks = jax.random.split(key, 10)

    def u(k, shape, fan_in):
        bound = 1.0 / jnp.sqrt(fan_in)
        return jax.random.uniform(k, shape, jnp.float32, -bound, bound)

    return {
        "conv1_w": u(ks[0], (6, 3, 5, 5), 3 * 5 * 5),
        "conv1_b": u(ks[1], (6,), 3 * 5 * 5),
        "conv2_w": u(ks[2], (16, 6, 5, 5), 6 * 5 * 5),
        "conv2_b": u(ks[3], (16,), 6 * 5 * 5),
        "fc1_w": u(ks[4], (120, 400), 400),
        "fc1_b": u(ks[5], (120,), 400),
        "fc2_w": u(ks[6], (84, 120), 120),
        "fc2_b": u(ks[7], (84,), 120),
        "fc3_w": u(ks[8], (10, 84), 84),
        "fc3_b": u(ks[9], (10,), 84),
    }


def prepare_params(p):
    """One-time transform: pre-transpose to (K, out) with out padded to 128
    lanes (K left UNPADDED for the conv stages), rearrange fc1 for the
    (spatial-block, channel-lane) layout the fused kernel uses, cast matmul
    operands to bf16, keep biases f32."""
    def conv_w(w):
        oc, ic, kh, kw = w.shape
        wm = w.transpose(2, 3, 1, 0).reshape(kh * kw * ic, oc)   # (kh,kw,ci) x oc
        return jnp.pad(wm, ((0, 0), (0, OCP - oc))).astype(jnp.bfloat16)

    def fc_w(w):
        n_out, k = w.shape
        return jnp.pad(w.T, ((0, OCP - k), (0, OCP - n_out))).astype(jnp.bfloat16)

    def bias(b):
        return jnp.pad(b, (0, OCP - b.shape[0])).reshape(1, OCP).astype(jnp.float32)

    # torch flattens conv2 output as (c, i2, j2); the fused kernel consumes it
    # as (s=(i2,j2) row block, c lane) -> fc1 weight becomes (25, 128, 128).
    f1 = p["fc1_w"].reshape(120, 16, 25).transpose(2, 1, 0)       # (s, c, f)
    f1 = jnp.pad(f1, ((0, 0), (0, OCP - 16), (0, OCP - 120))).astype(jnp.bfloat16)

    return {
        "c1_w": conv_w(p["conv1_w"]),     # (75, 128)  -- K unpadded
        "c1_b": bias(p["conv1_b"]),
        "c2_w": conv_w(p["conv2_w"]),     # (150, 128) -- K unpadded
        "c2_b": bias(p["conv2_b"]),
        "f1_w": f1,                       # (25, 128, 128)
        "f1_b": bias(p["fc1_b"]),
        "f2_w": fc_w(p["fc2_w"]),         # (128, 128)
        "f2_b": bias(p["fc2_b"]),
        "f3_w": fc_w(p["fc3_w"]),         # (128, 128)
        "f3_b": bias(p["fc3_b"]),
    }


# ----------------------------------------------------------------------------
# Net forward
# ----------------------------------------------------------------------------
@jax.jit
def net_forward(x, kp):
    n = x.shape[0]
    xh = jnp.transpose(x, (0, 2, 3, 1)).astype(jnp.bfloat16)     # NCHW -> NHWC once
    # TODO(synk): fold this im2col into the conv1 kernel (in-VMEM patch
    # extraction) to remove the remaining cols1 HBM round trip.
    cols1 = im2col_pool(xh, 5)                                   # (4, N*196, 75) bf16
    y1 = conv_pool(cols1, kp["c1_w"], kp["c1_b"])                # (N*196, 128) bf16
    y1 = y1.reshape(n, 14, 14, OCP)[..., :6]                     # keep 6 real channels
    cols2 = im2col_pool(y1, 5, row_major_batch=False)            # (4, 25, N, 150) bf16
    out = conv2_fc_fused(cols2, kp)                              # (N, 128) f32
    return out[:, :10]


# ----------------------------------------------------------------------------
# Pure-JAX reference (mirrors the torch module) for tolerance validation
# ----------------------------------------------------------------------------
def net_reference(x, p):
    dn = ("NCHW", "OIHW", "NCHW")
    y = lax.conv_general_dilated(x, p["conv1_w"], (1, 1), "VALID",
                                 dimension_numbers=dn)
    y = jax.nn.relu(y + p["conv1_b"][None, :, None, None])
    y = lax.reduce_window(y, -jnp.inf, lax.max, (1, 1, 2, 2), (1, 1, 2, 2), "VALID")
    y = lax.conv_general_dilated(y, p["conv2_w"], (1, 1), "VALID",
                                 dimension_numbers=dn)
    y = jax.nn.relu(y + p["conv2_b"][None, :, None, None])
    y = lax.reduce_window(y, -jnp.inf, lax.max, (1, 1, 2, 2), (1, 1, 2, 2), "VALID")
    y = y.reshape(x.shape[0], 400)
    y = jax.nn.relu(y @ p["fc1_w"].T + p["fc1_b"])
    y = jax.nn.relu(y @ p["fc2_w"].T + p["fc2_b"])
    return y @ p["fc3_w"].T + p["fc3_b"]


if __name__ == "__main__":
    key = jax.random.PRNGKey(0)
    k_x, k_p = jax.random.split(key)
    x = jax.random.normal(k_x, (2, 3, 32, 32), jnp.float32)      # NCHW, like torch
    raw = init_params(k_p)
    params = prepare_params(raw)
    out = jax.block_until_ready(net_forward(x, params))
    assert out.shape == (2, 10)
    # bf16 operands => compare with a tolerance, not exact equality.
    ref = net_reference(x, raw)
    rel = float(jnp.max(jnp.abs(out - ref)) / (jnp.max(jnp.abs(ref)) + 1e-6))
    assert rel < 0.1, f"mismatch vs f32 reference: rel_err={rel}"
    print("KERNEL_OK")
</pallas_src>

<mosaic_0001>
module attributes {stable_mosaic.version = 11 : i64} {
  func.func @_conv_pool_kernel(%arg0: i32, %arg1: memref<4x208x75xbf16, #tpu.memory_space<vmem>>, %arg2: memref<75x128xbf16, #tpu.memory_space<vmem>>, %arg3: memref<1x128xf32, #tpu.memory_space<vmem>>, %arg4: memref<208x128xbf16, #tpu.memory_space<vmem>>) attributes {dimension_semantics = [#tpu.dimension_semantics<parallel>], iteration_bounds = array<i64: 2>, scalar_prefetch = 0 : i64, scratch_operands = 0 : i64, tpu.core_type = #tpu.core_type<tc>, window_params = [{transform_indices = @transform_0, window_bounds = array<i64: 4, 208, 75>}, {pipeline_mode = #tpu.pipeline_mode<synchronous>, transform_indices = @transform_1, window_bounds = array<i64: 75, 128>}, {pipeline_mode = #tpu.pipeline_mode<synchronous>, transform_indices = @transform_2, window_bounds = array<i64: 1, 128>}, {transform_indices = @transform_3, window_bounds = array<i64: 208, 128>}]} {
    %c0 = arith.constant 0 : index
    %c0_0 = arith.constant 0 : index
    %0 = vector.load %arg2[%c0, %c0_0] : memref<75x128xbf16, #tpu.memory_space<vmem>>, vector<75x128xbf16>
    %c0_1 = arith.constant 0 : index
    %c0_2 = arith.constant 0 : index
    %c0_3 = arith.constant 0 : index
    %1 = vector.load %arg1[%c0_1, %c0_2, %c0_3] : memref<4x208x75xbf16, #tpu.memory_space<vmem>>, vector<1x208x75xbf16>
    %2 = vector.shape_cast %1 : vector<1x208x75xbf16> to vector<208x75xbf16>
    %cst = arith.constant dense<0.000000e+00> : vector<208x128xf32>
    %3 = tpu.matmul %2, %0, %cst {dimension_numbers = #tpu.dot_dimension_numbers<[1], [0], [0], [1], [0, 0, 1, 1], [], []>} : vector<208x75xbf16>, vector<75x128xbf16>, vector<208x128xf32> -> vector<208x128xf32>
    %c1 = arith.constant 1 : index
    %c0_4 = arith.constant 0 : index
    %c0_5 = arith.constant 0 : index
    %4 = vector.load %arg1[%c1, %c0_4, %c0_5] : memref<4x208x75xbf16, #tpu.memory_space<vmem>>, vector<1x208x75xbf16>
    %5 = vector.shape_cast %4 : vector<1x208x75xbf16> to vector<208x75xbf16>
    %cst_6 = arith.constant dense<0.000000e+00> : vector<208x128xf32>
    %6 = tpu.matmul %5, %0, %cst_6 {dimension_numbers = #tpu.dot_dimension_numbers<[1], [0], [0], [1], [0, 0, 1, 1], [], []>} : vector<208x75xbf16>, vector<75x128xbf16>, vector<208x128xf32> -> vector<208x128xf32>
    %7 = arith.maximumf %3, %6 : vector<208x128xf32>
    %c2 = arith.constant 2 : index
    %c0_7 = arith.constant 0 : index
    %c0_8 = arith.constant 0 : index
    %8 = vector.load %arg1[%c2, %c0_7, %c0_8] : memref<4x208x75xbf16, #tpu.memory_space<vmem>>, vector<1x208x75xbf16>
    %9 = vector.shape_cast %8 : vector<1x208x75xbf16> to vector<208x75xbf16>
    %cst_9 = arith.constant dense<0.000000e+00> : vector<208x128xf32>
    %10 = tpu.matmul %9, %0, %cst_9 {dimension_numbers = #tpu.dot_dimension_numbers<[1], [0], [0], [1], [0, 0, 1, 1], [], []>} : vector<208x75xbf16>, vector<75x128xbf16>, vector<208x128xf32> -> vector<208x128xf32>
    %11 = arith.maximumf %7, %10 : vector<208x128xf32>
    %c3 = arith.constant 3 : index
    %c0_10 = arith.constant 0 : index
    %c0_11 = arith.constant 0 : index
    %12 = vector.load %arg1[%c3, %c0_10, %c0_11] : memref<4x208x75xbf16, #tpu.memory_space<vmem>>, vector<1x208x75xbf16>
    %13 = vector.shape_cast %12 : vector<1x208x75xbf16> to vector<208x75xbf16>
    %cst_12 = arith.constant dense<0.000000e+00> : vector<208x128xf32>
    %14 = tpu.matmul %13, %0, %cst_12 {dimension_numbers = #tpu.dot_dimension_numbers<[1], [0], [0], [1], [0, 0, 1, 1], [], []>} : vector<208x75xbf16>, vector<75x128xbf16>, vector<208x128xf32> -> vector<208x128xf32>
    %15 = arith.maximumf %11, %14 : vector<208x128xf32>
    %c0_13 = arith.constant 0 : index
    %c0_14 = arith.constant 0 : index
    %16 = vector.load %arg3[%c0_13, %c0_14] : memref<1x128xf32, #tpu.memory_space<vmem>>, vector<1x128xf32>
    %17 = vector.broadcast %16 : vector<1x128xf32> to vector<208x128xf32>
    %18 = arith.addf %15, %17 : vector<208x128xf32>
    %cst_15 = arith.constant 0.000000e+00 : f32
    %19 = vector.broadcast %cst_15 : f32 to vector<208x128xf32>
    %20 = arith.maximumf %18, %19 : vector<208x128xf32>
    %21 = arith.truncf %20 : vector<208x128xf32> to vector<208x128xbf16>
    %c0_16 = arith.constant 0 : index
    %c0_17 = arith.constant 0 : index
    %22 = vector.load %arg4[%c0_16, %c0_17] : memref<208x128xbf16, #tpu.memory_space<vmem>>, vector<208x128xbf16>
    tpu.vector_store %arg4[%c0_16, %c0_17], %21 {strides = array<i32>} : memref<208x128xbf16, #tpu.memory_space<vmem>>, vector<208x128xbf16>,
    return
  }
  func.func @transform_0(%arg0: i32) -> (i32, i32, i32) {
    %c0_i32 = arith.constant 0 : i32
    %c0_i32_0 = arith.constant 0 : i32
    %c0_i32_1 = arith.constant 0 : i32
    return %c0_i32, %arg0, %c0_i32_0 : i32, i32, i32
  }
  func.func @transform_1(%arg0: i32) -> (i32, i32) {
    %c0_i32 = arith.constant 0 : i32
    %c0_i32_0 = arith.constant 0 : i32
    %c0_i32_1 = arith.constant 0 : i32
    return %c0_i32, %c0_i32_0 : i32, i32
  }
  func.func @transform_2(%arg0: i32) -> (i32, i32) {
    %c0_i32 = arith.constant 0 : i32
    %c0_i32_0 = arith.constant 0 : i32
    %c0_i32_1 = arith.constant 0 : i32
    return %c0_i32, %c0_i32_0 : i32, i32
  }
  func.func @transform_3(%arg0: i32) -> (i32, i32) {
    %c0_i32 = arith.constant 0 : i32
    %c0_i32_0 = arith.constant 0 : i32
    return %arg0, %c0_i32 : i32, i32
  }
}

module attributes {stable_mosaic.version = 11 : i64} {
  func.func @_conv2_fc_kernel(%arg0: i32, %arg1: memref<4x25x16x150xbf16, #tpu.memory_space<vmem>>, %arg2: memref<150x128xbf16, #tpu.memory_space<vmem>>, %arg3: memref<1x128xf32, #tpu.memory_space<vmem>>, %arg4: memref<25x128x128xbf16, #tpu.memory_space<vmem>>, %arg5: memref<1x128xf32, #tpu.memory_space<vmem>>, %arg6: memref<128x128xbf16, #tpu.memory_space<vmem>>, %arg7: memref<1x128xf32, #tpu.memory_space<vmem>>, %arg8: memref<128x128xbf16, #tpu.memory_space<vmem>>, %arg9: memref<1x128xf32, #tpu.memory_space<vmem>>, %arg10: memref<16x128xf32, #tpu.memory_space<vmem>>) attributes {dimension_semantics = [#tpu.dimension_semantics<parallel>], iteration_bounds = array<i64: 1>, scalar_prefetch = 0 : i64, scratch_operands = 0 : i64, tpu.core_type = #tpu.core_type<tc>, window_params = [{transform_indices = @transform_0, window_bounds = array<i64: 4, 25, 16, 150>}, {pipeline_mode = #tpu.pipeline_mode<synchronous>, transform_indices = @transform_1, window_bounds = array<i64: 150, 128>}, {pipeline_mode = #tpu.pipeline_mode<synchronous>, transform_indices = @transform_2, window_bounds = array<i64: 1, 128>}, {pipeline_mode = #tpu.pipeline_mode<synchronous>, transform_indices = @transform_3, window_bounds = array<i64: 25, 128, 128>}, {pipeline_mode = #tpu.pipeline_mode<synchronous>, transform_indices = @transform_4, window_bounds = array<i64: 1, 128>}, {pipeline_mode = #tpu.pipeline_mode<synchronous>, transform_indices = @transform_5, window_bounds = array<i64: 128, 128>}, {pipeline_mode = #tpu.pipeline_mode<synchronous>, transform_indices = @transform_6, window_bounds = array<i64: 1, 128>}, {pipeline_mode = #tpu.pipeline_mode<synchronous>, transform_indices = @transform_7, window_bounds = array<i64: 128, 128>}, {pipeline_mode = #tpu.pipeline_mode<synchronous>, transform_indices = @transform_8, window_bounds = array<i64: 1, 128>}, {transform_indices = @transform_9, window_bounds = array<i64: 16, 128>}]} {
    %c0 = arith.constant 0 : index
    %c0_0 = arith.constant 0 : index
    %0 = vector.load %arg2[%c0, %c0_0] : memref<150x128xbf16, #tpu.memory_space<vmem>>, vector<150x128xbf16>
    %c0_1 = arith.constant 0 : index
    %c0_2 = arith.constant 0 : index
    %c0_3 = arith.constant 0 : index
    %c0_4 = arith.constant 0 : index
    %1 = vector.load %arg1[%c0_1, %c0_2, %c0_3, %c0_4] : memref<4x25x16x150xbf16, #tpu.memory_space<vmem>>, vector<1x25x16x150xbf16>
    %2 = vector.shape_cast %1 : vector<1x25x16x150xbf16> to vector<25x16x150xbf16>
    %3 = vector.shape_cast %2 : vector<25x16x150xbf16> to vector<400x150xbf16>
    %cst = arith.constant dense<0.000000e+00> : vector<400x128xf32>
    %4 = tpu.matmul %3, %0, %cst {dimension_numbers = #tpu.dot_dimension_numbers<[1], [0], [0], [1], [0, 0, 1, 1], [], []>} : vector<400x150xbf16>, vector<150x128xbf16>, vector<400x128xf32> -> vector<400x128xf32>
    %c1 = arith.constant 1 : index
    %c0_5 = arith.constant 0 : index
    %c0_6 = arith.constant 0 : index
    %c0_7 = arith.constant 0 : index
    %5 = vector.load %arg1[%c1, %c0_5, %c0_6, %c0_7] : memref<4x25x16x150xbf16, #tpu.memory_space<vmem>>, vector<1x25x16x150xbf16>
    %6 = vector.shape_cast %5 : vector<1x25x16x150xbf16> to vector<25x16x150xbf16>
    %7 = vector.shape_cast %6 : vector<25x16x150xbf16> to vector<400x150xbf16>
    %cst_8 = arith.constant dense<0.000000e+00> : vector<400x128xf32>
    %8 = tpu.matmul %7, %0, %cst_8 {dimension_numbers = #tpu.dot_dimension_numbers<[1], [0], [0], [1], [0, 0, 1, 1], [], []>} : vector<400x150xbf16>, vector<150x128xbf16>, vector<400x128xf32> -> vector<400x128xf32>
    %9 = arith.maximumf %4, %8 : vector<400x128xf32>
    %c2 = arith.constant 2 : index
    %c0_9 = arith.constant 0 : index
    %c0_10 = arith.constant 0 : index
    %c0_11 = arith.constant 0 : index
    %10 = vector.load %arg1[%c2, %c0_9, %c0_10, %c0_11] : memref<4x25x16x150xbf16, #tpu.memory_space<vmem>>, vector<1x25x16x150xbf16>
    %11 = vector.shape_cast %10 : vector<1x25x16x150xbf16> to vector<25x16x150xbf16>
    %12 = vector.shape_cast %11 : vector<25x16x150xbf16> to vector<400x150xbf16>
    %cst_12 = arith.constant dense<0.000000e+00> : vector<400x128xf32>
    %13 = tpu.matmul %12, %0, %cst_12 {dimension_numbers = #tpu.dot_dimension_numbers<[1], [0], [0], [1], [0, 0, 1, 1], [], []>} : vector<400x150xbf16>, vector<150x128xbf16>, vector<400x128xf32> -> vector<400x128xf32>
    %14 = arith.maximumf %9, %13 : vector<400x128xf32>
    %c3 = arith.constant 3 : index
    %c0_13 = arith.constant 0 : index
    %c0_14 = arith.constant 0 : index
    %c0_15 = arith.constant 0 : index
    %15 = vector.load %arg1[%c3, %c0_13, %c0_14, %c0_15] : memref<4x25x16x150xbf16, #tpu.memory_space<vmem>>, vector<1x25x16x150xbf16>
    %16 = vector.shape_cast %15 : vector<1x25x16x150xbf16> to vector<25x16x150xbf16>
    %17 = vector.shape_cast %16 : vector<25x16x150xbf16> to vector<400x150xbf16>
    %cst_16 = arith.constant dense<0.000000e+00> : vector<400x128xf32>
    %18 = tpu.matmul %17, %0, %cst_16 {dimension_numbers = #tpu.dot_dimension_numbers<[1], [0], [0], [1], [0, 0, 1, 1], [], []>} : vector<400x150xbf16>, vector<150x128xbf16>, vector<400x128xf32> -> vector<400x128xf32>
    %19 = arith.maximumf %14, %18 : vector<400x128xf32>
    %c0_17 = arith.constant 0 : index
    %c0_18 = arith.constant 0 : index
    %20 = vector.load %arg3[%c0_17, %c0_18] : memref<1x128xf32, #tpu.memory_space<vmem>>, vector<1x128xf32>
    %21 = vector.broadcast %20 : vector<1x128xf32> to vector<400x128xf32>
    %22 = arith.addf %19, %21 : vector<400x128xf32>
    %cst_19 = arith.constant 0.000000e+00 : f32
    %23 = vector.broadcast %cst_19 : f32 to vector<400x128xf32>
    %24 = arith.maximumf %22, %23 : vector<400x128xf32>
    %cst_20 = arith.constant 0.000000e+00 : f32
    %25 = vector.broadcast %cst_20 : f32 to vector<16x128xf32>
    %26 = vector.extract_strided_slice %24 {offsets = [0, 0], sizes = [16, 128], strides = [1, 1]} : vector<400x128xf32> to vector<16x128xf32>
    %27 = arith.truncf %26 : vector<16x128xf32> to vector<16x128xbf16>
    %c0_21 = arith.constant 0 : index
    %c0_22 = arith.constant 0 : index
    %c0_23 = arith.constant 0 : index
    %28 = vector.load %arg4[%c0_21, %c0_22, %c0_23] : memref<25x128x128xbf16, #tpu.memory_space<vmem>>, vector<1x128x128xbf16>
    %29 = vector.shape_cast %28 : vector<1x128x128xbf16> to vector<128x128xbf16>
    %cst_24 = arith.constant dense<0.000000e+00> : vector<16x128xf32>
    %30 = tpu.matmul %27, %29, %cst_24 {dimension_numbers = #tpu.dot_dimension_numbers<[1], [0], [0], [1], [0, 0, 1, 1], [], []>} : vector<16x128xbf16>, vector<128x128xbf16>, vector<16x128xf32> -> vector<16x128xf32>
    %31 = arith.addf %25, %30 : vector<16x128xf32>
    %32 = vector.extract_strided_slice %24 {offsets = [16, 0], sizes = [16, 128], strides = [1, 1]} : vector<400x128xf32> to vector<16x128xf32>
    %33 = arith.truncf %32 : vector<16x128xf32> to vector<16x128xbf16>
    %c1_25 = arith.constant 1 : index
    %c0_26 = arith.constant 0 : index
    %c0_27 = arith.constant 0 : index
    %34 = vector.load %arg4[%c1_25, %c0_26, %c0_27] : memref<25x128x128xbf16, #tpu.memory_space<vmem>>, vector<1x128x128xbf16>
    %35 = vector.shape_cast %34 : vector<1x128x128xbf16> to vector<128x128xbf16>
    %cst_28 = arith.constant dense<0.000000e+00> : vector<16x128xf32>
    %36 = tpu.matmul %33, %35, %cst_28 {dimension_numbers = #tpu.dot_dimension_numbers<[1], [0], [0], [1], [0, 0, 1, 1], [], []>} : vector<16x128xbf16>, vector<128x128xbf16>, vector<16x128xf32> -> vector<16x128xf32>
    %37 = arith.addf %31, %36 : vector<16x128xf32>
    %38 = vector.extract_strided_slice %24 {offsets = [32, 0], sizes = [16, 128], strides = [1, 1]} : vector<400x128xf32> to vector<16x128xf32>
    %39 = arith.truncf %38 : vector<16x128xf32> to vector<16x128xbf16>
    %c2_29 = arith.constant 2 : index
    %c0_30 = arith.constant 0 : index
    %c0_31 = arith.constant 0 : index
    %40 = vector.load %arg4[%c2_29, %c0_30, %c0_31] : memref<25x128x128xbf16, #tpu.memory_space<vmem>>, vector<1x128x128xbf16>
    %41 = vector.shape_cast %40 : vector<1x128x128xbf16> to vector<128x128xbf16>
    %cst_32 = arith.constant dense<0.000000e+00> : vector<16x128xf32>
    %42 = tpu.matmul %39, %41, %cst_32 {dimension_numbers = #tpu.dot_dimension_numbers<[1], [0], [0], [1], [0, 0, 1, 1], [], []>} : vector<16x128xbf16>, vector<128x128xbf16>, vector<16x128xf32> -> vector<16x128xf32>
    %43 = arith.addf %37, %42 : vector<16x128xf32>
    %44 = vector.extract_strided_slice %24 {offsets = [48, 0], sizes = [16, 128], strides = [1, 1]} : vector<400x128xf32> to vector<16x128xf32>
    %45 = arith.truncf %44 : vector<16x128xf32> to vector<16x128xbf16>
    %c3_33 = arith.constant 3 : index
    %c0_34 = arith.constant 0 : index
    %c0_35 = arith.constant 0 : index
    %46 = vector.load %arg4[%c3_33, %c0_34, %c0_35] : memref<25x128x128xbf16, #tpu.memory_space<vmem>>, vector<1x128x128xbf16>
    %47 = vector.shape_cast %46 : vector<1x128x128xbf16> to vector<128x128xbf16>
    %cst_36 = arith.constant dense<0.000000e+00> : vector<16x128xf32>
    %48 = tpu.matmul %45, %47, %cst_36 {dimension_numbers = #tpu.dot_dimension_numbers<[1], [0], [0], [1], [0, 0, 1, 1], [], []>} : vector<16x128xbf16>, vector<128x128xbf16>, vector<16x128xf32> -> vector<16x128xf32>
    %49 = arith.addf %43, %48 : vector<16x128xf32>
    %50 = vector.extract_strided_slice %24 {offsets = [64, 0], sizes = [16, 128], strides = [1, 1]} : vector<400x128xf32> to vector<16x128xf32>
    %51 = arith.truncf %50 : vector<16x128xf32> to vector<16x128xbf16>
    %c4 = arith.constant 4 : index
    %c0_37 = arith.constant 0 : index
    %c0_38 = arith.constant 0 : index
    %52 = vector.load %arg4[%c4, %c0_37, %c0_38] : memref<25x128x128xbf16, #tpu.memory_space<vmem>>, vector<1x128x128xbf16>
    %53 = vector.shape_cast %52 : vector<1x128x128xbf16> to vector<128x128xbf16>
    %cst_39 = arith.constant dense<0.000000e+00> : vector<16x128xf32>
    %54 = tpu.matmul %51, %53, %cst_39 {dimension_numbers = #tpu.dot_dimension_numbers<[1], [0], [0], [1], [0, 0, 1, 1], [], []>} : vector<16x128xbf16>, vector<128x128xbf16>, vector<16x128xf32> -> vector<16x128xf32>
    %55 = arith.addf %49, %54 : vector<16x128xf32>
    %56 = vector.extract_strided_slice %24 {offsets = [80, 0], sizes = [16, 128], strides = [1, 1]} : vector<400x128xf32> to vector<16x128xf32>
    %57 = arith.truncf %56 : vector<16x128xf32> to vector<16x128xbf16>
    %c5 = arith.constant 5 : index
    %c0_40 = arith.constant 0 : index
    %c0_41 = arith.constant 0 : index
    %58 = vector.load %arg4[%c5, %c0_40, %c0_41] : memref<25x128x128xbf16, #tpu.memory_space<vmem>>, vector<1x128x128xbf16>
    %59 = vector.shape_cast %58 : vector<1x128x128xbf16> to vector<128x128xbf16>
    %cst_42 = arith.constant dense<0.000000e+00> : vector<16x128xf32>
    %60 = tpu.matmul %57, %59, %cst_42 {dimension_numbers = #tpu.dot_dimension_numbers<[1], [0], [0], [1], [0, 0, 1, 1], [], []>} : vector<16x128xbf16>, vector<128x128xbf16>, vector<16x128xf32> -> vector<16x128xf32>
    %61 = arith.addf %55, %60 : vector<16x128xf32>
    %62 = vector.extract_strided_slice %24 {offsets = [96, 0], sizes = [16, 128], strides = [1, 1]} : vector<400x128xf32> to vector<16x128xf32>
    %63 = arith.truncf %62 : vector<16x128xf32> to vector<16x128xbf16>
    %c6 = arith.constant 6 : index
    %c0_43 = arith.constant 0 : index
    %c0_44 = arith.constant 0 : index
    %64 = vector.load %arg4[%c6, %c0_43, %c0_44] : memref<25x128x128xbf16, #tpu.memory_space<vmem>>, vector<1x128x128xbf16>
    %65 = vector.shape_cast %64 : vector<1x128x128xbf16> to vector<128x128xbf16>
    %cst_45 = arith.constant dense<0.000000e+00> : vector<16x128xf32>
    %66 = tpu.matmul %63, %65, %cst_45 {dimension_numbers = #tpu.dot_dimension_numbers<[1], [0], [0], [1], [0, 0, 1, 1], [], []>} : vector<16x128xbf16>, vector<128x128xbf16>, vector<16x128xf32> -> vector<16x128xf32>
    %67 = arith.addf %61, %66 : vector<16x128xf32>
    %68 = vector.extract_strided_slice %24 {offsets = [112, 0], sizes = [16, 128], strides = [1, 1]} : vector<400x128xf32> to vector<16x128xf32>
    %69 = arith.truncf %68 : vector<16x128xf32> to vector<16x128xbf16>
    %c7 = arith.constant 7 : index
    %c0_46 = arith.constant 0 : index
    %c0_47 = arith.constant 0 : index
    %70 = vector.load %arg4[%c7, %c0_46, %c0_47] : memref<25x128x128xbf16, #tpu.memory_space<vmem>>, vector<1x128x128xbf16>
    %71 = vector.shape_cast %70 : vector<1x128x128xbf16> to vector<128x128xbf16>
    %cst_48 = arith.constant dense<0.000000e+00> : vector<16x128xf32>
    %72 = tpu.matmul %69, %71, %cst_48 {dimension_numbers = #tpu.dot_dimension_numbers<[1], [0], [0], [1], [0, 0, 1, 1], [], []>} : vector<16x128xbf16>, vector<128x128xbf16>, vector<16x128xf32> -> vector<16x128xf32>
    %73 = arith.addf %67, %72 : vector<16x128xf32>
    %74 = vector.extract_strided_slice %24 {offsets = [128, 0], sizes = [16, 128], strides = [1, 1]} : vector<400x128xf32> to vector<16x128xf32>
    %75 = arith.truncf %74 : vector<16x128xf32> to vector<16x128xbf16>
    %c8 = arith.constant 8 : index
    %c0_49 = arith.constant 0 : index
    %c0_50 = arith.constant 0 : index
    %76 = vector.load %arg4[%c8, %c0_49, %c0_50] : memref<25x128x128xbf16, #tpu.memory_space<vmem>>, vector<1x128x128xbf16>
    %77 = vector.shape_cast %76 : vector<1x128x128xbf16> to vector<128x128xbf16>
    %cst_51 = arith.constant dense<0.000000e+00> : vector<16x128xf32>
    %78 = tpu.matmul %75, %77, %cst_51 {dimension_numbers = #tpu.dot_dimension_numbers<[1], [0], [0], [1], [0, 0, 1, 1], [], []>} : vector<16x128xbf16>, vector<128x128xbf16>, vector<16x128xf32> -> vector<16x128xf32>
    %79 = arith.addf %73, %78 : vector<16x128xf32>
    %80 = vector.extract_strided_slice %24 {offsets = [144, 0], sizes = [16, 128], strides = [1, 1]} : vector<400x128xf32> to vector<16x128xf32>
    %81 = arith.truncf %80 : vector<16x128xf32> to vector<16x128xbf16>
    %c9 = arith.constant 9 : index
    %c0_52 = arith.constant 0 : index
    %c0_53 = arith.constant 0 : index
    %82 = vector.load %arg4[%c9, %c0_52, %c0_53] : memref<25x128x128xbf16, #tpu.memory_space<vmem>>, vector<1x128x128xbf16>
    %83 = vector.shape_cast %82 : vector<1x128x128xbf16> to vector<128x128xbf16>
    %cst_54 = arith.constant dense<0.000000e+00> : vector<16x128xf32>
    %84 = tpu.matmul %81, %83, %cst_54 {dimension_numbers = #tpu.dot_dimension_numbers<[1], [0], [0], [1], [0, 0, 1, 1], [], []>} : vector<16x128xbf16>, vector<128x128xbf16>, vector<16x128xf32> -> vector<16x128xf32>
    %85 = arith.addf %79, %84 : vector<16x128xf32>
    %86 = vector.extract_strided_slice %24 {offsets = [160, 0], sizes = [16, 128], strides = [1, 1]} : vector<400x128xf32> to vector<16x128xf32>
    %87 = arith.truncf %86 : vector<16x128xf32> to vector<16x128xbf16>
    %c10 = arith.constant 10 : index
    %c0_55 = arith.constant 0 : index
    %c0_56 = arith.constant 0 : index
    %88 = vector.load %arg4[%c10, %c0_55, %c0_56] : memref<25x128x128xbf16, #tpu.memory_space<vmem>>, vector<1x128x128xbf16>
    %89 = vector.shape_cast %88 : vector<1x128x128xbf16> to vector<128x128xbf16>
    %cst_57 = arith.constant dense<0.000000e+00> : vector<16x128xf32>
    %90 = tpu.matmul %87, %89, %cst_57 {dimension_numbers = #tpu.dot_dimension_numbers<[1], [0], [0], [1], [0, 0, 1, 1], [], []>} : vector<16x128xbf16>, vector<128x128xbf16>, vector<16x128xf32> -> vector<16x128xf32>
    %91 = arith.addf %85, %90 : vector<16x128xf32>
    %92 = vector.extract_strided_slice %24 {offsets = [176, 0], sizes = [16, 128], strides = [1, 1]} : vector<400x128xf32> to vector<16x128xf32>
    %93 = arith.truncf %92 : vector<16x128xf32> to vector<16x128xbf16>
    %c11 = arith.constant 11 : index
    %c0_58 = arith.constant 0 : index
    %c0_59 = arith.constant 0 : index
    %94 = vector.load %arg4[%c11, %c0_58, %c0_59] : memref<25x128x128xbf16, #tpu.memory_space<vmem>>, vector<1x128x128xbf16>
    %95 = vector.shape_cast %94 : vector<1x128x128xbf16> to vector<128x128xbf16>
    %cst_60 = arith.constant dense<0.000000e+00> : vector<16x128xf32>
    %96 = tpu.matmul %93, %95, %cst_60 {dimension_numbers = #tpu.dot_dimension_numbers<[1], [0], [0], [1], [0, 0, 1, 1], [], []>} : vector<16x128xbf16>, vector<128x128xbf16>, vector<16x128xf32> -> vector<16x128xf32>
    %97 = arith.addf %91, %96 : vector<16x128xf32>
    %98 = vector.extract_strided_slice %24 {offsets = [192, 0], sizes = [16, 128], strides = [1, 1]} : vector<400x128xf32> to vector<16x128xf32>
    %99 = arith.truncf %98 : vector<16x128xf32> to vector<16x128xbf16>
    %c12 = arith.constant 12 : index
    %c0_61 = arith.constant 0 : index
    %c0_62 = arith.constant 0 : index
    %100 = vector.load %arg4[%c12, %c0_61, %c0_62] : memref<25x128x128xbf16, #tpu.memory_space<vmem>>, vector<1x128x128xbf16>
    %101 = vector.shape_cast %100 : vector<1x128x128xbf16> to vector<128x128xbf16>
    %cst_63 = arith.constant dense<0.000000e+00> : vector<16x128xf32>
    %102 = tpu.matmul %99, %101, %cst_63 {dimension_numbers = #tpu.dot_dimension_numbers<[1], [0], [0], [1], [0, 0, 1, 1], [], []>} : vector<16x128xbf16>, vector<128x128xbf16>, vector<16x128xf32> -> vector<16x128xf32>
    %103 = arith.addf %97, %102 : vector<16x128xf32>
    %104 = vector.extract_strided_slice %24 {offsets = [208, 0], sizes = [16, 128], strides = [1, 1]} : vector<400x128xf32> to vector<16x128xf32>
    %105 = arith.truncf %104 : vector<16x128xf32> to vector<16x128xbf16>
    %c13 = arith.constant 13 : index
    %c0_64 = arith.constant 0 : index
    %c0_65 = arith.constant 0 : index
    %106 = vector.load %arg4[%c13, %c0_64, %c0_65] : memref<25x128x128xbf16, #tpu.memory_space<vmem>>, vector<1x128x128xbf16>
    %107 = vector.shape_cast %106 : vector<1x128x128xbf16> to vector<128x128xbf16>
    %cst_66 = arith.constant dense<0.000000e+00> : vector<16x128xf32>
    %108 = tpu.matmul %105, %107, %cst_66 {dimension_numbers = #tpu.dot_dimension_numbers<[1], [0], [0], [1], [0, 0, 1, 1], [], []>} : vector<16x128xbf16>, vector<128x128xbf16>, vector<16x128xf32> -> vector<16x128xf32>
    %109 = arith.addf %103, %108 : vector<16x128xf32>
    %110 = vector.extract_strided_slice %24 {offsets = [224, 0], sizes = [16, 128], strides = [1, 1]} : vector<400x128xf32> to vector<16x128xf32>
    %111 = arith.truncf %110 : vector<16x128xf32> to vector<16x128xbf16>
    %c14 = arith.constant 14 : index
    %c0_67 = arith.constant 0 : index
    %c0_68 = arith.constant 0 : index
    %112 = vector.load %arg4[%c14, %c0_67, %c0_68] : memref<25x128x128xbf16, #tpu.memory_space<vmem>>, vector<1x128x128xbf16>
    %113 = vector.shape_cast %112 : vector<1x128x128xbf16> to vector<128x128xbf16>
    %cst_69 = arith.constant dense<0.000000e+00> : vector<16x128xf32>
    %114 = tpu.matmul %111, %113, %cst_69 {dimension_numbers = #tpu.dot_dimension_numbers<[1], [0], [0], [1], [0, 0, 1, 1], [], []>} : vector<16x128xbf16>, vector<128x128xbf16>, vector<16x128xf32> -> vector<16x128xf32>
    %115 = arith.addf %109, %114 : vector<16x128xf32>
    %116 = vector.extract_strided_slice %24 {offsets = [240, 0], sizes = [16, 128], strides = [1, 1]} : vector<400x128xf32> to vector<16x128xf32>
    %117 = arith.truncf %116 : vector<16x128xf32> to vector<16x128xbf16>
    %c15 = arith.constant 15 : index
    %c0_70 = arith.constant 0 : index
    %c0_71 = arith.constant 0 : index
    %118 = vector.load %arg4[%c15, %c0_70, %c0_71] : memref<25x128x128xbf16, #tpu.memory_space<vmem>>, vector<1x128x128xbf16>
    %119 = vector.shape_cast %118 : vector<1x128x128xbf16> to vector<128x128xbf16>
    %cst_72 = arith.constant dense<0.000000e+00> : vector<16x128xf32>
    %120 = tpu.matmul %117, %119, %cst_72 {dimension_numbers = #tpu.dot_dimension_numbers<[1], [0], [0], [1], [0, 0, 1, 1], [], []>} : vector<16x128xbf16>, vector<128x128xbf16>, vector<16x128xf32> -> vector<16x128xf32>
    %121 = arith.addf %115, %120 : vector<16x128xf32>
    %122 = vector.extract_strided_slice %24 {offsets = [256, 0], sizes = [16, 128], strides = [1, 1]} : vector<400x128xf32> to vector<16x128xf32>
    %123 = arith.truncf %122 : vector<16x128xf32> to vector<16x128xbf16>
    %c16 = arith.constant 16 : index
    %c0_73 = arith.constant 0 : index
    %c0_74 = arith.constant 0 : index
    %124 = vector.load %arg4[%c16, %c0_73, %c0_74] : memref<25x128x128xbf16, #tpu.memory_space<vmem>>, vector<1x128x128xbf16>
    %125 = vector.shape_cast %124 : vector<1x128x128xbf16> to vector<128x128xbf16>
    %cst_75 = arith.constant dense<0.000000e+00> : vector<16x128xf32>
    %126 = tpu.matmul %123, %125, %cst_75 {dimension_numbers = #tpu.dot_dimension_numbers<[1], [0], [0], [1], [0, 0, 1, 1], [], []>} : vector<16x128xbf16>, vector<128x128xbf16>, vector<16x128xf32> -> vector<16x128xf32>
    %127 = arith.addf %121, %126 : vector<16x128xf32>
    %128 = vector.extract_strided_slice %24 {offsets = [272, 0], sizes = [16, 128], strides = [1, 1]} : vector<400x128xf32> to vector<16x128xf32>
    %129 = arith.truncf %128 : vector<16x128xf32> to vector<16x128xbf16>
    %c17 = arith.constant 17 : index
    %c0_76 = arith.constant 0 : index
    %c0_77 = arith.constant 0 : index
    %130 = vector.load %arg4[%c17, %c0_76, %c0_77] : memref<25x128x128xbf16, #tpu.memory_space<vmem>>, vector<1x128x128xbf16>
    %131 = vector.shape_cast %130 : vector<1x128x128xbf16> to vector<128x128xbf16>
    %cst_78 = arith.constant dense<0.000000e+00> : vector<16x128xf32>
    %132 = tpu.matmul %129, %131, %cst_78 {dimension_numbers = #tpu.dot_dimension_numbers<[1], [0], [0], [1], [0, 0, 1, 1], [], []>} : vector<16x128xbf16>, vector<128x128xbf16>, vector<16x128xf32> -> vector<16x128xf32>
    %133 = arith.addf %127, %132 : vector<16x128xf32>
    %134 = vector.extract_strided_slice %24 {offsets = [288, 0], sizes = [16, 128], strides = [1, 1]} : vector<400x128xf32> to vector<16x128xf32>
    %135 = arith.truncf %134 : vector<16x128xf32> to vector<16x128xbf16>
    %c18 = arith.constant 18 : index
    %c0_79 = arith.constant 0 : index
    %c0_80 = arith.constant 0 : index
    %136 = vector.load %arg4[%c18, %c0_79, %c0_80] : memref<25x128x128xbf16, #tpu.memory_space<vmem>>, vector<1x128x128xbf16>
    %137 = vector.shape_cast %136 : vector<1x128x128xbf16> to vector<128x128xbf16>
    %cst_81 = arith.constant dense<0.000000e+00> : vector<16x128xf32>
    %138 = tpu.matmul %135, %137, %cst_81 {dimension_numbers = #tpu.dot_dimension_numbers<[1], [0], [0], [1], [0, 0, 1, 1], [], []>} : vector<16x128xbf16>, vector<128x128xbf16>, vector<16x128xf32> -> vector<16x128xf32>
    %139 = arith.addf %133, %138 : vector<16x128xf32>
    %140 = vector.extract_strided_slice %24 {offsets = [304, 0], sizes = [16, 128], strides = [1, 1]} : vector<400x128xf32> to vector<16x128xf32>
    %141 = arith.truncf %140 : vector<16x128xf32> to vector<16x128xbf16>
    %c19 = arith.constant 19 : index
    %c0_82 = arith.constant 0 : index
    %c0_83 = arith.constant 0 : index
    %142 = vector.load %arg4[%c19, %c0_82, %c0_83] : memref<25x128x128xbf16, #tpu.memory_space<vmem>>, vector<1x128x128xbf16>
    %143 = vector.shape_cast %142 : vector<1x128x128xbf16> to vector<128x128xbf16>
    %cst_84 = arith.constant dense<0.000000e+00> : vector<16x128xf32>
    %144 = tpu.matmul %141, %143, %cst_84 {dimension_numbers = #tpu.dot_dimension_numbers<[1], [0], [0], [1], [0, 0, 1, 1], [], []>} : vector<16x128xbf16>, vector<128x128xbf16>, vector<16x128xf32> -> vector<16x128xf32>
    %145 = arith.addf %139, %144 : vector<16x128xf32>
    %146 = vector.extract_strided_slice %24 {offsets = [320, 0], sizes = [16, 128], strides = [1, 1]} : vector<400x128xf32> to vector<16x128xf32>
    %147 = arith.truncf %146 : vector<16x128xf32> to vector<16x128xbf16>
    %c20 = arith.constant 20 : index
    %c0_85 = arith.constant 0 : index
    %c0_86 = arith.constant 0 : index
    %148 = vector.load %arg4[%c20, %c0_85, %c0_86] : memref<25x128x128xbf16, #tpu.memory_space<vmem>>, vector<1x128x128xbf16>
    %149 = vector.shape_cast %148 : vector<1x128x128xbf16> to vector<128x128xbf16>
    %cst_87 = arith.constant dense<0.000000e+00> : vector<16x128xf32>
    %150 = tpu.matmul %147, %149, %cst_87 {dimension_numbers = #tpu.dot_dimension_numbers<[1], [0], [0], [1], [0, 0, 1, 1], [], []>} : vector<16x128xbf16>, vector<128x128xbf16>, vector<16x128xf32> -> vector<16x128xf32>
    %151 = arith.addf %145, %150 : vector<16x128xf32>
    %152 = vector.extract_strided_slice %24 {offsets = [336, 0], sizes = [16, 128], strides = [1, 1]} : vector<400x128xf32> to vector<16x128xf32>
    %153 = arith.truncf %152 : vector<16x128xf32> to vector<16x128xbf16>
    %c21 = arith.constant 21 : index
    %c0_88 = arith.constant 0 : index
    %c0_89 = arith.constant 0 : index
    %154 = vector.load %arg4[%c21, %c0_88, %c0_89] : memref<25x128x128xbf16, #tpu.memory_space<vmem>>, vector<1x128x128xbf16>
    %155 = vector.shape_cast %154 : vector<1x128x128xbf16> to vector<128x128xbf16>
    %cst_90 = arith.constant dense<0.000000e+00> : vector<16x128xf32>
    %156 = tpu.matmul %153, %155, %cst_90 {dimension_numbers = #tpu.dot_dimension_numbers<[1], [0], [0], [1], [0, 0, 1, 1], [], []>} : vector<16x128xbf16>, vector<128x128xbf16>, vector<16x128xf32> -> vector<16x128xf32>
    %157 = arith.addf %151, %156 : vector<16x128xf32>
    %158 = vector.extract_strided_slice %24 {offsets = [352, 0], sizes = [16, 128], strides = [1, 1]} : vector<400x128xf32> to vector<16x128xf32>
    %159 = arith.truncf %158 : vector<16x128xf32> to vector<16x128xbf16>
    %c22 = arith.constant 22 : index
    %c0_91 = arith.constant 0 : index
    %c0_92 = arith.constant 0 : index
    %160 = vector.load %arg4[%c22, %c0_91, %c0_92] : memref<25x128x128xbf16, #tpu.memory_space<vmem>>, vector<1x128x128xbf16>
    %161 = vector.shape_cast %160 : vector<1x128x128xbf16> to vector<128x128xbf16>
    %cst_93 = arith.constant dense<0.000000e+00> : vector<16x128xf32>
    %162 = tpu.matmul %159, %161, %cst_93 {dimension_numbers = #tpu.dot_dimension_numbers<[1], [0], [0], [1], [0, 0, 1, 1], [], []>} : vector<16x128xbf16>, vector<128x128xbf16>, vector<16x128xf32> -> vector<16x128xf32>
    %163 = arith.addf %157, %162 : vector<16x128xf32>
    %164 = vector.extract_strided_slice %24 {offsets = [368, 0], sizes = [16, 128], strides = [1, 1]} : vector<400x128xf32> to vector<16x128xf32>
    %165 = arith.truncf %164 : vector<16x128xf32> to vector<16x128xbf16>
    %c23 = arith.constant 23 : index
    %c0_94 = arith.constant 0 : index
    %c0_95 = arith.constant 0 : index
    %166 = vector.load %arg4[%c23, %c0_94, %c0_95] : memref<25x128x128xbf16, #tpu.memory_space<vmem>>, vector<1x128x128xbf16>
    %167 = vector.shape_cast %166 : vector<1x128x128xbf16> to vector<128x128xbf16>
    %cst_96 = arith.constant dense<0.000000e+00> : vector<16x128xf32>
    %168 = tpu.matmul %165, %167, %cst_96 {dimension_numbers = #tpu.dot_dimension_numbers<[1], [0], [0], [1], [0, 0, 1, 1], [], []>} : vector<16x128xbf16>, vector<128x128xbf16>, vector<16x128xf32> -> vector<16x128xf32>
    %169 = arith.addf %163, %168 : vector<16x128xf32>
    %170 = vector.extract_strided_slice %24 {offsets = [384, 0], sizes = [16, 128], strides = [1, 1]} : vector<400x128xf32> to vector<16x128xf32>
    %171 = arith.truncf %170 : vector<16x128xf32> to vector<16x128xbf16>
    %c24 = arith.constant 24 : index
    %c0_97 = arith.constant 0 : index
    %c0_98 = arith.constant 0 : index
    %172 = vector.load %arg4[%c24, %c0_97, %c0_98] : memref<25x128x128xbf16, #tpu.memory_space<vmem>>, vector<1x128x128xbf16>
    %173 = vector.shape_cast %172 : vector<1x128x128xbf16> to vector<128x128xbf16>
    %cst_99 = arith.constant dense<0.000000e+00> : vector<16x128xf32>
    %174 = tpu.matmul %171, %173, %cst_99 {dimension_numbers = #tpu.dot_dimension_numbers<[1], [0], [0], [1], [0, 0, 1, 1], [], []>} : vector<16x128xbf16>, vector<128x128xbf16>, vector<16x128xf32> -> vector<16x128xf32>
    %175 = arith.addf %169, %174 : vector<16x128xf32>
    %c0_100 = arith.constant 0 : index
    %c0_101 = arith.constant 0 : index
    %176 = vector.load %arg5[%c0_100, %c0_101] : memref<1x128xf32, #tpu.memory_space<vmem>>, vector<1x128xf32>
    %177 = vector.broadcast %176 : vector<1x128xf32> to vector<16x128xf32>
    %178 = arith.addf %175, %177 : vector<16x128xf32>
    %cst_102 = arith.constant 0.000000e+00 : f32
    %179 = vector.broadcast %cst_102 : f32 to vector<16x128xf32>
    %180 = arith.maximumf %178, %179 : vector<16x128xf32>
    %181 = arith.truncf %180 : vector<16x128xf32> to vector<16x128xbf16>
    %c0_103 = arith.constant 0 : index
    %c0_104 = arith.constant 0 : index
    %182 = vector.load %arg6[%c0_103, %c0_104] : memref<128x128xbf16, #tpu.memory_space<vmem>>, vector<128x128xbf16>
    %cst_105 = arith.constant dense<0.000000e+00> : vector<16x128xf32>
    %183 = tpu.matmul %181, %182, %cst_105 {dimension_numbers = #tpu.dot_dimension_numbers<[1], [0], [0], [1], [0, 0, 1, 1], [], []>} : vector<16x128xbf16>, vector<128x128xbf16>, vector<16x128xf32> -> vector<16x128xf32>
    %c0_106 = arith.constant 0 : index
    %c0_107 = arith.constant 0 : index
    %184 = vector.load %arg7[%c0_106, %c0_107] : memref<1x128xf32, #tpu.memory_space<vmem>>, vector<1x128xf32>
    %185 = vector.broadcast %184 : vector<1x128xf32> to vector<16x128xf32>
    %186 = arith.addf %183, %185 : vector<16x128xf32>
    %cst_108 = arith.constant 0.000000e+00 : f32
    %187 = vector.broadcast %cst_108 : f32 to vector<16x128xf32>
    %188 = arith.maximumf %186, %187 : vector<16x128xf32>
    %189 = arith.truncf %188 : vector<16x128xf32> to vector<16x128xbf16>
    %c0_109 = arith.constant 0 : index
    %c0_110 = arith.constant 0 : index
    %190 = vector.load %arg8[%c0_109, %c0_110] : memref<128x128xbf16, #tpu.memory_space<vmem>>, vector<128x128xbf16>
    %cst_111 = arith.constant dense<0.000000e+00> : vector<16x128xf32>
    %191 = tpu.matmul %189, %190, %cst_111 {dimension_numbers = #tpu.dot_dimension_numbers<[1], [0], [0], [1], [0, 0, 1, 1], [], []>} : vector<16x128xbf16>, vector<128x128xbf16>, vector<16x128xf32> -> vector<16x128xf32>
    %c0_112 = arith.constant 0 : index
    %c0_113 = arith.constant 0 : index
    %192 = vector.load %arg9[%c0_112, %c0_113] : memref<1x128xf32, #tpu.memory_space<vmem>>, vector<1x128xf32>
    %193 = vector.broadcast %192 : vector<1x128xf32> to vector<16x128xf32>
    %194 = arith.addf %191, %193 : vector<16x128xf32>
    %c0_114 = arith.constant 0 : index
    %c0_115 = arith.constant 0 : index
    %195 = vector.load %arg10[%c0_114, %c0_115] : memref<16x128xf32, #tpu.memory_space<vmem>>, vector<16x128xf32>
    tpu.vector_store %arg10[%c0_114, %c0_115], %194 {strides = array<i32>} : memref<16x128xf32, #tpu.memory_space<vmem>>, vector<16x128xf32>,
    return
  }
  func.func @transform_0(%arg0: i32) -> (i32, i32, i32, i32) {
    %c0_i32 = arith.constant 0 : i32
    %c0_i32_0 = arith.constant 0 : i32
    %c0_i32_1 = arith.constant 0 : i32
    %c0_i32_2 = arith.constant 0 : i32
    return %c0_i32, %c0_i32_0, %arg0, %c0_i32_1 : i32, i32, i32, i32
  }
  func.func @transform_1(%arg0: i32) -> (i32, i32) {
    %c0_i32 = arith.constant 0 : i32
    %c0_i32_0 = arith.constant 0 : i32
    %c0_i32_1 = arith.constant 0 : i32
    return %c0_i32, %c0_i32_0 : i32, i32
  }
  func.func @transform_2(%arg0: i32) -> (i32, i32) {
    %c0_i32 = arith.constant 0 : i32
    %c0_i32_0 = arith.constant 0 : i32
    %c0_i32_1 = arith.constant 0 : i32
    return %c0_i32, %c0_i32_0 : i32, i32
  }
  func.func @transform_3(%arg0: i32) -> (i32, i32, i32) {
    %c0_i32 = arith.constant 0 : i32
    %c0_i32_0 = arith.constant 0 : i32
    %c0_i32_1 = arith.constant 0 : i32
    %c0_i32_2 = arith.constant 0 : i32
    return %c0_i32, %c0_i32_0, %c0_i32_1 : i32, i32, i32
  }
  func.func @transform_4(%arg0: i32) -> (i32, i32) {
    %c0_i32 = arith.constant 0 : i32
    %c0_i32_0 = arith.constant 0 : i32
    %c0_i32_1 = arith.constant 0 : i32
    return %c0_i32, %c0_i32_0 : i32, i32
  }
  func.func @transform_5(%arg0: i32) -> (i32, i32) {
    %c0_i32 = arith.constant 0 : i32
    %c0_i32_0 = arith.constant 0 : i32
    %c0_i32_1 = arith.constant 0 : i32
    return %c0_i32, %c0_i32_0 : i32, i32
  }
  func.func @transform_6(%arg0: i32) -> (i32, i32) {
    %c0_i32 = arith.constant 0 : i32
    %c0_i32_0 = arith.constant 0 : i32
    %c0_i32_1 = arith.constant 0 : i32
    return %c0_i32, %c0_i32_0 : i32, i32
  }
  func.func @transform_7(%arg0: i32) -> (i32, i32) {
    %c0_i32 = arith.constant 0 : i32
    %c0_i32_0 = arith.constant 0 : i32
    %c0_i32_1 = arith.constant 0 : i32
    return %c0_i32, %c0_i32_0 : i32, i32
  }
  func.func @transform_8(%arg0: i32) -> (i32, i32) {
    %c0_i32 = arith.constant 0 : i32
    %c0_i32_0 = arith.constant 0 : i32
    %c0_i32_1 = arith.constant 0 : i32
    return %c0_i32, %c0_i32_0 : i32, i32
  }
  func.func @transform_9(%arg0: i32) -> (i32, i32) {
    %c0_i32 = arith.constant 0 : i32
    %c0_i32_0 = arith.constant 0 : i32
    return %arg0, %c0_i32 : i32, i32
  }
}

</mosaic_0001>

<llo_original>
// kernel: net_forward.2
$region0: #{net_forward.2}
  #allocation0 [shape = 'u32[]', space=smem, size = 0x4, offset = 0x4, fixed_abs, tag = 'smem constant byte address 0x4 - core index']
  #allocation1 [shape = 'u32[72,128]{1,0:T(1,128)}', space=vmem, size = 0x9000, scoped, tag = 'internal scratch']
  %s0 = inlined_call_operand.vmem [shape: bf16[4,416,75], index: 0, kind: input, shape index: {}]
  %s1 = inlined_call_operand.vmem [shape: bf16[75,128], index: 1, kind: input, shape index: {}]
  %s2 = inlined_call_operand.vmem [shape: f32[1,128], index: 2, kind: input, shape index: {}]
  %s3 = inlined_call_operand.vmem [shape: bf16[416,128], index: 3, kind: output, shape index: {}]
  %s4 = sld [smem:[#allocation0]]
  $region86: #{net_forward.2} parent=0
    _
  %s6 = ssub.s32 1, %s4
  %s7 = scalar_select 0, %s6, %s4
  $region1: #{net_forward.2} parent=0
    #allocation2 [shape = 'u8[425984]{0}', space=vmem, size = 0x68000, scoped, tag = 'input window, operand 0']
    loop: start=0, step=1, limit=4
    $region2: #{net_forward.2} parent=1 // loop_pre_header
      _
    $region3: #{net_forward.2} parent=1 // loop_header
      %s9 = sphi 0, %s13
      %p10 = scmp.ge.s32.totalorder %s9, 4
      %s19 = sphi 0, %s21
      %s22 = sphi 0, %s19
      %s23 = sphi 0, %s22
      %s39 = sphi 0, %s23
      %s43 = sphi 0, %s43
      %s45 = sphi 0, %s43
      %s46 = sphi 0, %s45
      %s60 = sphi 0, %s46
      %s64 = sphi 0, %s64
      %s66 = sphi 0, %s64
      %s67 = sphi 0, %s66
      %s81 = sphi 0, %s67
      %s87 = sphi 0, %s89
      %s90 = sphi 0, %s87
      %s91 = sphi 0, %s90
      %s107 = sphi 0, %s91
    $region4: #{net_forward.2} parent=1 // loop_header_branch
      %12 = sbr.rel (%p10) target = $region8
    $region5: #{net_forward.2} parent=1 // loop_body
      %s14 = ssub.s32 %s9, 1
      %s15 = ssub.s32 %s9, 2
      %s16 = sadd.s32 %s9, 1
      %s17 = ssub.s32 %s9, %s16
      %p18 = scmp.eq.s32.totalorder %s17, 0
      %s20 = sadd.s32 %s19, 1
      %s21 = scalar_select %p18, %s19, %s20
      %p24 = pneg %p18
      %p25 = scmp.eq.s32.totalorder %s9, 1
      %p26 = por %p24, %p25
      %p27 = scmp.ne.s32.totalorder %s19, %s22
      %p28 = scmp.eq.s32.totalorder %s9, 0
      %p29 = por %p27, %p28
      %p30 = scmp.ne.s32.totalorder %s19, %s22
      %p31 = scmp.eq.s32.totalorder %s14, 1
      %p32 = por %p30, %p31
      %p33 = scmp.ne.s32.totalorder %s22, %s23
      %p34 = scmp.eq.s32.totalorder %s14, 0
      %p35 = por %p33, %p34
      %p36 = scmp.ne.s32.totalorder %s22, %s23
      %p37 = scmp.eq.s32.totalorder %s15, 1
      %p38 = por %p36, %p37
      %p40 = scmp.ne.s32.totalorder %s23, %s39
      %p41 = scmp.eq.s32.totalorder %s15, 0
      %p42 = por %p40, %p41
      %s44 = sadd.s32 %s43, 1
      %p47 = scmp.eq.s32.totalorder %s9, 1
      %p48 = scmp.ne.s32.totalorder %s43, %s45
      %p49 = scmp.eq.s32.totalorder %s9, 0
      %p50 = por %p48, %p49
      %p51 = scmp.ne.s32.totalorder %s43, %s45
      %p52 = scmp.eq.s32.totalorder %s14, 1
      %p53 = por %p51, %p52
      %p54 = scmp.ne.s32.totalorder %s45, %s46
      %p55 = scmp.eq.s32.totalorder %s14, 0
      %p56 = por %p54, %p55
      %p57 = scmp.ne.s32.totalorder %s45, %s46
      %p58 = scmp.eq.s32.totalorder %s15, 1
      %p59 = por %p57, %p58
      %p61 = scmp.ne.s32.totalorder %s46, %s60
      %p62 = scmp.eq.s32.totalorder %s15, 0
      %p63 = por %p61, %p62
      %s65 = sadd.s32 %s64, 1
      %p68 = scmp.eq.s32.totalorder %s9, 1
      %p69 = scmp.ne.s32.totalorder %s64, %s66
      %p70 = scmp.eq.s32.totalorder %s9, 0
      %p71 = por %p69, %p70
      %p72 = scmp.ne.s32.totalorder %s64, %s66
      %p73 = scmp.eq.s32.totalorder %s14, 1
      %p74 = por %p72, %p73
      %p75 = scmp.ne.s32.totalorder %s66, %s67
      %p76 = scmp.eq.s32.totalorder %s14, 0
      %p77 = por %p75, %p76
      %p78 = scmp.ne.s32.totalorder %s66, %s67
      %p79 = scmp.eq.s32.totalorder %s15, 1
      %p80 = por %p78, %p79
      %p82 = scmp.ne.s32.totalorder %s67, %s81
      %p83 = scmp.eq.s32.totalorder %s15, 0
      %p84 = por %p82, %p83
      %s85 = ssub.s32 %s9, %s16
      %p86 = scmp.eq.s32.totalorder %s85, 0
      %s88 = sadd.s32 %s87, 1
      %s89 = scalar_select %p86, %s87, %s88
      %p92 = pneg %p86
      %p93 = scmp.eq.s32.totalorder %s9, 1
      %p94 = por %p92, %p93
      %p95 = scmp.ne.s32.totalorder %s87, %s90
      %p96 = scmp.eq.s32.totalorder %s9, 0
      %p97 = por %p95, %p96
      %p98 = scmp.ne.s32.totalorder %s87, %s90
      %p99 = scmp.eq.s32.totalorder %s14, 1
      %p100 = por %p98, %p99
      %p101 = scmp.ne.s32.totalorder %s90, %s91
      %p102 = scmp.eq.s32.totalorder %s14, 0
      %p103 = por %p101, %p102
      %p104 = scmp.ne.s32.totalorder %s90, %s91
      %p105 = scmp.eq.s32.totalorder %s15, 1
      %p106 = por %p104, %p105
      %p108 = scmp.ne.s32.totalorder %s91, %s107
      %p109 = scmp.eq.s32.totalorder %s15, 0
      %p110 = por %p108, %p109
      %p111 = scmp.le.s32.totalorder 1, %s9
      %p112 = scmp.lt.s32.totalorder %s9, 3
      %p113 = pnand %p111, %p112
      %p114 = pneg %p113
      // Predicated region
      $region9: #{net_forward.2} parent=5 // pred_check
        _
      $region10: #{net_forward.2} parent=5 // pred_check_branch
        %116 = sbr.rel (%p113) target = $region12
      $region11: #{net_forward.2} parent=5 // pred_region
        %s117 = ssub.s32 %s9, 1
        // Predicated region
        $region13: #{net_forward.2} parent=11 // pred_check
          %p118 = pneg %p56
        $region14: #{net_forward.2} parent=11 // pred_check_branch
          %120 = sbr.rel (%p118) target = $region16
        $region15: #{net_forward.2} parent=11 // pred_region
          _
        $region16: #{net_forward.2} parent=11 // pred_fallthru
          _
        // Predicated region
        $region17: #{net_forward.2} parent=11 // pred_check
          %p121 = pneg %p77
        $region18: #{net_forward.2} parent=11 // pred_check_branch
          %123 = sbr.rel (%p121) target = $region20
        $region19: #{net_forward.2} parent=11 // pred_region
          _
        $region20: #{net_forward.2} parent=11 // pred_fallthru
          _
      $region12: #{net_forward.2} parent=5 // pred_fallthru
        _
      %p124 = scmp.lt.s32.totalorder %s9, 2
      // Predicated region
      $region21: #{net_forward.2} parent=5 // pred_check
        %p125 = pneg %p124
      $region22: #{net_forward.2} parent=5 // pred_check_branch
        %127 = sbr.rel (%p125) target = $region24
      $region23: #{net_forward.2} parent=5 // pred_region
        // Predicated region
        $region25: #{net_forward.2} parent=23 // pred_check
          %p128 = pneg %p29
        $region26: #{net_forward.2} parent=23 // pred_check_branch
          %130 = sbr.rel (%p128) target = $region28
        $region27: #{net_forward.2} parent=23 // pred_region
          %s131 = sand.u32 %s19, 1
          %s132 = sand.u32 %s19, 1
          %s133 = smul.addr %s132, 416
          %s134 = scalar_lea.vmem [#allocation2], %s133
          %s135 = smul.u32 26, %s9
          %s136 = smul.addr %s135, 4
          %s137 = scalar_lea.vmem %s0, %s136
          // Predicated region
          $region29: #{net_forward.2} parent=27 // pred_check
            _
          $region30: #{net_forward.2} parent=27 // pred_check_branch
            %139 = sbr.rel (0) target = $region32
          $region31: #{net_forward.2} parent=27 // pred_region
            // Predicated region
            $region33: #{net_forward.2} parent=31 // pred_check
              _
            $region34: #{net_forward.2} parent=31 // pred_check_branch
              %141 = sbr.rel target = $region36
            $region35: #{net_forward.2} parent=31 // pred_region
              // Predicated region
              $region48: #{net_forward.2} parent=35 // pred_check
                _
              $region49: #{net_forward.2} parent=35 // pred_check_branch
                %363 = sbr.rel (0) target = $region51
              $region50: #{net_forward.2} parent=35 // pred_region
                loop: start=0, step=1, limit=1
                $region52: #{net_forward.2} parent=50 // loop_pre_header
                  _
                $region53: #{net_forward.2} parent=50 // loop_header
                  %s365 = sphi 0, %s369
                  %p366 = scmp.ge.s32.totalorder %s365, 1
                  %s370 = sphi %s137, %s137
                  %s371 = sphi %s134, %s134
                $region54: #{net_forward.2} parent=50 // loop_header_branch
                  %368 = sbr.rel (%p366) target = $region58
                $region55: #{net_forward.2} parent=50 // loop_body
                  _
                $region56: #{net_forward.2} parent=50 // loop_footer
                  %s369 = sadd.s32 1, %s365
                $region57: #{net_forward.2} parent=50 // loop_footer_branch
                  %364 = sbr.rel target = $region53
                $region58: #{net_forward.2} parent=50 // loop_exit
                  _
                %s373 = ssub.s32 16, 1
                loop: start=0, step=1, limit=1
                $region59: #{net_forward.2} parent=50 // loop_pre_header
                  _
                $region60: #{net_forward.2} parent=50 // loop_header
                  %s375 = sphi 0, %s379
                  %p376 = scmp.ge.s32.totalorder %s375, 1
                  %s380 = sphi %s137, %s137
                  %s381 = sphi %s134, %s134
                $region61: #{net_forward.2} parent=50 // loop_header_branch
                  %378 = sbr.rel (%p376) target = $region65
                $region62: #{net_forward.2} parent=50 // loop_body
                  %v382 = vld [vmem:[%s380] sm:%s373]
                  %383 = vst [vmem:[%s381] sm:%s373] %v382
                  %v384 = vld [vmem:[%s380 + $0x4] sm:%s373]
                  %385 = vst [vmem:[%s381 + $0x4] sm:%s373] %v384
                  %v386 = vld [vmem:[%s380 + $0x8] sm:%s373]
                  %387 = vst [vmem:[%s381 + $0x8] sm:%s373] %v386
                  %v388 = vld [vmem:[%s380 + $0xc] sm:%s373]
                  %389 = vst [vmem:[%s381 + $0xc] sm:%s373] %v388
                  %v390 = vld [vmem:[%s380 + $0x10] sm:%s373]
                  %391 = vst [vmem:[%s381 + $0x10] sm:%s373] %v390
                  %v392 = vld [vmem:[%s380 + $0x14] sm:%s373]
                  %393 = vst [vmem:[%s381 + $0x14] sm:%s373] %v392
                  %v394 = vld [vmem:[%s380 + $0x18] sm:%s373]
                  %395 = vst [vmem:[%s381 + $0x18] sm:%s373] %v394
                  %v396 = vld [vmem:[%s380 + $0x1c] sm:%s373]
                  %397 = vst [vmem:[%s381 + $0x1c] sm:%s373] %v396
                  %v398 = vld [vmem:[%s380 + $0x20] sm:%s373]
                  %399 = vst [vmem:[%s381 + $0x20] sm:%s373] %v398
                  %v400 = vld [vmem:[%s380 + $0x24] sm:%s373]
                  %401 = vst [vmem:[%s381 + $0x24] sm:%s373] %v400
                  %v402 = vld [vmem:[%s380 + $0x28] sm:%s373]
                  %403 = vst [vmem:[%s381 + $0x28] sm:%s373] %v402
                  %v404 = vld [vmem:[%s380 + $0x2c] sm:%s373]
                  %405 = vst [vmem:[%s381 + $0x2c] sm:%s373] %v404
                  %v406 = vld [vmem:[%s380 + $0x30] sm:%s373]
                  %407 = vst [vmem:[%s381 + $0x30] sm:%s373] %v406
                  %v408 = vld [vmem:[%s380 + $0x34] sm:%s373]
                  %409 = vst [vmem:[%s381 + $0x34] sm:%s373] %v408
                  %v410 = vld [vmem:[%s380 + $0x38] sm:%s373]
                  %411 = vst [vmem:[%s381 + $0x38] sm:%s373] %v410
                  %v412 = vld [vmem:[%s380 + $0x3c] sm:%s373]
                  %413 = vst [vmem:[%s381 + $0x3c] sm:%s373] %v412
                  %v414 = vld [vmem:[%s380 + $0x40] sm:%s373]
                  %415 = vst [vmem:[%s381 + $0x40] sm:%s373] %v414
                  %v416 = vld [vmem:[%s380 + $0x44] sm:%s373]
                  %417 = vst [vmem:[%s381 + $0x44] sm:%s373] %v416
                  %v418 = vld [vmem:[%s380 + $0x48] sm:%s373]
                  %419 = vst [vmem:[%s381 + $0x48] sm:%s373] %v418
                  %v420 = vld [vmem:[%s380 + $0x4c] sm:%s373]
                  %421 = vst [vmem:[%s381 + $0x4c] sm:%s373] %v420
                  %v422 = vld [vmem:[%s380 + $0x50] sm:%s373]
                  %423 = vst [vmem:[%s381 + $0x50] sm:%s373] %v422
                  %v424 = vld [vmem:[%s380 + $0x54] sm:%s373]
                  %425 = vst [vmem:[%s381 + $0x54] sm:%s373] %v424
                  %v426 = vld [vmem:[%s380 + $0x58] sm:%s373]
                  %427 = vst [vmem:[%s381 + $0x58] sm:%s373] %v426
                  %v428 = vld [vmem:[%s380 + $0x5c] sm:%s373]
                  %429 = vst [vmem:[%s381 + $0x5c] sm:%s373] %v428
                  %v430 = vld [vmem:[%s380 + $0x60] sm:%s373]
                  %431 = vst [vmem:[%s381 + $0x60] sm:%s373] %v430
                  %v432 = vld [vmem:[%s380 + $0x64] sm:%s373]
                  %433 = vst [vmem:[%s381 + $0x64] sm:%s373] %v432
                  %v434 = vld [vmem:[%s380 + $0xd0] sm:%s373]
                  %435 = vst [vmem:[%s381 + $0x68] sm:%s373] %v434
                  %v436 = vld [vmem:[%s380 + $0xd4] sm:%s373]
                  %437 = vst [vmem:[%s381 + $0x6c] sm:%s373] %v436
                  %v438 = vld [vmem:[%s380 + $0xd8] sm:%s373]
                  %439 = vst [vmem:[%s381 + $0x70] sm:%s373] %v438
                  %v440 = vld [vmem:[%s380 + $0xdc] sm:%s373]
                  %441 = vst [vmem:[%s381 + $0x74] sm:%s373] %v440
                  %v442 = vld [vmem:[%s380 + $0xe0] sm:%s373]
                  %443 = vst [vmem:[%s381 + $0x78] sm:%s373] %v442
                  %v444 = vld [vmem:[%s380 + $0xe4] sm:%s373]
                  %445 = vst [vmem:[%s381 + $0x7c] sm:%s373] %v444
                  %v446 = vld [vmem:[%s380 + $0xe8] sm:%s373]
                  %447 = vst [vmem:[%s381 + $0x80] sm:%s373] %v446
                  %v448 = vld [vmem:[%s380 + $0xec] sm:%s373]
                  %449 = vst [vmem:[%s381 + $0x84] sm:%s373] %v448
                  %v450 = vld [vmem:[%s380 + $0xf0] sm:%s373]
                  %451 = vst [vmem:[%s381 + $0x88] sm:%s373] %v450
                  %v452 = vld [vmem:[%s380 + $0xf4] sm:%s373]
                  %453 = vst [vmem:[%s381 + $0x8c] sm:%s373] %v452
                  %v454 = vld [vmem:[%s380 + $0xf8] sm:%s373]
                  %455 = vst [vmem:[%s381 + $0x90] sm:%s373] %v454
                  %v456 = vld [vmem:[%s380 + $0xfc] sm:%s373]
                  %457 = vst [vmem:[%s381 + $0x94] sm:%s373] %v456
                  %v458 = vld [vmem:[%s380 + $0x100] sm:%s373]
                  %459 = vst [vmem:[%s381 + $0x98] sm:%s373] %v458
                  %v460 = vld [vmem:[%s380 + $0x104] sm:%s373]
                  %461 = vst [vmem:[%s381 + $0x9c] sm:%s373] %v460
                  %v462 = vld [vmem:[%s380 + $0x108] sm:%s373]
                  %463 = vst [vmem:[%s381 + $0xa0] sm:%s373] %v462
                  %v464 = vld [vmem:[%s380 + $0x10c] sm:%s373]
                  %465 = vst [vmem:[%s381 + $0xa4] sm:%s373] %v464
                  %v466 = vld [vmem:[%s380 + $0x110] sm:%s373]
                  %467 = vst [vmem:[%s381 + $0xa8] sm:%s373] %v466
                  %v468 = vld [vmem:[%s380 + $0x114] sm:%s373]
                  %469 = vst [vmem:[%s381 + $0xac] sm:%s373] %v468
                  %v470 = vld [vmem:[%s380 + $0x118] sm:%s373]
                  %471 = vst [vmem:[%s381 + $0xb0] sm:%s373] %v470
                  %v472 = vld [vmem:[%s380 + $0x11c] sm:%s373]
                  %473 = vst [vmem:[%s381 + $0xb4] sm:%s373] %v472
                  %v474 = vld [vmem:[%s380 + $0x120] sm:%s373]
                  %475 = vst [vmem:[%s381 + $0xb8] sm:%s373] %v474
                  %v476 = vld [vmem:[%s380 + $0x124] sm:%s373]
                  %477 = vst [vmem:[%s381 + $0xbc] sm:%s373] %v476
                  %v478 = vld [vmem:[%s380 + $0x128] sm:%s373]
                  %479 = vst [vmem:[%s381 + $0xc0] sm:%s373] %v478
                  %v480 = vld [vmem:[%s380 + $0x12c] sm:%s373]
                  %481 = vst [vmem:[%s381 + $0xc4] sm:%s373] %v480
                  %v482 = vld [vmem:[%s380 + $0x130] sm:%s373]
                  %483 = vst [vmem:[%s381 + $0xc8] sm:%s373] %v482
                  %v484 = vld [vmem:[%s380 + $0x134] sm:%s373]
                  %485 = vst [vmem:[%s381 + $0xcc] sm:%s373] %v484
                  %v486 = vld [vmem:[%s380 + $0x1a0] sm:%s373]
                  %487 = vst [vmem:[%s381 + $0xd0] sm:%s373] %v486
                  %v488 = vld [vmem:[%s380 + $0x1a4] sm:%s373]
                  %489 = vst [vmem:[%s381 + $0xd4] sm:%s373] %v488
                  %v490 = vld [vmem:[%s380 + $0x1a8] sm:%s373]
                  %491 = vst [vmem:[%s381 + $0xd8] sm:%s373] %v490
                  %v492 = vld [vmem:[%s380 + $0x1ac] sm:%s373]
                  %493 = vst [vmem:[%s381 + $0xdc] sm:%s373] %v492
                  %v494 = vld [vmem:[%s380 + $0x1b0] sm:%s373]
                  %495 = vst [vmem:[%s381 + $0xe0] sm:%s373] %v494
                  %v496 = vld [vmem:[%s380 + $0x1b4] sm:%s373]
                  %497 = vst [vmem:[%s381 + $0xe4] sm:%s373] %v496
                  %v498 = vld [vmem:[%s380 + $0x1b8] sm:%s373]
                  %499 = vst [vmem:[%s381 + $0xe8] sm:%s373] %v498
                  %v500 = vld [vmem:[%s380 + $0x1bc] sm:%s373]
                  %501 = vst [vmem:[%s381 + $0xec] sm:%s373] %v500
                  %v502 = vld [vmem:[%s380 + $0x1c0] sm:%s373]
                  %503 = vst [vmem:[%s381 + $0xf0] sm:%s373] %v502
                  %v504 = vld [vmem:[%s380 + $0x1c4] sm:%s373]
                  %505 = vst [vmem:[%s381 + $0xf4] sm:%s373] %v504
                  %v506 = vld [vmem:[%s380 + $0x1c8] sm:%s373]
                  %507 = vst [vmem:[%s381 + $0xf8] sm:%s373] %v506
                  %v508 = vld [vmem:[%s380 + $0x1cc] sm:%s373]
                  %509 = vst [vmem:[%s381 + $0xfc] sm:%s373] %v508
                  %v510 = vld [vmem:[%s380 + $0x1d0] sm:%s373]
                  %511 = vst [vmem:[%s381 + $0x100] sm:%s373] %v510
                  %v512 = vld [vmem:[%s380 + $0x1d4] sm:%s373]
                  %513 = vst [vmem:[%s381 + $0x104] sm:%s373] %v512
                  %v514 = vld [vmem:[%s380 + $0x1d8] sm:%s373]
                  %515 = vst [vmem:[%s381 + $0x108] sm:%s373] %v514
                  %v516 = vld [vmem:[%s380 + $0x1dc] sm:%s373]
                  %517 = vst [vmem:[%s381 + $0x10c] sm:%s373] %v516
                  %v518 = vld [vmem:[%s380 + $0x1e0] sm:%s373]
                  %519 = vst [vmem:[%s381 + $0x110] sm:%s373] %v518
                  %v520 = vld [vmem:[%s380 + $0x1e4] sm:%s373]
                  %521 = vst [vmem:[%s381 + $0x114] sm:%s373] %v520
                  %v522 = vld [vmem:[%s380 + $0x1e8] sm:%s373]
                  %523 = vst [vmem:[%s381 + $0x118] sm:%s373] %v522
                  %v524 = vld [vmem:[%s380 + $0x1ec] sm:%s373]
                  %525 = vst [vmem:[%s381 + $0x11c] sm:%s373] %v524
                  %v526 = vld [vmem:[%s380 + $0x1f0] sm:%s373]
                  %527 = vst [vmem:[%s381 + $0x120] sm:%s373] %v526
                  %v528 = vld [vmem:[%s380 + $0x1f4] sm:%s373]
                  %529 = vst [vmem:[%s381 + $0x124] sm:%s373] %v528
                  %v530 = vld [vmem:[%s380 + $0x1f8] sm:%s373]
                  %531 = vst [vmem:[%s381 + $0x128] sm:%s373] %v530
                  %v532 = vld [vmem:[%s380 + $0x1fc] sm:%s373]
                  %533 = vst [vmem:[%s381 + $0x12c] sm:%s373] %v532
                  %v534 = vld [vmem:[%s380 + $0x200] sm:%s373]
                  %535 = vst [vmem:[%s381 + $0x130] sm:%s373] %v534
                  %v536 = vld [vmem:[%s380 + $0x204] sm:%s373]
                  %537 = vst [vmem:[%s381 + $0x134] sm:%s373] %v536
                  %v538 = vld [vmem:[%s380 + $0x270] sm:%s373]
                  %539 = vst [vmem:[%s381 + $0x138] sm:%s373] %v538
                  %v540 = vld [vmem:[%s380 + $0x274] sm:%s373]
                  %541 = vst [vmem:[%s381 + $0x13c] sm:%s373] %v540
                  %v542 = vld [vmem:[%s380 + $0x278] sm:%s373]
                  %543 = vst [vmem:[%s381 + $0x140] sm:%s373] %v542
                  %v544 = vld [vmem:[%s380 + $0x27c] sm:%s373]
                  %545 = vst [vmem:[%s381 + $0x144] sm:%s373] %v544
                  %v546 = vld [vmem:[%s380 + $0x280] sm:%s373]
                  %547 = vst [vmem:[%s381 + $0x148] sm:%s373] %v546
                  %v548 = vld [vmem:[%s380 + $0x284] sm:%s373]
                  %549 = vst [vmem:[%s381 + $0x14c] sm:%s373] %v548
                  %v550 = vld [vmem:[%s380 + $0x288] sm:%s373]
                  %551 = vst [vmem:[%s381 + $0x150] sm:%s373] %v550
                  %v552 = vld [vmem:[%s380 + $0x28c] sm:%s373]
                  %553 = vst [vmem:[%s381 + $0x154] sm:%s373] %v552
                  %v554 = vld [vmem:[%s380 + $0x290] sm:%s373]
                  %555 = vst [vmem:[%s381 + $0x158] sm:%s373] %v554
                  %v556 = vld [vmem:[%s380 + $0x294] sm:%s373]
                  %557 = vst [vmem:[%s381 + $0x15c] sm:%s373] %v556
                  %v558 = vld [vmem:[%s380 + $0x298] sm:%s373]
                  %559 = vst [vmem:[%s381 + $0x160] sm:%s373] %v558
                  %v560 = vld [vmem:[%s380 + $0x29c] sm:%s373]
                  %561 = vst [vmem:[%s381 + $0x164] sm:%s373] %v560
                  %v562 = vld [vmem:[%s380 + $0x2a0] sm:%s373]
                  %563 = vst [vmem:[%s381 + $0x168] sm:%s373] %v562
                  %v564 = vld [vmem:[%s380 + $0x2a4] sm:%s373]
                  %565 = vst [vmem:[%s381 + $0x16c] sm:%s373] %v564
                  %v566 = vld [vmem:[%s380 + $0x2a8] sm:%s373]
                  %567 = vst [vmem:[%s381 + $0x170] sm:%s373] %v566
                  %v568 = vld [vmem:[%s380 + $0x2ac] sm:%s373]
                  %569 = vst [vmem:[%s381 + $0x174] sm:%s373] %v568
                  %v570 = vld [vmem:[%s380 + $0x2b0] sm:%s373]
                  %571 = vst [vmem:[%s381 + $0x178] sm:%s373] %v570
                  %v572 = vld [vmem:[%s380 + $0x2b4] sm:%s373]
                  %573 = vst [vmem:[%s381 + $0x17c] sm:%s373] %v572
                  %v574 = vld [vmem:[%s380 + $0x2b8] sm:%s373]
                  %575 = vst [vmem:[%s381 + $0x180] sm:%s373] %v574
                  %v576 = vld [vmem:[%s380 + $0x2bc] sm:%s373]
                  %577 = vst [vmem:[%s381 + $0x184] sm:%s373] %v576
                  %v578 = vld [vmem:[%s380 + $0x2c0] sm:%s373]
                  %579 = vst [vmem:[%s381 + $0x188] sm:%s373] %v578
                  %v580 = vld [vmem:[%s380 + $0x2c4] sm:%s373]
                  %581 = vst [vmem:[%s381 + $0x18c] sm:%s373] %v580
                  %v582 = vld [vmem:[%s380 + $0x2c8] sm:%s373]
                  %583 = vst [vmem:[%s381 + $0x190] sm:%s373] %v582
                  %v584 = vld [vmem:[%s380 + $0x2cc] sm:%s373]
                  %585 = vst [vmem:[%s381 + $0x194] sm:%s373] %v584
                  %v586 = vld [vmem:[%s380 + $0x2d0] sm:%s373]
                  %587 = vst [vmem:[%s381 + $0x198] sm:%s373] %v586
                  %v588 = vld [vmem:[%s380 + $0x2d4] sm:%s373]
                  %589 = vst [vmem:[%s381 + $0x19c] sm:%s373] %v588
                $region63: #{net_forward.2} parent=50 // loop_footer
                  %s379 = sadd.s32 1, %s375
                $region64: #{net_forward.2} parent=50 // loop_footer_branch
                  %374 = sbr.rel target = $region60
                $region65: #{net_forward.2} parent=50 // loop_exit
                  _
              $region51: #{net_forward.2} parent=35 // pred_fallthru
                _
            $region36: #{net_forward.2} parent=31 // pred_fallthru
              _
            // Predicated region
            $region37: #{net_forward.2} parent=31 // pred_check
              _
            $region38: #{net_forward.2} parent=31 // pred_check_branch
              %143 = sbr.rel (0) target = $region40
            $region39: #{net_forward.2} parent=31 // pred_region
              %s145 = ssub.s32 16, 1
              loop: start=0, step=1, limit=1
              $region41: #{net_forward.2} parent=39 // loop_pre_header
                _
              $region42: #{net_forward.2} parent=39 // loop_header
                %s147 = sphi 0, %s151
                %p148 = scmp.ge.s32.totalorder %s147, 1
                %s152 = sphi %s137, %s137
                %s153 = sphi %s134, %s134
              $region43: #{net_forward.2} parent=39 // loop_header_branch
                %150 = sbr.rel (%p148) target = $region47
              $region44: #{net_forward.2} parent=39 // loop_body
                %v154 = vld [vmem:[%s152] sm:%s145]
                %155 = vst [vmem:[%s153] sm:%s145] %v154
                %v156 = vld [vmem:[%s152 + $0x4] sm:%s145]
                %157 = vst [vmem:[%s153 + $0x4] sm:%s145] %v156
                %v158 = vld [vmem:[%s152 + $0x8] sm:%s145]
                %159 = vst [vmem:[%s153 + $0x8] sm:%s145] %v158
                %v160 = vld [vmem:[%s152 + $0xc] sm:%s145]
                %161 = vst [vmem:[%s153 + $0xc] sm:%s145] %v160
                %v162 = vld [vmem:[%s152 + $0x10] sm:%s145]
                %163 = vst [vmem:[%s153 + $0x10] sm:%s145] %v162
                %v164 = vld [vmem:[%s152 + $0x14] sm:%s145]
                %165 = vst [vmem:[%s153 + $0x14] sm:%s145] %v164
                %v166 = vld [vmem:[%s152 + $0x18] sm:%s145]
                %167 = vst [vmem:[%s153 + $0x18] sm:%s145] %v166
                %v168 = vld [vmem:[%s152 + $0x1c] sm:%s145]
                %169 = vst [vmem:[%s153 + $0x1c] sm:%s145] %v168
                %v170 = vld [vmem:[%s152 + $0x20] sm:%s145]
                %171 = vst [vmem:[%s153 + $0x20] sm:%s145] %v170
                %v172 = vld [vmem:[%s152 + $0x24] sm:%s145]
                %173 = vst [vmem:[%s153 + $0x24] sm:%s145] %v172
                %v174 = vld [vmem:[%s152 + $0x28] sm:%s145]
                %175 = vst [vmem:[%s153 + $0x28] sm:%s145] %v174
                %v176 = vld [vmem:[%s152 + $0x2c] sm:%s145]
                %177 = vst [vmem:[%s153 + $0x2c] sm:%s145] %v176
                %v178 = vld [vmem:[%s152 + $0x30] sm:%s145]
                %179 = vst [vmem:[%s153 + $0x30] sm:%s145] %v178
                %v180 = vld [vmem:[%s152 + $0x34] sm:%s145]
                %181 = vst [vmem:[%s153 + $0x34] sm:%s145] %v180
                %v182 = vld [vmem:[%s152 + $0x38] sm:%s145]
                %183 = vst [vmem:[%s153 + $0x38] sm:%s145] %v182
                %v184 = vld [vmem:[%s152 + $0x3c] sm:%s145]
                %185 = vst [vmem:[%s153 + $0x3c] sm:%s145] %v184
                %v186 = vld [vmem:[%s152 + $0x40] sm:%s145]
                %187 = vst [vmem:[%s153 + $0x40] sm:%s145] %v186
                %v188 = vld [vmem:[%s152 + $0x44] sm:%s145]
                %189 = vst [vmem:[%s153 + $0x44] sm:%s145] %v188
                %v190 = vld [vmem:[%s152 + $0x48] sm:%s145]
                %191 = vst [vmem:[%s153 + $0x48] sm:%s145] %v190
                %v192 = vld [vmem:[%s152 + $0x4c] sm:%s145]
                %193 = vst [vmem:[%s153 + $0x4c] sm:%s145] %v192
                %v194 = vld [vmem:[%s152 + $0x50] sm:%s145]
                %195 = vst [vmem:[%s153 + $0x50] sm:%s145] %v194
                %v196 = vld [vmem:[%s152 + $0x54] sm:%s145]
                %197 = vst [vmem:[%s153 + $0x54] sm:%s145] %v196
                %v198 = vld [vmem:[%s152 + $0x58] sm:%s145]
                %199 = vst [vmem:[%s153 + $0x58] sm:%s145] %v198
                %v200 = vld [vmem:[%s152 + $0x5c] sm:%s145]
                %201 = vst [vmem:[%s153 + $0x5c] sm:%s145] %v200
                %v202 = vld [vmem:[%s152 + $0x60] sm:%s145]
                %203 = vst [vmem:[%s153 + $0x60] sm:%s145] %v202
                %v204 = vld [vmem:[%s152 + $0x64] sm:%s145]
                %205 = vst [vmem:[%s153 + $0x64] sm:%s145] %v204
                %v206 = vld [vmem:[%s152 + $0xd0] sm:%s145]
                %207 = vst [vmem:[%s153 + $0x68] sm:%s145] %v206
                %v208 = vld [vmem:[%s152 + $0xd4] sm:%s145]
                %209 = vst [vmem:[%s153 + $0x6c] sm:%s145] %v208
                %v210 = vld [vmem:[%s152 + $0xd8] sm:%s145]
                %211 = vst [vmem:[%s153 + $0x70] sm:%s145] %v210
                %v212 = vld [vmem:[%s152 + $0xdc] sm:%s145]
                %213 = vst [vmem:[%s153 + $0x74] sm:%s145] %v212
                %v214 = vld [vmem:[%s152 + $0xe0] sm:%s145]
                %215 = vst [vmem:[%s153 + $0x78] sm:%s145] %v214
                %v216 = vld [vmem:[%s152 + $0xe4] sm:%s145]
                %217 = vst [vmem:[%s153 + $0x7c] sm:%s145] %v216
                %v218 = vld [vmem:[%s152 + $0xe8] sm:%s145]
                %219 = vst [vmem:[%s153 + $0x80] sm:%s145] %v218
                %v220 = vld [vmem:[%s152 + $0xec] sm:%s145]
                %221 = vst [vmem:[%s153 + $0x84] sm:%s145] %v220
                %v222 = vld [vmem:[%s152 + $0xf0] sm:%s145]
                %223 = vst [vmem:[%s153 + $0x88] sm:%s145] %v222
                %v224 = vld [vmem:[%s152 + $0xf4] sm:%s145]
                %225 = vst [vmem:[%s153 + $0x8c] sm:%s145] %v224
                %v226 = vld [vmem:[%s152 + $0xf8] sm:%s145]
                %227 = vst [vmem:[%s153 + $0x90] sm:%s145] %v226
                %v228 = vld [vmem:[%s152 + $0xfc] sm:%s145]
                %229 = vst [vmem:[%s153 + $0x94] sm:%s145] %v228
                %v230 = vld [vmem:[%s152 + $0x100] sm:%s145]
                %231 = vst [vmem:[%s153 + $0x98] sm:%s145] %v230
                %v232 = vld [vmem:[%s152 + $0x104] sm:%s145]
                %233 = vst [vmem:[%s153 + $0x9c] sm:%s145] %v232
                %v234 = vld [vmem:[%s152 + $0x108] sm:%s145]
                %235 = vst [vmem:[%s153 + $0xa0] sm:%s145] %v234
                %v236 = vld [vmem:[%s152 + $0x10c] sm:%s145]
                %237 = vst [vmem:[%s153 + $0xa4] sm:%s145] %v236
                %v238 = vld [vmem:[%s152 + $0x110] sm:%s145]
                %239 = vst [vmem:[%s153 + $0xa8] sm:%s145] %v238
                %v240 = vld [vmem:[%s152 + $0x114] sm:%s145]
                %241 = vst [vmem:[%s153 + $0xac] sm:%s145] %v240
                %v242 = vld [vmem:[%s152 + $0x118] sm:%s145]
                %243 = vst [vmem:[%s153 + $0xb0] sm:%s145] %v242
                %v244 = vld [vmem:[%s152 + $0x11c] sm:%s145]
                %245 = vst [vmem:[%s153 + $0xb4] sm:%s145] %v244
                %v246 = vld [vmem:[%s152 + $0x120] sm:%s145]
                %247 = vst [vmem:[%s153 + $0xb8] sm:%s145] %v246
                %v248 = vld [vmem:[%s152 + $0x124] sm:%s145]
                %249 = vst [vmem:[%s153 + $0xbc] sm:%s145] %v248
                %v250 = vld [vmem:[%s152 + $0x128] sm:%s145]
                %251 = vst [vmem:[%s153 + $0xc0] sm:%s145] %v250
                %v252 = vld [vmem:[%s152 + $0x12c] sm:%s145]
                %253 = vst [vmem:[%s153 + $0xc4] sm:%s145] %v252
                %v254 = vld [vmem:[%s152 + $0x130] sm:%s145]
                %255 = vst [vmem:[%s153 + $0xc8] sm:%s145] %v254
                %v256 = vld [vmem:[%s152 + $0x134] sm:%s145]
                %257 = vst [vmem:[%s153 + $0xcc] sm:%s145] %v256
                %v258 = vld [vmem:[%s152 + $0x1a0] sm:%s145]
                %259 = vst [vmem:[%s153 + $0xd0] sm:%s145] %v258
                %v260 = vld [vmem:[%s152 + $0x1a4] sm:%s145]
                %261 = vst [vmem:[%s153 + $0xd4] sm:%s145] %v260
                %v262 = vld [vmem:[%s152 + $0x1a8] sm:%s145]
                %263 = vst [vmem:[%s153 + $0xd8] sm:%s145] %v262
                %v264 = vld [vmem:[%s152 + $0x1ac] sm:%s145]
                %265 = vst [vmem:[%s153 + $0xdc] sm:%s145] %v264
                %v266 = vld [vmem:[%s152 + $0x1b0] sm:%s145]
                %267 = vst [vmem:[%s153 + $0xe0] sm:%s145] %v266
                %v268 = vld [vmem:[%s152 + $0x1b4] sm:%s145]
                %269 = vst [vmem:[%s153 + $0xe4] sm:%s145] %v268
                %v270 = vld [vmem:[%s152 + $0x1b8] sm:%s145]
                %271 = vst [vmem:[%s153 + $0xe8] sm:%s145] %v270
                %v272 = vld [vmem:[%s152 + $0x1bc] sm:%s145]
                %273 = vst [vmem:[%s153 + $0xec] sm:%s145] %v272
                %v274 = vld [vmem:[%s152 + $0x1c0] sm:%s145]
                %275 = vst [vmem:[%s153 + $0xf0] sm:%s145] %v274
                %v276 = vld [vmem:[%s152 + $0x1c4] sm:%s145]
                %277 = vst [vmem:[%s153 + $0xf4] sm:%s145] %v276
                %v278 = vld [vmem:[%s152 + $0x1c8] sm:%s145]
                %279 = vst [vmem:[%s153 + $0xf8] sm:%s145] %v278
                %v280 = vld [vmem:[%s152 + $0x1cc] sm:%s145]
                %281 = vst [vmem:[%s153 + $0xfc] sm:%s145] %v280
                %v282 = vld [vmem:[%s152 + $0x1d0] sm:%s145]
                %283 = vst [vmem:[%s153 + $0x100] sm:%s145] %v282
                %v284 = vld [vmem:[%s152 + $0x1d4] sm:%s145]
                %285 = vst [vmem:[%s153 + $0x104] sm:%s145] %v284
                %v286 = vld [vmem:[%s152 + $0x1d8] sm:%s145]
                %287 = vst [vmem:[%s153 + $0x108] sm:%s145] %v286
                %v288 = vld [vmem:[%s152 + $0x1dc] sm:%s145]
                %289 = vst [vmem:[%s153 + $0x10c] sm:%s145] %v288
                %v290 = vld [vmem:[%s152 + $0x1e0] sm:%s145]
                %291 = vst [vmem:[%s153 + $0x110] sm:%s145] %v290
                %v292 = vld [vmem:[%s152 + $0x1e4] sm:%s145]
                %293 = vst [vmem:[%s153 + $0x114] sm:%s145] %v292
                %v294 = vld [vmem:[%s152 + $0x1e8] sm:%s145]
                %295 = vst [vmem:[%s153 + $0x118] sm:%s145] %v294
                %v296 = vld [vmem:[%s152 + $0x1ec] sm:%s145]
                %297 = vst [vmem:[%s153 + $0x11c] sm:%s145] %v296
                %v298 = vld [vmem:[%s152 + $0x1f0] sm:%s145]
                %299 = vst [vmem:[%s153 + $0x120] sm:%s145] %v298
                %v300 = vld [vmem:[%s152 + $0x1f4] sm:%s145]
                %301 = vst [vmem:[%s153 + $0x124] sm:%s145] %v300
                %v302 = vld [vmem:[%s152 + $0x1f8] sm:%s145]
                %303 = vst [vmem:[%s153 + $0x128] sm:%s145] %v302
                %v304 = vld [vmem:[%s152 + $0x1fc] sm:%s145]
                %305 = vst [vmem:[%s153 + $0x12c] sm:%s145] %v304
                %v306 = vld [vmem:[%s152 + $0x200] sm:%s145]
                %307 = vst [vmem:[%s153 + $0x130] sm:%s145] %v306
                %v308 = vld [vmem:[%s152 + $0x204] sm:%s145]
                %309 = vst [vmem:[%s153 + $0x134] sm:%s145] %v308
                %v310 = vld [vmem:[%s152 + $0x270] sm:%s145]
                %311 = vst [vmem:[%s153 + $0x138] sm:%s145] %v310
                %v312 = vld [vmem:[%s152 + $0x274] sm:%s145]
                %313 = vst [vmem:[%s153 + $0x13c] sm:%s145] %v312
                %v314 = vld [vmem:[%s152 + $0x278] sm:%s145]
                %315 = vst [vmem:[%s153 + $0x140] sm:%s145] %v314
                %v316 = vld [vmem:[%s152 + $0x27c] sm:%s145]
                %317 = vst [vmem:[%s153 + $0x144] sm:%s145] %v316
                %v318 = vld [vmem:[%s152 + $0x280] sm:%s145]
                %319 = vst [vmem:[%s153 + $0x148] sm:%s145] %v318
                %v320 = vld [vmem:[%s152 + $0x284] sm:%s145]
                %321 = vst [vmem:[%s153 + $0x14c] sm:%s145] %v320
                %v322 = vld [vmem:[%s152 + $0x288] sm:%s145]
                %323 = vst [vmem:[%s153 + $0x150] sm:%s145] %v322
                %v324 = vld [vmem:[%s152 + $0x28c] sm:%s145]
                %325 = vst [vmem:[%s153 + $0x154] sm:%s145] %v324
                %v326 = vld [vmem:[%s152 + $0x290] sm:%s145]
                %327 = vst [vmem:[%s153 + $0x158] sm:%s145] %v326
                %v328 = vld [vmem:[%s152 + $0x294] sm:%s145]
                %329 = vst [vmem:[%s153 + $0x15c] sm:%s145] %v328
                %v330 = vld [vmem:[%s152 + $0x298] sm:%s145]
                %331 = vst [vmem:[%s153 + $0x160] sm:%s145] %v330
                %v332 = vld [vmem:[%s152 + $0x29c] sm:%s145]
                %333 = vst [vmem:[%s153 + $0x164] sm:%s145] %v332
                %v334 = vld [vmem:[%s152 + $0x2a0] sm:%s145]
                %335 = vst [vmem:[%s153 + $0x168] sm:%s145] %v334
                %v336 = vld [vmem:[%s152 + $0x2a4] sm:%s145]
                %337 = vst [vmem:[%s153 + $0x16c] sm:%s145] %v336
                %v338 = vld [vmem:[%s152 + $0x2a8] sm:%s145]
                %339 = vst [vmem:[%s153 + $0x170] sm:%s145] %v338
                %v340 = vld [vmem:[%s152 + $0x2ac] sm:%s145]
                %341 = vst [vmem:[%s153 + $0x174] sm:%s145] %v340
                %v342 = vld [vmem:[%s152 + $0x2b0] sm:%s145]
                %343 = vst [vmem:[%s153 + $0x178] sm:%s145] %v342
                %v344 = vld [vmem:[%s152 + $0x2b4] sm:%s145]
                %345 = vst [vmem:[%s153 + $0x17c] sm:%s145] %v344
                %v346 = vld [vmem:[%s152 + $0x2b8] sm:%s145]
                %347 = vst [vmem:[%s153 + $0x180] sm:%s145] %v346
                %v348 = vld [vmem:[%s152 + $0x2bc] sm:%s145]
                %349 = vst [vmem:[%s153 + $0x184] sm:%s145] %v348
                %v350 = vld [vmem:[%s152 + $0x2c0] sm:%s145]
                %351 = vst [vmem:[%s153 + $0x188] sm:%s145] %v350
                %v352 = vld [vmem:[%s152 + $0x2c4] sm:%s145]
                %353 = vst [vmem:[%s153 + $0x18c] sm:%s145] %v352
                %v354 = vld [vmem:[%s152 + $0x2c8] sm:%s145]
                %355 = vst [vmem:[%s153 + $0x190] sm:%s145] %v354
                %v356 = vld [vmem:[%s152 + $0x2cc] sm:%s145]
                %357 = vst [vmem:[%s153 + $0x194] sm:%s145] %v356
                %v358 = vld [vmem:[%s152 + $0x2d0] sm:%s145]
                %359 = vst [vmem:[%s153 + $0x198] sm:%s145] %v358
                %v360 = vld [vmem:[%s152 + $0x2d4] sm:%s145]
                %361 = vst [vmem:[%s153 + $0x19c] sm:%s145] %v360
              $region45: #{net_forward.2} parent=39 // loop_footer
                %s151 = sadd.s32 1, %s147
              $region46: #{net_forward.2} parent=39 // loop_footer_branch
                %146 = sbr.rel target = $region42
              $region47: #{net_forward.2} parent=39 // loop_exit
                _
            $region40: #{net_forward.2} parent=31 // pred_fallthru
              _
          $region32: #{net_forward.2} parent=27 // pred_fallthru
            _
          %590 = vnop
        $region28: #{net_forward.2} parent=23 // pred_fallthru
          _
      $region24: #{net_forward.2} parent=5 // pred_fallthru
        _
      %p591 = scmp.le.s32.totalorder 1, %s9
      %p592 = scmp.lt.s32.totalorder %s9, 3
      %p593 = pnand %p591, %p592
      %p594 = pneg %p593
      // Predicated region
      $region66: #{net_forward.2} parent=5 // pred_check
        _
      $region67: #{net_forward.2} parent=5 // pred_check_branch
        %596 = sbr.rel (%p593) target = $region69
      $region68: #{net_forward.2} parent=5 // pred_region
        %s597 = ssub.s32 %s9, 1
        %s598 = sand.u32 %s22, 1
        %s599 = sand.u32 %s22, 1
        %s600 = smul.addr %s599, 416
        %s601 = scalar_lea.vmem [#allocation2], %s600
        // Predicated region
        $region70: #{net_forward.2} parent=68 // pred_check
          %p602 = pneg %p35
        $region71: #{net_forward.2} parent=68 // pred_check_branch
          %604 = sbr.rel (%p602) target = $region73
        $region72: #{net_forward.2} parent=68 // pred_region
          _
        $region73: #{net_forward.2} parent=68 // pred_fallthru
          _
        %s605 = sand.u32 %s22, 1
        %s606 = sand.u32 %s22, 1
        %s607 = smul.addr %s606, 416
        %s608 = scalar_lea.vmem [#allocation2], %s607
        %p609 = pneg %p35
        %p610 = pneg %p32
        %p611 = pneg %p56
        %p612 = pneg %p53
        %p613 = pneg %p77
        %p614 = pneg %p74
        %p615 = pneg %p103
        %p616 = pneg %p100
        %s617 = smul.u32 26, %s14
        %p618 = scmp.lt.s32.totalorder %s617, 51
        %s619 = scalar_select %p618, %s617, 51
        %s620 = smul.addr %s619, 4
        %s621 = scalar_lea.vmem %s3, %s620
        %s622 = smul.u32 26, %s14
        %s623 = smul.u32 26, %s14
        %p624 = scmp.lt.s32.totalorder %s623, 51
        %s625 = scalar_select %p624, %s623, 51
        %s626 = smul.addr %s625, 4
        %s627 = scalar_lea.vmem %s3, %s626
        %s628 = smul.u32 26, %s14
        %v630 = vld [vmem:[%s1] sm:$0xf]
        %v631 = vld [vmem:[%s1 + $0x4] sm:$0xf]
        %v632 = vld [vmem:[%s1 + $0x8] sm:$0xf]
        %v633 = vld [vmem:[%s1 + $0xc] sm:$0xf]
        %v634 = vld [vmem:[%s1 + $0x10] sm:$0xf]
        %v635 = vld [vmem:[%s1 + $0x14] sm:$0xf]
        %v636 = vld [vmem:[%s1 + $0x18] sm:$0xf]
        %v637 = vld [vmem:[%s1 + $0x1c] sm:$0xf]
        %v638 = vld [vmem:[%s1 + $0x20] sm:$0xf]
        %v639 = vld [vmem:[%s1 + $0x24] sm:$0x3]
        %v640 = vld [vmem:[%s601] sm:$0xf]
        %v641 = vld [vmem:[%s601 + $0x4] sm:$0xf]
        %v642 = vld [vmem:[%s601 + $0x8] sm:$0xf]
        %v643 = vld [vmem:[%s601 + $0xc] sm:$0xf]
        %v644 = vld [vmem:[%s601 + $0x10] sm:$0xf]
        %v645 = vld [vmem:[%s601 + $0x14] sm:$0xf]
        %v646 = vld [vmem:[%s601 + $0x18] sm:$0xf]
        %v647 = vld [vmem:[%s601 + $0x1c] sm:$0xf]
        %v648 = vld [vmem:[%s601 + $0x20] sm:$0xf]
        %v649 = vld [vmem:[%s601 + $0x24] sm:$0xf]
        %v650 = vld [vmem:[%s601 + $0x28] sm:$0xf]
        %v651 = vld [vmem:[%s601 + $0x2c] sm:$0xf]
        %v652 = vld [vmem:[%s601 + $0x30] sm:$0xf]
        %v653 = vld [vmem:[%s601 + $0x34] sm:$0xf]
        %v654 = vld [vmem:[%s601 + $0x38] sm:$0xf]
        %v655 = vld [vmem:[%s601 + $0x3c] sm:$0xf]
        %v656 = vld [vmem:[%s601 + $0x40] sm:$0xf]
        %v657 = vld [vmem:[%s601 + $0x44] sm:$0xf]
        %v658 = vld [vmem:[%s601 + $0x48] sm:$0xf]
        %v659 = vld [vmem:[%s601 + $0x4c] sm:$0xf]
        %v660 = vld [vmem:[%s601 + $0x50] sm:$0xf]
        %v661 = vld [vmem:[%s601 + $0x54] sm:$0xf]
        %v662 = vld [vmem:[%s601 + $0x58] sm:$0xf]
        %v663 = vld [vmem:[%s601 + $0x5c] sm:$0xf]
        %v664 = vld [vmem:[%s601 + $0x60] sm:$0xf]
        %v665 = vld [vmem:[%s601 + $0x64] sm:$0xf]
        %v692 = vunpack.c.l.b16 %v640
        %v693 = vunpack.c.l.b16 %v641
        %v694 = vunpack.c.l.b16 %v642
        %v695 = vunpack.c.l.b16 %v643
        %v696 = vunpack.c.l.b16 %v644
        %v697 = vunpack.c.l.b16 %v645
        %v698 = vunpack.c.l.b16 %v646
        %v699 = vunpack.c.l.b16 %v647
        %v700 = vunpack.c.l.b16 %v648
        %v701 = vunpack.c.l.b16 %v649
        %v702 = vunpack.c.l.b16 %v650
        %v703 = vunpack.c.l.b16 %v651
        %v704 = vunpack.c.l.b16 %v652
        %v705 = vunpack.c.l.b16 %v653
        %v706 = vunpack.c.l.b16 %v654
        %v707 = vunpack.c.l.b16 %v655
        %v708 = vunpack.c.l.b16 %v656
        %v709 = vunpack.c.l.b16 %v657
        %v710 = vunpack.c.l.b16 %v658
        %v711 = vunpack.c.l.b16 %v659
        %v712 = vunpack.c.l.b16 %v660
        %v713 = vunpack.c.l.b16 %v661
        %v714 = vunpack.c.l.b16 %v662
        %v715 = vunpack.c.l.b16 %v663
        %v716 = vunpack.c.l.b16 %v664
        %v717 = vunpack.c.l.b16 %v665
        %v718 = vpack.c.b16 %v693, %v692
        %v719 = vpack.c.b16 %v695, %v694
        %v720 = vpack.c.b16 %v697, %v696
        %v721 = vpack.c.b16 %v699, %v698
        %v722 = vpack.c.b16 %v701, %v700
        %v723 = vpack.c.b16 %v703, %v702
        %v724 = vpack.c.b16 %v705, %v704
        %v725 = vpack.c.b16 %v707, %v706
        %v726 = vpack.c.b16 %v709, %v708
        %v727 = vpack.c.b16 %v711, %v710
        %v728 = vpack.c.b16 %v713, %v712
        %v729 = vpack.c.b16 %v715, %v714
        %v730 = vpack.c.b16 %v717, %v716
        %v741 = vunpack.c.l.b16 %v630
        %v742 = vunpack.c.l.b16 %v631
        %v743 = vunpack.c.l.b16 %v632
        %v744 = vunpack.c.l.b16 %v633
        %v745 = vunpack.c.l.b16 %v634
        %v746 = vunpack.c.l.b16 %v635
        %v747 = vunpack.c.l.b16 %v636
        %v748 = vunpack.c.l.b16 %v637
        %v749 = vunpack.c.l.b16 %v638
        %v750 = vunpack.c.l.b16 %v639
        %v751 = vpack.c.b16 %v742, %v741
        %v752 = vpack.c.b16 %v744, %v743
        %v753 = vpack.c.b16 %v746, %v745
        %v754 = vpack.c.b16 %v748, %v747
        %v755 = vpack.c.b16 %v750, %v749
        %vm760 = vcmask 613376
        %v762 = vsel %vm760, %v718, 0
        %v765 = vsel %vm760, %v719, 0
        %v768 = vsel %vm760, %v720, 0
        %v771 = vsel %vm760, %v721, 0
        %v774 = vsel %vm760, %v722, 0
        %v777 = vsel %vm760, %v723, 0
        %v780 = vsel %vm760, %v724, 0
        %v783 = vsel %vm760, %v725, 0
        %v786 = vsel %vm760, %v726, 0
        %v789 = vsel %vm760, %v727, 0
        %v792 = vsel %vm760, %v728, 0
        %v795 = vsel %vm760, %v729, 0
        %v798 = vsel %vm760, %v730, 0
        %vm800 = vcmask 1044480
        %vm801 = vcmask 1045504
        %v802 = vsel %vm800, 4294967295, 65535
        %v803 = vsel %vm801, %v802, 0
        %v805 = vand.u32 %v755, %v803
        %807 = vmatpush.bf16.msra.mxu0 0
        %808 = vmatpush.bf16.msra.mxu0 0
        %809 = vmatpush.bf16.msra.mxu0 0
        %810 = vmatpush.bf16.msra.mxu0 %v805
        %811 = vmatpush.bf16.msra.mxu0 %v754
        %812 = vmatpush.bf16.msra.mxu0 %v753
        %813 = vmatpush.bf16.msra.mxu0 %v752
        %814 = vmatpush.bf16.msra.mxu0 %v751
        %815 = vmatmul.bf16.gmra.mxu0 %v762
        %v816 = vpop.f32.mrf.mxu0
        %v817 = vadd.f32 0.0, %v816
        %v818 = vpop.f32.mrf.mxu0
        %v819 = vadd.f32 0.0, %v818
        %820 = vmatmul.bf16.gmra.mxu0 %v765
        %v821 = vpop.f32.mrf.mxu0
        %v822 = vadd.f32 0.0, %v821
        %v823 = vpop.f32.mrf.mxu0
        %v824 = vadd.f32 0.0, %v823
        %825 = vmatmul.bf16.gmra.mxu0 %v768
        %v826 = vpop.f32.mrf.mxu0
        %v827 = vadd.f32 0.0, %v826
        %v828 = vpop.f32.mrf.mxu0
        %v829 = vadd.f32 0.0, %v828
        %830 = vmatmul.bf16.gmra.mxu0 %v771
        %v831 = vpop.f32.mrf.mxu0
        %v832 = vadd.f32 0.0, %v831
        %v833 = vpop.f32.mrf.mxu0
        %v834 = vadd.f32 0.0, %v833
        %835 = vmatmul.bf16.gmra.mxu0 %v774
        %v836 = vpop.f32.mrf.mxu0
        %v837 = vadd.f32 0.0, %v836
        %v838 = vpop.f32.mrf.mxu0
        %v839 = vadd.f32 0.0, %v838
        %840 = vmatmul.bf16.gmra.mxu0 %v777
        %v841 = vpop.f32.mrf.mxu0
        %v842 = vadd.f32 0.0, %v841
        %v843 = vpop.f32.mrf.mxu0
        %v844 = vadd.f32 0.0, %v843
        %845 = vmatmul.bf16.gmra.mxu0 %v780
        %v846 = vpop.f32.mrf.mxu0
        %v847 = vadd.f32 0.0, %v846
        %v848 = vpop.f32.mrf.mxu0
        %v849 = vadd.f32 0.0, %v848
        %850 = vmatmul.bf16.gmra.mxu0 %v783
        %v851 = vpop.f32.mrf.mxu0
        %v852 = vadd.f32 0.0, %v851
        %v853 = vpop.f32.mrf.mxu0
        %v854 = vadd.f32 0.0, %v853
        %855 = vmatmul.bf16.gmra.mxu0 %v786
        %v856 = vpop.f32.mrf.mxu0
        %v857 = vadd.f32 0.0, %v856
        %v858 = vpop.f32.mrf.mxu0
        %v859 = vadd.f32 0.0, %v858
        %860 = vmatmul.bf16.gmra.mxu0 %v789
        %v861 = vpop.f32.mrf.mxu0
        %v862 = vadd.f32 0.0, %v861
        %v863 = vpop.f32.mrf.mxu0
        %v864 = vadd.f32 0.0, %v863
        %865 = vmatmul.bf16.gmra.mxu0 %v792
        %v866 = vpop.f32.mrf.mxu0
        %v867 = vadd.f32 0.0, %v866
        %v868 = vpop.f32.mrf.mxu0
        %v869 = vadd.f32 0.0, %v868
        %870 = vmatmul.bf16.gmra.mxu0 %v795
        %v871 = vpop.f32.mrf.mxu0
        %v872 = vadd.f32 0.0, %v871
        %v873 = vpop.f32.mrf.mxu0
        %v874 = vadd.f32 0.0, %v873
        %875 = vmatmul.bf16.gmra.mxu0 %v798
        %v876 = vpop.f32.mrf.mxu0
        %v877 = vadd.f32 0.0, %v876
        %v878 = vpop.f32.mrf.mxu0
        %v879 = vadd.f32 0.0, %v878
        %880 = vdwg.mxu0
        %s881 = scalar_lea.vmem %s601, 104 [#allocation2]
        %v882 = vld [vmem:[%s881] sm:$0xf]
        %v883 = vld [vmem:[%s881 + $0x4] sm:$0xf]
        %v884 = vld [vmem:[%s881 + $0x8] sm:$0xf]
        %v885 = vld [vmem:[%s881 + $0xc] sm:$0xf]
        %v886 = vld [vmem:[%s881 + $0x10] sm:$0xf]
        %v887 = vld [vmem:[%s881 + $0x14] sm:$0xf]
        %v888 = vld [vmem:[%s881 + $0x18] sm:$0xf]
        %v889 = vld [vmem:[%s881 + $0x1c] sm:$0xf]
        %v890 = vld [vmem:[%s881 + $0x20] sm:$0xf]
        %v891 = vld [vmem:[%s881 + $0x24] sm:$0xf]
        %v892 = vld [vmem:[%s881 + $0x28] sm:$0xf]
        %v893 = vld [vmem:[%s881 + $0x2c] sm:$0xf]
        %v894 = vld [vmem:[%s881 + $0x30] sm:$0xf]
        %v895 = vld [vmem:[%s881 + $0x34] sm:$0xf]
        %v896 = vld [vmem:[%s881 + $0x38] sm:$0xf]
        %v897 = vld [vmem:[%s881 + $0x3c] sm:$0xf]
        %v898 = vld [vmem:[%s881 + $0x40] sm:$0xf]
        %v899 = vld [vmem:[%s881 + $0x44] sm:$0xf]
        %v900 = vld [vmem:[%s881 + $0x48] sm:$0xf]
        %v901 = vld [vmem:[%s881 + $0x4c] sm:$0xf]
        %v902 = vld [vmem:[%s881 + $0x50] sm:$0xf]
        %v903 = vld [vmem:[%s881 + $0x54] sm:$0xf]
        %v904 = vld [vmem:[%s881 + $0x58] sm:$0xf]
        %v905 = vld [vmem:[%s881 + $0x5c] sm:$0xf]
        %v906 = vld [vmem:[%s881 + $0x60] sm:$0xf]
        %v907 = vld [vmem:[%s881 + $0x64] sm:$0xf]
        %v934 = vunpack.c.l.b16 %v882
        %v935 = vunpack.c.l.b16 %v883
        %v936 = vunpack.c.l.b16 %v884
        %v937 = vunpack.c.l.b16 %v885
        %v938 = vunpack.c.l.b16 %v886
        %v939 = vunpack.c.l.b16 %v887
        %v940 = vunpack.c.l.b16 %v888
        %v941 = vunpack.c.l.b16 %v889
        %v942 = vunpack.c.l.b16 %v890
        %v943 = vunpack.c.l.b16 %v891
        %v944 = vunpack.c.l.b16 %v892
        %v945 = vunpack.c.l.b16 %v893
        %v946 = vunpack.c.l.b16 %v894
        %v947 = vunpack.c.l.b16 %v895
        %v948 = vunpack.c.l.b16 %v896
        %v949 = vunpack.c.l.b16 %v897
        %v950 = vunpack.c.l.b16 %v898
        %v951 = vunpack.c.l.b16 %v899
        %v952 = vunpack.c.l.b16 %v900
        %v953 = vunpack.c.l.b16 %v901
        %v954 = vunpack.c.l.b16 %v902
        %v955 = vunpack.c.l.b16 %v903
        %v956 = vunpack.c.l.b16 %v904
        %v957 = vunpack.c.l.b16 %v905
        %v958 = vunpack.c.l.b16 %v906
        %v959 = vunpack.c.l.b16 %v907
        %v960 = vpack.c.b16 %v935, %v934
        %v961 = vpack.c.b16 %v937, %v936
        %v962 = vpack.c.b16 %v939, %v938
        %v963 = vpack.c.b16 %v941, %v940
        %v964 = vpack.c.b16 %v943, %v942
        %v965 = vpack.c.b16 %v945, %v944
        %v966 = vpack.c.b16 %v947, %v946
        %v967 = vpack.c.b16 %v949, %v948
        %v968 = vpack.c.b16 %v951, %v950
        %v969 = vpack.c.b16 %v953, %v952
        %v970 = vpack.c.b16 %v955, %v954
        %v971 = vpack.c.b16 %v957, %v956
        %v972 = vpack.c.b16 %v959, %v958
        %v974 = vsel %vm760, %v960, 0
        %v977 = vsel %vm760, %v961, 0
        %v980 = vsel %vm760, %v962, 0
        %v983 = vsel %vm760, %v963, 0
        %v986 = vsel %vm760, %v964, 0
        %v989 = vsel %vm760, %v965, 0
        %v992 = vsel %vm760, %v966, 0
        %v995 = vsel %vm760, %v967, 0
        %v998 = vsel %vm760, %v968, 0
        %v1001 = vsel %vm760, %v969, 0
        %v1004 = vsel %vm760, %v970, 0
        %v1007 = vsel %vm760, %v971, 0
        %v1010 = vsel %vm760, %v972, 0
        %1012 = vmatpush.bf16.msra.mxu0 0
        %1013 = vmatpush.bf16.msra.mxu0 0
        %1014 = vmatpush.bf16.msra.mxu0 0
        %1015 = vmatpush.bf16.msra.mxu0 %v805
        %1016 = vmatpush.bf16.msra.mxu0 %v754
        %1017 = vmatpush.bf16.msra.mxu0 %v753
        %1018 = vmatpush.bf16.msra.mxu0 %v752
        %1019 = vmatpush.bf16.msra.mxu0 %v751
        %1020 = vmatmul.bf16.gmra.mxu0 %v974
        %v1021 = vpop.f32.mrf.mxu0
        %v1022 = vadd.f32 0.0, %v1021
        %v1023 = vpop.f32.mrf.mxu0
        %v1024 = vadd.f32 0.0, %v1023
        %1025 = vmatmul.bf16.gmra.mxu0 %v977
        %v1026 = vpop.f32.mrf.mxu0
        %v1027 = vadd.f32 0.0, %v1026
        %v1028 = vpop.f32.mrf.mxu0
        %v1029 = vadd.f32 0.0, %v1028
        %1030 = vmatmul.bf16.gmra.mxu0 %v980
        %v1031 = vpop.f32.mrf.mxu0
        %v1032 = vadd.f32 0.0, %v1031
        %v1033 = vpop.f32.mrf.mxu0
        %v1034 = vadd.f32 0.0, %v1033
        %1035 = vmatmul.bf16.gmra.mxu0 %v983
        %v1036 = vpop.f32.mrf.mxu0
        %v1037 = vadd.f32 0.0, %v1036
        %v1038 = vpop.f32.mrf.mxu0
        %v1039 = vadd.f32 0.0, %v1038
        %1040 = vmatmul.bf16.gmra.mxu0 %v986
        %v1041 = vpop.f32.mrf.mxu0
        %v1042 = vadd.f32 0.0, %v1041
        %v1043 = vpop.f32.mrf.mxu0
        %v1044 = vadd.f32 0.0, %v1043
        %1045 = vmatmul.bf16.gmra.mxu0 %v989
        %v1046 = vpop.f32.mrf.mxu0
        %v1047 = vadd.f32 0.0, %v1046
        %v1048 = vpop.f32.mrf.mxu0
        %v1049 = vadd.f32 0.0, %v1048
        %1050 = vmatmul.bf16.gmra.mxu0 %v992
        %v1051 = vpop.f32.mrf.mxu0
        %v1052 = vadd.f32 0.0, %v1051
        %v1053 = vpop.f32.mrf.mxu0
        %v1054 = vadd.f32 0.0, %v1053
        %1055 = vmatmul.bf16.gmra.mxu0 %v995
        %v1056 = vpop.f32.mrf.mxu0
        %v1057 = vadd.f32 0.0, %v1056
        %v1058 = vpop.f32.mrf.mxu0
        %v1059 = vadd.f32 0.0, %v1058
        %1060 = vmatmul.bf16.gmra.mxu0 %v998
        %v1061 = vpop.f32.mrf.mxu0
        %v1062 = vadd.f32 0.0, %v1061
        %v1063 = vpop.f32.mrf.mxu0
        %v1064 = vadd.f32 0.0, %v1063
        %1065 = vmatmul.bf16.gmra.mxu0 %v1001
        %v1066 = vpop.f32.mrf.mxu0
        %v1067 = vadd.f32 0.0, %v1066
        %v1068 = vpop.f32.mrf.mxu0
        %v1069 = vadd.f32 0.0, %v1068
        %1070 = vmatmul.bf16.gmra.mxu0 %v1004
        %v1071 = vpop.f32.mrf.mxu0
        %v1072 = vadd.f32 0.0, %v1071
        %v1073 = vpop.f32.mrf.mxu0
        %v1074 = vadd.f32 0.0, %v1073
        %1075 = vmatmul.bf16.gmra.mxu0 %v1007
        %v1076 = vpop.f32.mrf.mxu0
        %v1077 = vadd.f32 0.0, %v1076
        %v1078 = vpop.f32.mrf.mxu0
        %v1079 = vadd.f32 0.0, %v1078
        %1080 = vmatmul.bf16.gmra.mxu0 %v1010
        %v1081 = vpop.f32.mrf.mxu0
        %v1082 = vadd.f32 0.0, %v1081
        %v1083 = vpop.f32.mrf.mxu0
        %v1084 = vadd.f32 0.0, %v1083
        %1085 = vdwg.mxu0
        %v1086 = vmax.f32 %v817, %v1022
        %v1087 = vmax.f32 %v819, %v1024
        %v1088 = vmax.f32 %v822, %v1027
        %v1089 = vmax.f32 %v824, %v1029
        %v1090 = vmax.f32 %v827, %v1032
        %v1091 = vmax.f32 %v829, %v1034
        %v1092 = vmax.f32 %v832, %v1037
        %v1093 = vmax.f32 %v834, %v1039
        %v1094 = vmax.f32 %v837, %v1042
        %v1095 = vmax.f32 %v839, %v1044
        %v1096 = vmax.f32 %v842, %v1047
        %v1097 = vmax.f32 %v844, %v1049
        %v1098 = vmax.f32 %v847, %v1052
        %v1099 = vmax.f32 %v849, %v1054
        %v1100 = vmax.f32 %v852, %v1057
        %v1101 = vmax.f32 %v854, %v1059
        %v1102 = vmax.f32 %v857, %v1062
        %v1103 = vmax.f32 %v859, %v1064
        %v1104 = vmax.f32 %v862, %v1067
        %v1105 = vmax.f32 %v864, %v1069
        %v1106 = vmax.f32 %v867, %v1072
        %v1107 = vmax.f32 %v869, %v1074
        %v1108 = vmax.f32 %v872, %v1077
        %v1109 = vmax.f32 %v874, %v1079
        %v1110 = vmax.f32 %v877, %v1082
        %v1111 = vmax.f32 %v879, %v1084
        %s1112 = scalar_lea.vmem %s601, 208 [#allocation2]
        %v1113 = vld [vmem:[%s1112] sm:$0xf]
        %v1114 = vld [vmem:[%s1112 + $0x4] sm:$0xf]
        %v1115 = vld [vmem:[%s1112 + $0x8] sm:$0xf]
        %v1116 = vld [vmem:[%s1112 + $0xc] sm:$0xf]
        %v1117 = vld [vmem:[%s1112 + $0x10] sm:$0xf]
        %v1118 = vld [vmem:[%s1112 + $0x14] sm:$0xf]
        %v1119 = vld [vmem:[%s1112 + $0x18] sm:$0xf]
        %v1120 = vld [vmem:[%s1112 + $0x1c] sm:$0xf]
        %v1121 = vld [vmem:[%s1112 + $0x20] sm:$0xf]
        %v1122 = vld [vmem:[%s1112 + $0x24] sm:$0xf]
        %v1123 = vld [vmem:[%s1112 + $0x28] sm:$0xf]
        %v1124 = vld [vmem:[%s1112 + $0x2c] sm:$0xf]
        %v1125 = vld [vmem:[%s1112 + $0x30] sm:$0xf]
        %v1126 = vld [vmem:[%s1112 + $0x34] sm:$0xf]
        %v1127 = vld [vmem:[%s1112 + $0x38] sm:$0xf]
        %v1128 = vld [vmem:[%s1112 + $0x3c] sm:$0xf]
        %v1129 = vld [vmem:[%s1112 + $0x40] sm:$0xf]
        %v1130 = vld [vmem:[%s1112 + $0x44] sm:$0xf]
        %v1131 = vld [vmem:[%s1112 + $0x48] sm:$0xf]
        %v1132 = vld [vmem:[%s1112 + $0x4c] sm:$0xf]
        %v1133 = vld [vmem:[%s1112 + $0x50] sm:$0xf]
        %v1134 = vld [vmem:[%s1112 + $0x54] sm:$0xf]
        %v1135 = vld [vmem:[%s1112 + $0x58] sm:$0xf]
        %v1136 = vld [vmem:[%s1112 + $0x5c] sm:$0xf]
        %v1137 = vld [vmem:[%s1112 + $0x60] sm:$0xf]
        %v1138 = vld [vmem:[%s1112 + $0x64] sm:$0xf]
        %v1165 = vunpack.c.l.b16 %v1113
        %v1166 = vunpack.c.l.b16 %v1114
        %v1167 = vunpack.c.l.b16 %v1115
        %v1168 = vunpack.c.l.b16 %v1116
        %v1169 = vunpack.c.l.b16 %v1117
        %v1170 = vunpack.c.l.b16 %v1118
        %v1171 = vunpack.c.l.b16 %v1119
        %v1172 = vunpack.c.l.b16 %v1120
        %v1173 = vunpack.c.l.b16 %v1121
        %v1174 = vunpack.c.l.b16 %v1122
        %v1175 = vunpack.c.l.b16 %v1123
        %v1176 = vunpack.c.l.b16 %v1124
        %v1177 = vunpack.c.l.b16 %v1125
        %v1178 = vunpack.c.l.b16 %v1126
        %v1179 = vunpack.c.l.b16 %v1127
        %v1180 = vunpack.c.l.b16 %v1128
        %v1181 = vunpack.c.l.b16 %v1129
        %v1182 = vunpack.c.l.b16 %v1130
        %v1183 = vunpack.c.l.b16 %v1131
        %v1184 = vunpack.c.l.b16 %v1132
        %v1185 = vunpack.c.l.b16 %v1133
        %v1186 = vunpack.c.l.b16 %v1134
        %v1187 = vunpack.c.l.b16 %v1135
        %v1188 = vunpack.c.l.b16 %v1136
        %v1189 = vunpack.c.l.b16 %v1137
        %v1190 = vunpack.c.l.b16 %v1138
        %v1191 = vpack.c.b16 %v1166, %v1165
        %v1192 = vpack.c.b16 %v1168, %v1167
        %v1193 = vpack.c.b16 %v1170, %v1169
        %v1194 = vpack.c.b16 %v1172, %v1171
        %v1195 = vpack.c.b16 %v1174, %v1173
        %v1196 = vpack.c.b16 %v1176, %v1175
        %v1197 = vpack.c.b16 %v1178, %v1177
        %v1198 = vpack.c.b16 %v1180, %v1179
        %v1199 = vpack.c.b16 %v1182, %v1181
        %v1200 = vpack.c.b16 %v1184, %v1183
        %v1201 = vpack.c.b16 %v1186, %v1185
        %v1202 = vpack.c.b16 %v1188, %v1187
        %v1203 = vpack.c.b16 %v1190, %v1189
        %v1205 = vsel %vm760, %v1191, 0
        %v1208 = vsel %vm760, %v1192, 0
        %v1211 = vsel %vm760, %v1193, 0
        %v1214 = vsel %vm760, %v1194, 0
        %v1217 = vsel %vm760, %v1195, 0
        %v1220 = vsel %vm760, %v1196, 0
        %v1223 = vsel %vm760, %v1197, 0
        %v1226 = vsel %vm760, %v1198, 0
        %v1229 = vsel %vm760, %v1199, 0
        %v1232 = vsel %vm760, %v1200, 0
        %v1235 = vsel %vm760, %v1201, 0
        %v1238 = vsel %vm760, %v1202, 0
        %v1241 = vsel %vm760, %v1203, 0
        %1243 = vmatpush.bf16.msra.mxu0 0
        %1244 = vmatpush.bf16.msra.mxu0 0
        %1245 = vmatpush.bf16.msra.mxu0 0
        %1246 = vmatpush.bf16.msra.mxu0 %v805
        %1247 = vmatpush.bf16.msra.mxu0 %v754
        %1248 = vmatpush.bf16.msra.mxu0 %v753
        %1249 = vmatpush.bf16.msra.mxu0 %v752
        %1250 = vmatpush.bf16.msra.mxu0 %v751
        %1251 = vmatmul.bf16.gmra.mxu0 %v1205
        %v1252 = vpop.f32.mrf.mxu0
        %v1253 = vadd.f32 0.0, %v1252
        %v1254 = vpop.f32.mrf.mxu0
        %v1255 = vadd.f32 0.0, %v1254
        %1256 = vmatmul.bf16.gmra.mxu0 %v1208
        %v1257 = vpop.f32.mrf.mxu0
        %v1258 = vadd.f32 0.0, %v1257
        %v1259 = vpop.f32.mrf.mxu0
        %v1260 = vadd.f32 0.0, %v1259
        %1261 = vmatmul.bf16.gmra.mxu0 %v1211
        %v1262 = vpop.f32.mrf.mxu0
        %v1263 = vadd.f32 0.0, %v1262
        %v1264 = vpop.f32.mrf.mxu0
        %v1265 = vadd.f32 0.0, %v1264
        %1266 = vmatmul.bf16.gmra.mxu0 %v1214
        %v1267 = vpop.f32.mrf.mxu0
        %v1268 = vadd.f32 0.0, %v1267
        %v1269 = vpop.f32.mrf.mxu0
        %v1270 = vadd.f32 0.0, %v1269
        %1271 = vmatmul.bf16.gmra.mxu0 %v1217
        %v1272 = vpop.f32.mrf.mxu0
        %v1273 = vadd.f32 0.0, %v1272
        %v1274 = vpop.f32.mrf.mxu0
        %v1275 = vadd.f32 0.0, %v1274
        %1276 = vmatmul.bf16.gmra.mxu0 %v1220
        %v1277 = vpop.f32.mrf.mxu0
        %v1278 = vadd.f32 0.0, %v1277
        %v1279 = vpop.f32.mrf.mxu0
        %v1280 = vadd.f32 0.0, %v1279
        %1281 = vmatmul.bf16.gmra.mxu0 %v1223
        %v1282 = vpop.f32.mrf.mxu0
        %v1283 = vadd.f32 0.0, %v1282
        %v1284 = vpop.f32.mrf.mxu0
        %v1285 = vadd.f32 0.0, %v1284
        %1286 = vmatmul.bf16.gmra.mxu0 %v1226
        %v1287 = vpop.f32.mrf.mxu0
        %v1288 = vadd.f32 0.0, %v1287
        %v1289 = vpop.f32.mrf.mxu0
        %v1290 = vadd.f32 0.0, %v1289
        %1291 = vmatmul.bf16.gmra.mxu0 %v1229
        %v1292 = vpop.f32.mrf.mxu0
        %v1293 = vadd.f32 0.0, %v1292
        %v1294 = vpop.f32.mrf.mxu0
        %v1295 = vadd.f32 0.0, %v1294
        %1296 = vmatmul.bf16.gmra.mxu0 %v1232
        %v1297 = vpop.f32.mrf.mxu0
        %v1298 = vadd.f32 0.0, %v1297
        %v1299 = vpop.f32.mrf.mxu0
        %v1300 = vadd.f32 0.0, %v1299
        %1301 = vmatmul.bf16.gmra.mxu0 %v1235
        %v1302 = vpop.f32.mrf.mxu0
        %v1303 = vadd.f32 0.0, %v1302
        %v1304 = vpop.f32.mrf.mxu0
        %v1305 = vadd.f32 0.0, %v1304
        %1306 = vmatmul.bf16.gmra.mxu0 %v1238
        %v1307 = vpop.f32.mrf.mxu0
        %v1308 = vadd.f32 0.0, %v1307
        %v1309 = vpop.f32.mrf.mxu0
        %v1310 = vadd.f32 0.0, %v1309
        %1311 = vmatmul.bf16.gmra.mxu0 %v1241
        %v1312 = vpop.f32.mrf.mxu0
        %v1313 = vadd.f32 0.0, %v1312
        %v1314 = vpop.f32.mrf.mxu0
        %v1315 = vadd.f32 0.0, %v1314
        %1316 = vdwg.mxu0
        %v1317 = vmax.f32 %v1086, %v1253
        %v1318 = vmax.f32 %v1087, %v1255
        %v1319 = vmax.f32 %v1088, %v1258
        %v1320 = vmax.f32 %v1089, %v1260
        %v1321 = vmax.f32 %v1090, %v1263
        %v1322 = vmax.f32 %v1091, %v1265
        %v1323 = vmax.f32 %v1092, %v1268
        %v1324 = vmax.f32 %v1093, %v1270
        %v1325 = vmax.f32 %v1094, %v1273
        %v1326 = vmax.f32 %v1095, %v1275
        %v1327 = vmax.f32 %v1096, %v1278
        %v1328 = vmax.f32 %v1097, %v1280
        %v1329 = vmax.f32 %v1098, %v1283
        %v1330 = vmax.f32 %v1099, %v1285
        %v1331 = vmax.f32 %v1100, %v1288
        %v1332 = vmax.f32 %v1101, %v1290
        %v1333 = vmax.f32 %v1102, %v1293
        %v1334 = vmax.f32 %v1103, %v1295
        %v1335 = vmax.f32 %v1104, %v1298
        %v1336 = vmax.f32 %v1105, %v1300
        %v1337 = vmax.f32 %v1106, %v1303
        %v1338 = vmax.f32 %v1107, %v1305
        %v1339 = vmax.f32 %v1108, %v1308
        %v1340 = vmax.f32 %v1109, %v1310
        %v1341 = vmax.f32 %v1110, %v1313
        %v1342 = vmax.f32 %v1111, %v1315
        %s1343 = scalar_lea.vmem %s601, 312 [#allocation2]
        %v1344 = vld [vmem:[%s1343] sm:$0xf]
        %v1345 = vld [vmem:[%s1343 + $0x4] sm:$0xf]
        %v1346 = vld [vmem:[%s1343 + $0x8] sm:$0xf]
        %v1347 = vld [vmem:[%s1343 + $0xc] sm:$0xf]
        %v1348 = vld [vmem:[%s1343 + $0x10] sm:$0xf]
        %v1349 = vld [vmem:[%s1343 + $0x14] sm:$0xf]
        %v1350 = vld [vmem:[%s1343 + $0x18] sm:$0xf]
        %v1351 = vld [vmem:[%s1343 + $0x1c] sm:$0xf]
        %v1352 = vld [vmem:[%s1343 + $0x20] sm:$0xf]
        %v1353 = vld [vmem:[%s1343 + $0x24] sm:$0xf]
        %v1354 = vld [vmem:[%s1343 + $0x28] sm:$0xf]
        %v1355 = vld [vmem:[%s1343 + $0x2c] sm:$0xf]
        %v1356 = vld [vmem:[%s1343 + $0x30] sm:$0xf]
        %v1357 = vld [vmem:[%s1343 + $0x34] sm:$0xf]
        %v1358 = vld [vmem:[%s1343 + $0x38] sm:$0xf]
        %v1359 = vld [vmem:[%s1343 + $0x3c] sm:$0xf]
        %v1360 = vld [vmem:[%s1343 + $0x40] sm:$0xf]
        %v1361 = vld [vmem:[%s1343 + $0x44] sm:$0xf]
        %v1362 = vld [vmem:[%s1343 + $0x48] sm:$0xf]
        %v1363 = vld [vmem:[%s1343 + $0x4c] sm:$0xf]
        %v1364 = vld [vmem:[%s1343 + $0x50] sm:$0xf]
        %v1365 = vld [vmem:[%s1343 + $0x54] sm:$0xf]
        %v1366 = vld [vmem:[%s1343 + $0x58] sm:$0xf]
        %v1367 = vld [vmem:[%s1343 + $0x5c] sm:$0xf]
        %v1368 = vld [vmem:[%s1343 + $0x60] sm:$0xf]
        %v1369 = vld [vmem:[%s1343 + $0x64] sm:$0xf]
        %v1396 = vunpack.c.l.b16 %v1344
        %v1397 = vunpack.c.l.b16 %v1345
        %v1398 = vunpack.c.l.b16 %v1346
        %v1399 = vunpack.c.l.b16 %v1347
        %v1400 = vunpack.c.l.b16 %v1348
        %v1401 = vunpack.c.l.b16 %v1349
        %v1402 = vunpack.c.l.b16 %v1350
        %v1403 = vunpack.c.l.b16 %v1351
        %v1404 = vunpack.c.l.b16 %v1352
        %v1405 = vunpack.c.l.b16 %v1353
        %v1406 = vunpack.c.l.b16 %v1354
        %v1407 = vunpack.c.l.b16 %v1355
        %v1408 = vunpack.c.l.b16 %v1356
        %v1409 = vunpack.c.l.b16 %v1357
        %v1410 = vunpack.c.l.b16 %v1358
        %v1411 = vunpack.c.l.b16 %v1359
        %v1412 = vunpack.c.l.b16 %v1360
        %v1413 = vunpack.c.l.b16 %v1361
        %v1414 = vunpack.c.l.b16 %v1362
        %v1415 = vunpack.c.l.b16 %v1363
        %v1416 = vunpack.c.l.b16 %v1364
        %v1417 = vunpack.c.l.b16 %v1365
        %v1418 = vunpack.c.l.b16 %v1366
        %v1419 = vunpack.c.l.b16 %v1367
        %v1420 = vunpack.c.l.b16 %v1368
        %v1421 = vunpack.c.l.b16 %v1369
        %v1422 = vpack.c.b16 %v1397, %v1396
        %v1423 = vpack.c.b16 %v1399, %v1398
        %v1424 = vpack.c.b16 %v1401, %v1400
        %v1425 = vpack.c.b16 %v1403, %v1402
        %v1426 = vpack.c.b16 %v1405, %v1404
        %v1427 = vpack.c.b16 %v1407, %v1406
        %v1428 = vpack.c.b16 %v1409, %v1408
        %v1429 = vpack.c.b16 %v1411, %v1410
        %v1430 = vpack.c.b16 %v1413, %v1412
        %v1431 = vpack.c.b16 %v1415, %v1414
        %v1432 = vpack.c.b16 %v1417, %v1416
        %v1433 = vpack.c.b16 %v1419, %v1418
        %v1434 = vpack.c.b16 %v1421, %v1420
        %v1436 = vsel %vm760, %v1422, 0
        %v1439 = vsel %vm760, %v1423, 0
        %v1442 = vsel %vm760, %v1424, 0
        %v1445 = vsel %vm760, %v1425, 0
        %v1448 = vsel %vm760, %v1426, 0
        %v1451 = vsel %vm760, %v1427, 0
        %v1454 = vsel %vm760, %v1428, 0
        %v1457 = vsel %vm760, %v1429, 0
        %v1460 = vsel %vm760, %v1430, 0
        %v1463 = vsel %vm760, %v1431, 0
        %v1466 = vsel %vm760, %v1432, 0
        %v1469 = vsel %vm760, %v1433, 0
        %v1472 = vsel %vm760, %v1434, 0
        %1474 = vmatpush.bf16.msra.mxu0 0
        %1475 = vmatpush.bf16.msra.mxu0 0
        %1476 = vmatpush.bf16.msra.mxu0 0
        %1477 = vmatpush.bf16.msra.mxu0 %v805
        %1478 = vmatpush.bf16.msra.mxu0 %v754
        %1479 = vmatpush.bf16.msra.mxu0 %v753
        %1480 = vmatpush.bf16.msra.mxu0 %v752
        %1481 = vmatpush.bf16.msra.mxu0 %v751
        %1482 = vmatmul.bf16.gmra.mxu0 %v1436
        %v1483 = vpop.f32.mrf.mxu0
        %v1484 = vadd.f32 0.0, %v1483
        %v1485 = vpop.f32.mrf.mxu0
        %v1486 = vadd.f32 0.0, %v1485
        %1487 = vmatmul.bf16.gmra.mxu0 %v1439
        %v1488 = vpop.f32.mrf.mxu0
        %v1489 = vadd.f32 0.0, %v1488
        %v1490 = vpop.f32.mrf.mxu0
        %v1491 = vadd.f32 0.0, %v1490
        %1492 = vmatmul.bf16.gmra.mxu0 %v1442
        %v1493 = vpop.f32.mrf.mxu0
        %v1494 = vadd.f32 0.0, %v1493
        %v1495 = vpop.f32.mrf.mxu0
        %v1496 = vadd.f32 0.0, %v1495
        %1497 = vmatmul.bf16.gmra.mxu0 %v1445
        %v1498 = vpop.f32.mrf.mxu0
        %v1499 = vadd.f32 0.0, %v1498
        %v1500 = vpop.f32.mrf.mxu0
        %v1501 = vadd.f32 0.0, %v1500
        %1502 = vmatmul.bf16.gmra.mxu0 %v1448
        %v1503 = vpop.f32.mrf.mxu0
        %v1504 = vadd.f32 0.0, %v1503
        %v1505 = vpop.f32.mrf.mxu0
        %v1506 = vadd.f32 0.0, %v1505
        %1507 = vmatmul.bf16.gmra.mxu0 %v1451
        %v1508 = vpop.f32.mrf.mxu0
        %v1509 = vadd.f32 0.0, %v1508
        %v1510 = vpop.f32.mrf.mxu0
        %v1511 = vadd.f32 0.0, %v1510
        %1512 = vmatmul.bf16.gmra.mxu0 %v1454
        %v1513 = vpop.f32.mrf.mxu0
        %v1514 = vadd.f32 0.0, %v1513
        %v1515 = vpop.f32.mrf.mxu0
        %v1516 = vadd.f32 0.0, %v1515
        %1517 = vmatmul.bf16.gmra.mxu0 %v1457
        %v1518 = vpop.f32.mrf.mxu0
        %v1519 = vadd.f32 0.0, %v1518
        %v1520 = vpop.f32.mrf.mxu0
        %v1521 = vadd.f32 0.0, %v1520
        %1522 = vmatmul.bf16.gmra.mxu0 %v1460
        %v1523 = vpop.f32.mrf.mxu0
        %v1524 = vadd.f32 0.0, %v1523
        %v1525 = vpop.f32.mrf.mxu0
        %v1526 = vadd.f32 0.0, %v1525
        %1527 = vmatmul.bf16.gmra.mxu0 %v1463
        %v1528 = vpop.f32.mrf.mxu0
        %v1529 = vadd.f32 0.0, %v1528
        %v1530 = vpop.f32.mrf.mxu0
        %v1531 = vadd.f32 0.0, %v1530
        %1532 = vmatmul.bf16.gmra.mxu0 %v1466
        %v1533 = vpop.f32.mrf.mxu0
        %v1534 = vadd.f32 0.0, %v1533
        %v1535 = vpop.f32.mrf.mxu0
        %v1536 = vadd.f32 0.0, %v1535
        %1537 = vmatmul.bf16.gmra.mxu0 %v1469
        %v1538 = vpop.f32.mrf.mxu0
        %v1539 = vadd.f32 0.0, %v1538
        %v1540 = vpop.f32.mrf.mxu0
        %v1541 = vadd.f32 0.0, %v1540
        %1542 = vmatmul.bf16.gmra.mxu0 %v1472
        %v1543 = vpop.f32.mrf.mxu0
        %v1544 = vadd.f32 0.0, %v1543
        %v1545 = vpop.f32.mrf.mxu0
        %v1546 = vadd.f32 0.0, %v1545
        %1547 = vdwg.mxu0
        %v1548 = vmax.f32 %v1317, %v1484
        %v1549 = vmax.f32 %v1318, %v1486
        %v1550 = vmax.f32 %v1319, %v1489
        %v1551 = vmax.f32 %v1320, %v1491
        %v1552 = vmax.f32 %v1321, %v1494
        %v1553 = vmax.f32 %v1322, %v1496
        %v1554 = vmax.f32 %v1323, %v1499
        %v1555 = vmax.f32 %v1324, %v1501
        %v1556 = vmax.f32 %v1325, %v1504
        %v1557 = vmax.f32 %v1326, %v1506
        %v1558 = vmax.f32 %v1327, %v1509
        %v1559 = vmax.f32 %v1328, %v1511
        %v1560 = vmax.f32 %v1329, %v1514
        %v1561 = vmax.f32 %v1330, %v1516
        %v1562 = vmax.f32 %v1331, %v1519
        %v1563 = vmax.f32 %v1332, %v1521
        %v1564 = vmax.f32 %v1333, %v1524
        %v1565 = vmax.f32 %v1334, %v1526
        %v1566 = vmax.f32 %v1335, %v1529
        %v1567 = vmax.f32 %v1336, %v1531
        %v1568 = vmax.f32 %v1337, %v1534
        %v1569 = vmax.f32 %v1338, %v1536
        %v1570 = vmax.f32 %v1339, %v1539
        %v1571 = vmax.f32 %v1340, %v1541
        %v1572 = vmax.f32 %v1341, %v1544
        %v1573 = vmax.f32 %v1342, %v1546
        %v1574 = vld [vmem:[%s2] sm:$0x1]
        %v1576 = vperm.slane %v1574, 0
        %v1578 = vadd.f32 %v1548, %v1576
        %v1579 = vadd.f32 %v1549, %v1576
        %v1580 = vadd.f32 %v1550, %v1576
        %v1581 = vadd.f32 %v1551, %v1576
        %v1582 = vadd.f32 %v1552, %v1576
        %v1583 = vadd.f32 %v1553, %v1576
        %v1584 = vadd.f32 %v1554, %v1576
        %v1585 = vadd.f32 %v1555, %v1576
        %v1586 = vadd.f32 %v1556, %v1576
        %v1587 = vadd.f32 %v1557, %v1576
        %v1588 = vadd.f32 %v1558, %v1576
        %v1589 = vadd.f32 %v1559, %v1576
        %v1590 = vadd.f32 %v1560, %v1576
        %v1591 = vadd.f32 %v1561, %v1576
        %v1592 = vadd.f32 %v1562, %v1576
        %v1593 = vadd.f32 %v1563, %v1576
        %v1594 = vadd.f32 %v1564, %v1576
        %v1595 = vadd.f32 %v1565, %v1576
        %v1596 = vadd.f32 %v1566, %v1576
        %v1597 = vadd.f32 %v1567, %v1576
        %v1598 = vadd.f32 %v1568, %v1576
        %v1599 = vadd.f32 %v1569, %v1576
        %v1600 = vadd.f32 %v1570, %v1576
        %v1601 = vadd.f32 %v1571, %v1576
        %v1602 = vadd.f32 %v1572, %v1576
        %v1603 = vadd.f32 %v1573, %v1576
        %v1604 = vmax.f32 %v1578, 0.0
        %v1605 = vmax.f32 %v1579, 0.0
        %v1606 = vmax.f32 %v1580, 0.0
        %v1607 = vmax.f32 %v1581, 0.0
        %v1608 = vmax.f32 %v1582, 0.0
        %v1609 = vmax.f32 %v1583, 0.0
        %v1610 = vmax.f32 %v1584, 0.0
        %v1611 = vmax.f32 %v1585, 0.0
        %v1612 = vmax.f32 %v1586, 0.0
        %v1613 = vmax.f32 %v1587, 0.0
        %v1614 = vmax.f32 %v1588, 0.0
        %v1615 = vmax.f32 %v1589, 0.0
        %v1616 = vmax.f32 %v1590, 0.0
        %v1617 = vmax.f32 %v1591, 0.0
        %v1618 = vmax.f32 %v1592, 0.0
        %v1619 = vmax.f32 %v1593, 0.0
        %v1620 = vmax.f32 %v1594, 0.0
        %v1621 = vmax.f32 %v1595, 0.0
        %v1622 = vmax.f32 %v1596, 0.0
        %v1623 = vmax.f32 %v1597, 0.0
        %v1624 = vmax.f32 %v1598, 0.0
        %v1625 = vmax.f32 %v1599, 0.0
        %v1626 = vmax.f32 %v1600, 0.0
        %v1627 = vmax.f32 %v1601, 0.0
        %v1628 = vmax.f32 %v1602, 0.0
        %v1629 = vmax.f32 %v1603, 0.0
        %v1630 = vpack.c.bf16 %v1604, %v1604
        %v1631 = vpack.c.bf16 %v1605, %v1605
        %v1632 = vpack.c.bf16 %v1606, %v1606
        %v1633 = vpack.c.bf16 %v1607, %v1607
        %v1634 = vpack.c.bf16 %v1608, %v1608
        %v1635 = vpack.c.bf16 %v1609, %v1609
        %v1636 = vpack.c.bf16 %v1610, %v1610
        %v1637 = vpack.c.bf16 %v1611, %v1611
        %v1638 = vpack.c.bf16 %v1612, %v1612
        %v1639 = vpack.c.bf16 %v1613, %v1613
        %v1640 = vpack.c.bf16 %v1614, %v1614
        %v1641 = vpack.c.bf16 %v1615, %v1615
        %v1642 = vpack.c.bf16 %v1616, %v1616
        %v1643 = vpack.c.bf16 %v1617, %v1617
        %v1644 = vpack.c.bf16 %v1618, %v1618
        %v1645 = vpack.c.bf16 %v1619, %v1619
        %v1646 = vpack.c.bf16 %v1620, %v1620
        %v1647 = vpack.c.bf16 %v1621, %v1621
        %v1648 = vpack.c.bf16 %v1622, %v1622
        %v1649 = vpack.c.bf16 %v1623, %v1623
        %v1650 = vpack.c.bf16 %v1624, %v1624
        %v1651 = vpack.c.bf16 %v1625, %v1625
        %v1652 = vpack.c.bf16 %v1626, %v1626
        %v1653 = vpack.c.bf16 %v1627, %v1627
        %v1654 = vpack.c.bf16 %v1628, %v1628
        %v1655 = vpack.c.bf16 %v1629, %v1629
        %1656 = vst [vmem:[%s627] sm:$0xf] %v1630
        %1657 = vst [vmem:[%s627 + $0x4] sm:$0xf] %v1631
        %1658 = vst [vmem:[%s627 + $0x8] sm:$0xf] %v1632
        %1659 = vst [vmem:[%s627 + $0xc] sm:$0xf] %v1633
        %1660 = vst [vmem:[%s627 + $0x10] sm:$0xf] %v1634
        %1661 = vst [vmem:[%s627 + $0x14] sm:$0xf] %v1635
        %1662 = vst [vmem:[%s627 + $0x18] sm:$0xf] %v1636
        %1663 = vst [vmem:[%s627 + $0x1c] sm:$0xf] %v1637
        %1664 = vst [vmem:[%s627 + $0x20] sm:$0xf] %v1638
        %1665 = vst [vmem:[%s627 + $0x24] sm:$0xf] %v1639
        %1666 = vst [vmem:[%s627 + $0x28] sm:$0xf] %v1640
        %1667 = vst [vmem:[%s627 + $0x2c] sm:$0xf] %v1641
        %1668 = vst [vmem:[%s627 + $0x30] sm:$0xf] %v1642
        %1669 = vst [vmem:[%s627 + $0x34] sm:$0xf] %v1643
        %1670 = vst [vmem:[%s627 + $0x38] sm:$0xf] %v1644
        %1671 = vst [vmem:[%s627 + $0x3c] sm:$0xf] %v1645
        %1672 = vst [vmem:[%s627 + $0x40] sm:$0xf] %v1646
        %1673 = vst [vmem:[%s627 + $0x44] sm:$0xf] %v1647
        %1674 = vst [vmem:[%s627 + $0x48] sm:$0xf] %v1648
        %1675 = vst [vmem:[%s627 + $0x4c] sm:$0xf] %v1649
        %1676 = vst [vmem:[%s627 + $0x50] sm:$0xf] %v1650
        %1677 = vst [vmem:[%s627 + $0x54] sm:$0xf] %v1651
        %1678 = vst [vmem:[%s627 + $0x58] sm:$0xf] %v1652
        %1679 = vst [vmem:[%s627 + $0x5c] sm:$0xf] %v1653
        %1680 = vst [vmem:[%s627 + $0x60] sm:$0xf] %v1654
        %1681 = vst [vmem:[%s627 + $0x64] sm:$0xf] %v1655
        %s1682 = smul.u32 26, %s14
        %p1683 = scmp.lt.s32.totalorder %s1682, 51
        %s1684 = scalar_select %p1683, %s1682, 51
        %s1685 = smul.addr %s1684, 4
        %s1686 = scalar_lea.vmem %s3, %s1685
        // Predicated region
        $region74: #{net_forward.2} parent=68 // pred_check
          %p1687 = pneg %p100
        $region75: #{net_forward.2} parent=68 // pred_check_branch
          %1689 = sbr.rel (%p1687) target = $region77
        $region76: #{net_forward.2} parent=68 // pred_region
          %s1690 = smul.u32 26, %s14
        $region77: #{net_forward.2} parent=68 // pred_fallthru
          _
      $region69: #{net_forward.2} parent=5 // pred_fallthru
        _
      %p1691 = scmp.le.s32.totalorder 2, %s9
      // Predicated region
      $region78: #{net_forward.2} parent=5 // pred_check
        %p1692 = pneg %p1691
      $region79: #{net_forward.2} parent=5 // pred_check_branch
        %1694 = sbr.rel (%p1692) target = $region81
      $region80: #{net_forward.2} parent=5 // pred_region
        %s1695 = ssub.s32 %s9, 2
        // Predicated region
        $region82: #{net_forward.2} parent=80 // pred_check
          %p1696 = pneg %p106
        $region83: #{net_forward.2} parent=80 // pred_check_branch
          %1698 = sbr.rel (%p1696) target = $region85
        $region84: #{net_forward.2} parent=80 // pred_region
          %s1699 = smul.u32 26, %s15
          %p1700 = scmp.lt.s32.totalorder %s1699, 51
          %s1701 = scalar_select %p1700, %s1699, 51
          %s1702 = smul.addr %s1701, 4
          %s1703 = scalar_lea.vmem %s3, %s1702
        $region85: #{net_forward.2} parent=80 // pred_fallthru
          _
      $region81: #{net_forward.2} parent=5 // pred_fallthru
        _
    $region6: #{net_forward.2} parent=1 // loop_footer
      %s13 = sadd.s32 1, %s9
    $region7: #{net_forward.2} parent=1 // loop_footer_branch
      %8 = sbr.rel target = $region3
    $region8: #{net_forward.2} parent=1 // loop_exit
      _

// kernel: net_forward.3
$region0: #{net_forward.3}
  #allocation0 [shape = 'u32[]', space=smem, size = 0x4, offset = 0x4, fixed_abs, tag = 'smem constant byte address 0x4 - core index']
  #allocation1 [shape = 'u32[72,128]{1,0:T(1,128)}', space=vmem, size = 0x9000, scoped, tag = 'internal scratch']
  %s0 = inlined_call_operand.vmem [shape: bf16[4,25,16,150], index: 0, kind: input, shape index: {}]
  %s1 = inlined_call_operand.vmem [shape: bf16[150,128], index: 1, kind: input, shape index: {}]
  %s2 = inlined_call_operand.vmem [shape: f32[1,128], index: 2, kind: input, shape index: {}]
  %s3 = inlined_call_operand.vmem [shape: bf16[25,128,128], index: 3, kind: input, shape index: {}]
  %s4 = inlined_call_operand.vmem [shape: f32[1,128], index: 4, kind: input, shape index: {}]
  %s5 = inlined_call_operand.vmem [shape: bf16[128,128], index: 5, kind: input, shape index: {}]
  %s6 = inlined_call_operand.vmem [shape: f32[1,128], index: 6, kind: input, shape index: {}]
  %s7 = inlined_call_operand.vmem [shape: bf16[128,128], index: 7, kind: input, shape index: {}]
  %s8 = inlined_call_operand.vmem [shape: f32[1,128], index: 8, kind: input, shape index: {}]
  %s9 = inlined_call_operand.vmem [shape: f32[16,128], index: 9, kind: output, shape index: {}]
  %s10 = sld [smem:[#allocation0]]
  $region46: #{net_forward.3} parent=0
    _
  %s12 = ssub.s32 1, %s10
  %s13 = scalar_select 0, %s12, %s10
  // Predicated region
  $region2: #{net_forward.3} parent=0 // pred_check
    _
  $region3: #{net_forward.3} parent=0 // pred_check_branch
    %15 = sbr.rel (0) target = $region5
  $region4: #{net_forward.3} parent=0 // pred_region
    _
  $region5: #{net_forward.3} parent=0 // pred_fallthru
    _
  // Predicated region
  $region6: #{net_forward.3} parent=0 // pred_check
    _
  $region7: #{net_forward.3} parent=0 // pred_check_branch
    %17 = sbr.rel (0) target = $region9
  $region8: #{net_forward.3} parent=0 // pred_region
    _
  $region9: #{net_forward.3} parent=0 // pred_fallthru
    _
  // Predicated region
  $region10: #{net_forward.3} parent=0 // pred_check
    _
  $region11: #{net_forward.3} parent=0 // pred_check_branch
    %19 = sbr.rel (0) target = $region13
  $region12: #{net_forward.3} parent=0 // pred_region
    _
  $region13: #{net_forward.3} parent=0 // pred_fallthru
    _
  // Predicated region
  $region14: #{net_forward.3} parent=0 // pred_check
    _
  $region15: #{net_forward.3} parent=0 // pred_check_branch
    %21 = sbr.rel (0) target = $region17
  $region16: #{net_forward.3} parent=0 // pred_region
    _
  $region17: #{net_forward.3} parent=0 // pred_fallthru
    _
  // Predicated region
  $region18: #{net_forward.3} parent=0 // pred_check
    _
  $region19: #{net_forward.3} parent=0 // pred_check_branch
    %23 = sbr.rel (0) target = $region21
  $region20: #{net_forward.3} parent=0 // pred_region
    _
  $region21: #{net_forward.3} parent=0 // pred_fallthru
    _
  // Predicated region
  $region22: #{net_forward.3} parent=0 // pred_check
    _
  $region23: #{net_forward.3} parent=0 // pred_check_branch
    %25 = sbr.rel (0) target = $region25
  $region24: #{net_forward.3} parent=0 // pred_region
    _
  $region25: #{net_forward.3} parent=0 // pred_fallthru
    _
  // Predicated region
  $region26: #{net_forward.3} parent=0 // pred_check
    _
  $region27: #{net_forward.3} parent=0 // pred_check_branch
    %27 = sbr.rel (0) target = $region29
  $region28: #{net_forward.3} parent=0 // pred_region
    _
  $region29: #{net_forward.3} parent=0 // pred_fallthru
    _
  // Predicated region
  $region30: #{net_forward.3} parent=0 // pred_check
    _
  $region31: #{net_forward.3} parent=0 // pred_check_branch
    %29 = sbr.rel (0) target = $region33
  $region32: #{net_forward.3} parent=0 // pred_region
    _
  $region33: #{net_forward.3} parent=0 // pred_fallthru
    _
  // Predicated region
  $region34: #{net_forward.3} parent=0 // pred_check
    _
  $region35: #{net_forward.3} parent=0 // pred_check_branch
    %31 = sbr.rel (0) target = $region37
  $region36: #{net_forward.3} parent=0 // pred_region
    _
  $region37: #{net_forward.3} parent=0 // pred_fallthru
    _
  %v33 = vld [vmem:[%s1] sm:$0xf]
  %v34 = vld [vmem:[%s1 + $0x4] sm:$0xf]
  %v35 = vld [vmem:[%s1 + $0x8] sm:$0xf]
  %v36 = vld [vmem:[%s1 + $0xc] sm:$0xf]
  %v37 = vld [vmem:[%s1 + $0x10] sm:$0xf]
  %v38 = vld [vmem:[%s1 + $0x14] sm:$0xf]
  %v39 = vld [vmem:[%s1 + $0x18] sm:$0xf]
  %v40 = vld [vmem:[%s1 + $0x1c] sm:$0xf]
  %v41 = vld [vmem:[%s1 + $0x20] sm:$0xf]
  %v42 = vld [vmem:[%s1 + $0x24] sm:$0xf]
  %v43 = vld [vmem:[%s1 + $0x28] sm:$0xf]
  %v44 = vld [vmem:[%s1 + $0x2c] sm:$0xf]
  %v45 = vld [vmem:[%s1 + $0x30] sm:$0xf]
  %v46 = vld [vmem:[%s1 + $0x34] sm:$0xf]
  %v47 = vld [vmem:[%s1 + $0x38] sm:$0xf]
  %v48 = vld [vmem:[%s1 + $0x3c] sm:$0xf]
  %v49 = vld [vmem:[%s1 + $0x40] sm:$0xf]
  %v50 = vld [vmem:[%s1 + $0x44] sm:$0xf]
  %v51 = vld [vmem:[%s1 + $0x48] sm:$0x7]
  %v52 = vld [vmem:[%s0] sm:$0xff]
  %v53 = vld [vmem:[%s0 + $0x8] sm:$0xff]
  %v54 = vld [vmem:[%s0 + $0x10] sm:$0xff]
  %v55 = vld [vmem:[%s0 + $0x18] sm:$0xff]
  %v56 = vld [vmem:[%s0 + $0x20] sm:$0xff]
  %v57 = vld [vmem:[%s0 + $0x28] sm:$0xff]
  %v58 = vld [vmem:[%s0 + $0x30] sm:$0xff]
  %v59 = vld [vmem:[%s0 + $0x38] sm:$0xff]
  %v60 = vld [vmem:[%s0 + $0x40] sm:$0xff]
  %v61 = vld [vmem:[%s0 + $0x48] sm:$0xff]
  %v62 = vld [vmem:[%s0 + $0x50] sm:$0xff]
  %v63 = vld [vmem:[%s0 + $0x58] sm:$0xff]
  %v64 = vld [vmem:[%s0 + $0x60] sm:$0xff]
  %v65 = vld [vmem:[%s0 + $0x68] sm:$0xff]
  %v66 = vld [vmem:[%s0 + $0x70] sm:$0xff]
  %v67 = vld [vmem:[%s0 + $0x78] sm:$0xff]
  %v68 = vld [vmem:[%s0 + $0x80] sm:$0xff]
  %v69 = vld [vmem:[%s0 + $0x88] sm:$0xff]
  %v70 = vld [vmem:[%s0 + $0x90] sm:$0xff]
  %v71 = vld [vmem:[%s0 + $0x98] sm:$0xff]
  %v72 = vld [vmem:[%s0 + $0xa0] sm:$0xff]
  %v73 = vld [vmem:[%s0 + $0xa8] sm:$0xff]
  %v74 = vld [vmem:[%s0 + $0xb0] sm:$0xff]
  %v75 = vld [vmem:[%s0 + $0xb8] sm:$0xff]
  %v76 = vld [vmem:[%s0 + $0xc0] sm:$0xff]
  %v77 = vld [vmem:[%s0 + $0xc8] sm:$0xff]
  %v78 = vld [vmem:[%s0 + $0xd0] sm:$0xff]
  %v79 = vld [vmem:[%s0 + $0xd8] sm:$0xff]
  %v80 = vld [vmem:[%s0 + $0xe0] sm:$0xff]
  %v81 = vld [vmem:[%s0 + $0xe8] sm:$0xff]
  %v82 = vld [vmem:[%s0 + $0xf0] sm:$0xff]
  %v83 = vld [vmem:[%s0 + $0xf8] sm:$0xff]
  %v84 = vld [vmem:[%s0 + $0x100] sm:$0xff]
  %v85 = vld [vmem:[%s0 + $0x108] sm:$0xff]
  %v86 = vld [vmem:[%s0 + $0x110] sm:$0xff]
  %v87 = vld [vmem:[%s0 + $0x118] sm:$0xff]
  %v88 = vld [vmem:[%s0 + $0x120] sm:$0xff]
  %v89 = vld [vmem:[%s0 + $0x128] sm:$0xff]
  %v90 = vld [vmem:[%s0 + $0x130] sm:$0xff]
  %v91 = vld [vmem:[%s0 + $0x138] sm:$0xff]
  %v92 = vld [vmem:[%s0 + $0x140] sm:$0xff]
  %v93 = vld [vmem:[%s0 + $0x148] sm:$0xff]
  %v94 = vld [vmem:[%s0 + $0x150] sm:$0xff]
  %v95 = vld [vmem:[%s0 + $0x158] sm:$0xff]
  %v96 = vld [vmem:[%s0 + $0x160] sm:$0xff]
  %v97 = vld [vmem:[%s0 + $0x168] sm:$0xff]
  %v98 = vld [vmem:[%s0 + $0x170] sm:$0xff]
  %v99 = vld [vmem:[%s0 + $0x178] sm:$0xff]
  %v100 = vld [vmem:[%s0 + $0x180] sm:$0xff]
  %v101 = vld [vmem:[%s0 + $0x188] sm:$0xff]
  %v152 = vunpack.c.l.b16 %v52
  %v153 = vunpack.c.h.b16 %v52
  %v154 = vunpack.c.l.b16 %v53
  %v155 = vunpack.c.h.b16 %v53
  %v156 = vunpack.c.l.b16 %v54
  %v157 = vunpack.c.h.b16 %v54
  %v158 = vunpack.c.l.b16 %v55
  %v159 = vunpack.c.h.b16 %v55
  %v160 = vunpack.c.l.b16 %v56
  %v161 = vunpack.c.h.b16 %v56
  %v162 = vunpack.c.l.b16 %v57
  %v163 = vunpack.c.h.b16 %v57
  %v164 = vunpack.c.l.b16 %v58
  %v165 = vunpack.c.h.b16 %v58
  %v166 = vunpack.c.l.b16 %v59
  %v167 = vunpack.c.h.b16 %v59
  %v168 = vunpack.c.l.b16 %v60
  %v169 = vunpack.c.h.b16 %v60
  %v170 = vunpack.c.l.b16 %v61
  %v171 = vunpack.c.h.b16 %v61
  %v172 = vunpack.c.l.b16 %v62
  %v173 = vunpack.c.h.b16 %v62
  %v174 = vunpack.c.l.b16 %v63
  %v175 = vunpack.c.h.b16 %v63
  %v176 = vunpack.c.l.b16 %v64
  %v177 = vunpack.c.h.b16 %v64
  %v178 = vunpack.c.l.b16 %v65
  %v179 = vunpack.c.h.b16 %v65
  %v180 = vunpack.c.l.b16 %v66
  %v181 = vunpack.c.h.b16 %v66
  %v182 = vunpack.c.l.b16 %v67
  %v183 = vunpack.c.h.b16 %v67
  %v184 = vunpack.c.l.b16 %v68
  %v185 = vunpack.c.h.b16 %v68
  %v186 = vunpack.c.l.b16 %v69
  %v187 = vunpack.c.h.b16 %v69
  %v188 = vunpack.c.l.b16 %v70
  %v189 = vunpack.c.h.b16 %v70
  %v190 = vunpack.c.l.b16 %v71
  %v191 = vunpack.c.h.b16 %v71
  %v192 = vunpack.c.l.b16 %v72
  %v193 = vunpack.c.h.b16 %v72
  %v194 = vunpack.c.l.b16 %v73
  %v195 = vunpack.c.h.b16 %v73
  %v196 = vunpack.c.l.b16 %v74
  %v197 = vunpack.c.h.b16 %v74
  %v198 = vunpack.c.l.b16 %v75
  %v199 = vunpack.c.h.b16 %v75
  %v200 = vunpack.c.l.b16 %v76
  %v201 = vunpack.c.h.b16 %v76
  %v202 = vunpack.c.l.b16 %v77
  %v203 = vunpack.c.h.b16 %v77
  %v204 = vunpack.c.l.b16 %v78
  %v205 = vunpack.c.h.b16 %v78
  %v206 = vunpack.c.l.b16 %v79
  %v207 = vunpack.c.h.b16 %v79
  %v208 = vunpack.c.l.b16 %v80
  %v209 = vunpack.c.h.b16 %v80
  %v210 = vunpack.c.l.b16 %v81
  %v211 = vunpack.c.h.b16 %v81
  %v212 = vunpack.c.l.b16 %v82
  %v213 = vunpack.c.h.b16 %v82
  %v214 = vunpack.c.l.b16 %v83
  %v215 = vunpack.c.h.b16 %v83
  %v216 = vunpack.c.l.b16 %v84
  %v217 = vunpack.c.h.b16 %v84
  %v218 = vunpack.c.l.b16 %v85
  %v219 = vunpack.c.h.b16 %v85
  %v220 = vunpack.c.l.b16 %v86
  %v221 = vunpack.c.h.b16 %v86
  %v222 = vunpack.c.l.b16 %v87
  %v223 = vunpack.c.h.b16 %v87
  %v224 = vunpack.c.l.b16 %v88
  %v225 = vunpack.c.h.b16 %v88
  %v226 = vunpack.c.l.b16 %v89
  %v227 = vunpack.c.h.b16 %v89
  %v228 = vunpack.c.l.b16 %v90
  %v229 = vunpack.c.h.b16 %v90
  %v230 = vunpack.c.l.b16 %v91
  %v231 = vunpack.c.h.b16 %v91
  %v232 = vunpack.c.l.b16 %v92
  %v233 = vunpack.c.h.b16 %v92
  %v234 = vunpack.c.l.b16 %v93
  %v235 = vunpack.c.h.b16 %v93
  %v236 = vunpack.c.l.b16 %v94
  %v237 = vunpack.c.h.b16 %v94
  %v238 = vunpack.c.l.b16 %v95
  %v239 = vunpack.c.h.b16 %v95
  %v240 = vunpack.c.l.b16 %v96
  %v241 = vunpack.c.h.b16 %v96
  %v242 = vunpack.c.l.b16 %v97
  %v243 = vunpack.c.h.b16 %v97
  %v244 = vunpack.c.l.b16 %v98
  %v245 = vunpack.c.h.b16 %v98
  %v246 = vunpack.c.l.b16 %v99
  %v247 = vunpack.c.h.b16 %v99
  %v248 = vunpack.c.l.b16 %v100
  %v249 = vunpack.c.h.b16 %v100
  %v250 = vunpack.c.l.b16 %v101
  %v251 = vunpack.c.h.b16 %v101
  %v252 = vpack.c.b16 %v154, %v152
  %v253 = vpack.c.b16 %v155, %v153
  %v254 = vpack.c.b16 %v158, %v156
  %v255 = vpack.c.b16 %v159, %v157
  %v256 = vpack.c.b16 %v162, %v160
  %v257 = vpack.c.b16 %v163, %v161
  %v258 = vpack.c.b16 %v166, %v164
  %v259 = vpack.c.b16 %v167, %v165
  %v260 = vpack.c.b16 %v170, %v168
  %v261 = vpack.c.b16 %v171, %v169
  %v262 = vpack.c.b16 %v174, %v172
  %v263 = vpack.c.b16 %v175, %v173
  %v264 = vpack.c.b16 %v178, %v176
  %v265 = vpack.c.b16 %v179, %v177
  %v266 = vpack.c.b16 %v182, %v180
  %v267 = vpack.c.b16 %v183, %v181
  %v268 = vpack.c.b16 %v186, %v184
  %v269 = vpack.c.b16 %v187, %v185
  %v270 = vpack.c.b16 %v190, %v188
  %v271 = vpack.c.b16 %v191, %v189
  %v272 = vpack.c.b16 %v194, %v192
  %v273 = vpack.c.b16 %v195, %v193
  %v274 = vpack.c.b16 %v198, %v196
  %v275 = vpack.c.b16 %v199, %v197
  %v276 = vpack.c.b16 %v202, %v200
  %v277 = vpack.c.b16 %v203, %v201
  %v278 = vpack.c.b16 %v206, %v204
  %v279 = vpack.c.b16 %v207, %v205
  %v280 = vpack.c.b16 %v210, %v208
  %v281 = vpack.c.b16 %v211, %v209
  %v282 = vpack.c.b16 %v214, %v212
  %v283 = vpack.c.b16 %v215, %v213
  %v284 = vpack.c.b16 %v218, %v216
  %v285 = vpack.c.b16 %v219, %v217
  %v286 = vpack.c.b16 %v222, %v220
  %v287 = vpack.c.b16 %v223, %v221
  %v288 = vpack.c.b16 %v226, %v224
  %v289 = vpack.c.b16 %v227, %v225
  %v290 = vpack.c.b16 %v230, %v228
  %v291 = vpack.c.b16 %v231, %v229
  %v292 = vpack.c.b16 %v234, %v232
  %v293 = vpack.c.b16 %v235, %v233
  %v294 = vpack.c.b16 %v238, %v236
  %v295 = vpack.c.b16 %v239, %v237
  %v296 = vpack.c.b16 %v242, %v240
  %v297 = vpack.c.b16 %v243, %v241
  %v298 = vpack.c.b16 %v246, %v244
  %v299 = vpack.c.b16 %v247, %v245
  %v300 = vpack.c.b16 %v250, %v248
  %v301 = vpack.c.b16 %v251, %v249
  %v346 = vunpack.c.l.b16 %v33
  %v347 = vunpack.c.l.b16 %v34
  %v348 = vunpack.c.l.b16 %v35
  %v349 = vunpack.c.l.b16 %v36
  %v350 = vunpack.c.l.b16 %v37
  %v351 = vunpack.c.l.b16 %v38
  %v352 = vunpack.c.l.b16 %v39
  %v353 = vunpack.c.l.b16 %v40
  %v354 = vunpack.c.l.b16 %v41
  %v355 = vunpack.c.l.b16 %v42
  %v356 = vunpack.c.l.b16 %v43
  %v357 = vunpack.c.l.b16 %v44
  %v358 = vunpack.c.l.b16 %v45
  %v359 = vunpack.c.l.b16 %v46
  %v360 = vunpack.c.l.b16 %v47
  %v361 = vunpack.c.l.b16 %v48
  %v362 = vunpack.c.l.b16 %v49
  %v363 = vunpack.c.l.b16 %v50
  %v364 = vunpack.c.l.b16 %v51
  %v365 = vpack.c.b16 %v347, %v346
  %v366 = vpack.c.b16 %v349, %v348
  %v367 = vpack.c.b16 %v351, %v350
  %v368 = vpack.c.b16 %v353, %v352
  %v369 = vpack.c.b16 %v355, %v354
  %v370 = vpack.c.b16 %v357, %v356
  %v371 = vpack.c.b16 %v359, %v358
  %v372 = vpack.c.b16 %v361, %v360
  %v373 = vpack.c.b16 %v363, %v362
  %v374 = vpack.c.b16 %v364, %v364
  %vm384 = vcmask 179200
  %v386 = vsel %vm384, %v253, 0
  %v389 = vsel %vm384, %v255, 0
  %v392 = vsel %vm384, %v257, 0
  %v395 = vsel %vm384, %v259, 0
  %v398 = vsel %vm384, %v261, 0
  %v401 = vsel %vm384, %v263, 0
  %v404 = vsel %vm384, %v265, 0
  %v407 = vsel %vm384, %v267, 0
  %v410 = vsel %vm384, %v269, 0
  %v413 = vsel %vm384, %v271, 0
  %v416 = vsel %vm384, %v273, 0
  %v419 = vsel %vm384, %v275, 0
  %v422 = vsel %vm384, %v277, 0
  %v425 = vsel %vm384, %v279, 0
  %v428 = vsel %vm384, %v281, 0
  %v431 = vsel %vm384, %v283, 0
  %v434 = vsel %vm384, %v285, 0
  %v437 = vsel %vm384, %v287, 0
  %v440 = vsel %vm384, %v289, 0
  %v443 = vsel %vm384, %v291, 0
  %v446 = vsel %vm384, %v293, 0
  %v449 = vsel %vm384, %v295, 0
  %v452 = vsel %vm384, %v297, 0
  %v455 = vsel %vm384, %v299, 0
  %v458 = vsel %vm384, %v301, 0
  %vm460 = vcmask 1042432
  %v462 = vsel %vm460, %v374, 0
  %464 = vmatpush.bf16.msra.mxu0 %v372
  %465 = vmatpush.bf16.msra.mxu0 %v371
  %466 = vmatpush.bf16.msra.mxu0 %v370
  %467 = vmatpush.bf16.msra.mxu0 %v369
  %468 = vmatpush.bf16.msra.mxu0 %v368
  %469 = vmatpush.bf16.msra.mxu0 %v367
  %470 = vmatpush.bf16.msra.mxu0 %v366
  %471 = vmatpush.bf16.msra.mxu0 %v365
  %472 = vmatmul.bf16.gmra.mxu0 %v252
  %v473 = vpop.f32.mrf.mxu0
  %v474 = vadd.f32 0.0, %v473
  %v475 = vpop.f32.mrf.mxu0
  %v476 = vadd.f32 0.0, %v475
  %477 = vmatmul.bf16.gmra.mxu0 %v254
  %v478 = vpop.f32.mrf.mxu0
  %v479 = vadd.f32 0.0, %v478
  %v480 = vpop.f32.mrf.mxu0
  %v481 = vadd.f32 0.0, %v480
  %482 = vmatmul.bf16.gmra.mxu0 %v256
  %v483 = vpop.f32.mrf.mxu0
  %v484 = vadd.f32 0.0, %v483
  %v485 = vpop.f32.mrf.mxu0
  %v486 = vadd.f32 0.0, %v485
  %487 = vmatmul.bf16.gmra.mxu0 %v258
  %v488 = vpop.f32.mrf.mxu0
  %v489 = vadd.f32 0.0, %v488
  %v490 = vpop.f32.mrf.mxu0
  %v491 = vadd.f32 0.0, %v490
  %492 = vmatmul.bf16.gmra.mxu0 %v260
  %v493 = vpop.f32.mrf.mxu0
  %v494 = vadd.f32 0.0, %v493
  %v495 = vpop.f32.mrf.mxu0
  %v496 = vadd.f32 0.0, %v495
  %497 = vmatmul.bf16.gmra.mxu0 %v262
  %v498 = vpop.f32.mrf.mxu0
  %v499 = vadd.f32 0.0, %v498
  %v500 = vpop.f32.mrf.mxu0
  %v501 = vadd.f32 0.0, %v500
  %502 = vmatmul.bf16.gmra.mxu0 %v264
  %v503 = vpop.f32.mrf.mxu0
  %v504 = vadd.f32 0.0, %v503
  %v505 = vpop.f32.mrf.mxu0
  %v506 = vadd.f32 0.0, %v505
  %507 = vmatmul.bf16.gmra.mxu0 %v266
  %v508 = vpop.f32.mrf.mxu0
  %v509 = vadd.f32 0.0, %v508
  %v510 = vpop.f32.mrf.mxu0
  %v511 = vadd.f32 0.0, %v510
  %512 = vmatmul.bf16.gmra.mxu0 %v268
  %v513 = vpop.f32.mrf.mxu0
  %v514 = vadd.f32 0.0, %v513
  %v515 = vpop.f32.mrf.mxu0
  %v516 = vadd.f32 0.0, %v515
  %517 = vmatmul.bf16.gmra.mxu0 %v270
  %v518 = vpop.f32.mrf.mxu0
  %v519 = vadd.f32 0.0, %v518
  %v520 = vpop.f32.mrf.mxu0
  %v521 = vadd.f32 0.0, %v520
  %522 = vmatmul.bf16.gmra.mxu0 %v272
  %v523 = vpop.f32.mrf.mxu0
  %v524 = vadd.f32 0.0, %v523
  %v525 = vpop.f32.mrf.mxu0
  %v526 = vadd.f32 0.0, %v525
  %527 = vmatmul.bf16.gmra.mxu0 %v274
  %v528 = vpop.f32.mrf.mxu0
  %v529 = vadd.f32 0.0, %v528
  %v530 = vpop.f32.mrf.mxu0
  %v531 = vadd.f32 0.0, %v530
  %532 = vmatmul.bf16.gmra.mxu0 %v276
  %v533 = vpop.f32.mrf.mxu0
  %v534 = vadd.f32 0.0, %v533
  %v535 = vpop.f32.mrf.mxu0
  %v536 = vadd.f32 0.0, %v535
  %537 = vmatmul.bf16.gmra.mxu0 %v278
  %v538 = vpop.f32.mrf.mxu0
  %v539 = vadd.f32 0.0, %v538
  %v540 = vpop.f32.mrf.mxu0
  %v541 = vadd.f32 0.0, %v540
  %542 = vmatmul.bf16.gmra.mxu0 %v280
  %v543 = vpop.f32.mrf.mxu0
  %v544 = vadd.f32 0.0, %v543
  %v545 = vpop.f32.mrf.mxu0
  %v546 = vadd.f32 0.0, %v545
  %547 = vmatmul.bf16.gmra.mxu0 %v282
  %v548 = vpop.f32.mrf.mxu0
  %v549 = vadd.f32 0.0, %v548
  %v550 = vpop.f32.mrf.mxu0
  %v551 = vadd.f32 0.0, %v550
  %552 = vmatmul.bf16.gmra.mxu0 %v284
  %v553 = vpop.f32.mrf.mxu0
  %v554 = vadd.f32 0.0, %v553
  %v555 = vpop.f32.mrf.mxu0
  %v556 = vadd.f32 0.0, %v555
  %557 = vmatmul.bf16.gmra.mxu0 %v286
  %v558 = vpop.f32.mrf.mxu0
  %v559 = vadd.f32 0.0, %v558
  %v560 = vpop.f32.mrf.mxu0
  %v561 = vadd.f32 0.0, %v560
  %562 = vmatmul.bf16.gmra.mxu0 %v288
  %v563 = vpop.f32.mrf.mxu0
  %v564 = vadd.f32 0.0, %v563
  %v565 = vpop.f32.mrf.mxu0
  %v566 = vadd.f32 0.0, %v565
  %567 = vmatmul.bf16.gmra.mxu0 %v290
  %v568 = vpop.f32.mrf.mxu0
  %v569 = vadd.f32 0.0, %v568
  %v570 = vpop.f32.mrf.mxu0
  %v571 = vadd.f32 0.0, %v570
  %572 = vmatmul.bf16.gmra.mxu0 %v292
  %v573 = vpop.f32.mrf.mxu0
  %v574 = vadd.f32 0.0, %v573
  %v575 = vpop.f32.mrf.mxu0
  %v576 = vadd.f32 0.0, %v575
  %577 = vmatmul.bf16.gmra.mxu0 %v294
  %v578 = vpop.f32.mrf.mxu0
  %v579 = vadd.f32 0.0, %v578
  %v580 = vpop.f32.mrf.mxu0
  %v581 = vadd.f32 0.0, %v580
  %582 = vmatmul.bf16.gmra.mxu0 %v296
  %v583 = vpop.f32.mrf.mxu0
  %v584 = vadd.f32 0.0, %v583
  %v585 = vpop.f32.mrf.mxu0
  %v586 = vadd.f32 0.0, %v585
  %587 = vmatmul.bf16.gmra.mxu0 %v298
  %v588 = vpop.f32.mrf.mxu0
  %v589 = vadd.f32 0.0, %v588
  %v590 = vpop.f32.mrf.mxu0
  %v591 = vadd.f32 0.0, %v590
  %592 = vmatmul.bf16.gmra.mxu0 %v300
  %v593 = vpop.f32.mrf.mxu0
  %v594 = vadd.f32 0.0, %v593
  %v595 = vpop.f32.mrf.mxu0
  %v596 = vadd.f32 0.0, %v595
  %597 = vdwg.mxu0
  %598 = vmatpush.bf16.msra.mxu0 0
  %599 = vmatpush.bf16.msra.mxu0 0
  %600 = vmatpush.bf16.msra.mxu0 0
  %601 = vmatpush.bf16.msra.mxu0 0
  %602 = vmatpush.bf16.msra.mxu0 0
  %603 = vmatpush.bf16.msra.mxu0 0
  %604 = vmatpush.bf16.msra.mxu0 %v462
  %605 = vmatpush.bf16.msra.mxu0 %v373
  %606 = vmatmul.bf16.gmra.mxu0 %v386
  %v607 = vpop.f32.mrf.mxu0
  %v608 = vadd.f32 %v474, %v607
  %v609 = vpop.f32.mrf.mxu0
  %v610 = vadd.f32 %v476, %v609
  %611 = vmatmul.bf16.gmra.mxu0 %v389
  %v612 = vpop.f32.mrf.mxu0
  %v613 = vadd.f32 %v479, %v612
  %v614 = vpop.f32.mrf.mxu0
  %v615 = vadd.f32 %v481, %v614
  %616 = vmatmul.bf16.gmra.mxu0 %v392
  %v617 = vpop.f32.mrf.mxu0
  %v618 = vadd.f32 %v484, %v617
  %v619 = vpop.f32.mrf.mxu0
  %v620 = vadd.f32 %v486, %v619
  %621 = vmatmul.bf16.gmra.mxu0 %v395
  %v622 = vpop.f32.mrf.mxu0
  %v623 = vadd.f32 %v489, %v622
  %v624 = vpop.f32.mrf.mxu0
  %v625 = vadd.f32 %v491, %v624
  %626 = vmatmul.bf16.gmra.mxu0 %v398
  %v627 = vpop.f32.mrf.mxu0
  %v628 = vadd.f32 %v494, %v627
  %v629 = vpop.f32.mrf.mxu0
  %v630 = vadd.f32 %v496, %v629
  %631 = vmatmul.bf16.gmra.mxu0 %v401
  %v632 = vpop.f32.mrf.mxu0
  %v633 = vadd.f32 %v499, %v632
  %v634 = vpop.f32.mrf.mxu0
  %v635 = vadd.f32 %v501, %v634
  %636 = vmatmul.bf16.gmra.mxu0 %v404
  %v637 = vpop.f32.mrf.mxu0
  %v638 = vadd.f32 %v504, %v637
  %v639 = vpop.f32.mrf.mxu0
  %v640 = vadd.f32 %v506, %v639
  %641 = vmatmul.bf16.gmra.mxu0 %v407
  %v642 = vpop.f32.mrf.mxu0
  %v643 = vadd.f32 %v509, %v642
  %v644 = vpop.f32.mrf.mxu0
  %v645 = vadd.f32 %v511, %v644
  %646 = vmatmul.bf16.gmra.mxu0 %v410
  %v647 = vpop.f32.mrf.mxu0
  %v648 = vadd.f32 %v514, %v647
  %v649 = vpop.f32.mrf.mxu0
  %v650 = vadd.f32 %v516, %v649
  %651 = vmatmul.bf16.gmra.mxu0 %v413
  %v652 = vpop.f32.mrf.mxu0
  %v653 = vadd.f32 %v519, %v652
  %v654 = vpop.f32.mrf.mxu0
  %v655 = vadd.f32 %v521, %v654
  %656 = vmatmul.bf16.gmra.mxu0 %v416
  %v657 = vpop.f32.mrf.mxu0
  %v658 = vadd.f32 %v524, %v657
  %v659 = vpop.f32.mrf.mxu0
  %v660 = vadd.f32 %v526, %v659
  %661 = vmatmul.bf16.gmra.mxu0 %v419
  %v662 = vpop.f32.mrf.mxu0
  %v663 = vadd.f32 %v529, %v662
  %v664 = vpop.f32.mrf.mxu0
  %v665 = vadd.f32 %v531, %v664
  %666 = vmatmul.bf16.gmra.mxu0 %v422
  %v667 = vpop.f32.mrf.mxu0
  %v668 = vadd.f32 %v534, %v667
  %v669 = vpop.f32.mrf.mxu0
  %v670 = vadd.f32 %v536, %v669
  %671 = vmatmul.bf16.gmra.mxu0 %v425
  %v672 = vpop.f32.mrf.mxu0
  %v673 = vadd.f32 %v539, %v672
  %v674 = vpop.f32.mrf.mxu0
  %v675 = vadd.f32 %v541, %v674
  %676 = vmatmul.bf16.gmra.mxu0 %v428
  %v677 = vpop.f32.mrf.mxu0
  %v678 = vadd.f32 %v544, %v677
  %v679 = vpop.f32.mrf.mxu0
  %v680 = vadd.f32 %v546, %v679
  %681 = vmatmul.bf16.gmra.mxu0 %v431
  %v682 = vpop.f32.mrf.mxu0
  %v683 = vadd.f32 %v549, %v682
  %v684 = vpop.f32.mrf.mxu0
  %v685 = vadd.f32 %v551, %v684
  %686 = vmatmul.bf16.gmra.mxu0 %v434
  %v687 = vpop.f32.mrf.mxu0
  %v688 = vadd.f32 %v554, %v687
  %v689 = vpop.f32.mrf.mxu0
  %v690 = vadd.f32 %v556, %v689
  %691 = vmatmul.bf16.gmra.mxu0 %v437
  %v692 = vpop.f32.mrf.mxu0
  %v693 = vadd.f32 %v559, %v692
  %v694 = vpop.f32.mrf.mxu0
  %v695 = vadd.f32 %v561, %v694
  %696 = vmatmul.bf16.gmra.mxu0 %v440
  %v697 = vpop.f32.mrf.mxu0
  %v698 = vadd.f32 %v564, %v697
  %v699 = vpop.f32.mrf.mxu0
  %v700 = vadd.f32 %v566, %v699
  %701 = vmatmul.bf16.gmra.mxu0 %v443
  %v702 = vpop.f32.mrf.mxu0
  %v703 = vadd.f32 %v569, %v702
  %v704 = vpop.f32.mrf.mxu0
  %v705 = vadd.f32 %v571, %v704
  %706 = vmatmul.bf16.gmra.mxu0 %v446
  %v707 = vpop.f32.mrf.mxu0
  %v708 = vadd.f32 %v574, %v707
  %v709 = vpop.f32.mrf.mxu0
  %v710 = vadd.f32 %v576, %v709
  %711 = vmatmul.bf16.gmra.mxu0 %v449
  %v712 = vpop.f32.mrf.mxu0
  %v713 = vadd.f32 %v579, %v712
  %v714 = vpop.f32.mrf.mxu0
  %v715 = vadd.f32 %v581, %v714
  %716 = vmatmul.bf16.gmra.mxu0 %v452
  %v717 = vpop.f32.mrf.mxu0
  %v718 = vadd.f32 %v584, %v717
  %v719 = vpop.f32.mrf.mxu0
  %v720 = vadd.f32 %v586, %v719
  %721 = vmatmul.bf16.gmra.mxu0 %v455
  %v722 = vpop.f32.mrf.mxu0
  %v723 = vadd.f32 %v589, %v722
  %v724 = vpop.f32.mrf.mxu0
  %v725 = vadd.f32 %v591, %v724
  %726 = vmatmul.bf16.gmra.mxu0 %v458
  %v727 = vpop.f32.mrf.mxu0
  %v728 = vadd.f32 %v594, %v727
  %v729 = vpop.f32.mrf.mxu0
  %v730 = vadd.f32 %v596, %v729
  %731 = vdwg.mxu0
  %s732 = scalar_lea.vmem %s0, 400
  %v733 = vld [vmem:[%s732] sm:$0xff]
  %v734 = vld [vmem:[%s732 + $0x8] sm:$0xff]
  %v735 = vld [vmem:[%s732 + $0x10] sm:$0xff]
  %v736 = vld [vmem:[%s732 + $0x18] sm:$0xff]
  %v737 = vld [vmem:[%s732 + $0x20] sm:$0xff]
  %v738 = vld [vmem:[%s732 + $0x28] sm:$0xff]
  %v739 = vld [vmem:[%s732 + $0x30] sm:$0xff]
  %v740 = vld [vmem:[%s732 + $0x38] sm:$0xff]
  %v741 = vld [vmem:[%s732 + $0x40] sm:$0xff]
  %v742 = vld [vmem:[%s732 + $0x48] sm:$0xff]
  %v743 = vld [vmem:[%s732 + $0x50] sm:$0xff]
  %v744 = vld [vmem:[%s732 + $0x58] sm:$0xff]
  %v745 = vld [vmem:[%s732 + $0x60] sm:$0xff]
  %v746 = vld [vmem:[%s732 + $0x68] sm:$0xff]
  %v747 = vld [vmem:[%s732 + $0x70] sm:$0xff]
  %v748 = vld [vmem:[%s732 + $0x78] sm:$0xff]
  %v749 = vld [vmem:[%s732 + $0x80] sm:$0xff]
  %v750 = vld [vmem:[%s732 + $0x88] sm:$0xff]
  %v751 = vld [vmem:[%s732 + $0x90] sm:$0xff]
  %v752 = vld [vmem:[%s732 + $0x98] sm:$0xff]
  %v753 = vld [vmem:[%s732 + $0xa0] sm:$0xff]
  %v754 = vld [vmem:[%s732 + $0xa8] sm:$0xff]
  %v755 = vld [vmem:[%s732 + $0xb0] sm:$0xff]
  %v756 = vld [vmem:[%s732 + $0xb8] sm:$0xff]
  %v757 = vld [vmem:[%s732 + $0xc0] sm:$0xff]
  %v758 = vld [vmem:[%s732 + $0xc8] sm:$0xff]
  %v759 = vld [vmem:[%s732 + $0xd0] sm:$0xff]
  %v760 = vld [vmem:[%s732 + $0xd8] sm:$0xff]
  %v761 = vld [vmem:[%s732 + $0xe0] sm:$0xff]
  %v762 = vld [vmem:[%s732 + $0xe8] sm:$0xff]
  %v763 = vld [vmem:[%s732 + $0xf0] sm:$0xff]
  %v764 = vld [vmem:[%s732 + $0xf8] sm:$0xff]
  %v765 = vld [vmem:[%s732 + $0x100] sm:$0xff]
  %v766 = vld [vmem:[%s732 + $0x108] sm:$0xff]
  %v767 = vld [vmem:[%s732 + $0x110] sm:$0xff]
  %v768 = vld [vmem:[%s732 + $0x118] sm:$0xff]
  %v769 = vld [vmem:[%s732 + $0x120] sm:$0xff]
  %v770 = vld [vmem:[%s732 + $0x128] sm:$0xff]
  %v771 = vld [vmem:[%s732 + $0x130] sm:$0xff]
  %v772 = vld [vmem:[%s732 + $0x138] sm:$0xff]
  %v773 = vld [vmem:[%s732 + $0x140] sm:$0xff]
  %v774 = vld [vmem:[%s732 + $0x148] sm:$0xff]
  %v775 = vld [vmem:[%s732 + $0x150] sm:$0xff]
  %v776 = vld [vmem:[%s732 + $0x158] sm:$0xff]
  %v777 = vld [vmem:[%s732 + $0x160] sm:$0xff]
  %v778 = vld [vmem:[%s732 + $0x168] sm:$0xff]
  %v779 = vld [vmem:[%s732 + $0x170] sm:$0xff]
  %v780 = vld [vmem:[%s732 + $0x178] sm:$0xff]
  %v781 = vld [vmem:[%s732 + $0x180] sm:$0xff]
  %v782 = vld [vmem:[%s732 + $0x188] sm:$0xff]
  %v833 = vunpack.c.l.b16 %v733
  %v834 = vunpack.c.h.b16 %v733
  %v835 = vunpack.c.l.b16 %v734
  %v836 = vunpack.c.h.b16 %v734
  %v837 = vunpack.c.l.b16 %v735
  %v838 = vunpack.c.h.b16 %v735
  %v839 = vunpack.c.l.b16 %v736
  %v840 = vunpack.c.h.b16 %v736
  %v841 = vunpack.c.l.b16 %v737
  %v842 = vunpack.c.h.b16 %v737
  %v843 = vunpack.c.l.b16 %v738
  %v844 = vunpack.c.h.b16 %v738
  %v845 = vunpack.c.l.b16 %v739
  %v846 = vunpack.c.h.b16 %v739
  %v847 = vunpack.c.l.b16 %v740
  %v848 = vunpack.c.h.b16 %v740
  %v849 = vunpack.c.l.b16 %v741
  %v850 = vunpack.c.h.b16 %v741
  %v851 = vunpack.c.l.b16 %v742
  %v852 = vunpack.c.h.b16 %v742
  %v853 = vunpack.c.l.b16 %v743
  %v854 = vunpack.c.h.b16 %v743
  %v855 = vunpack.c.l.b16 %v744
  %v856 = vunpack.c.h.b16 %v744
  %v857 = vunpack.c.l.b16 %v745
  %v858 = vunpack.c.h.b16 %v745
  %v859 = vunpack.c.l.b16 %v746
  %v860 = vunpack.c.h.b16 %v746
  %v861 = vunpack.c.l.b16 %v747
  %v862 = vunpack.c.h.b16 %v747
  %v863 = vunpack.c.l.b16 %v748
  %v864 = vunpack.c.h.b16 %v748
  %v865 = vunpack.c.l.b16 %v749
  %v866 = vunpack.c.h.b16 %v749
  %v867 = vunpack.c.l.b16 %v750
  %v868 = vunpack.c.h.b16 %v750
  %v869 = vunpack.c.l.b16 %v751
  %v870 = vunpack.c.h.b16 %v751
  %v871 = vunpack.c.l.b16 %v752
  %v872 = vunpack.c.h.b16 %v752
  %v873 = vunpack.c.l.b16 %v753
  %v874 = vunpack.c.h.b16 %v753
  %v875 = vunpack.c.l.b16 %v754
  %v876 = vunpack.c.h.b16 %v754
  %v877 = vunpack.c.l.b16 %v755
  %v878 = vunpack.c.h.b16 %v755
  %v879 = vunpack.c.l.b16 %v756
  %v880 = vunpack.c.h.b16 %v756
  %v881 = vunpack.c.l.b16 %v757
  %v882 = vunpack.c.h.b16 %v757
  %v883 = vunpack.c.l.b16 %v758
  %v884 = vunpack.c.h.b16 %v758
  %v885 = vunpack.c.l.b16 %v759
  %v886 = vunpack.c.h.b16 %v759
  %v887 = vunpack.c.l.b16 %v760
  %v888 = vunpack.c.h.b16 %v760
  %v889 = vunpack.c.l.b16 %v761
  %v890 = vunpack.c.h.b16 %v761
  %v891 = vunpack.c.l.b16 %v762
  %v892 = vunpack.c.h.b16 %v762
  %v893 = vunpack.c.l.b16 %v763
  %v894 = vunpack.c.h.b16 %v763
  %v895 = vunpack.c.l.b16 %v764
  %v896 = vunpack.c.h.b16 %v764
  %v897 = vunpack.c.l.b16 %v765
  %v898 = vunpack.c.h.b16 %v765
  %v899 = vunpack.c.l.b16 %v766
  %v900 = vunpack.c.h.b16 %v766
  %v901 = vunpack.c.l.b16 %v767
  %v902 = vunpack.c.h.b16 %v767
  %v903 = vunpack.c.l.b16 %v768
  %v904 = vunpack.c.h.b16 %v768
  %v905 = vunpack.c.l.b16 %v769
  %v906 = vunpack.c.h.b16 %v769
  %v907 = vunpack.c.l.b16 %v770
  %v908 = vunpack.c.h.b16 %v770
  %v909 = vunpack.c.l.b16 %v771
  %v910 = vunpack.c.h.b16 %v771
  %v911 = vunpack.c.l.b16 %v772
  %v912 = vunpack.c.h.b16 %v772
  %v913 = vunpack.c.l.b16 %v773
  %v914 = vunpack.c.h.b16 %v773
  %v915 = vunpack.c.l.b16 %v774
  %v916 = vunpack.c.h.b16 %v774
  %v917 = vunpack.c.l.b16 %v775
  %v918 = vunpack.c.h.b16 %v775
  %v919 = vunpack.c.l.b16 %v776
  %v920 = vunpack.c.h.b16 %v776
  %v921 = vunpack.c.l.b16 %v777
  %v922 = vunpack.c.h.b16 %v777
  %v923 = vunpack.c.l.b16 %v778
  %v924 = vunpack.c.h.b16 %v778
  %v925 = vunpack.c.l.b16 %v779
  %v926 = vunpack.c.h.b16 %v779
  %v927 = vunpack.c.l.b16 %v780
  %v928 = vunpack.c.h.b16 %v780
  %v929 = vunpack.c.l.b16 %v781
  %v930 = vunpack.c.h.b16 %v781
  %v931 = vunpack.c.l.b16 %v782
  %v932 = vunpack.c.h.b16 %v782
  %v933 = vpack.c.b16 %v835, %v833
  %v934 = vpack.c.b16 %v836, %v834
  %v935 = vpack.c.b16 %v839, %v837
  %v936 = vpack.c.b16 %v840, %v838
  %v937 = vpack.c.b16 %v843, %v841
  %v938 = vpack.c.b16 %v844, %v842
  %v939 = vpack.c.b16 %v847, %v845
  %v940 = vpack.c.b16 %v848, %v846
  %v941 = vpack.c.b16 %v851, %v849
  %v942 = vpack.c.b16 %v852, %v850
  %v943 = vpack.c.b16 %v855, %v853
  %v944 = vpack.c.b16 %v856, %v854
  %v945 = vpack.c.b16 %v859, %v857
  %v946 = vpack.c.b16 %v860, %v858
  %v947 = vpack.c.b16 %v863, %v861
  %v948 = vpack.c.b16 %v864, %v862
  %v949 = vpack.c.b16 %v867, %v865
  %v950 = vpack.c.b16 %v868, %v866
  %v951 = vpack.c.b16 %v871, %v869
  %v952 = vpack.c.b16 %v872, %v870
  %v953 = vpack.c.b16 %v875, %v873
  %v954 = vpack.c.b16 %v876, %v874
  %v955 = vpack.c.b16 %v879, %v877
  %v956 = vpack.c.b16 %v880, %v878
  %v957 = vpack.c.b16 %v883, %v881
  %v958 = vpack.c.b16 %v884, %v882
  %v959 = vpack.c.b16 %v887, %v885
  %v960 = vpack.c.b16 %v888, %v886
  %v961 = vpack.c.b16 %v891, %v889
  %v962 = vpack.c.b16 %v892, %v890
  %v963 = vpack.c.b16 %v895, %v893
  %v964 = vpack.c.b16 %v896, %v894
  %v965 = vpack.c.b16 %v899, %v897
  %v966 = vpack.c.b16 %v900, %v898
  %v967 = vpack.c.b16 %v903, %v901
  %v968 = vpack.c.b16 %v904, %v902
  %v969 = vpack.c.b16 %v907, %v905
  %v970 = vpack.c.b16 %v908, %v906
  %v971 = vpack.c.b16 %v911, %v909
  %v972 = vpack.c.b16 %v912, %v910
  %v973 = vpack.c.b16 %v915, %v913
  %v974 = vpack.c.b16 %v916, %v914
  %v975 = vpack.c.b16 %v919, %v917
  %v976 = vpack.c.b16 %v920, %v918
  %v977 = vpack.c.b16 %v923, %v921
  %v978 = vpack.c.b16 %v924, %v922
  %v979 = vpack.c.b16 %v927, %v925
  %v980 = vpack.c.b16 %v928, %v926
  %v981 = vpack.c.b16 %v931, %v929
  %v982 = vpack.c.b16 %v932, %v930
  %v1009 = vsel %vm384, %v934, 0
  %v1012 = vsel %vm384, %v936, 0
  %v1015 = vsel %vm384, %v938, 0
  %v1018 = vsel %vm384, %v940, 0
  %v1021 = vsel %vm384, %v942, 0
  %v1024 = vsel %vm384, %v944, 0
  %v1027 = vsel %vm384, %v946, 0
  %v1030 = vsel %vm384, %v948, 0
  %v1033 = vsel %vm384, %v950, 0
  %v1036 = vsel %vm384, %v952, 0
  %v1039 = vsel %vm384, %v954, 0
  %v1042 = vsel %vm384, %v956, 0
  %v1045 = vsel %vm384, %v958, 0
  %v1048 = vsel %vm384, %v960, 0
  %v1051 = vsel %vm384, %v962, 0
  %v1054 = vsel %vm384, %v964, 0
  %v1057 = vsel %vm384, %v966, 0
  %v1060 = vsel %vm384, %v968, 0
  %v1063 = vsel %vm384, %v970, 0
  %v1066 = vsel %vm384, %v972, 0
  %v1069 = vsel %vm384, %v974, 0
  %v1072 = vsel %vm384, %v976, 0
  %v1075 = vsel %vm384, %v978, 0
  %v1078 = vsel %vm384, %v980, 0
  %v1081 = vsel %vm384, %v982, 0
  %1083 = vmatpush.bf16.msra.mxu0 %v372
  %1084 = vmatpush.bf16.msra.mxu0 %v371
  %1085 = vmatpush.bf16.msra.mxu0 %v370
  %1086 = vmatpush.bf16.msra.mxu0 %v369
  %1087 = vmatpush.bf16.msra.mxu0 %v368
  %1088 = vmatpush.bf16.msra.mxu0 %v367
  %1089 = vmatpush.bf16.msra.mxu0 %v366
  %1090 = vmatpush.bf16.msra.mxu0 %v365
  %1091 = vmatmul.bf16.gmra.mxu0 %v933
  %v1092 = vpop.f32.mrf.mxu0
  %v1093 = vadd.f32 0.0, %v1092
  %v1094 = vpop.f32.mrf.mxu0
  %v1095 = vadd.f32 0.0, %v1094
  %1096 = vmatmul.bf16.gmra.mxu0 %v935
  %v1097 = vpop.f32.mrf.mxu0
  %v1098 = vadd.f32 0.0, %v1097
  %v1099 = vpop.f32.mrf.mxu0
  %v1100 = vadd.f32 0.0, %v1099
  %1101 = vmatmul.bf16.gmra.mxu0 %v937
  %v1102 = vpop.f32.mrf.mxu0
  %v1103 = vadd.f32 0.0, %v1102
  %v1104 = vpop.f32.mrf.mxu0
  %v1105 = vadd.f32 0.0, %v1104
  %1106 = vmatmul.bf16.gmra.mxu0 %v939
  %v1107 = vpop.f32.mrf.mxu0
  %v1108 = vadd.f32 0.0, %v1107
  %v1109 = vpop.f32.mrf.mxu0
  %v1110 = vadd.f32 0.0, %v1109
  %1111 = vmatmul.bf16.gmra.mxu0 %v941
  %v1112 = vpop.f32.mrf.mxu0
  %v1113 = vadd.f32 0.0, %v1112
  %v1114 = vpop.f32.mrf.mxu0
  %v1115 = vadd.f32 0.0, %v1114
  %1116 = vmatmul.bf16.gmra.mxu0 %v943
  %v1117 = vpop.f32.mrf.mxu0
  %v1118 = vadd.f32 0.0, %v1117
  %v1119 = vpop.f32.mrf.mxu0
  %v1120 = vadd.f32 0.0, %v1119
  %1121 = vmatmul.bf16.gmra.mxu0 %v945
  %v1122 = vpop.f32.mrf.mxu0
  %v1123 = vadd.f32 0.0, %v1122
  %v1124 = vpop.f32.mrf.mxu0
  %v1125 = vadd.f32 0.0, %v1124
  %1126 = vmatmul.bf16.gmra.mxu0 %v947
  %v1127 = vpop.f32.mrf.mxu0
  %v1128 = vadd.f32 0.0, %v1127
  %v1129 = vpop.f32.mrf.mxu0
  %v1130 = vadd.f32 0.0, %v1129
  %1131 = vmatmul.bf16.gmra.mxu0 %v949
  %v1132 = vpop.f32.mrf.mxu0
  %v1133 = vadd.f32 0.0, %v1132
  %v1134 = vpop.f32.mrf.mxu0
  %v1135 = vadd.f32 0.0, %v1134
  %1136 = vmatmul.bf16.gmra.mxu0 %v951
  %v1137 = vpop.f32.mrf.mxu0
  %v1138 = vadd.f32 0.0, %v1137
  %v1139 = vpop.f32.mrf.mxu0
  %v1140 = vadd.f32 0.0, %v1139
  %1141 = vmatmul.bf16.gmra.mxu0 %v953
  %v1142 = vpop.f32.mrf.mxu0
  %v1143 = vadd.f32 0.0, %v1142
  %v1144 = vpop.f32.mrf.mxu0
  %v1145 = vadd.f32 0.0, %v1144
  %1146 = vmatmul.bf16.gmra.mxu0 %v955
  %v1147 = vpop.f32.mrf.mxu0
  %v1148 = vadd.f32 0.0, %v1147
  %v1149 = vpop.f32.mrf.mxu0
  %v1150 = vadd.f32 0.0, %v1149
  %1151 = vmatmul.bf16.gmra.mxu0 %v957
  %v1152 = vpop.f32.mrf.mxu0
  %v1153 = vadd.f32 0.0, %v1152
  %v1154 = vpop.f32.mrf.mxu0
  %v1155 = vadd.f32 0.0, %v1154
  %1156 = vmatmul.bf16.gmra.mxu0 %v959
  %v1157 = vpop.f32.mrf.mxu0
  %v1158 = vadd.f32 0.0, %v1157
  %v1159 = vpop.f32.mrf.mxu0
  %v1160 = vadd.f32 0.0, %v1159
  %1161 = vmatmul.bf16.gmra.mxu0 %v961
  %v1162 = vpop.f32.mrf.mxu0
  %v1163 = vadd.f32 0.0, %v1162
  %v1164 = vpop.f32.mrf.mxu0
  %v1165 = vadd.f32 0.0, %v1164
  %1166 = vmatmul.bf16.gmra.mxu0 %v963
  %v1167 = vpop.f32.mrf.mxu0
  %v1168 = vadd.f32 0.0, %v1167
  %v1169 = vpop.f32.mrf.mxu0
  %v1170 = vadd.f32 0.0, %v1169
  %1171 = vmatmul.bf16.gmra.mxu0 %v965
  %v1172 = vpop.f32.mrf.mxu0
  %v1173 = vadd.f32 0.0, %v1172
  %v1174 = vpop.f32.mrf.mxu0
  %v1175 = vadd.f32 0.0, %v1174
  %1176 = vmatmul.bf16.gmra.mxu0 %v967
  %v1177 = vpop.f32.mrf.mxu0
  %v1178 = vadd.f32 0.0, %v1177
  %v1179 = vpop.f32.mrf.mxu0
  %v1180 = vadd.f32 0.0, %v1179
  %1181 = vmatmul.bf16.gmra.mxu0 %v969
  %v1182 = vpop.f32.mrf.mxu0
  %v1183 = vadd.f32 0.0, %v1182
  %v1184 = vpop.f32.mrf.mxu0
  %v1185 = vadd.f32 0.0, %v1184
  %1186 = vmatmul.bf16.gmra.mxu0 %v971
  %v1187 = vpop.f32.mrf.mxu0
  %v1188 = vadd.f32 0.0, %v1187
  %v1189 = vpop.f32.mrf.mxu0
  %v1190 = vadd.f32 0.0, %v1189
  %1191 = vmatmul.bf16.gmra.mxu0 %v973
  %v1192 = vpop.f32.mrf.mxu0
  %v1193 = vadd.f32 0.0, %v1192
  %v1194 = vpop.f32.mrf.mxu0
  %v1195 = vadd.f32 0.0, %v1194
  %1196 = vmatmul.bf16.gmra.mxu0 %v975
  %v1197 = vpop.f32.mrf.mxu0
  %v1198 = vadd.f32 0.0, %v1197
  %v1199 = vpop.f32.mrf.mxu0
  %v1200 = vadd.f32 0.0, %v1199
  %1201 = vmatmul.bf16.gmra.mxu0 %v977
  %v1202 = vpop.f32.mrf.mxu0
  %v1203 = vadd.f32 0.0, %v1202
  %v1204 = vpop.f32.mrf.mxu0
  %v1205 = vadd.f32 0.0, %v1204
  %1206 = vmatmul.bf16.gmra.mxu0 %v979
  %v1207 = vpop.f32.mrf.mxu0
  %v1208 = vadd.f32 0.0, %v1207
  %v1209 = vpop.f32.mrf.mxu0
  %v1210 = vadd.f32 0.0, %v1209
  %1211 = vmatmul.bf16.gmra.mxu0 %v981
  %v1212 = vpop.f32.mrf.mxu0
  %v1213 = vadd.f32 0.0, %v1212
  %v1214 = vpop.f32.mrf.mxu0
  %v1215 = vadd.f32 0.0, %v1214
  %1216 = vdwg.mxu0
  %1217 = vmatpush.bf16.msra.mxu0 0
  %1218 = vmatpush.bf16.msra.mxu0 0
  %1219 = vmatpush.bf16.msra.mxu0 0
  %1220 = vmatpush.bf16.msra.mxu0 0
  %1221 = vmatpush.bf16.msra.mxu0 0
  %1222 = vmatpush.bf16.msra.mxu0 0
  %1223 = vmatpush.bf16.msra.mxu0 %v462
  %1224 = vmatpush.bf16.msra.mxu0 %v373
  %1225 = vmatmul.bf16.gmra.mxu0 %v1009
  %v1226 = vpop.f32.mrf.mxu0
  %v1227 = vadd.f32 %v1093, %v1226
  %v1228 = vpop.f32.mrf.mxu0
  %v1229 = vadd.f32 %v1095, %v1228
  %1230 = vmatmul.bf16.gmra.mxu0 %v1012
  %v1231 = vpop.f32.mrf.mxu0
  %v1232 = vadd.f32 %v1098, %v1231
  %v1233 = vpop.f32.mrf.mxu0
  %v1234 = vadd.f32 %v1100, %v1233
  %1235 = vmatmul.bf16.gmra.mxu0 %v1015
  %v1236 = vpop.f32.mrf.mxu0
  %v1237 = vadd.f32 %v1103, %v1236
  %v1238 = vpop.f32.mrf.mxu0
  %v1239 = vadd.f32 %v1105, %v1238
  %1240 = vmatmul.bf16.gmra.mxu0 %v1018
  %v1241 = vpop.f32.mrf.mxu0
  %v1242 = vadd.f32 %v1108, %v1241
  %v1243 = vpop.f32.mrf.mxu0
  %v1244 = vadd.f32 %v1110, %v1243
  %1245 = vmatmul.bf16.gmra.mxu0 %v1021
  %v1246 = vpop.f32.mrf.mxu0
  %v1247 = vadd.f32 %v1113, %v1246
  %v1248 = vpop.f32.mrf.mxu0
  %v1249 = vadd.f32 %v1115, %v1248
  %1250 = vmatmul.bf16.gmra.mxu0 %v1024
  %v1251 = vpop.f32.mrf.mxu0
  %v1252 = vadd.f32 %v1118, %v1251
  %v1253 = vpop.f32.mrf.mxu0
  %v1254 = vadd.f32 %v1120, %v1253
  %1255 = vmatmul.bf16.gmra.mxu0 %v1027
  %v1256 = vpop.f32.mrf.mxu0
  %v1257 = vadd.f32 %v1123, %v1256
  %v1258 = vpop.f32.mrf.mxu0
  %v1259 = vadd.f32 %v1125, %v1258
  %1260 = vmatmul.bf16.gmra.mxu0 %v1030
  %v1261 = vpop.f32.mrf.mxu0
  %v1262 = vadd.f32 %v1128, %v1261
  %v1263 = vpop.f32.mrf.mxu0
  %v1264 = vadd.f32 %v1130, %v1263
  %1265 = vmatmul.bf16.gmra.mxu0 %v1033
  %v1266 = vpop.f32.mrf.mxu0
  %v1267 = vadd.f32 %v1133, %v1266
  %v1268 = vpop.f32.mrf.mxu0
  %v1269 = vadd.f32 %v1135, %v1268
  %1270 = vmatmul.bf16.gmra.mxu0 %v1036
  %v1271 = vpop.f32.mrf.mxu0
  %v1272 = vadd.f32 %v1138, %v1271
  %v1273 = vpop.f32.mrf.mxu0
  %v1274 = vadd.f32 %v1140, %v1273
  %1275 = vmatmul.bf16.gmra.mxu0 %v1039
  %v1276 = vpop.f32.mrf.mxu0
  %v1277 = vadd.f32 %v1143, %v1276
  %v1278 = vpop.f32.mrf.mxu0
  %v1279 = vadd.f32 %v1145, %v1278
  %1280 = vmatmul.bf16.gmra.mxu0 %v1042
  %v1281 = vpop.f32.mrf.mxu0
  %v1282 = vadd.f32 %v1148, %v1281
  %v1283 = vpop.f32.mrf.mxu0
  %v1284 = vadd.f32 %v1150, %v1283
  %1285 = vmatmul.bf16.gmra.mxu0 %v1045
  %v1286 = vpop.f32.mrf.mxu0
  %v1287 = vadd.f32 %v1153, %v1286
  %v1288 = vpop.f32.mrf.mxu0
  %v1289 = vadd.f32 %v1155, %v1288
  %1290 = vmatmul.bf16.gmra.mxu0 %v1048
  %v1291 = vpop.f32.mrf.mxu0
  %v1292 = vadd.f32 %v1158, %v1291
  %v1293 = vpop.f32.mrf.mxu0
  %v1294 = vadd.f32 %v1160, %v1293
  %1295 = vmatmul.bf16.gmra.mxu0 %v1051
  %v1296 = vpop.f32.mrf.mxu0
  %v1297 = vadd.f32 %v1163, %v1296
  %v1298 = vpop.f32.mrf.mxu0
  %v1299 = vadd.f32 %v1165, %v1298
  %1300 = vmatmul.bf16.gmra.mxu0 %v1054
  %v1301 = vpop.f32.mrf.mxu0
  %v1302 = vadd.f32 %v1168, %v1301
  %v1303 = vpop.f32.mrf.mxu0
  %v1304 = vadd.f32 %v1170, %v1303
  %1305 = vmatmul.bf16.gmra.mxu0 %v1057
  %v1306 = vpop.f32.mrf.mxu0
  %v1307 = vadd.f32 %v1173, %v1306
  %v1308 = vpop.f32.mrf.mxu0
  %v1309 = vadd.f32 %v1175, %v1308
  %1310 = vmatmul.bf16.gmra.mxu0 %v1060
  %v1311 = vpop.f32.mrf.mxu0
  %v1312 = vadd.f32 %v1178, %v1311
  %v1313 = vpop.f32.mrf.mxu0
  %v1314 = vadd.f32 %v1180, %v1313
  %1315 = vmatmul.bf16.gmra.mxu0 %v1063
  %v1316 = vpop.f32.mrf.mxu0
  %v1317 = vadd.f32 %v1183, %v1316
  %v1318 = vpop.f32.mrf.mxu0
  %v1319 = vadd.f32 %v1185, %v1318
  %1320 = vmatmul.bf16.gmra.mxu0 %v1066
  %v1321 = vpop.f32.mrf.mxu0
  %v1322 = vadd.f32 %v1188, %v1321
  %v1323 = vpop.f32.mrf.mxu0
  %v1324 = vadd.f32 %v1190, %v1323
  %1325 = vmatmul.bf16.gmra.mxu0 %v1069
  %v1326 = vpop.f32.mrf.mxu0
  %v1327 = vadd.f32 %v1193, %v1326
  %v1328 = vpop.f32.mrf.mxu0
  %v1329 = vadd.f32 %v1195, %v1328
  %1330 = vmatmul.bf16.gmra.mxu0 %v1072
  %v1331 = vpop.f32.mrf.mxu0
  %v1332 = vadd.f32 %v1198, %v1331
  %v1333 = vpop.f32.mrf.mxu0
  %v1334 = vadd.f32 %v1200, %v1333
  %1335 = vmatmul.bf16.gmra.mxu0 %v1075
  %v1336 = vpop.f32.mrf.mxu0
  %v1337 = vadd.f32 %v1203, %v1336
  %v1338 = vpop.f32.mrf.mxu0
  %v1339 = vadd.f32 %v1205, %v1338
  %1340 = vmatmul.bf16.gmra.mxu0 %v1078
  %v1341 = vpop.f32.mrf.mxu0
  %v1342 = vadd.f32 %v1208, %v1341
  %v1343 = vpop.f32.mrf.mxu0
  %v1344 = vadd.f32 %v1210, %v1343
  %1345 = vmatmul.bf16.gmra.mxu0 %v1081
  %v1346 = vpop.f32.mrf.mxu0
  %v1347 = vadd.f32 %v1213, %v1346
  %v1348 = vpop.f32.mrf.mxu0
  %v1349 = vadd.f32 %v1215, %v1348
  %1350 = vdwg.mxu0
  %v1351 = vmax.f32 %v608, %v1227
  %v1352 = vmax.f32 %v610, %v1229
  %v1353 = vmax.f32 %v613, %v1232
  %v1354 = vmax.f32 %v615, %v1234
  %v1355 = vmax.f32 %v618, %v1237
  %v1356 = vmax.f32 %v620, %v1239
  %v1357 = vmax.f32 %v623, %v1242
  %v1358 = vmax.f32 %v625, %v1244
  %v1359 = vmax.f32 %v628, %v1247
  %v1360 = vmax.f32 %v630, %v1249
  %v1361 = vmax.f32 %v633, %v1252
  %v1362 = vmax.f32 %v635, %v1254
  %v1363 = vmax.f32 %v638, %v1257
  %v1364 = vmax.f32 %v640, %v1259
  %v1365 = vmax.f32 %v643, %v1262
  %v1366 = vmax.f32 %v645, %v1264
  %v1367 = vmax.f32 %v648, %v1267
  %v1368 = vmax.f32 %v650, %v1269
  %v1369 = vmax.f32 %v653, %v1272
  %v1370 = vmax.f32 %v655, %v1274
  %v1371 = vmax.f32 %v658, %v1277
  %v1372 = vmax.f32 %v660, %v1279
  %v1373 = vmax.f32 %v663, %v1282
  %v1374 = vmax.f32 %v665, %v1284
  %v1375 = vmax.f32 %v668, %v1287
  %v1376 = vmax.f32 %v670, %v1289
  %v1377 = vmax.f32 %v673, %v1292
  %v1378 = vmax.f32 %v675, %v1294
  %v1379 = vmax.f32 %v678, %v1297
  %v1380 = vmax.f32 %v680, %v1299
  %v1381 = vmax.f32 %v683, %v1302
  %v1382 = vmax.f32 %v685, %v1304
  %v1383 = vmax.f32 %v688, %v1307
  %v1384 = vmax.f32 %v690, %v1309
  %v1385 = vmax.f32 %v693, %v1312
  %v1386 = vmax.f32 %v695, %v1314
  %v1387 = vmax.f32 %v698, %v1317
  %v1388 = vmax.f32 %v700, %v1319
  %v1389 = vmax.f32 %v703, %v1322
  %v1390 = vmax.f32 %v705, %v1324
  %v1391 = vmax.f32 %v708, %v1327
  %v1392 = vmax.f32 %v710, %v1329
  %v1393 = vmax.f32 %v713, %v1332
  %v1394 = vmax.f32 %v715, %v1334
  %v1395 = vmax.f32 %v718, %v1337
  %v1396 = vmax.f32 %v720, %v1339
  %v1397 = vmax.f32 %v723, %v1342
  %v1398 = vmax.f32 %v725, %v1344
  %v1399 = vmax.f32 %v728, %v1347
  %v1400 = vmax.f32 %v730, %v1349
  %s1401 = scalar_lea.vmem %s0, 800
  %v1402 = vld [vmem:[%s1401] sm:$0xff]
  %v1403 = vld [vmem:[%s1401 + $0x8] sm:$0xff]
  %v1404 = vld [vmem:[%s1401 + $0x10] sm:$0xff]
  %v1405 = vld [vmem:[%s1401 + $0x18] sm:$0xff]
  %v1406 = vld [vmem:[%s1401 + $0x20] sm:$0xff]
  %v1407 = vld [vmem:[%s1401 + $0x28] sm:$0xff]
  %v1408 = vld [vmem:[%s1401 + $0x30] sm:$0xff]
  %v1409 = vld [vmem:[%s1401 + $0x38] sm:$0xff]
  %v1410 = vld [vmem:[%s1401 + $0x40] sm:$0xff]
  %v1411 = vld [vmem:[%s1401 + $0x48] sm:$0xff]
  %v1412 = vld [vmem:[%s1401 + $0x50] sm:$0xff]
  %v1413 = vld [vmem:[%s1401 + $0x58] sm:$0xff]
  %v1414 = vld [vmem:[%s1401 + $0x60] sm:$0xff]
  %v1415 = vld [vmem:[%s1401 + $0x68] sm:$0xff]
  %v1416 = vld [vmem:[%s1401 + $0x70] sm:$0xff]
  %v1417 = vld [vmem:[%s1401 + $0x78] sm:$0xff]
  %v1418 = vld [vmem:[%s1401 + $0x80] sm:$0xff]
  %v1419 = vld [vmem:[%s1401 + $0x88] sm:$0xff]
  %v1420 = vld [vmem:[%s1401 + $0x90] sm:$0xff]
  %v1421 = vld [vmem:[%s1401 + $0x98] sm:$0xff]
  %v1422 = vld [vmem:[%s1401 + $0xa0] sm:$0xff]
  %v1423 = vld [vmem:[%s1401 + $0xa8] sm:$0xff]
  %v1424 = vld [vmem:[%s1401 + $0xb0] sm:$0xff]
  %v1425 = vld [vmem:[%s1401 + $0xb8] sm:$0xff]
  %v1426 = vld [vmem:[%s1401 + $0xc0] sm:$0xff]
  %v1427 = vld [vmem:[%s1401 + $0xc8] sm:$0xff]
  %v1428 = vld [vmem:[%s1401 + $0xd0] sm:$0xff]
  %v1429 = vld [vmem:[%s1401 + $0xd8] sm:$0xff]
  %v1430 = vld [vmem:[%s1401 + $0xe0] sm:$0xff]
  %v1431 = vld [vmem:[%s1401 + $0xe8] sm:$0xff]
  %v1432 = vld [vmem:[%s1401 + $0xf0] sm:$0xff]
  %v1433 = vld [vmem:[%s1401 + $0xf8] sm:$0xff]
  %v1434 = vld [vmem:[%s1401 + $0x100] sm:$0xff]
  %v1435 = vld [vmem:[%s1401 + $0x108] sm:$0xff]
  %v1436 = vld [vmem:[%s1401 + $0x110] sm:$0xff]
  %v1437 = vld [vmem:[%s1401 + $0x118] sm:$0xff]
  %v1438 = vld [vmem:[%s1401 + $0x120] sm:$0xff]
  %v1439 = vld [vmem:[%s1401 + $0x128] sm:$0xff]
  %v1440 = vld [vmem:[%s1401 + $0x130] sm:$0xff]
  %v1441 = vld [vmem:[%s1401 + $0x138] sm:$0xff]
  %v1442 = vld [vmem:[%s1401 + $0x140] sm:$0xff]
  %v1443 = vld [vmem:[%s1401 + $0x148] sm:$0xff]
  %v1444 = vld [vmem:[%s1401 + $0x150] sm:$0xff]
  %v1445 = vld [vmem:[%s1401 + $0x158] sm:$0xff]
  %v1446 = vld [vmem:[%s1401 + $0x160] sm:$0xff]
  %v1447 = vld [vmem:[%s1401 + $0x168] sm:$0xff]
  %v1448 = vld [vmem:[%s1401 + $0x170] sm:$0xff]
  %v1449 = vld [vmem:[%s1401 + $0x178] sm:$0xff]
  %v1450 = vld [vmem:[%s1401 + $0x180] sm:$0xff]
  %v1451 = vld [vmem:[%s1401 + $0x188] sm:$0xff]
  %v1502 = vunpack.c.l.b16 %v1402
  %v1503 = vunpack.c.h.b16 %v1402
  %v1504 = vunpack.c.l.b16 %v1403
  %v1505 = vunpack.c.h.b16 %v1403
  %v1506 = vunpack.c.l.b16 %v1404
  %v1507 = vunpack.c.h.b16 %v1404
  %v1508 = vunpack.c.l.b16 %v1405
  %v1509 = vunpack.c.h.b16 %v1405
  %v1510 = vunpack.c.l.b16 %v1406
  %v1511 = vunpack.c.h.b16 %v1406
  %v1512 = vunpack.c.l.b16 %v1407
  %v1513 = vunpack.c.h.b16 %v1407
  %v1514 = vunpack.c.l.b16 %v1408
  %v1515 = vunpack.c.h.b16 %v1408
  %v1516 = vunpack.c.l.b16 %v1409
  %v1517 = vunpack.c.h.b16 %v1409
  %v1518 = vunpack.c.l.b16 %v1410
  %v1519 = vunpack.c.h.b16 %v1410
  %v1520 = vunpack.c.l.b16 %v1411
  %v1521 = vunpack.c.h.b16 %v1411
  %v1522 = vunpack.c.l.b16 %v1412
  %v1523 = vunpack.c.h.b16 %v1412
  %v1524 = vunpack.c.l.b16 %v1413
  %v1525 = vunpack.c.h.b16 %v1413
  %v1526 = vunpack.c.l.b16 %v1414
  %v1527 = vunpack.c.h.b16 %v1414
  %v1528 = vunpack.c.l.b16 %v1415
  %v1529 = vunpack.c.h.b16 %v1415
  %v1530 = vunpack.c.l.b16 %v1416
  %v1531 = vunpack.c.h.b16 %v1416
  %v1532 = vunpack.c.l.b16 %v1417
  %v1533 = vunpack.c.h.b16 %v1417
  %v1534 = vunpack.c.l.b16 %v1418
  %v1535 = vunpack.c.h.b16 %v1418
  %v1536 = vunpack.c.l.b16 %v1419
  %v1537 = vunpack.c.h.b16 %v1419
  %v1538 = vunpack.c.l.b16 %v1420
  %v1539 = vunpack.c.h.b16 %v1420
  %v1540 = vunpack.c.l.b16 %v1421
  %v1541 = vunpack.c.h.b16 %v1421
  %v1542 = vunpack.c.l.b16 %v1422
  %v1543 = vunpack.c.h.b16 %v1422
  %v1544 = vunpack.c.l.b16 %v1423
  %v1545 = vunpack.c.h.b16 %v1423
  %v1546 = vunpack.c.l.b16 %v1424
  %v1547 = vunpack.c.h.b16 %v1424
  %v1548 = vunpack.c.l.b16 %v1425
  %v1549 = vunpack.c.h.b16 %v1425
  %v1550 = vunpack.c.l.b16 %v1426
  %v1551 = vunpack.c.h.b16 %v1426
  %v1552 = vunpack.c.l.b16 %v1427
  %v1553 = vunpack.c.h.b16 %v1427
  %v1554 = vunpack.c.l.b16 %v1428
  %v1555 = vunpack.c.h.b16 %v1428
  %v1556 = vunpack.c.l.b16 %v1429
  %v1557 = vunpack.c.h.b16 %v1429
  %v1558 = vunpack.c.l.b16 %v1430
  %v1559 = vunpack.c.h.b16 %v1430
  %v1560 = vunpack.c.l.b16 %v1431
  %v1561 = vunpack.c.h.b16 %v1431
  %v1562 = vunpack.c.l.b16 %v1432
  %v1563 = vunpack.c.h.b16 %v1432
  %v1564 = vunpack.c.l.b16 %v1433
  %v1565 = vunpack.c.h.b16 %v1433
  %v1566 = vunpack.c.l.b16 %v1434
  %v1567 = vunpack.c.h.b16 %v1434
  %v1568 = vunpack.c.l.b16 %v1435
  %v1569 = vunpack.c.h.b16 %v1435
  %v1570 = vunpack.c.l.b16 %v1436
  %v1571 = vunpack.c.h.b16 %v1436
  %v1572 = vunpack.c.l.b16 %v1437
  %v1573 = vunpack.c.h.b16 %v1437
  %v1574 = vunpack.c.l.b16 %v1438
  %v1575 = vunpack.c.h.b16 %v1438
  %v1576 = vunpack.c.l.b16 %v1439
  %v1577 = vunpack.c.h.b16 %v1439
  %v1578 = vunpack.c.l.b16 %v1440
  %v1579 = vunpack.c.h.b16 %v1440
  %v1580 = vunpack.c.l.b16 %v1441
  %v1581 = vunpack.c.h.b16 %v1441
  %v1582 = vunpack.c.l.b16 %v1442
  %v1583 = vunpack.c.h.b16 %v1442
  %v1584 = vunpack.c.l.b16 %v1443
  %v1585 = vunpack.c.h.b16 %v1443
  %v1586 = vunpack.c.l.b16 %v1444
  %v1587 = vunpack.c.h.b16 %v1444
  %v1588 = vunpack.c.l.b16 %v1445
  %v1589 = vunpack.c.h.b16 %v1445
  %v1590 = vunpack.c.l.b16 %v1446
  %v1591 = vunpack.c.h.b16 %v1446
  %v1592 = vunpack.c.l.b16 %v1447
  %v1593 = vunpack.c.h.b16 %v1447
  %v1594 = vunpack.c.l.b16 %v1448
  %v1595 = vunpack.c.h.b16 %v1448
  %v1596 = vunpack.c.l.b16 %v1449
  %v1597 = vunpack.c.h.b16 %v1449
  %v1598 = vunpack.c.l.b16 %v1450
  %v1599 = vunpack.c.h.b16 %v1450
  %v1600 = vunpack.c.l.b16 %v1451
  %v1601 = vunpack.c.h.b16 %v1451
  %v1602 = vpack.c.b16 %v1504, %v1502
  %v1603 = vpack.c.b16 %v1505, %v1503
  %v1604 = vpack.c.b16 %v1508, %v1506
  %v1605 = vpack.c.b16 %v1509, %v1507
  %v1606 = vpack.c.b16 %v1512, %v1510
  %v1607 = vpack.c.b16 %v1513, %v1511
  %v1608 = vpack.c.b16 %v1516, %v1514
  %v1609 = vpack.c.b16 %v1517, %v1515
  %v1610 = vpack.c.b16 %v1520, %v1518
  %v1611 = vpack.c.b16 %v1521, %v1519
  %v1612 = vpack.c.b16 %v1524, %v1522
  %v1613 = vpack.c.b16 %v1525, %v1523
  %v1614 = vpack.c.b16 %v1528, %v1526
  %v1615 = vpack.c.b16 %v1529, %v1527
  %v1616 = vpack.c.b16 %v1532, %v1530
  %v1617 = vpack.c.b16 %v1533, %v1531
  %v1618 = vpack.c.b16 %v1536, %v1534
  %v1619 = vpack.c.b16 %v1537, %v1535
  %v1620 = vpack.c.b16 %v1540, %v1538
  %v1621 = vpack.c.b16 %v1541, %v1539
  %v1622 = vpack.c.b16 %v1544, %v1542
  %v1623 = vpack.c.b16 %v1545, %v1543
  %v1624 = vpack.c.b16 %v1548, %v1546
  %v1625 = vpack.c.b16 %v1549, %v1547
  %v1626 = vpack.c.b16 %v1552, %v1550
  %v1627 = vpack.c.b16 %v1553, %v1551
  %v1628 = vpack.c.b16 %v1556, %v1554
  %v1629 = vpack.c.b16 %v1557, %v1555
  %v1630 = vpack.c.b16 %v1560, %v1558
  %v1631 = vpack.c.b16 %v1561, %v1559
  %v1632 = vpack.c.b16 %v1564, %v1562
  %v1633 = vpack.c.b16 %v1565, %v1563
  %v1634 = vpack.c.b16 %v1568, %v1566
  %v1635 = vpack.c.b16 %v1569, %v1567
  %v1636 = vpack.c.b16 %v1572, %v1570
  %v1637 = vpack.c.b16 %v1573, %v1571
  %v1638 = vpack.c.b16 %v1576, %v1574
  %v1639 = vpack.c.b16 %v1577, %v1575
  %v1640 = vpack.c.b16 %v1580, %v1578
  %v1641 = vpack.c.b16 %v1581, %v1579
  %v1642 = vpack.c.b16 %v1584, %v1582
  %v1643 = vpack.c.b16 %v1585, %v1583
  %v1644 = vpack.c.b16 %v1588, %v1586
  %v1645 = vpack.c.b16 %v1589, %v1587
  %v1646 = vpack.c.b16 %v1592, %v1590
  %v1647 = vpack.c.b16 %v1593, %v1591
  %v1648 = vpack.c.b16 %v1596, %v1594
  %v1649 = vpack.c.b16 %v1597, %v1595
  %v1650 = vpack.c.b16 %v1600, %v1598
  %v1651 = vpack.c.b16 %v1601, %v1599
  %v1678 = vsel %vm384, %v1603, 0
  %v1681 = vsel %vm384, %v1605, 0
  %v1684 = vsel %vm384, %v1607, 0
  %v1687 = vsel %vm384, %v1609, 0
  %v1690 = vsel %vm384, %v1611, 0
  %v1693 = vsel %vm384, %v1613, 0
  %v1696 = vsel %vm384, %v1615, 0
  %v1699 = vsel %vm384, %v1617, 0
  %v1702 = vsel %vm384, %v1619, 0
  %v1705 = vsel %vm384, %v1621, 0
  %v1708 = vsel %vm384, %v1623, 0
  %v1711 = vsel %vm384, %v1625, 0
  %v1714 = vsel %vm384, %v1627, 0
  %v1717 = vsel %vm384, %v1629, 0
  %v1720 = vsel %vm384, %v1631, 0
  %v1723 = vsel %vm384, %v1633, 0
  %v1726 = vsel %vm384, %v1635, 0
  %v1729 = vsel %vm384, %v1637, 0
  %v1732 = vsel %vm384, %v1639, 0
  %v1735 = vsel %vm384, %v1641, 0
  %v1738 = vsel %vm384, %v1643, 0
  %v1741 = vsel %vm384, %v1645, 0
  %v1744 = vsel %vm384, %v1647, 0
  %v1747 = vsel %vm384, %v1649, 0
  %v1750 = vsel %vm384, %v1651, 0
  %1752 = vmatpush.bf16.msra.mxu0 %v372
  %1753 = vmatpush.bf16.msra.mxu0 %v371
  %1754 = vmatpush.bf16.msra.mxu0 %v370
  %1755 = vmatpush.bf16.msra.mxu0 %v369
  %1756 = vmatpush.bf16.msra.mxu0 %v368
  %1757 = vmatpush.bf16.msra.mxu0 %v367
  %1758 = vmatpush.bf16.msra.mxu0 %v366
  %1759 = vmatpush.bf16.msra.mxu0 %v365
  %1760 = vmatmul.bf16.gmra.mxu0 %v1602
  %v1761 = vpop.f32.mrf.mxu0
  %v1762 = vadd.f32 0.0, %v1761
  %v1763 = vpop.f32.mrf.mxu0
  %v1764 = vadd.f32 0.0, %v1763
  %1765 = vmatmul.bf16.gmra.mxu0 %v1604
  %v1766 = vpop.f32.mrf.mxu0
  %v1767 = vadd.f32 0.0, %v1766
  %v1768 = vpop.f32.mrf.mxu0
  %v1769 = vadd.f32 0.0, %v1768
  %1770 = vmatmul.bf16.gmra.mxu0 %v1606
  %v1771 = vpop.f32.mrf.mxu0
  %v1772 = vadd.f32 0.0, %v1771
  %v1773 = vpop.f32.mrf.mxu0
  %v1774 = vadd.f32 0.0, %v1773
  %1775 = vmatmul.bf16.gmra.mxu0 %v1608
  %v1776 = vpop.f32.mrf.mxu0
  %v1777 = vadd.f32 0.0, %v1776
  %v1778 = vpop.f32.mrf.mxu0
  %v1779 = vadd.f32 0.0, %v1778
  %1780 = vmatmul.bf16.gmra.mxu0 %v1610
  %v1781 = vpop.f32.mrf.mxu0
  %v1782 = vadd.f32 0.0, %v1781
  %v1783 = vpop.f32.mrf.mxu0
  %v1784 = vadd.f32 0.0, %v1783
  %1785 = vmatmul.bf16.gmra.mxu0 %v1612
  %v1786 = vpop.f32.mrf.mxu0
  %v1787 = vadd.f32 0.0, %v1786
  %v1788 = vpop.f32.mrf.mxu0
  %v1789 = vadd.f32 0.0, %v1788
  %1790 = vmatmul.bf16.gmra.mxu0 %v1614
  %v1791 = vpop.f32.mrf.mxu0
  %v1792 = vadd.f32 0.0, %v1791
  %v1793 = vpop.f32.mrf.mxu0
  %v1794 = vadd.f32 0.0, %v1793
  %1795 = vmatmul.bf16.gmra.mxu0 %v1616
  %v1796 = vpop.f32.mrf.mxu0
  %v1797 = vadd.f32 0.0, %v1796
  %v1798 = vpop.f32.mrf.mxu0
  %v1799 = vadd.f32 0.0, %v1798
  %1800 = vmatmul.bf16.gmra.mxu0 %v1618
  %v1801 = vpop.f32.mrf.mxu0
  %v1802 = vadd.f32 0.0, %v1801
  %v1803 = vpop.f32.mrf.mxu0
  %v1804 = vadd.f32 0.0, %v1803
  %1805 = vmatmul.bf16.gmra.mxu0 %v1620
  %v1806 = vpop.f32.mrf.mxu0
  %v1807 = vadd.f32 0.0, %v1806
  %v1808 = vpop.f32.mrf.mxu0
  %v1809 = vadd.f32 0.0, %v1808
  %1810 = vmatmul.bf16.gmra.mxu0 %v1622
  %v1811 = vpop.f32.mrf.mxu0
  %v1812 = vadd.f32 0.0, %v1811
  %v1813 = vpop.f32.mrf.mxu0
  %v1814 = vadd.f32 0.0, %v1813
  %1815 = vmatmul.bf16.gmra.mxu0 %v1624
  %v1816 = vpop.f32.mrf.mxu0
  %v1817 = vadd.f32 0.0, %v1816
  %v1818 = vpop.f32.mrf.mxu0
  %v1819 = vadd.f32 0.0, %v1818
  %1820 = vmatmul.bf16.gmra.mxu0 %v1626
  %v1821 = vpop.f32.mrf.mxu0
  %v1822 = vadd.f32 0.0, %v1821
  %v1823 = vpop.f32.mrf.mxu0
  %v1824 = vadd.f32 0.0, %v1823
  %1825 = vmatmul.bf16.gmra.mxu0 %v1628
  %v1826 = vpop.f32.mrf.mxu0
  %v1827 = vadd.f32 0.0, %v1826
  %v1828 = vpop.f32.mrf.mxu0
  %v1829 = vadd.f32 0.0, %v1828
  %1830 = vmatmul.bf16.gmra.mxu0 %v1630
  %v1831 = vpop.f32.mrf.mxu0
  %v1832 = vadd.f32 0.0, %v1831
  %v1833 = vpop.f32.mrf.mxu0
  %v1834 = vadd.f32 0.0, %v1833
  %1835 = vmatmul.bf16.gmra.mxu0 %v1632
  %v1836 = vpop.f32.mrf.mxu0
  %v1837 = vadd.f32 0.0, %v1836
  %v1838 = vpop.f32.mrf.mxu0
  %v1839 = vadd.f32 0.0, %v1838
  %1840 = vmatmul.bf16.gmra.mxu0 %v1634
  %v1841 = vpop.f32.mrf.mxu0
  %v1842 = vadd.f32 0.0, %v1841
  %v1843 = vpop.f32.mrf.mxu0
  %v1844 = vadd.f32 0.0, %v1843
  %1845 = vmatmul.bf16.gmra.mxu0 %v1636
  %v1846 = vpop.f32.mrf.mxu0
  %v1847 = vadd.f32 0.0, %v1846
  %v1848 = vpop.f32.mrf.mxu0
  %v1849 = vadd.f32 0.0, %v1848
  %1850 = vmatmul.bf16.gmra.mxu0 %v1638
  %v1851 = vpop.f32.mrf.mxu0
  %v1852 = vadd.f32 0.0, %v1851
  %v1853 = vpop.f32.mrf.mxu0
  %v1854 = vadd.f32 0.0, %v1853
  %1855 = vmatmul.bf16.gmra.mxu0 %v1640
  %v1856 = vpop.f32.mrf.mxu0
  %v1857 = vadd.f32 0.0, %v1856
  %v1858 = vpop.f32.mrf.mxu0
  %v1859 = vadd.f32 0.0, %v1858
  %1860 = vmatmul.bf16.gmra.mxu0 %v1642
  %v1861 = vpop.f32.mrf.mxu0
  %v1862 = vadd.f32 0.0, %v1861
  %v1863 = vpop.f32.mrf.mxu0
  %v1864 = vadd.f32 0.0, %v1863
  %1865 = vmatmul.bf16.gmra.mxu0 %v1644
  %v1866 = vpop.f32.mrf.mxu0
  %v1867 = vadd.f32 0.0, %v1866
  %v1868 = vpop.f32.mrf.mxu0
  %v1869 = vadd.f32 0.0, %v1868
  %1870 = vmatmul.bf16.gmra.mxu0 %v1646
  %v1871 = vpop.f32.mrf.mxu0
  %v1872 = vadd.f32 0.0, %v1871
  %v1873 = vpop.f32.mrf.mxu0
  %v1874 = vadd.f32 0.0, %v1873
  %1875 = vmatmul.bf16.gmra.mxu0 %v1648
  %v1876 = vpop.f32.mrf.mxu0
  %v1877 = vadd.f32 0.0, %v1876
  %v1878 = vpop.f32.mrf.mxu0
  %v1879 = vadd.f32 0.0, %v1878
  %1880 = vmatmul.bf16.gmra.mxu0 %v1650
  %v1881 = vpop.f32.mrf.mxu0
  %v1882 = vadd.f32 0.0, %v1881
  %v1883 = vpop.f32.mrf.mxu0
  %v1884 = vadd.f32 0.0, %v1883
  %1885 = vdwg.mxu0
  %1886 = vmatpush.bf16.msra.mxu0 0
  %1887 = vmatpush.bf16.msra.mxu0 0
  %1888 = vmatpush.bf16.msra.mxu0 0
  %1889 = vmatpush.bf16.msra.mxu0 0
  %1890 = vmatpush.bf16.msra.mxu0 0
  %1891 = vmatpush.bf16.msra.mxu0 0
  %1892 = vmatpush.bf16.msra.mxu0 %v462
  %1893 = vmatpush.bf16.msra.mxu0 %v373
  %1894 = vmatmul.bf16.gmra.mxu0 %v1678
  %v1895 = vpop.f32.mrf.mxu0
  %v1896 = vadd.f32 %v1762, %v1895
  %v1897 = vpop.f32.mrf.mxu0
  %v1898 = vadd.f32 %v1764, %v1897
  %1899 = vmatmul.bf16.gmra.mxu0 %v1681
  %v1900 = vpop.f32.mrf.mxu0
  %v1901 = vadd.f32 %v1767, %v1900
  %v1902 = vpop.f32.mrf.mxu0
  %v1903 = vadd.f32 %v1769, %v1902
  %1904 = vmatmul.bf16.gmra.mxu0 %v1684
  %v1905 = vpop.f32.mrf.mxu0
  %v1906 = vadd.f32 %v1772, %v1905
  %v1907 = vpop.f32.mrf.mxu0
  %v1908 = vadd.f32 %v1774, %v1907
  %1909 = vmatmul.bf16.gmra.mxu0 %v1687
  %v1910 = vpop.f32.mrf.mxu0
  %v1911 = vadd.f32 %v1777, %v1910
  %v1912 = vpop.f32.mrf.mxu0
  %v1913 = vadd.f32 %v1779, %v1912
  %1914 = vmatmul.bf16.gmra.mxu0 %v1690
  %v1915 = vpop.f32.mrf.mxu0
  %v1916 = vadd.f32 %v1782, %v1915
  %v1917 = vpop.f32.mrf.mxu0
  %v1918 = vadd.f32 %v1784, %v1917
  %1919 = vmatmul.bf16.gmra.mxu0 %v1693
  %v1920 = vpop.f32.mrf.mxu0
  %v1921 = vadd.f32 %v1787, %v1920
  %v1922 = vpop.f32.mrf.mxu0
  %v1923 = vadd.f32 %v1789, %v1922
  %1924 = vmatmul.bf16.gmra.mxu0 %v1696
  %v1925 = vpop.f32.mrf.mxu0
  %v1926 = vadd.f32 %v1792, %v1925
  %v1927 = vpop.f32.mrf.mxu0
  %v1928 = vadd.f32 %v1794, %v1927
  %1929 = vmatmul.bf16.gmra.mxu0 %v1699
  %v1930 = vpop.f32.mrf.mxu0
  %v1931 = vadd.f32 %v1797, %v1930
  %v1932 = vpop.f32.mrf.mxu0
  %v1933 = vadd.f32 %v1799, %v1932
  %1934 = vmatmul.bf16.gmra.mxu0 %v1702
  %v1935 = vpop.f32.mrf.mxu0
  %v1936 = vadd.f32 %v1802, %v1935
  %v1937 = vpop.f32.mrf.mxu0
  %v1938 = vadd.f32 %v1804, %v1937
  %1939 = vmatmul.bf16.gmra.mxu0 %v1705
  %v1940 = vpop.f32.mrf.mxu0
  %v1941 = vadd.f32 %v1807, %v1940
  %v1942 = vpop.f32.mrf.mxu0
  %v1943 = vadd.f32 %v1809, %v1942
  %1944 = vmatmul.bf16.gmra.mxu0 %v1708
  %v1945 = vpop.f32.mrf.mxu0
  %v1946 = vadd.f32 %v1812, %v1945
  %v1947 = vpop.f32.mrf.mxu0
  %v1948 = vadd.f32 %v1814, %v1947
  %1949 = vmatmul.bf16.gmra.mxu0 %v1711
  %v1950 = vpop.f32.mrf.mxu0
  %v1951 = vadd.f32 %v1817, %v1950
  %v1952 = vpop.f32.mrf.mxu0
  %v1953 = vadd.f32 %v1819, %v1952
  %1954 = vmatmul.bf16.gmra.mxu0 %v1714
  %v1955 = vpop.f32.mrf.mxu0
  %v1956 = vadd.f32 %v1822, %v1955
  %v1957 = vpop.f32.mrf.mxu0
  %v1958 = vadd.f32 %v1824, %v1957
  %1959 = vmatmul.bf16.gmra.mxu0 %v1717
  %v1960 = vpop.f32.mrf.mxu0
  %v1961 = vadd.f32 %v1827, %v1960
  %v1962 = vpop.f32.mrf.mxu0
  %v1963 = vadd.f32 %v1829, %v1962
  %1964 = vmatmul.bf16.gmra.mxu0 %v1720
  %v1965 = vpop.f32.mrf.mxu0
  %v1966 = vadd.f32 %v1832, %v1965
  %v1967 = vpop.f32.mrf.mxu0
  %v1968 = vadd.f32 %v1834, %v1967
  %1969 = vmatmul.bf16.gmra.mxu0 %v1723
  %v1970 = vpop.f32.mrf.mxu0
  %v1971 = vadd.f32 %v1837, %v1970
  %v1972 = vpop.f32.mrf.mxu0
  %v1973 = vadd.f32 %v1839, %v1972
  %1974 = vmatmul.bf16.gmra.mxu0 %v1726
  %v1975 = vpop.f32.mrf.mxu0
  %v1976 = vadd.f32 %v1842, %v1975
  %v1977 = vpop.f32.mrf.mxu0
  %v1978 = vadd.f32 %v1844, %v1977
  %1979 = vmatmul.bf16.gmra.mxu0 %v1729
  %v1980 = vpop.f32.mrf.mxu0
  %v1981 = vadd.f32 %v1847, %v1980
  %v1982 = vpop.f32.mrf.mxu0
  %v1983 = vadd.f32 %v1849, %v1982
  %1984 = vmatmul.bf16.gmra.mxu0 %v1732
  %v1985 = vpop.f32.mrf.mxu0
  %v1986 = vadd.f32 %v1852, %v1985
  %v1987 = vpop.f32.mrf.mxu0
  %v1988 = vadd.f32 %v1854, %v1987
  %1989 = vmatmul.bf16.gmra.mxu0 %v1735
  %v1990 = vpop.f32.mrf.mxu0
  %v1991 = vadd.f32 %v1857, %v1990
  %v1992 = vpop.f32.mrf.mxu0
  %v1993 = vadd.f32 %v1859, %v1992
  %1994 = vmatmul.bf16.gmra.mxu0 %v1738
  %v1995 = vpop.f32.mrf.mxu0
  %v1996 = vadd.f32 %v1862, %v1995
  %v1997 = vpop.f32.mrf.mxu0
  %v1998 = vadd.f32 %v1864, %v1997
  %1999 = vmatmul.bf16.gmra.mxu0 %v1741
  %v2000 = vpop.f32.mrf.mxu0
  %v2001 = vadd.f32 %v1867, %v2000
  %v2002 = vpop.f32.mrf.mxu0
  %v2003 = vadd.f32 %v1869, %v2002
  %2004 = vmatmul.bf16.gmra.mxu0 %v1744
  %v2005 = vpop.f32.mrf.mxu0
  %v2006 = vadd.f32 %v1872, %v2005
  %v2007 = vpop.f32.mrf.mxu0
  %v2008 = vadd.f32 %v1874, %v2007
  %2009 = vmatmul.bf16.gmra.mxu0 %v1747
  %v2010 = vpop.f32.mrf.mxu0
  %v2011 = vadd.f32 %v1877, %v2010
  %v2012 = vpop.f32.mrf.mxu0
  %v2013 = vadd.f32 %v1879, %v2012
  %2014 = vmatmul.bf16.gmra.mxu0 %v1750
  %v2015 = vpop.f32.mrf.mxu0
  %v2016 = vadd.f32 %v1882, %v2015
  %v2017 = vpop.f32.mrf.mxu0
  %v2018 = vadd.f32 %v1884, %v2017
  %2019 = vdwg.mxu0
  %v2020 = vmax.f32 %v1351, %v1896
  %v2021 = vmax.f32 %v1352, %v1898
  %v2022 = vmax.f32 %v1353, %v1901
  %v2023 = vmax.f32 %v1354, %v1903
  %v2024 = vmax.f32 %v1355, %v1906
  %v2025 = vmax.f32 %v1356, %v1908
  %v2026 = vmax.f32 %v1357, %v1911
  %v2027 = vmax.f32 %v1358, %v1913
  %v2028 = vmax.f32 %v1359, %v1916
  %v2029 = vmax.f32 %v1360, %v1918
  %v2030 = vmax.f32 %v1361, %v1921
  %v2031 = vmax.f32 %v1362, %v1923
  %v2032 = vmax.f32 %v1363, %v1926
  %v2033 = vmax.f32 %v1364, %v1928
  %v2034 = vmax.f32 %v1365, %v1931
  %v2035 = vmax.f32 %v1366, %v1933
  %v2036 = vmax.f32 %v1367, %v1936
  %v2037 = vmax.f32 %v1368, %v1938
  %v2038 = vmax.f32 %v1369, %v1941
  %v2039 = vmax.f32 %v1370, %v1943
  %v2040 = vmax.f32 %v1371, %v1946
  %v2041 = vmax.f32 %v1372, %v1948
  %v2042 = vmax.f32 %v1373, %v1951
  %v2043 = vmax.f32 %v1374, %v1953
  %v2044 = vmax.f32 %v1375, %v1956
  %v2045 = vmax.f32 %v1376, %v1958
  %v2046 = vmax.f32 %v1377, %v1961
  %v2047 = vmax.f32 %v1378, %v1963
  %v2048 = vmax.f32 %v1379, %v1966
  %v2049 = vmax.f32 %v1380, %v1968
  %v2050 = vmax.f32 %v1381, %v1971
  %v2051 = vmax.f32 %v1382, %v1973
  %v2052 = vmax.f32 %v1383, %v1976
  %v2053 = vmax.f32 %v1384, %v1978
  %v2054 = vmax.f32 %v1385, %v1981
  %v2055 = vmax.f32 %v1386, %v1983
  %v2056 = vmax.f32 %v1387, %v1986
  %v2057 = vmax.f32 %v1388, %v1988
  %v2058 = vmax.f32 %v1389, %v1991
  %v2059 = vmax.f32 %v1390, %v1993
  %v2060 = vmax.f32 %v1391, %v1996
  %v2061 = vmax.f32 %v1392, %v1998
  %v2062 = vmax.f32 %v1393, %v2001
  %v2063 = vmax.f32 %v1394, %v2003
  %v2064 = vmax.f32 %v1395, %v2006
  %v2065 = vmax.f32 %v1396, %v2008
  %v2066 = vmax.f32 %v1397, %v2011
  %v2067 = vmax.f32 %v1398, %v2013
  %v2068 = vmax.f32 %v1399, %v2016
  %v2069 = vmax.f32 %v1400, %v2018
  %s2070 = scalar_lea.vmem %s0, 1200
  %v2071 = vld [vmem:[%s2070] sm:$0xff]
  %v2072 = vld [vmem:[%s2070 + $0x8] sm:$0xff]
  %v2073 = vld [vmem:[%s2070 + $0x10] sm:$0xff]
  %v2074 = vld [vmem:[%s2070 + $0x18] sm:$0xff]
  %v2075 = vld [vmem:[%s2070 + $0x20] sm:$0xff]
  %v2076 = vld [vmem:[%s2070 + $0x28] sm:$0xff]
  %v2077 = vld [vmem:[%s2070 + $0x30] sm:$0xff]
  %v2078 = vld [vmem:[%s2070 + $0x38] sm:$0xff]
  %v2079 = vld [vmem:[%s2070 + $0x40] sm:$0xff]
  %v2080 = vld [vmem:[%s2070 + $0x48] sm:$0xff]
  %v2081 = vld [vmem:[%s2070 + $0x50] sm:$0xff]
  %v2082 = vld [vmem:[%s2070 + $0x58] sm:$0xff]
  %v2083 = vld [vmem:[%s2070 + $0x60] sm:$0xff]
  %v2084 = vld [vmem:[%s2070 + $0x68] sm:$0xff]
  %v2085 = vld [vmem:[%s2070 + $0x70] sm:$0xff]
  %v2086 = vld [vmem:[%s2070 + $0x78] sm:$0xff]
  %v2087 = vld [vmem:[%s2070 + $0x80] sm:$0xff]
  %v2088 = vld [vmem:[%s2070 + $0x88] sm:$0xff]
  %v2089 = vld [vmem:[%s2070 + $0x90] sm:$0xff]
  %v2090 = vld [vmem:[%s2070 + $0x98] sm:$0xff]
  %v2091 = vld [vmem:[%s2070 + $0xa0] sm:$0xff]
  %v2092 = vld [vmem:[%s2070 + $0xa8] sm:$0xff]
  %v2093 = vld [vmem:[%s2070 + $0xb0] sm:$0xff]
  %v2094 = vld [vmem:[%s2070 + $0xb8] sm:$0xff]
  %v2095 = vld [vmem:[%s2070 + $0xc0] sm:$0xff]
  %v2096 = vld [vmem:[%s2070 + $0xc8] sm:$0xff]
  %v2097 = vld [vmem:[%s2070 + $0xd0] sm:$0xff]
  %v2098 = vld [vmem:[%s2070 + $0xd8] sm:$0xff]
  %v2099 = vld [vmem:[%s2070 + $0xe0] sm:$0xff]
  %v2100 = vld [vmem:[%s2070 + $0xe8] sm:$0xff]
  %v2101 = vld [vmem:[%s2070 + $0xf0] sm:$0xff]
  %v2102 = vld [vmem:[%s2070 + $0xf8] sm:$0xff]
  %v2103 = vld [vmem:[%s2070 + $0x100] sm:$0xff]
  %v2104 = vld [vmem:[%s2070 + $0x108] sm:$0xff]
  %v2105 = vld [vmem:[%s2070 + $0x110] sm:$0xff]
  %v2106 = vld [vmem:[%s2070 + $0x118] sm:$0xff]
  %v2107 = vld [vmem:[%s2070 + $0x120] sm:$0xff]
  %v2108 = vld [vmem:[%s2070 + $0x128] sm:$0xff]
  %v2109 = vld [vmem:[%s2070 + $0x130] sm:$0xff]
  %v2110 = vld [vmem:[%s2070 + $0x138] sm:$0xff]
  %v2111 = vld [vmem:[%s2070 + $0x140] sm:$0xff]
  %v2112 = vld [vmem:[%s2070 + $0x148] sm:$0xff]
  %v2113 = vld [vmem:[%s2070 + $0x150] sm:$0xff]
  %v2114 = vld [vmem:[%s2070 + $0x158] sm:$0xff]
  %v2115 = vld [vmem:[%s2070 + $0x160] sm:$0xff]
  %v2116 = vld [vmem:[%s2070 + $0x168] sm:$0xff]
  %v2117 = vld [vmem:[%s2070 + $0x170] sm:$0xff]
  %v2118 = vld [vmem:[%s2070 + $0x178] sm:$0xff]
  %v2119 = vld [vmem:[%s2070 + $0x180] sm:$0xff]
  %v2120 = vld [vmem:[%s2070 + $0x188] sm:$0xff]
  %v2171 = vunpack.c.l.b16 %v2071
  %v2172 = vunpack.c.h.b16 %v2071
  %v2173 = vunpack.c.l.b16 %v2072
  %v2174 = vunpack.c.h.b16 %v2072
  %v2175 = vunpack.c.l.b16 %v2073
  %v2176 = vunpack.c.h.b16 %v2073
  %v2177 = vunpack.c.l.b16 %v2074
  %v2178 = vunpack.c.h.b16 %v2074
  %v2179 = vunpack.c.l.b16 %v2075
  %v2180 = vunpack.c.h.b16 %v2075
  %v2181 = vunpack.c.l.b16 %v2076
  %v2182 = vunpack.c.h.b16 %v2076
  %v2183 = vunpack.c.l.b16 %v2077
  %v2184 = vunpack.c.h.b16 %v2077
  %v2185 = vunpack.c.l.b16 %v2078
  %v2186 = vunpack.c.h.b16 %v2078
  %v2187 = vunpack.c.l.b16 %v2079
  %v2188 = vunpack.c.h.b16 %v2079
  %v2189 = vunpack.c.l.b16 %v2080
  %v2190 = vunpack.c.h.b16 %v2080
  %v2191 = vunpack.c.l.b16 %v2081
  %v2192 = vunpack.c.h.b16 %v2081
  %v2193 = vunpack.c.l.b16 %v2082
  %v2194 = vunpack.c.h.b16 %v2082
  %v2195 = vunpack.c.l.b16 %v2083
  %v2196 = vunpack.c.h.b16 %v2083
  %v2197 = vunpack.c.l.b16 %v2084
  %v2198 = vunpack.c.h.b16 %v2084
  %v2199 = vunpack.c.l.b16 %v2085
  %v2200 = vunpack.c.h.b16 %v2085
  %v2201 = vunpack.c.l.b16 %v2086
  %v2202 = vunpack.c.h.b16 %v2086
  %v2203 = vunpack.c.l.b16 %v2087
  %v2204 = vunpack.c.h.b16 %v2087
  %v2205 = vunpack.c.l.b16 %v2088
  %v2206 = vunpack.c.h.b16 %v2088
  %v2207 = vunpack.c.l.b16 %v2089
  %v2208 = vunpack.c.h.b16 %v2089
  %v2209 = vunpack.c.l.b16 %v2090
  %v2210 = vunpack.c.h.b16 %v2090
  %v2211 = vunpack.c.l.b16 %v2091
  %v2212 = vunpack.c.h.b16 %v2091
  %v2213 = vunpack.c.l.b16 %v2092
  %v2214 = vunpack.c.h.b16 %v2092
  %v2215 = vunpack.c.l.b16 %v2093
  %v2216 = vunpack.c.h.b16 %v2093
  %v2217 = vunpack.c.l.b16 %v2094
  %v2218 = vunpack.c.h.b16 %v2094
  %v2219 = vunpack.c.l.b16 %v2095
  %v2220 = vunpack.c.h.b16 %v2095
  %v2221 = vunpack.c.l.b16 %v2096
  %v2222 = vunpack.c.h.b16 %v2096
  %v2223 = vunpack.c.l.b16 %v2097
  %v2224 = vunpack.c.h.b16 %v2097
  %v2225 = vunpack.c.l.b16 %v2098
  %v2226 = vunpack.c.h.b16 %v2098
  %v2227 = vunpack.c.l.b16 %v2099
  %v2228 = vunpack.c.h.b16 %v2099
  %v2229 = vunpack.c.l.b16 %v2100
  %v2230 = vunpack.c.h.b16 %v2100
  %v2231 = vunpack.c.l.b16 %v2101
  %v2232 = vunpack.c.h.b16 %v2101
  %v2233 = vunpack.c.l.b16 %v2102
  %v2234 = vunpack.c.h.b16 %v2102
  %v2235 = vunpack.c.l.b16 %v2103
  %v2236 = vunpack.c.h.b16 %v2103
  %v2237 = vunpack.c.l.b16 %v2104
  %v2238 = vunpack.c.h.b16 %v2104
  %v2239 = vunpack.c.l.b16 %v2105
  %v2240 = vunpack.c.h.b16 %v2105
  %v2241 = vunpack.c.l.b16 %v2106
  %v2242 = vunpack.c.h.b16 %v2106
  %v2243 = vunpack.c.l.b16 %v2107
  %v2244 = vunpack.c.h.b16 %v2107
  %v2245 = vunpack.c.l.b16 %v2108
  %v2246 = vunpack.c.h.b16 %v2108
  %v2247 = vunpack.c.l.b16 %v2109
  %v2248 = vunpack.c.h.b16 %v2109
  %v2249 = vunpack.c.l.b16 %v2110
  %v2250 = vunpack.c.h.b16 %v2110
  %v2251 = vunpack.c.l.b16 %v2111
  %v2252 = vunpack.c.h.b16 %v2111
  %v2253 = vunpack.c.l.b16 %v2112
  %v2254 = vunpack.c.h.b16 %v2112
  %v2255 = vunpack.c.l.b16 %v2113
  %v2256 = vunpack.c.h.b16 %v2113
  %v2257 = vunpack.c.l.b16 %v2114
  %v2258 = vunpack.c.h.b16 %v2114
  %v2259 = vunpack.c.l.b16 %v2115
  %v2260 = vunpack.c.h.b16 %v2115
  %v2261 = vunpack.c.l.b16 %v2116
  %v2262 = vunpack.c.h.b16 %v2116
  %v2263 = vunpack.c.l.b16 %v2117
  %v2264 = vunpack.c.h.b16 %v2117
  %v2265 = vunpack.c.l.b16 %v2118
  %v2266 = vunpack.c.h.b16 %v2118
  %v2267 = vunpack.c.l.b16 %v2119
  %v2268 = vunpack.c.h.b16 %v2119
  %v2269 = vunpack.c.l.b16 %v2120
  %v2270 = vunpack.c.h.b16 %v2120
  %v2271 = vpack.c.b16 %v2173, %v2171
  %v2272 = vpack.c.b16 %v2174, %v2172
  %v2273 = vpack.c.b16 %v2177, %v2175
  %v2274 = vpack.c.b16 %v2178, %v2176
  %v2275 = vpack.c.b16 %v2181, %v2179
  %v2276 = vpack.c.b16 %v2182, %v2180
  %v2277 = vpack.c.b16 %v2185, %v2183
  %v2278 = vpack.c.b16 %v2186, %v2184
  %v2279 = vpack.c.b16 %v2189, %v2187
  %v2280 = vpack.c.b16 %v2190, %v2188
  %v2281 = vpack.c.b16 %v2193, %v2191
  %v2282 = vpack.c.b16 %v2194, %v2192
  %v2283 = vpack.c.b16 %v2197, %v2195
  %v2284 = vpack.c.b16 %v2198, %v2196
  %v2285 = vpack.c.b16 %v2201, %v2199
  %v2286 = vpack.c.b16 %v2202, %v2200
  %v2287 = vpack.c.b16 %v2205, %v2203
  %v2288 = vpack.c.b16 %v2206, %v2204
  %v2289 = vpack.c.b16 %v2209, %v2207
  %v2290 = vpack.c.b16 %v2210, %v2208
  %v2291 = vpack.c.b16 %v2213, %v2211
  %v2292 = vpack.c.b16 %v2214, %v2212
  %v2293 = vpack.c.b16 %v2217, %v2215
  %v2294 = vpack.c.b16 %v2218, %v2216
  %v2295 = vpack.c.b16 %v2221, %v2219
  %v2296 = vpack.c.b16 %v2222, %v2220
  %v2297 = vpack.c.b16 %v2225, %v2223
  %v2298 = vpack.c.b16 %v2226, %v2224
  %v2299 = vpack.c.b16 %v2229, %v2227
  %v2300 = vpack.c.b16 %v2230, %v2228
  %v2301 = vpack.c.b16 %v2233, %v2231
  %v2302 = vpack.c.b16 %v2234, %v2232
  %v2303 = vpack.c.b16 %v2237, %v2235
  %v2304 = vpack.c.b16 %v2238, %v2236
  %v2305 = vpack.c.b16 %v2241, %v2239
  %v2306 = vpack.c.b16 %v2242, %v2240
  %v2307 = vpack.c.b16 %v2245, %v2243
  %v2308 = vpack.c.b16 %v2246, %v2244
  %v2309 = vpack.c.b16 %v2249, %v2247
  %v2310 = vpack.c.b16 %v2250, %v2248
  %v2311 = vpack.c.b16 %v2253, %v2251
  %v2312 = vpack.c.b16 %v2254, %v2252
  %v2313 = vpack.c.b16 %v2257, %v2255
  %v2314 = vpack.c.b16 %v2258, %v2256
  %v2315 = vpack.c.b16 %v2261, %v2259
  %v2316 = vpack.c.b16 %v2262, %v2260
  %v2317 = vpack.c.b16 %v2265, %v2263
  %v2318 = vpack.c.b16 %v2266, %v2264
  %v2319 = vpack.c.b16 %v2269, %v2267
  %v2320 = vpack.c.b16 %v2270, %v2268
  %v2347 = vsel %vm384, %v2272, 0
  %v2350 = vsel %vm384, %v2274, 0
  %v2353 = vsel %vm384, %v2276, 0
  %v2356 = vsel %vm384, %v2278, 0
  %v2359 = vsel %vm384, %v2280, 0
  %v2362 = vsel %vm384, %v2282, 0
  %v2365 = vsel %vm384, %v2284, 0
  %v2368 = vsel %vm384, %v2286, 0
  %v2371 = vsel %vm384, %v2288, 0
  %v2374 = vsel %vm384, %v2290, 0
  %v2377 = vsel %vm384, %v2292, 0
  %v2380 = vsel %vm384, %v2294, 0
  %v2383 = vsel %vm384, %v2296, 0
  %v2386 = vsel %vm384, %v2298, 0
  %v2389 = vsel %vm384, %v2300, 0
  %v2392 = vsel %vm384, %v2302, 0
  %v2395 = vsel %vm384, %v2304, 0
  %v2398 = vsel %vm384, %v2306, 0
  %v2401 = vsel %vm384, %v2308, 0
  %v2404 = vsel %vm384, %v2310, 0
  %v2407 = vsel %vm384, %v2312, 0
  %v2410 = vsel %vm384, %v2314, 0
  %v2413 = vsel %vm384, %v2316, 0
  %v2416 = vsel %vm384, %v2318, 0
  %v2419 = vsel %vm384, %v2320, 0
  %2421 = vmatpush.bf16.msra.mxu0 %v372
  %2422 = vmatpush.bf16.msra.mxu0 %v371
  %2423 = vmatpush.bf16.msra.mxu0 %v370
  %2424 = vmatpush.bf16.msra.mxu0 %v369
  %2425 = vmatpush.bf16.msra.mxu0 %v368
  %2426 = vmatpush.bf16.msra.mxu0 %v367
  %2427 = vmatpush.bf16.msra.mxu0 %v366
  %2428 = vmatpush.bf16.msra.mxu0 %v365
  %2429 = vmatmul.bf16.gmra.mxu0 %v2271
  %v2430 = vpop.f32.mrf.mxu0
  %v2431 = vadd.f32 0.0, %v2430
  %v2432 = vpop.f32.mrf.mxu0
  %v2433 = vadd.f32 0.0, %v2432
  %2434 = vmatmul.bf16.gmra.mxu0 %v2273
  %v2435 = vpop.f32.mrf.mxu0
  %v2436 = vadd.f32 0.0, %v2435
  %v2437 = vpop.f32.mrf.mxu0
  %v2438 = vadd.f32 0.0, %v2437
  %2439 = vmatmul.bf16.gmra.mxu0 %v2275
  %v2440 = vpop.f32.mrf.mxu0
  %v2441 = vadd.f32 0.0, %v2440
  %v2442 = vpop.f32.mrf.mxu0
  %v2443 = vadd.f32 0.0, %v2442
  %2444 = vmatmul.bf16.gmra.mxu0 %v2277
  %v2445 = vpop.f32.mrf.mxu0
  %v2446 = vadd.f32 0.0, %v2445
  %v2447 = vpop.f32.mrf.mxu0
  %v2448 = vadd.f32 0.0, %v2447
  %2449 = vmatmul.bf16.gmra.mxu0 %v2279
  %v2450 = vpop.f32.mrf.mxu0
  %v2451 = vadd.f32 0.0, %v2450
  %v2452 = vpop.f32.mrf.mxu0
  %v2453 = vadd.f32 0.0, %v2452
  %2454 = vmatmul.bf16.gmra.mxu0 %v2281
  %v2455 = vpop.f32.mrf.mxu0
  %v2456 = vadd.f32 0.0, %v2455
  %v2457 = vpop.f32.mrf.mxu0
  %v2458 = vadd.f32 0.0, %v2457
  %2459 = vmatmul.bf16.gmra.mxu0 %v2283
  %v2460 = vpop.f32.mrf.mxu0
  %v2461 = vadd.f32 0.0, %v2460
  %v2462 = vpop.f32.mrf.mxu0
  %v2463 = vadd.f32 0.0, %v2462
  %2464 = vmatmul.bf16.gmra.mxu0 %v2285
  %v2465 = vpop.f32.mrf.mxu0
  %v2466 = vadd.f32 0.0, %v2465
  %v2467 = vpop.f32.mrf.mxu0
  %v2468 = vadd.f32 0.0, %v2467
  %2469 = vmatmul.bf16.gmra.mxu0 %v2287
  %v2470 = vpop.f32.mrf.mxu0
  %v2471 = vadd.f32 0.0, %v2470
  %v2472 = vpop.f32.mrf.mxu0
  %v2473 = vadd.f32 0.0, %v2472
  %2474 = vmatmul.bf16.gmra.mxu0 %v2289
  %v2475 = vpop.f32.mrf.mxu0
  %v2476 = vadd.f32 0.0, %v2475
  %v2477 = vpop.f32.mrf.mxu0
  %v2478 = vadd.f32 0.0, %v2477
  %2479 = vmatmul.bf16.gmra.mxu0 %v2291
  %v2480 = vpop.f32.mrf.mxu0
  %v2481 = vadd.f32 0.0, %v2480
  %v2482 = vpop.f32.mrf.mxu0
  %v2483 = vadd.f32 0.0, %v2482
  %2484 = vmatmul.bf16.gmra.mxu0 %v2293
  %v2485 = vpop.f32.mrf.mxu0
  %v2486 = vadd.f32 0.0, %v2485
  %v2487 = vpop.f32.mrf.mxu0
  %v2488 = vadd.f32 0.0, %v2487
  %2489 = vmatmul.bf16.gmra.mxu0 %v2295
  %v2490 = vpop.f32.mrf.mxu0
  %v2491 = vadd.f32 0.0, %v2490
  %v2492 = vpop.f32.mrf.mxu0
  %v2493 = vadd.f32 0.0, %v2492
  %2494 = vmatmul.bf16.gmra.mxu0 %v2297
  %v2495 = vpop.f32.mrf.mxu0
  %v2496 = vadd.f32 0.0, %v2495
  %v2497 = vpop.f32.mrf.mxu0
  %v2498 = vadd.f32 0.0, %v2497
  %2499 = vmatmul.bf16.gmra.mxu0 %v2299
  %v2500 = vpop.f32.mrf.mxu0
  %v2501 = vadd.f32 0.0, %v2500
  %v2502 = vpop.f32.mrf.mxu0
  %v2503 = vadd.f32 0.0, %v2502
  %2504 = vmatmul.bf16.gmra.mxu0 %v2301
  %v2505 = vpop.f32.mrf.mxu0
  %v2506 = vadd.f32 0.0, %v2505
  %v2507 = vpop.f32.mrf.mxu0
  %v2508 = vadd.f32 0.0, %v2507
  %2509 = vmatmul.bf16.gmra.mxu0 %v2303
  %v2510 = vpop.f32.mrf.mxu0
  %v2511 = vadd.f32 0.0, %v2510
  %v2512 = vpop.f32.mrf.mxu0
  %v2513 = vadd.f32 0.0, %v2512
  %2514 = vmatmul.bf16.gmra.mxu0 %v2305
  %v2515 = vpop.f32.mrf.mxu0
  %v2516 = vadd.f32 0.0, %v2515
  %v2517 = vpop.f32.mrf.mxu0
  %v2518 = vadd.f32 0.0, %v2517
  %2519 = vmatmul.bf16.gmra.mxu0 %v2307
  %v2520 = vpop.f32.mrf.mxu0
  %v2521 = vadd.f32 0.0, %v2520
  %v2522 = vpop.f32.mrf.mxu0
  %v2523 = vadd.f32 0.0, %v2522
  %2524 = vmatmul.bf16.gmra.mxu0 %v2309
  %v2525 = vpop.f32.mrf.mxu0
  %v2526 = vadd.f32 0.0, %v2525
  %v2527 = vpop.f32.mrf.mxu0
  %v2528 = vadd.f32 0.0, %v2527
  %2529 = vmatmul.bf16.gmra.mxu0 %v2311
  %v2530 = vpop.f32.mrf.mxu0
  %v2531 = vadd.f32 0.0, %v2530
  %v2532 = vpop.f32.mrf.mxu0
  %v2533 = vadd.f32 0.0, %v2532
  %2534 = vmatmul.bf16.gmra.mxu0 %v2313
  %v2535 = vpop.f32.mrf.mxu0
  %v2536 = vadd.f32 0.0, %v2535
  %v2537 = vpop.f32.mrf.mxu0
  %v2538 = vadd.f32 0.0, %v2537
  %2539 = vmatmul.bf16.gmra.mxu0 %v2315
  %v2540 = vpop.f32.mrf.mxu0
  %v2541 = vadd.f32 0.0, %v2540
  %v2542 = vpop.f32.mrf.mxu0
  %v2543 = vadd.f32 0.0, %v2542
  %2544 = vmatmul.bf16.gmra.mxu0 %v2317
  %v2545 = vpop.f32.mrf.mxu0
  %v2546 = vadd.f32 0.0, %v2545
  %v2547 = vpop.f32.mrf.mxu0
  %v2548 = vadd.f32 0.0, %v2547
  %2549 = vmatmul.bf16.gmra.mxu0 %v2319
  %v2550 = vpop.f32.mrf.mxu0
  %v2551 = vadd.f32 0.0, %v2550
  %v2552 = vpop.f32.mrf.mxu0
  %v2553 = vadd.f32 0.0, %v2552
  %2554 = vdwg.mxu0
  %2555 = vmatpush.bf16.msra.mxu0 0
  %2556 = vmatpush.bf16.msra.mxu0 0
  %2557 = vmatpush.bf16.msra.mxu0 0
  %2558 = vmatpush.bf16.msra.mxu0 0
  %2559 = vmatpush.bf16.msra.mxu0 0
  %2560 = vmatpush.bf16.msra.mxu0 0
  %2561 = vmatpush.bf16.msra.mxu0 %v462
  %2562 = vmatpush.bf16.msra.mxu0 %v373
  %2563 = vmatmul.bf16.gmra.mxu0 %v2347
  %v2564 = vpop.f32.mrf.mxu0
  %v2565 = vadd.f32 %v2431, %v2564
  %v2566 = vpop.f32.mrf.mxu0
  %v2567 = vadd.f32 %v2433, %v2566
  %2568 = vmatmul.bf16.gmra.mxu0 %v2350
  %v2569 = vpop.f32.mrf.mxu0
  %v2570 = vadd.f32 %v2436, %v2569
  %v2571 = vpop.f32.mrf.mxu0
  %v2572 = vadd.f32 %v2438, %v2571
  %2573 = vmatmul.bf16.gmra.mxu0 %v2353
  %v2574 = vpop.f32.mrf.mxu0
  %v2575 = vadd.f32 %v2441, %v2574
  %v2576 = vpop.f32.mrf.mxu0
  %v2577 = vadd.f32 %v2443, %v2576
  %2578 = vmatmul.bf16.gmra.mxu0 %v2356
  %v2579 = vpop.f32.mrf.mxu0
  %v2580 = vadd.f32 %v2446, %v2579
  %v2581 = vpop.f32.mrf.mxu0
  %v2582 = vadd.f32 %v2448, %v2581
  %2583 = vmatmul.bf16.gmra.mxu0 %v2359
  %v2584 = vpop.f32.mrf.mxu0
  %v2585 = vadd.f32 %v2451, %v2584
  %v2586 = vpop.f32.mrf.mxu0
  %v2587 = vadd.f32 %v2453, %v2586
  %2588 = vmatmul.bf16.gmra.mxu0 %v2362
  %v2589 = vpop.f32.mrf.mxu0
  %v2590 = vadd.f32 %v2456, %v2589
  %v2591 = vpop.f32.mrf.mxu0
  %v2592 = vadd.f32 %v2458, %v2591
  %2593 = vmatmul.bf16.gmra.mxu0 %v2365
  %v2594 = vpop.f32.mrf.mxu0
  %v2595 = vadd.f32 %v2461, %v2594
  %v2596 = vpop.f32.mrf.mxu0
  %v2597 = vadd.f32 %v2463, %v2596
  %2598 = vmatmul.bf16.gmra.mxu0 %v2368
  %v2599 = vpop.f32.mrf.mxu0
  %v2600 = vadd.f32 %v2466, %v2599
  %v2601 = vpop.f32.mrf.mxu0
  %v2602 = vadd.f32 %v2468, %v2601
  %2603 = vmatmul.bf16.gmra.mxu0 %v2371
  %v2604 = vpop.f32.mrf.mxu0
  %v2605 = vadd.f32 %v2471, %v2604
  %v2606 = vpop.f32.mrf.mxu0
  %v2607 = vadd.f32 %v2473, %v2606
  %2608 = vmatmul.bf16.gmra.mxu0 %v2374
  %v2609 = vpop.f32.mrf.mxu0
  %v2610 = vadd.f32 %v2476, %v2609
  %v2611 = vpop.f32.mrf.mxu0
  %v2612 = vadd.f32 %v2478, %v2611
  %2613 = vmatmul.bf16.gmra.mxu0 %v2377
  %v2614 = vpop.f32.mrf.mxu0
  %v2615 = vadd.f32 %v2481, %v2614
  %v2616 = vpop.f32.mrf.mxu0
  %v2617 = vadd.f32 %v2483, %v2616
  %2618 = vmatmul.bf16.gmra.mxu0 %v2380
  %v2619 = vpop.f32.mrf.mxu0
  %v2620 = vadd.f32 %v2486, %v2619
  %v2621 = vpop.f32.mrf.mxu0
  %v2622 = vadd.f32 %v2488, %v2621
  %2623 = vmatmul.bf16.gmra.mxu0 %v2383
  %v2624 = vpop.f32.mrf.mxu0
  %v2625 = vadd.f32 %v2491, %v2624
  %v2626 = vpop.f32.mrf.mxu0
  %v2627 = vadd.f32 %v2493, %v2626
  %2628 = vmatmul.bf16.gmra.mxu0 %v2386
  %v2629 = vpop.f32.mrf.mxu0
  %v2630 = vadd.f32 %v2496, %v2629
  %v2631 = vpop.f32.mrf.mxu0
  %v2632 = vadd.f32 %v2498, %v2631
  %2633 = vmatmul.bf16.gmra.mxu0 %v2389
  %v2634 = vpop.f32.mrf.mxu0
  %v2635 = vadd.f32 %v2501, %v2634
  %v2636 = vpop.f32.mrf.mxu0
  %v2637 = vadd.f32 %v2503, %v2636
  %2638 = vmatmul.bf16.gmra.mxu0 %v2392
  %v2639 = vpop.f32.mrf.mxu0
  %v2640 = vadd.f32 %v2506, %v2639
  %v2641 = vpop.f32.mrf.mxu0
  %v2642 = vadd.f32 %v2508, %v2641
  %2643 = vmatmul.bf16.gmra.mxu0 %v2395
  %v2644 = vpop.f32.mrf.mxu0
  %v2645 = vadd.f32 %v2511, %v2644
  %v2646 = vpop.f32.mrf.mxu0
  %v2647 = vadd.f32 %v2513, %v2646
  %2648 = vmatmul.bf16.gmra.mxu0 %v2398
  %v2649 = vpop.f32.mrf.mxu0
  %v2650 = vadd.f32 %v2516, %v2649
  %v2651 = vpop.f32.mrf.mxu0
  %v2652 = vadd.f32 %v2518, %v2651
  %2653 = vmatmul.bf16.gmra.mxu0 %v2401
  %v2654 = vpop.f32.mrf.mxu0
  %v2655 = vadd.f32 %v2521, %v2654
  %v2656 = vpop.f32.mrf.mxu0
  %v2657 = vadd.f32 %v2523, %v2656
  %2658 = vmatmul.bf16.gmra.mxu0 %v2404
  %v2659 = vpop.f32.mrf.mxu0
  %v2660 = vadd.f32 %v2526, %v2659
  %v2661 = vpop.f32.mrf.mxu0
  %v2662 = vadd.f32 %v2528, %v2661
  %2663 = vmatmul.bf16.gmra.mxu0 %v2407
  %v2664 = vpop.f32.mrf.mxu0
  %v2665 = vadd.f32 %v2531, %v2664
  %v2666 = vpop.f32.mrf.mxu0
  %v2667 = vadd.f32 %v2533, %v2666
  %2668 = vmatmul.bf16.gmra.mxu0 %v2410
  %v2669 = vpop.f32.mrf.mxu0
  %v2670 = vadd.f32 %v2536, %v2669
  %v2671 = vpop.f32.mrf.mxu0
  %v2672 = vadd.f32 %v2538, %v2671
  %2673 = vmatmul.bf16.gmra.mxu0 %v2413
  %v2674 = vpop.f32.mrf.mxu0
  %v2675 = vadd.f32 %v2541, %v2674
  %v2676 = vpop.f32.mrf.mxu0
  %v2677 = vadd.f32 %v2543, %v2676
  %2678 = vmatmul.bf16.gmra.mxu0 %v2416
  %v2679 = vpop.f32.mrf.mxu0
  %v2680 = vadd.f32 %v2546, %v2679
  %v2681 = vpop.f32.mrf.mxu0
  %v2682 = vadd.f32 %v2548, %v2681
  %2683 = vmatmul.bf16.gmra.mxu0 %v2419
  %v2684 = vpop.f32.mrf.mxu0
  %v2685 = vadd.f32 %v2551, %v2684
  %v2686 = vpop.f32.mrf.mxu0
  %v2687 = vadd.f32 %v2553, %v2686
  %2688 = vdwg.mxu0
  %v2689 = vmax.f32 %v2020, %v2565
  %v2690 = vmax.f32 %v2021, %v2567
  %v2691 = vmax.f32 %v2022, %v2570
  %v2692 = vmax.f32 %v2023, %v2572
  %v2693 = vmax.f32 %v2024, %v2575
  %v2694 = vmax.f32 %v2025, %v2577
  %v2695 = vmax.f32 %v2026, %v2580
  %v2696 = vmax.f32 %v2027, %v2582
  %v2697 = vmax.f32 %v2028, %v2585
  %v2698 = vmax.f32 %v2029, %v2587
  %v2699 = vmax.f32 %v2030, %v2590
  %v2700 = vmax.f32 %v2031, %v2592
  %v2701 = vmax.f32 %v2032, %v2595
  %v2702 = vmax.f32 %v2033, %v2597
  %v2703 = vmax.f32 %v2034, %v2600
  %v2704 = vmax.f32 %v2035, %v2602
  %v2705 = vmax.f32 %v2036, %v2605
  %v2706 = vmax.f32 %v2037, %v2607
  %v2707 = vmax.f32 %v2038, %v2610
  %v2708 = vmax.f32 %v2039, %v2612
  %v2709 = vmax.f32 %v2040, %v2615
  %v2710 = vmax.f32 %v2041, %v2617
  %v2711 = vmax.f32 %v2042, %v2620
  %v2712 = vmax.f32 %v2043, %v2622
  %v2713 = vmax.f32 %v2044, %v2625
  %v2714 = vmax.f32 %v2045, %v2627
  %v2715 = vmax.f32 %v2046, %v2630
  %v2716 = vmax.f32 %v2047, %v2632
  %v2717 = vmax.f32 %v2048, %v2635
  %v2718 = vmax.f32 %v2049, %v2637
  %v2719 = vmax.f32 %v2050, %v2640
  %v2720 = vmax.f32 %v2051, %v2642
  %v2721 = vmax.f32 %v2052, %v2645
  %v2722 = vmax.f32 %v2053, %v2647
  %v2723 = vmax.f32 %v2054, %v2650
  %v2724 = vmax.f32 %v2055, %v2652
  %v2725 = vmax.f32 %v2056, %v2655
  %v2726 = vmax.f32 %v2057, %v2657
  %v2727 = vmax.f32 %v2058, %v2660
  %v2728 = vmax.f32 %v2059, %v2662
  %v2729 = vmax.f32 %v2060, %v2665
  %v2730 = vmax.f32 %v2061, %v2667
  %v2731 = vmax.f32 %v2062, %v2670
  %v2732 = vmax.f32 %v2063, %v2672
  %v2733 = vmax.f32 %v2064, %v2675
  %v2734 = vmax.f32 %v2065, %v2677
  %v2735 = vmax.f32 %v2066, %v2680
  %v2736 = vmax.f32 %v2067, %v2682
  %v2737 = vmax.f32 %v2068, %v2685
  %v2738 = vmax.f32 %v2069, %v2687
  %v2739 = vld [vmem:[%s2] sm:$0x1]
  %v2741 = vperm.slane %v2739, 0
  %v2743 = vadd.f32 %v2689, %v2741
  %v2744 = vadd.f32 %v2690, %v2741
  %v2745 = vadd.f32 %v2691, %v2741
  %v2746 = vadd.f32 %v2692, %v2741
  %v2747 = vadd.f32 %v2693, %v2741
  %v2748 = vadd.f32 %v2694, %v2741
  %v2749 = vadd.f32 %v2695, %v2741
  %v2750 = vadd.f32 %v2696, %v2741
  %v2751 = vadd.f32 %v2697, %v2741
  %v2752 = vadd.f32 %v2698, %v2741
  %v2753 = vadd.f32 %v2699, %v2741
  %v2754 = vadd.f32 %v2700, %v2741
  %v2755 = vadd.f32 %v2701, %v2741
  %v2756 = vadd.f32 %v2702, %v2741
  %v2757 = vadd.f32 %v2703, %v2741
  %v2758 = vadd.f32 %v2704, %v2741
  %v2759 = vadd.f32 %v2705, %v2741
  %v2760 = vadd.f32 %v2706, %v2741
  %v2761 = vadd.f32 %v2707, %v2741
  %v2762 = vadd.f32 %v2708, %v2741
  %v2763 = vadd.f32 %v2709, %v2741
  %v2764 = vadd.f32 %v2710, %v2741
  %v2765 = vadd.f32 %v2711, %v2741
  %v2766 = vadd.f32 %v2712, %v2741
  %v2767 = vadd.f32 %v2713, %v2741
  %v2768 = vadd.f32 %v2714, %v2741
  %v2769 = vadd.f32 %v2715, %v2741
  %v2770 = vadd.f32 %v2716, %v2741
  %v2771 = vadd.f32 %v2717, %v2741
  %v2772 = vadd.f32 %v2718, %v2741
  %v2773 = vadd.f32 %v2719, %v2741
  %v2774 = vadd.f32 %v2720, %v2741
  %v2775 = vadd.f32 %v2721, %v2741
  %v2776 = vadd.f32 %v2722, %v2741
  %v2777 = vadd.f32 %v2723, %v2741
  %v2778 = vadd.f32 %v2724, %v2741
  %v2779 = vadd.f32 %v2725, %v2741
  %v2780 = vadd.f32 %v2726, %v2741
  %v2781 = vadd.f32 %v2727, %v2741
  %v2782 = vadd.f32 %v2728, %v2741
  %v2783 = vadd.f32 %v2729, %v2741
  %v2784 = vadd.f32 %v2730, %v2741
  %v2785 = vadd.f32 %v2731, %v2741
  %v2786 = vadd.f32 %v2732, %v2741
  %v2787 = vadd.f32 %v2733, %v2741
  %v2788 = vadd.f32 %v2734, %v2741
  %v2789 = vadd.f32 %v2735, %v2741
  %v2790 = vadd.f32 %v2736, %v2741
  %v2791 = vadd.f32 %v2737, %v2741
  %v2792 = vadd.f32 %v2738, %v2741
  %v2793 = vmax.f32 %v2743, 0.0
  %v2794 = vmax.f32 %v2744, 0.0
  %v2795 = vmax.f32 %v2745, 0.0
  %v2796 = vmax.f32 %v2746, 0.0
  %v2797 = vmax.f32 %v2747, 0.0
  %v2798 = vmax.f32 %v2748, 0.0
  %v2799 = vmax.f32 %v2749, 0.0
  %v2800 = vmax.f32 %v2750, 0.0
  %v2801 = vmax.f32 %v2751, 0.0
  %v2802 = vmax.f32 %v2752, 0.0
  %v2803 = vmax.f32 %v2753, 0.0
  %v2804 = vmax.f32 %v2754, 0.0
  %v2805 = vmax.f32 %v2755, 0.0
  %v2806 = vmax.f32 %v2756, 0.0
  %v2807 = vmax.f32 %v2757, 0.0
  %v2808 = vmax.f32 %v2758, 0.0
  %v2809 = vmax.f32 %v2759, 0.0
  %v2810 = vmax.f32 %v2760, 0.0
  %v2811 = vmax.f32 %v2761, 0.0
  %v2812 = vmax.f32 %v2762, 0.0
  %v2813 = vmax.f32 %v2763, 0.0
  %v2814 = vmax.f32 %v2764, 0.0
  %v2815 = vmax.f32 %v2765, 0.0
  %v2816 = vmax.f32 %v2766, 0.0
  %v2817 = vmax.f32 %v2767, 0.0
  %v2818 = vmax.f32 %v2768, 0.0
  %v2819 = vmax.f32 %v2769, 0.0
  %v2820 = vmax.f32 %v2770, 0.0
  %v2821 = vmax.f32 %v2771, 0.0
  %v2822 = vmax.f32 %v2772, 0.0
  %v2823 = vmax.f32 %v2773, 0.0
  %v2824 = vmax.f32 %v2774, 0.0
  %v2825 = vmax.f32 %v2775, 0.0
  %v2826 = vmax.f32 %v2776, 0.0
  %v2827 = vmax.f32 %v2777, 0.0
  %v2828 = vmax.f32 %v2778, 0.0
  %v2829 = vmax.f32 %v2779, 0.0
  %v2830 = vmax.f32 %v2780, 0.0
  %v2831 = vmax.f32 %v2781, 0.0
  %v2832 = vmax.f32 %v2782, 0.0
  %v2833 = vmax.f32 %v2783, 0.0
  %v2834 = vmax.f32 %v2784, 0.0
  %v2835 = vmax.f32 %v2785, 0.0
  %v2836 = vmax.f32 %v2786, 0.0
  %v2837 = vmax.f32 %v2787, 0.0
  %v2838 = vmax.f32 %v2788, 0.0
  %v2839 = vmax.f32 %v2789, 0.0
  %v2840 = vmax.f32 %v2790, 0.0
  %v2841 = vmax.f32 %v2791, 0.0
  %v2842 = vmax.f32 %v2792, 0.0
  %v2843 = vpack.c.bf16 %v2794, %v2793
  %v2844 = vld [vmem:[%s3] sm:$0xf]
  %v2845 = vld [vmem:[%s3 + $0x4] sm:$0xf]
  %v2846 = vld [vmem:[%s3 + $0x8] sm:$0xf]
  %v2847 = vld [vmem:[%s3 + $0xc] sm:$0xf]
  %v2848 = vld [vmem:[%s3 + $0x10] sm:$0xf]
  %v2849 = vld [vmem:[%s3 + $0x14] sm:$0xf]
  %v2850 = vld [vmem:[%s3 + $0x18] sm:$0xf]
  %v2851 = vld [vmem:[%s3 + $0x1c] sm:$0xf]
  %v2852 = vld [vmem:[%s3 + $0x20] sm:$0xf]
  %v2853 = vld [vmem:[%s3 + $0x24] sm:$0xf]
  %v2854 = vld [vmem:[%s3 + $0x28] sm:$0xf]
  %v2855 = vld [vmem:[%s3 + $0x2c] sm:$0xf]
  %v2856 = vld [vmem:[%s3 + $0x30] sm:$0xf]
  %v2857 = vld [vmem:[%s3 + $0x34] sm:$0xf]
  %v2858 = vld [vmem:[%s3 + $0x38] sm:$0xf]
  %v2859 = vld [vmem:[%s3 + $0x3c] sm:$0xf]
  %v2860 = vpack.c.bf16 %v2796, %v2795
  %s2861 = scalar_lea.vmem %s3, 64
  %v2862 = vld [vmem:[%s2861] sm:$0xf]
  %v2863 = vld [vmem:[%s2861 + $0x4] sm:$0xf]
  %v2864 = vld [vmem:[%s2861 + $0x8] sm:$0xf]
  %v2865 = vld [vmem:[%s2861 + $0xc] sm:$0xf]
  %v2866 = vld [vmem:[%s2861 + $0x10] sm:$0xf]
  %v2867 = vld [vmem:[%s2861 + $0x14] sm:$0xf]
  %v2868 = vld [vmem:[%s2861 + $0x18] sm:$0xf]
  %v2869 = vld [vmem:[%s2861 + $0x1c] sm:$0xf]
  %v2870 = vld [vmem:[%s2861 + $0x20] sm:$0xf]
  %v2871 = vld [vmem:[%s2861 + $0x24] sm:$0xf]
  %v2872 = vld [vmem:[%s2861 + $0x28] sm:$0xf]
  %v2873 = vld [vmem:[%s2861 + $0x2c] sm:$0xf]
  %v2874 = vld [vmem:[%s2861 + $0x30] sm:$0xf]
  %v2875 = vld [vmem:[%s2861 + $0x34] sm:$0xf]
  %v2876 = vld [vmem:[%s2861 + $0x38] sm:$0xf]
  %v2877 = vld [vmem:[%s2861 + $0x3c] sm:$0xf]
  %v2894 = vunpack.c.l.b16 %v2862
  %v2895 = vunpack.c.l.b16 %v2863
  %v2896 = vunpack.c.l.b16 %v2864
  %v2897 = vunpack.c.l.b16 %v2865
  %v2898 = vunpack.c.l.b16 %v2866
  %v2899 = vunpack.c.l.b16 %v2867
  %v2900 = vunpack.c.l.b16 %v2868
  %v2901 = vunpack.c.l.b16 %v2869
  %v2902 = vunpack.c.l.b16 %v2870
  %v2903 = vunpack.c.l.b16 %v2871
  %v2904 = vunpack.c.l.b16 %v2872
  %v2905 = vunpack.c.l.b16 %v2873
  %v2906 = vunpack.c.l.b16 %v2874
  %v2907 = vunpack.c.l.b16 %v2875
  %v2908 = vunpack.c.l.b16 %v2876
  %v2909 = vunpack.c.l.b16 %v2877
  %v2910 = vpack.c.b16 %v2895, %v2894
  %v2911 = vpack.c.b16 %v2897, %v2896
  %v2912 = vpack.c.b16 %v2899, %v2898
  %v2913 = vpack.c.b16 %v2901, %v2900
  %v2914 = vpack.c.b16 %v2903, %v2902
  %v2915 = vpack.c.b16 %v2905, %v2904
  %v2916 = vpack.c.b16 %v2907, %v2906
  %v2917 = vpack.c.b16 %v2909, %v2908
  %2926 = vmatpush.bf16.msra.mxu0 %v2917
  %2927 = vmatpush.bf16.msra.mxu0 %v2916
  %2928 = vmatpush.bf16.msra.mxu0 %v2915
  %2929 = vmatpush.bf16.msra.mxu0 %v2914
  %2930 = vmatpush.bf16.msra.mxu0 %v2913
  %2931 = vmatpush.bf16.msra.mxu0 %v2912
  %2932 = vmatpush.bf16.msra.mxu0 %v2911
  %2933 = vmatpush.bf16.msra.mxu0 %v2910
  %2934 = vmatmul.bf16.gmra.mxu0 %v2860
  %v2935 = vpop.f32.mrf.mxu0
  %v2936 = vadd.f32 0.0, %v2935
  %v2937 = vpop.f32.mrf.mxu0
  %v2938 = vadd.f32 0.0, %v2937
  %2939 = vdwg.mxu0
  %v2956 = vunpack.c.l.b16 %v2844
  %v2957 = vunpack.c.l.b16 %v2845
  %v2958 = vunpack.c.l.b16 %v2846
  %v2959 = vunpack.c.l.b16 %v2847
  %v2960 = vunpack.c.l.b16 %v2848
  %v2961 = vunpack.c.l.b16 %v2849
  %v2962 = vunpack.c.l.b16 %v2850
  %v2963 = vunpack.c.l.b16 %v2851
  %v2964 = vunpack.c.l.b16 %v2852
  %v2965 = vunpack.c.l.b16 %v2853
  %v2966 = vunpack.c.l.b16 %v2854
  %v2967 = vunpack.c.l.b16 %v2855
  %v2968 = vunpack.c.l.b16 %v2856
  %v2969 = vunpack.c.l.b16 %v2857
  %v2970 = vunpack.c.l.b16 %v2858
  %v2971 = vunpack.c.l.b16 %v2859
  %v2972 = vpack.c.b16 %v2957, %v2956
  %v2973 = vpack.c.b16 %v2959, %v2958
  %v2974 = vpack.c.b16 %v2961, %v2960
  %v2975 = vpack.c.b16 %v2963, %v2962
  %v2976 = vpack.c.b16 %v2965, %v2964
  %v2977 = vpack.c.b16 %v2967, %v2966
  %v2978 = vpack.c.b16 %v2969, %v2968
  %v2979 = vpack.c.b16 %v2971, %v2970
  %2988 = vmatpush.bf16.msra.mxu0 %v2979
  %2989 = vmatpush.bf16.msra.mxu0 %v2978
  %2990 = vmatpush.bf16.msra.mxu0 %v2977
  %2991 = vmatpush.bf16.msra.mxu0 %v2976
  %2992 = vmatpush.bf16.msra.mxu0 %v2975
  %2993 = vmatpush.bf16.msra.mxu0 %v2974
  %2994 = vmatpush.bf16.msra.mxu0 %v2973
  %2995 = vmatpush.bf16.msra.mxu0 %v2972
  %2996 = vmatmul.bf16.gmra.mxu0 %v2843
  %v2997 = vpop.f32.mrf.mxu0
  %v2998 = vadd.f32 %v2936, %v2997
  %v2999 = vpop.f32.mrf.mxu0
  %v3000 = vadd.f32 %v2938, %v2999
  %3001 = vdwg.mxu0
  %v3002 = vpack.c.bf16 %v2798, %v2797
  %s3003 = scalar_lea.vmem %s3, 128
  %v3004 = vld [vmem:[%s3003] sm:$0xf]
  %v3005 = vld [vmem:[%s3003 + $0x4] sm:$0xf]
  %v3006 = vld [vmem:[%s3003 + $0x8] sm:$0xf]
  %v3007 = vld [vmem:[%s3003 + $0xc] sm:$0xf]
  %v3008 = vld [vmem:[%s3003 + $0x10] sm:$0xf]
  %v3009 = vld [vmem:[%s3003 + $0x14] sm:$0xf]
  %v3010 = vld [vmem:[%s3003 + $0x18] sm:$0xf]
  %v3011 = vld [vmem:[%s3003 + $0x1c] sm:$0xf]
  %v3012 = vld [vmem:[%s3003 + $0x20] sm:$0xf]
  %v3013 = vld [vmem:[%s3003 + $0x24] sm:$0xf]
  %v3014 = vld [vmem:[%s3003 + $0x28] sm:$0xf]
  %v3015 = vld [vmem:[%s3003 + $0x2c] sm:$0xf]
  %v3016 = vld [vmem:[%s3003 + $0x30] sm:$0xf]
  %v3017 = vld [vmem:[%s3003 + $0x34] sm:$0xf]
  %v3018 = vld [vmem:[%s3003 + $0x38] sm:$0xf]
  %v3019 = vld [vmem:[%s3003 + $0x3c] sm:$0xf]
  %v3036 = vunpack.c.l.b16 %v3004
  %v3037 = vunpack.c.l.b16 %v3005
  %v3038 = vunpack.c.l.b16 %v3006
  %v3039 = vunpack.c.l.b16 %v3007
  %v3040 = vunpack.c.l.b16 %v3008
  %v3041 = vunpack.c.l.b16 %v3009
  %v3042 = vunpack.c.l.b16 %v3010
  %v3043 = vunpack.c.l.b16 %v3011
  %v3044 = vunpack.c.l.b16 %v3012
  %v3045 = vunpack.c.l.b16 %v3013
  %v3046 = vunpack.c.l.b16 %v3014
  %v3047 = vunpack.c.l.b16 %v3015
  %v3048 = vunpack.c.l.b16 %v3016
  %v3049 = vunpack.c.l.b16 %v3017
  %v3050 = vunpack.c.l.b16 %v3018
  %v3051 = vunpack.c.l.b16 %v3019
  %v3052 = vpack.c.b16 %v3037, %v3036
  %v3053 = vpack.c.b16 %v3039, %v3038
  %v3054 = vpack.c.b16 %v3041, %v3040
  %v3055 = vpack.c.b16 %v3043, %v3042
  %v3056 = vpack.c.b16 %v3045, %v3044
  %v3057 = vpack.c.b16 %v3047, %v3046
  %v3058 = vpack.c.b16 %v3049, %v3048
  %v3059 = vpack.c.b16 %v3051, %v3050
  %3068 = vmatpush.bf16.msra.mxu0 %v3059
  %3069 = vmatpush.bf16.msra.mxu0 %v3058
  %3070 = vmatpush.bf16.msra.mxu0 %v3057
  %3071 = vmatpush.bf16.msra.mxu0 %v3056
  %3072 = vmatpush.bf16.msra.mxu0 %v3055
  %3073 = vmatpush.bf16.msra.mxu0 %v3054
  %3074 = vmatpush.bf16.msra.mxu0 %v3053
  %3075 = vmatpush.bf16.msra.mxu0 %v3052
  %3076 = vmatmul.bf16.gmra.mxu0 %v3002
  %v3077 = vpop.f32.mrf.mxu0
  %v3078 = vadd.f32 0.0, %v3077
  %v3079 = vpop.f32.mrf.mxu0
  %v3080 = vadd.f32 0.0, %v3079
  %3081 = vdwg.mxu0
  %v3082 = vadd.f32 %v2998, %v3078
  %v3083 = vadd.f32 %v3000, %v3080
  %v3084 = vpack.c.bf16 %v2800, %v2799
  %s3085 = scalar_lea.vmem %s3, 192
  %v3086 = vld [vmem:[%s3085] sm:$0xf]
  %v3087 = vld [vmem:[%s3085 + $0x4] sm:$0xf]
  %v3088 = vld [vmem:[%s3085 + $0x8] sm:$0xf]
  %v3089 = vld [vmem:[%s3085 + $0xc] sm:$0xf]
  %v3090 = vld [vmem:[%s3085 + $0x10] sm:$0xf]
  %v3091 = vld [vmem:[%s3085 + $0x14] sm:$0xf]
  %v3092 = vld [vmem:[%s3085 + $0x18] sm:$0xf]
  %v3093 = vld [vmem:[%s3085 + $0x1c] sm:$0xf]
  %v3094 = vld [vmem:[%s3085 + $0x20] sm:$0xf]
  %v3095 = vld [vmem:[%s3085 + $0x24] sm:$0xf]
  %v3096 = vld [vmem:[%s3085 + $0x28] sm:$0xf]
  %v3097 = vld [vmem:[%s3085 + $0x2c] sm:$0xf]
  %v3098 = vld [vmem:[%s3085 + $0x30] sm:$0xf]
  %v3099 = vld [vmem:[%s3085 + $0x34] sm:$0xf]
  %v3100 = vld [vmem:[%s3085 + $0x38] sm:$0xf]
  %v3101 = vld [vmem:[%s3085 + $0x3c] sm:$0xf]
  %v3118 = vunpack.c.l.b16 %v3086
  %v3119 = vunpack.c.l.b16 %v3087
  %v3120 = vunpack.c.l.b16 %v3088
  %v3121 = vunpack.c.l.b16 %v3089
  %v3122 = vunpack.c.l.b16 %v3090
  %v3123 = vunpack.c.l.b16 %v3091
  %v3124 = vunpack.c.l.b16 %v3092
  %v3125 = vunpack.c.l.b16 %v3093
  %v3126 = vunpack.c.l.b16 %v3094
  %v3127 = vunpack.c.l.b16 %v3095
  %v3128 = vunpack.c.l.b16 %v3096
  %v3129 = vunpack.c.l.b16 %v3097
  %v3130 = vunpack.c.l.b16 %v3098
  %v3131 = vunpack.c.l.b16 %v3099
  %v3132 = vunpack.c.l.b16 %v3100
  %v3133 = vunpack.c.l.b16 %v3101
  %v3134 = vpack.c.b16 %v3119, %v3118
  %v3135 = vpack.c.b16 %v3121, %v3120
  %v3136 = vpack.c.b16 %v3123, %v3122
  %v3137 = vpack.c.b16 %v3125, %v3124
  %v3138 = vpack.c.b16 %v3127, %v3126
  %v3139 = vpack.c.b16 %v3129, %v3128
  %v3140 = vpack.c.b16 %v3131, %v3130
  %v3141 = vpack.c.b16 %v3133, %v3132
  %3150 = vmatpush.bf16.msra.mxu0 %v3141
  %3151 = vmatpush.bf16.msra.mxu0 %v3140
  %3152 = vmatpush.bf16.msra.mxu0 %v3139
  %3153 = vmatpush.bf16.msra.mxu0 %v3138
  %3154 = vmatpush.bf16.msra.mxu0 %v3137
  %3155 = vmatpush.bf16.msra.mxu0 %v3136
  %3156 = vmatpush.bf16.msra.mxu0 %v3135
  %3157 = vmatpush.bf16.msra.mxu0 %v3134
  %3158 = vmatmul.bf16.gmra.mxu0 %v3084
  %v3159 = vpop.f32.mrf.mxu0
  %v3160 = vadd.f32 0.0, %v3159
  %v3161 = vpop.f32.mrf.mxu0
  %v3162 = vadd.f32 0.0, %v3161
  %3163 = vdwg.mxu0
  %v3164 = vadd.f32 %v3082, %v3160
  %v3165 = vadd.f32 %v3083, %v3162
  %v3166 = vpack.c.bf16 %v2802, %v2801
  %s3167 = scalar_lea.vmem %s3, 256
  %v3168 = vld [vmem:[%s3167] sm:$0xf]
  %v3169 = vld [vmem:[%s3167 + $0x4] sm:$0xf]
  %v3170 = vld [vmem:[%s3167 + $0x8] sm:$0xf]
  %v3171 = vld [vmem:[%s3167 + $0xc] sm:$0xf]
  %v3172 = vld [vmem:[%s3167 + $0x10] sm:$0xf]
  %v3173 = vld [vmem:[%s3167 + $0x14] sm:$0xf]
  %v3174 = vld [vmem:[%s3167 + $0x18] sm:$0xf]
  %v3175 = vld [vmem:[%s3167 + $0x1c] sm:$0xf]
  %v3176 = vld [vmem:[%s3167 + $0x20] sm:$0xf]
  %v3177 = vld [vmem:[%s3167 + $0x24] sm:$0xf]
  %v3178 = vld [vmem:[%s3167 + $0x28] sm:$0xf]
  %v3179 = vld [vmem:[%s3167 + $0x2c] sm:$0xf]
  %v3180 = vld [vmem:[%s3167 + $0x30] sm:$0xf]
  %v3181 = vld [vmem:[%s3167 + $0x34] sm:$0xf]
  %v3182 = vld [vmem:[%s3167 + $0x38] sm:$0xf]
  %v3183 = vld [vmem:[%s3167 + $0x3c] sm:$0xf]
  %v3200 = vunpack.c.l.b16 %v3168
  %v3201 = vunpack.c.l.b16 %v3169
  %v3202 = vunpack.c.l.b16 %v3170
  %v3203 = vunpack.c.l.b16 %v3171
  %v3204 = vunpack.c.l.b16 %v3172
  %v3205 = vunpack.c.l.b16 %v3173
  %v3206 = vunpack.c.l.b16 %v3174
  %v3207 = vunpack.c.l.b16 %v3175
  %v3208 = vunpack.c.l.b16 %v3176
  %v3209 = vunpack.c.l.b16 %v3177
  %v3210 = vunpack.c.l.b16 %v3178
  %v3211 = vunpack.c.l.b16 %v3179
  %v3212 = vunpack.c.l.b16 %v3180
  %v3213 = vunpack.c.l.b16 %v3181
  %v3214 = vunpack.c.l.b16 %v3182
  %v3215 = vunpack.c.l.b16 %v3183
  %v3216 = vpack.c.b16 %v3201, %v3200
  %v3217 = vpack.c.b16 %v3203, %v3202
  %v3218 = vpack.c.b16 %v3205, %v3204
  %v3219 = vpack.c.b16 %v3207, %v3206
  %v3220 = vpack.c.b16 %v3209, %v3208
  %v3221 = vpack.c.b16 %v3211, %v3210
  %v3222 = vpack.c.b16 %v3213, %v3212
  %v3223 = vpack.c.b16 %v3215, %v3214
  %3232 = vmatpush.bf16.msra.mxu0 %v3223
  %3233 = vmatpush.bf16.msra.mxu0 %v3222
  %3234 = vmatpush.bf16.msra.mxu0 %v3221
  %3235 = vmatpush.bf16.msra.mxu0 %v3220
  %3236 = vmatpush.bf16.msra.mxu0 %v3219
  %3237 = vmatpush.bf16.msra.mxu0 %v3218
  %3238 = vmatpush.bf16.msra.mxu0 %v3217
  %3239 = vmatpush.bf16.msra.mxu0 %v3216
  %3240 = vmatmul.bf16.gmra.mxu0 %v3166
  %v3241 = vpop.f32.mrf.mxu0
  %v3242 = vadd.f32 0.0, %v3241
  %v3243 = vpop.f32.mrf.mxu0
  %v3244 = vadd.f32 0.0, %v3243
  %3245 = vdwg.mxu0
  %v3246 = vadd.f32 %v3164, %v3242
  %v3247 = vadd.f32 %v3165, %v3244
  %v3248 = vpack.c.bf16 %v2804, %v2803
  %s3249 = scalar_lea.vmem %s3, 320
  %v3250 = vld [vmem:[%s3249] sm:$0xf]
  %v3251 = vld [vmem:[%s3249 + $0x4] sm:$0xf]
  %v3252 = vld [vmem:[%s3249 + $0x8] sm:$0xf]
  %v3253 = vld [vmem:[%s3249 + $0xc] sm:$0xf]
  %v3254 = vld [vmem:[%s3249 + $0x10] sm:$0xf]
  %v3255 = vld [vmem:[%s3249 + $0x14] sm:$0xf]
  %v3256 = vld [vmem:[%s3249 + $0x18] sm:$0xf]
  %v3257 = vld [vmem:[%s3249 + $0x1c] sm:$0xf]
  %v3258 = vld [vmem:[%s3249 + $0x20] sm:$0xf]
  %v3259 = vld [vmem:[%s3249 + $0x24] sm:$0xf]
  %v3260 = vld [vmem:[%s3249 + $0x28] sm:$0xf]
  %v3261 = vld [vmem:[%s3249 + $0x2c] sm:$0xf]
  %v3262 = vld [vmem:[%s3249 + $0x30] sm:$0xf]
  %v3263 = vld [vmem:[%s3249 + $0x34] sm:$0xf]
  %v3264 = vld [vmem:[%s3249 + $0x38] sm:$0xf]
  %v3265 = vld [vmem:[%s3249 + $0x3c] sm:$0xf]
  %v3282 = vunpack.c.l.b16 %v3250
  %v3283 = vunpack.c.l.b16 %v3251
  %v3284 = vunpack.c.l.b16 %v3252
  %v3285 = vunpack.c.l.b16 %v3253
  %v3286 = vunpack.c.l.b16 %v3254
  %v3287 = vunpack.c.l.b16 %v3255
  %v3288 = vunpack.c.l.b16 %v3256
  %v3289 = vunpack.c.l.b16 %v3257
  %v3290 = vunpack.c.l.b16 %v3258
  %v3291 = vunpack.c.l.b16 %v3259
  %v3292 = vunpack.c.l.b16 %v3260
  %v3293 = vunpack.c.l.b16 %v3261
  %v3294 = vunpack.c.l.b16 %v3262
  %v3295 = vunpack.c.l.b16 %v3263
  %v3296 = vunpack.c.l.b16 %v3264
  %v3297 = vunpack.c.l.b16 %v3265
  %v3298 = vpack.c.b16 %v3283, %v3282
  %v3299 = vpack.c.b16 %v3285, %v3284
  %v3300 = vpack.c.b16 %v3287, %v3286
  %v3301 = vpack.c.b16 %v3289, %v3288
  %v3302 = vpack.c.b16 %v3291, %v3290
  %v3303 = vpack.c.b16 %v3293, %v3292
  %v3304 = vpack.c.b16 %v3295, %v3294
  %v3305 = vpack.c.b16 %v3297, %v3296
  %3314 = vmatpush.bf16.msra.mxu0 %v3305
  %3315 = vmatpush.bf16.msra.mxu0 %v3304
  %3316 = vmatpush.bf16.msra.mxu0 %v3303
  %3317 = vmatpush.bf16.msra.mxu0 %v3302
  %3318 = vmatpush.bf16.msra.mxu0 %v3301
  %3319 = vmatpush.bf16.msra.mxu0 %v3300
  %3320 = vmatpush.bf16.msra.mxu0 %v3299
  %3321 = vmatpush.bf16.msra.mxu0 %v3298
  %3322 = vmatmul.bf16.gmra.mxu0 %v3248
  %v3323 = vpop.f32.mrf.mxu0
  %v3324 = vadd.f32 0.0, %v3323
  %v3325 = vpop.f32.mrf.mxu0
  %v3326 = vadd.f32 0.0, %v3325
  %3327 = vdwg.mxu0
  %v3328 = vadd.f32 %v3246, %v3324
  %v3329 = vadd.f32 %v3247, %v3326
  %v3330 = vpack.c.bf16 %v2806, %v2805
  %s3331 = scalar_lea.vmem %s3, 384
  %v3332 = vld [vmem:[%s3331] sm:$0xf]
  %v3333 = vld [vmem:[%s3331 + $0x4] sm:$0xf]
  %v3334 = vld [vmem:[%s3331 + $0x8] sm:$0xf]
  %v3335 = vld [vmem:[%s3331 + $0xc] sm:$0xf]
  %v3336 = vld [vmem:[%s3331 + $0x10] sm:$0xf]
  %v3337 = vld [vmem:[%s3331 + $0x14] sm:$0xf]
  %v3338 = vld [vmem:[%s3331 + $0x18] sm:$0xf]
  %v3339 = vld [vmem:[%s3331 + $0x1c] sm:$0xf]
  %v3340 = vld [vmem:[%s3331 + $0x20] sm:$0xf]
  %v3341 = vld [vmem:[%s3331 + $0x24] sm:$0xf]
  %v3342 = vld [vmem:[%s3331 + $0x28] sm:$0xf]
  %v3343 = vld [vmem:[%s3331 + $0x2c] sm:$0xf]
  %v3344 = vld [vmem:[%s3331 + $0x30] sm:$0xf]
  %v3345 = vld [vmem:[%s3331 + $0x34] sm:$0xf]
  %v3346 = vld [vmem:[%s3331 + $0x38] sm:$0xf]
  %v3347 = vld [vmem:[%s3331 + $0x3c] sm:$0xf]
  %v3364 = vunpack.c.l.b16 %v3332
  %v3365 = vunpack.c.l.b16 %v3333
  %v3366 = vunpack.c.l.b16 %v3334
  %v3367 = vunpack.c.l.b16 %v3335
  %v3368 = vunpack.c.l.b16 %v3336
  %v3369 = vunpack.c.l.b16 %v3337
  %v3370 = vunpack.c.l.b16 %v3338
  %v3371 = vunpack.c.l.b16 %v3339
  %v3372 = vunpack.c.l.b16 %v3340
  %v3373 = vunpack.c.l.b16 %v3341
  %v3374 = vunpack.c.l.b16 %v3342
  %v3375 = vunpack.c.l.b16 %v3343
  %v3376 = vunpack.c.l.b16 %v3344
  %v3377 = vunpack.c.l.b16 %v3345
  %v3378 = vunpack.c.l.b16 %v3346
  %v3379 = vunpack.c.l.b16 %v3347
  %v3380 = vpack.c.b16 %v3365, %v3364
  %v3381 = vpack.c.b16 %v3367, %v3366
  %v3382 = vpack.c.b16 %v3369, %v3368
  %v3383 = vpack.c.b16 %v3371, %v3370
  %v3384 = vpack.c.b16 %v3373, %v3372
  %v3385 = vpack.c.b16 %v3375, %v3374
  %v3386 = vpack.c.b16 %v3377, %v3376
  %v3387 = vpack.c.b16 %v3379, %v3378
  %3396 = vmatpush.bf16.msra.mxu0 %v3387
  %3397 = vmatpush.bf16.msra.mxu0 %v3386
  %3398 = vmatpush.bf16.msra.mxu0 %v3385
  %3399 = vmatpush.bf16.msra.mxu0 %v3384
  %3400 = vmatpush.bf16.msra.mxu0 %v3383
  %3401 = vmatpush.bf16.msra.mxu0 %v3382
  %3402 = vmatpush.bf16.msra.mxu0 %v3381
  %3403 = vmatpush.bf16.msra.mxu0 %v3380
  %3404 = vmatmul.bf16.gmra.mxu0 %v3330
  %v3405 = vpop.f32.mrf.mxu0
  %v3406 = vadd.f32 0.0, %v3405
  %v3407 = vpop.f32.mrf.mxu0
  %v3408 = vadd.f32 0.0, %v3407
  %3409 = vdwg.mxu0
  %v3410 = vadd.f32 %v3328, %v3406
  %v3411 = vadd.f32 %v3329, %v3408
  %v3412 = vpack.c.bf16 %v2808, %v2807
  %s3413 = scalar_lea.vmem %s3, 448
  %v3414 = vld [vmem:[%s3413] sm:$0xf]
  %v3415 = vld [vmem:[%s3413 + $0x4] sm:$0xf]
  %v3416 = vld [vmem:[%s3413 + $0x8] sm:$0xf]
  %v3417 = vld [vmem:[%s3413 + $0xc] sm:$0xf]
  %v3418 = vld [vmem:[%s3413 + $0x10] sm:$0xf]
  %v3419 = vld [vmem:[%s3413 + $0x14] sm:$0xf]
  %v3420 = vld [vmem:[%s3413 + $0x18] sm:$0xf]
  %v3421 = vld [vmem:[%s3413 + $0x1c] sm:$0xf]
  %v3422 = vld [vmem:[%s3413 + $0x20] sm:$0xf]
  %v3423 = vld [vmem:[%s3413 + $0x24] sm:$0xf]
  %v3424 = vld [vmem:[%s3413 + $0x28] sm:$0xf]
  %v3425 = vld [vmem:[%s3413 + $0x2c] sm:$0xf]
  %v3426 = vld [vmem:[%s3413 + $0x30] sm:$0xf]
  %v3427 = vld [vmem:[%s3413 + $0x34] sm:$0xf]
  %v3428 = vld [vmem:[%s3413 + $0x38] sm:$0xf]
  %v3429 = vld [vmem:[%s3413 + $0x3c] sm:$0xf]
  %v3446 = vunpack.c.l.b16 %v3414
  %v3447 = vunpack.c.l.b16 %v3415
  %v3448 = vunpack.c.l.b16 %v3416
  %v3449 = vunpack.c.l.b16 %v3417
  %v3450 = vunpack.c.l.b16 %v3418
  %v3451 = vunpack.c.l.b16 %v3419
  %v3452 = vunpack.c.l.b16 %v3420
  %v3453 = vunpack.c.l.b16 %v3421
  %v3454 = vunpack.c.l.b16 %v3422
  %v3455 = vunpack.c.l.b16 %v3423
  %v3456 = vunpack.c.l.b16 %v3424
  %v3457 = vunpack.c.l.b16 %v3425
  %v3458 = vunpack.c.l.b16 %v3426
  %v3459 = vunpack.c.l.b16 %v3427
  %v3460 = vunpack.c.l.b16 %v3428
  %v3461 = vunpack.c.l.b16 %v3429
  %v3462 = vpack.c.b16 %v3447, %v3446
  %v3463 = vpack.c.b16 %v3449, %v3448
  %v3464 = vpack.c.b16 %v3451, %v3450
  %v3465 = vpack.c.b16 %v3453, %v3452
  %v3466 = vpack.c.b16 %v3455, %v3454
  %v3467 = vpack.c.b16 %v3457, %v3456
  %v3468 = vpack.c.b16 %v3459, %v3458
  %v3469 = vpack.c.b16 %v3461, %v3460
  %3478 = vmatpush.bf16.msra.mxu0 %v3469
  %3479 = vmatpush.bf16.msra.mxu0 %v3468
  %3480 = vmatpush.bf16.msra.mxu0 %v3467
  %3481 = vmatpush.bf16.msra.mxu0 %v3466
  %3482 = vmatpush.bf16.msra.mxu0 %v3465
  %3483 = vmatpush.bf16.msra.mxu0 %v3464
  %3484 = vmatpush.bf16.msra.mxu0 %v3463
  %3485 = vmatpush.bf16.msra.mxu0 %v3462
  %3486 = vmatmul.bf16.gmra.mxu0 %v3412
  %v3487 = vpop.f32.mrf.mxu0
  %v3488 = vadd.f32 0.0, %v3487
  %v3489 = vpop.f32.mrf.mxu0
  %v3490 = vadd.f32 0.0, %v3489
  %3491 = vdwg.mxu0
  %v3492 = vadd.f32 %v3410, %v3488
  %v3493 = vadd.f32 %v3411, %v3490
  %v3494 = vpack.c.bf16 %v2810, %v2809
  %s3495 = scalar_lea.vmem %s3, 512
  %v3496 = vld [vmem:[%s3495] sm:$0xf]
  %v3497 = vld [vmem:[%s3495 + $0x4] sm:$0xf]
  %v3498 = vld [vmem:[%s3495 + $0x8] sm:$0xf]
  %v3499 = vld [vmem:[%s3495 + $0xc] sm:$0xf]
  %v3500 = vld [vmem:[%s3495 + $0x10] sm:$0xf]
  %v3501 = vld [vmem:[%s3495 + $0x14] sm:$0xf]
  %v3502 = vld [vmem:[%s3495 + $0x18] sm:$0xf]
  %v3503 = vld [vmem:[%s3495 + $0x1c] sm:$0xf]
  %v3504 = vld [vmem:[%s3495 + $0x20] sm:$0xf]
  %v3505 = vld [vmem:[%s3495 + $0x24] sm:$0xf]
  %v3506 = vld [vmem:[%s3495 + $0x28] sm:$0xf]
  %v3507 = vld [vmem:[%s3495 + $0x2c] sm:$0xf]
  %v3508 = vld [vmem:[%s3495 + $0x30] sm:$0xf]
  %v3509 = vld [vmem:[%s3495 + $0x34] sm:$0xf]
  %v3510 = vld [vmem:[%s3495 + $0x38] sm:$0xf]
  %v3511 = vld [vmem:[%s3495 + $0x3c] sm:$0xf]
  %v3528 = vunpack.c.l.b16 %v3496
  %v3529 = vunpack.c.l.b16 %v3497
  %v3530 = vunpack.c.l.b16 %v3498
  %v3531 = vunpack.c.l.b16 %v3499
  %v3532 = vunpack.c.l.b16 %v3500
  %v3533 = vunpack.c.l.b16 %v3501
  %v3534 = vunpack.c.l.b16 %v3502
  %v3535 = vunpack.c.l.b16 %v3503
  %v3536 = vunpack.c.l.b16 %v3504
  %v3537 = vunpack.c.l.b16 %v3505
  %v3538 = vunpack.c.l.b16 %v3506
  %v3539 = vunpack.c.l.b16 %v3507
  %v3540 = vunpack.c.l.b16 %v3508
  %v3541 = vunpack.c.l.b16 %v3509
  %v3542 = vunpack.c.l.b16 %v3510
  %v3543 = vunpack.c.l.b16 %v3511
  %v3544 = vpack.c.b16 %v3529, %v3528
  %v3545 = vpack.c.b16 %v3531, %v3530
  %v3546 = vpack.c.b16 %v3533, %v3532
  %v3547 = vpack.c.b16 %v3535, %v3534
  %v3548 = vpack.c.b16 %v3537, %v3536
  %v3549 = vpack.c.b16 %v3539, %v3538
  %v3550 = vpack.c.b16 %v3541, %v3540
  %v3551 = vpack.c.b16 %v3543, %v3542
  %3560 = vmatpush.bf16.msra.mxu0 %v3551
  %3561 = vmatpush.bf16.msra.mxu0 %v3550
  %3562 = vmatpush.bf16.msra.mxu0 %v3549
  %3563 = vmatpush.bf16.msra.mxu0 %v3548
  %3564 = vmatpush.bf16.msra.mxu0 %v3547
  %3565 = vmatpush.bf16.msra.mxu0 %v3546
  %3566 = vmatpush.bf16.msra.mxu0 %v3545
  %3567 = vmatpush.bf16.msra.mxu0 %v3544
  %3568 = vmatmul.bf16.gmra.mxu0 %v3494
  %v3569 = vpop.f32.mrf.mxu0
  %v3570 = vadd.f32 0.0, %v3569
  %v3571 = vpop.f32.mrf.mxu0
  %v3572 = vadd.f32 0.0, %v3571
  %3573 = vdwg.mxu0
  %v3574 = vadd.f32 %v3492, %v3570
  %v3575 = vadd.f32 %v3493, %v3572
  %v3576 = vpack.c.bf16 %v2812, %v2811
  %s3577 = scalar_lea.vmem %s3, 576
  %v3578 = vld [vmem:[%s3577] sm:$0xf]
  %v3579 = vld [vmem:[%s3577 + $0x4] sm:$0xf]
  %v3580 = vld [vmem:[%s3577 + $0x8] sm:$0xf]
  %v3581 = vld [vmem:[%s3577 + $0xc] sm:$0xf]
  %v3582 = vld [vmem:[%s3577 + $0x10] sm:$0xf]
  %v3583 = vld [vmem:[%s3577 + $0x14] sm:$0xf]
  %v3584 = vld [vmem:[%s3577 + $0x18] sm:$0xf]
  %v3585 = vld [vmem:[%s3577 + $0x1c] sm:$0xf]
  %v3586 = vld [vmem:[%s3577 + $0x20] sm:$0xf]
  %v3587 = vld [vmem:[%s3577 + $0x24] sm:$0xf]
  %v3588 = vld [vmem:[%s3577 + $0x28] sm:$0xf]
  %v3589 = vld [vmem:[%s3577 + $0x2c] sm:$0xf]
  %v3590 = vld [vmem:[%s3577 + $0x30] sm:$0xf]
  %v3591 = vld [vmem:[%s3577 + $0x34] sm:$0xf]
  %v3592 = vld [vmem:[%s3577 + $0x38] sm:$0xf]
  %v3593 = vld [vmem:[%s3577 + $0x3c] sm:$0xf]
  %v3610 = vunpack.c.l.b16 %v3578
  %v3611 = vunpack.c.l.b16 %v3579
  %v3612 = vunpack.c.l.b16 %v3580
  %v3613 = vunpack.c.l.b16 %v3581
  %v3614 = vunpack.c.l.b16 %v3582
  %v3615 = vunpack.c.l.b16 %v3583
  %v3616 = vunpack.c.l.b16 %v3584
  %v3617 = vunpack.c.l.b16 %v3585
  %v3618 = vunpack.c.l.b16 %v3586
  %v3619 = vunpack.c.l.b16 %v3587
  %v3620 = vunpack.c.l.b16 %v3588
  %v3621 = vunpack.c.l.b16 %v3589
  %v3622 = vunpack.c.l.b16 %v3590
  %v3623 = vunpack.c.l.b16 %v3591
  %v3624 = vunpack.c.l.b16 %v3592
  %v3625 = vunpack.c.l.b16 %v3593
  %v3626 = vpack.c.b16 %v3611, %v3610
  %v3627 = vpack.c.b16 %v3613, %v3612
  %v3628 = vpack.c.b16 %v3615, %v3614
  %v3629 = vpack.c.b16 %v3617, %v3616
  %v3630 = vpack.c.b16 %v3619, %v3618
  %v3631 = vpack.c.b16 %v3621, %v3620
  %v3632 = vpack.c.b16 %v3623, %v3622
  %v3633 = vpack.c.b16 %v3625, %v3624
  %3642 = vmatpush.bf16.msra.mxu0 %v3633
  %3643 = vmatpush.bf16.msra.mxu0 %v3632
  %3644 = vmatpush.bf16.msra.mxu0 %v3631
  %3645 = vmatpush.bf16.msra.mxu0 %v3630
  %3646 = vmatpush.bf16.msra.mxu0 %v3629
  %3647 = vmatpush.bf16.msra.mxu0 %v3628
  %3648 = vmatpush.bf16.msra.mxu0 %v3627
  %3649 = vmatpush.bf16.msra.mxu0 %v3626
  %3650 = vmatmul.bf16.gmra.mxu0 %v3576
  %v3651 = vpop.f32.mrf.mxu0
  %v3652 = vadd.f32 0.0, %v3651
  %v3653 = vpop.f32.mrf.mxu0
  %v3654 = vadd.f32 0.0, %v3653
  %3655 = vdwg.mxu0
  %v3656 = vadd.f32 %v3574, %v3652
  %v3657 = vadd.f32 %v3575, %v3654
  %v3658 = vpack.c.bf16 %v2814, %v2813
  %s3659 = scalar_lea.vmem %s3, 640
  %v3660 = vld [vmem:[%s3659] sm:$0xf]
  %v3661 = vld [vmem:[%s3659 + $0x4] sm:$0xf]
  %v3662 = vld [vmem:[%s3659 + $0x8] sm:$0xf]
  %v3663 = vld [vmem:[%s3659 + $0xc] sm:$0xf]
  %v3664 = vld [vmem:[%s3659 + $0x10] sm:$0xf]
  %v3665 = vld [vmem:[%s3659 + $0x14] sm:$0xf]
  %v3666 = vld [vmem:[%s3659 + $0x18] sm:$0xf]
  %v3667 = vld [vmem:[%s3659 + $0x1c] sm:$0xf]
  %v3668 = vld [vmem:[%s3659 + $0x20] sm:$0xf]
  %v3669 = vld [vmem:[%s3659 + $0x24] sm:$0xf]
  %v3670 = vld [vmem:[%s3659 + $0x28] sm:$0xf]
  %v3671 = vld [vmem:[%s3659 + $0x2c] sm:$0xf]
  %v3672 = vld [vmem:[%s3659 + $0x30] sm:$0xf]
  %v3673 = vld [vmem:[%s3659 + $0x34] sm:$0xf]
  %v3674 = vld [vmem:[%s3659 + $0x38] sm:$0xf]
  %v3675 = vld [vmem:[%s3659 + $0x3c] sm:$0xf]
  %v3692 = vunpack.c.l.b16 %v3660
  %v3693 = vunpack.c.l.b16 %v3661
  %v3694 = vunpack.c.l.b16 %v3662
  %v3695 = vunpack.c.l.b16 %v3663
  %v3696 = vunpack.c.l.b16 %v3664
  %v3697 = vunpack.c.l.b16 %v3665
  %v3698 = vunpack.c.l.b16 %v3666
  %v3699 = vunpack.c.l.b16 %v3667
  %v3700 = vunpack.c.l.b16 %v3668
  %v3701 = vunpack.c.l.b16 %v3669
  %v3702 = vunpack.c.l.b16 %v3670
  %v3703 = vunpack.c.l.b16 %v3671
  %v3704 = vunpack.c.l.b16 %v3672
  %v3705 = vunpack.c.l.b16 %v3673
  %v3706 = vunpack.c.l.b16 %v3674
  %v3707 = vunpack.c.l.b16 %v3675
  %v3708 = vpack.c.b16 %v3693, %v3692
  %v3709 = vpack.c.b16 %v3695, %v3694
  %v3710 = vpack.c.b16 %v3697, %v3696
  %v3711 = vpack.c.b16 %v3699, %v3698
  %v3712 = vpack.c.b16 %v3701, %v3700
  %v3713 = vpack.c.b16 %v3703, %v3702
  %v3714 = vpack.c.b16 %v3705, %v3704
  %v3715 = vpack.c.b16 %v3707, %v3706
  %3724 = vmatpush.bf16.msra.mxu0 %v3715
  %3725 = vmatpush.bf16.msra.mxu0 %v3714
  %3726 = vmatpush.bf16.msra.mxu0 %v3713
  %3727 = vmatpush.bf16.msra.mxu0 %v3712
  %3728 = vmatpush.bf16.msra.mxu0 %v3711
  %3729 = vmatpush.bf16.msra.mxu0 %v3710
  %3730 = vmatpush.bf16.msra.mxu0 %v3709
  %3731 = vmatpush.bf16.msra.mxu0 %v3708
  %3732 = vmatmul.bf16.gmra.mxu0 %v3658
  %v3733 = vpop.f32.mrf.mxu0
  %v3734 = vadd.f32 0.0, %v3733
  %v3735 = vpop.f32.mrf.mxu0
  %v3736 = vadd.f32 0.0, %v3735
  %3737 = vdwg.mxu0
  %v3738 = vadd.f32 %v3656, %v3734
  %v3739 = vadd.f32 %v3657, %v3736
  %v3740 = vpack.c.bf16 %v2816, %v2815
  %s3741 = scalar_lea.vmem %s3, 704
  %v3742 = vld [vmem:[%s3741] sm:$0xf]
  %v3743 = vld [vmem:[%s3741 + $0x4] sm:$0xf]
  %v3744 = vld [vmem:[%s3741 + $0x8] sm:$0xf]
  %v3745 = vld [vmem:[%s3741 + $0xc] sm:$0xf]
  %v3746 = vld [vmem:[%s3741 + $0x10] sm:$0xf]
  %v3747 = vld [vmem:[%s3741 + $0x14] sm:$0xf]
  %v3748 = vld [vmem:[%s3741 + $0x18] sm:$0xf]
  %v3749 = vld [vmem:[%s3741 + $0x1c] sm:$0xf]
  %v3750 = vld [vmem:[%s3741 + $0x20] sm:$0xf]
  %v3751 = vld [vmem:[%s3741 + $0x24] sm:$0xf]
  %v3752 = vld [vmem:[%s3741 + $0x28] sm:$0xf]
  %v3753 = vld [vmem:[%s3741 + $0x2c] sm:$0xf]
  %v3754 = vld [vmem:[%s3741 + $0x30] sm:$0xf]
  %v3755 = vld [vmem:[%s3741 + $0x34] sm:$0xf]
  %v3756 = vld [vmem:[%s3741 + $0x38] sm:$0xf]
  %v3757 = vld [vmem:[%s3741 + $0x3c] sm:$0xf]
  %v3774 = vunpack.c.l.b16 %v3742
  %v3775 = vunpack.c.l.b16 %v3743
  %v3776 = vunpack.c.l.b16 %v3744
  %v3777 = vunpack.c.l.b16 %v3745
  %v3778 = vunpack.c.l.b16 %v3746
  %v3779 = vunpack.c.l.b16 %v3747
  %v3780 = vunpack.c.l.b16 %v3748
  %v3781 = vunpack.c.l.b16 %v3749
  %v3782 = vunpack.c.l.b16 %v3750
  %v3783 = vunpack.c.l.b16 %v3751
  %v3784 = vunpack.c.l.b16 %v3752
  %v3785 = vunpack.c.l.b16 %v3753
  %v3786 = vunpack.c.l.b16 %v3754
  %v3787 = vunpack.c.l.b16 %v3755
  %v3788 = vunpack.c.l.b16 %v3756
  %v3789 = vunpack.c.l.b16 %v3757
  %v3790 = vpack.c.b16 %v3775, %v3774
  %v3791 = vpack.c.b16 %v3777, %v3776
  %v3792 = vpack.c.b16 %v3779, %v3778
  %v3793 = vpack.c.b16 %v3781, %v3780
  %v3794 = vpack.c.b16 %v3783, %v3782
  %v3795 = vpack.c.b16 %v3785, %v3784
  %v3796 = vpack.c.b16 %v3787, %v3786
  %v3797 = vpack.c.b16 %v3789, %v3788
  %3806 = vmatpush.bf16.msra.mxu0 %v3797
  %3807 = vmatpush.bf16.msra.mxu0 %v3796
  %3808 = vmatpush.bf16.msra.mxu0 %v3795
  %3809 = vmatpush.bf16.msra.mxu0 %v3794
  %3810 = vmatpush.bf16.msra.mxu0 %v3793
  %3811 = vmatpush.bf16.msra.mxu0 %v3792
  %3812 = vmatpush.bf16.msra.mxu0 %v3791
  %3813 = vmatpush.bf16.msra.mxu0 %v3790
  %3814 = vmatmul.bf16.gmra.mxu0 %v3740
  %v3815 = vpop.f32.mrf.mxu0
  %v3816 = vadd.f32 0.0, %v3815
  %v3817 = vpop.f32.mrf.mxu0
  %v3818 = vadd.f32 0.0, %v3817
  %3819 = vdwg.mxu0
  %v3820 = vadd.f32 %v3738, %v3816
  %v3821 = vadd.f32 %v3739, %v3818
  %v3822 = vpack.c.bf16 %v2818, %v2817
  %s3823 = scalar_lea.vmem %s3, 768
  %v3824 = vld [vmem:[%s3823] sm:$0xf]
  %v3825 = vld [vmem:[%s3823 + $0x4] sm:$0xf]
  %v3826 = vld [vmem:[%s3823 + $0x8] sm:$0xf]
  %v3827 = vld [vmem:[%s3823 + $0xc] sm:$0xf]
  %v3828 = vld [vmem:[%s3823 + $0x10] sm:$0xf]
  %v3829 = vld [vmem:[%s3823 + $0x14] sm:$0xf]
  %v3830 = vld [vmem:[%s3823 + $0x18] sm:$0xf]
  %v3831 = vld [vmem:[%s3823 + $0x1c] sm:$0xf]
  %v3832 = vld [vmem:[%s3823 + $0x20] sm:$0xf]
  %v3833 = vld [vmem:[%s3823 + $0x24] sm:$0xf]
  %v3834 = vld [vmem:[%s3823 + $0x28] sm:$0xf]
  %v3835 = vld [vmem:[%s3823 + $0x2c] sm:$0xf]
  %v3836 = vld [vmem:[%s3823 + $0x30] sm:$0xf]
  %v3837 = vld [vmem:[%s3823 + $0x34] sm:$0xf]
  %v3838 = vld [vmem:[%s3823 + $0x38] sm:$0xf]
  %v3839 = vld [vmem:[%s3823 + $0x3c] sm:$0xf]
  %v3856 = vunpack.c.l.b16 %v3824
  %v3857 = vunpack.c.l.b16 %v3825
  %v3858 = vunpack.c.l.b16 %v3826
  %v3859 = vunpack.c.l.b16 %v3827
  %v3860 = vunpack.c.l.b16 %v3828
  %v3861 = vunpack.c.l.b16 %v3829
  %v3862 = vunpack.c.l.b16 %v3830
  %v3863 = vunpack.c.l.b16 %v3831
  %v3864 = vunpack.c.l.b16 %v3832
  %v3865 = vunpack.c.l.b16 %v3833
  %v3866 = vunpack.c.l.b16 %v3834
  %v3867 = vunpack.c.l.b16 %v3835
  %v3868 = vunpack.c.l.b16 %v3836
  %v3869 = vunpack.c.l.b16 %v3837
  %v3870 = vunpack.c.l.b16 %v3838
  %v3871 = vunpack.c.l.b16 %v3839
  %v3872 = vpack.c.b16 %v3857, %v3856
  %v3873 = vpack.c.b16 %v3859, %v3858
  %v3874 = vpack.c.b16 %v3861, %v3860
  %v3875 = vpack.c.b16 %v3863, %v3862
  %v3876 = vpack.c.b16 %v3865, %v3864
  %v3877 = vpack.c.b16 %v3867, %v3866
  %v3878 = vpack.c.b16 %v3869, %v3868
  %v3879 = vpack.c.b16 %v3871, %v3870
  %3888 = vmatpush.bf16.msra.mxu0 %v3879
  %3889 = vmatpush.bf16.msra.mxu0 %v3878
  %3890 = vmatpush.bf16.msra.mxu0 %v3877
  %3891 = vmatpush.bf16.msra.mxu0 %v3876
  %3892 = vmatpush.bf16.msra.mxu0 %v3875
  %3893 = vmatpush.bf16.msra.mxu0 %v3874
  %3894 = vmatpush.bf16.msra.mxu0 %v3873
  %3895 = vmatpush.bf16.msra.mxu0 %v3872
  %3896 = vmatmul.bf16.gmra.mxu0 %v3822
  %v3897 = vpop.f32.mrf.mxu0
  %v3898 = vadd.f32 0.0, %v3897
  %v3899 = vpop.f32.mrf.mxu0
  %v3900 = vadd.f32 0.0, %v3899
  %3901 = vdwg.mxu0
  %v3902 = vadd.f32 %v3820, %v3898
  %v3903 = vadd.f32 %v3821, %v3900
  %v3904 = vpack.c.bf16 %v2820, %v2819
  %s3905 = scalar_lea.vmem %s3, 832
  %v3906 = vld [vmem:[%s3905] sm:$0xf]
  %v3907 = vld [vmem:[%s3905 + $0x4] sm:$0xf]
  %v3908 = vld [vmem:[%s3905 + $0x8] sm:$0xf]
  %v3909 = vld [vmem:[%s3905 + $0xc] sm:$0xf]
  %v3910 = vld [vmem:[%s3905 + $0x10] sm:$0xf]
  %v3911 = vld [vmem:[%s3905 + $0x14] sm:$0xf]
  %v3912 = vld [vmem:[%s3905 + $0x18] sm:$0xf]
  %v3913 = vld [vmem:[%s3905 + $0x1c] sm:$0xf]
  %v3914 = vld [vmem:[%s3905 + $0x20] sm:$0xf]
  %v3915 = vld [vmem:[%s3905 + $0x24] sm:$0xf]
  %v3916 = vld [vmem:[%s3905 + $0x28] sm:$0xf]
  %v3917 = vld [vmem:[%s3905 + $0x2c] sm:$0xf]
  %v3918 = vld [vmem:[%s3905 + $0x30] sm:$0xf]
  %v3919 = vld [vmem:[%s3905 + $0x34] sm:$0xf]
  %v3920 = vld [vmem:[%s3905 + $0x38] sm:$0xf]
  %v3921 = vld [vmem:[%s3905 + $0x3c] sm:$0xf]
  %v3938 = vunpack.c.l.b16 %v3906
  %v3939 = vunpack.c.l.b16 %v3907
  %v3940 = vunpack.c.l.b16 %v3908
  %v3941 = vunpack.c.l.b16 %v3909
  %v3942 = vunpack.c.l.b16 %v3910
  %v3943 = vunpack.c.l.b16 %v3911
  %v3944 = vunpack.c.l.b16 %v3912
  %v3945 = vunpack.c.l.b16 %v3913
  %v3946 = vunpack.c.l.b16 %v3914
  %v3947 = vunpack.c.l.b16 %v3915
  %v3948 = vunpack.c.l.b16 %v3916
  %v3949 = vunpack.c.l.b16 %v3917
  %v3950 = vunpack.c.l.b16 %v3918
  %v3951 = vunpack.c.l.b16 %v3919
  %v3952 = vunpack.c.l.b16 %v3920
  %v3953 = vunpack.c.l.b16 %v3921
  %v3954 = vpack.c.b16 %v3939, %v3938
  %v3955 = vpack.c.b16 %v3941, %v3940
  %v3956 = vpack.c.b16 %v3943, %v3942
  %v3957 = vpack.c.b16 %v3945, %v3944
  %v3958 = vpack.c.b16 %v3947, %v3946
  %v3959 = vpack.c.b16 %v3949, %v3948
  %v3960 = vpack.c.b16 %v3951, %v3950
  %v3961 = vpack.c.b16 %v3953, %v3952
  %3970 = vmatpush.bf16.msra.mxu0 %v3961
  %3971 = vmatpush.bf16.msra.mxu0 %v3960
  %3972 = vmatpush.bf16.msra.mxu0 %v3959
  %3973 = vmatpush.bf16.msra.mxu0 %v3958
  %3974 = vmatpush.bf16.msra.mxu0 %v3957
  %3975 = vmatpush.bf16.msra.mxu0 %v3956
  %3976 = vmatpush.bf16.msra.mxu0 %v3955
  %3977 = vmatpush.bf16.msra.mxu0 %v3954
  %3978 = vmatmul.bf16.gmra.mxu0 %v3904
  %v3979 = vpop.f32.mrf.mxu0
  %v3980 = vadd.f32 0.0, %v3979
  %v3981 = vpop.f32.mrf.mxu0
  %v3982 = vadd.f32 0.0, %v3981
  %3983 = vdwg.mxu0
  %v3984 = vadd.f32 %v3902, %v3980
  %v3985 = vadd.f32 %v3903, %v3982
  %v3986 = vpack.c.bf16 %v2822, %v2821
  %s3987 = scalar_lea.vmem %s3, 896
  %v3988 = vld [vmem:[%s3987] sm:$0xf]
  %v3989 = vld [vmem:[%s3987 + $0x4] sm:$0xf]
  %v3990 = vld [vmem:[%s3987 + $0x8] sm:$0xf]
  %v3991 = vld [vmem:[%s3987 + $0xc] sm:$0xf]
  %v3992 = vld [vmem:[%s3987 + $0x10] sm:$0xf]
  %v3993 = vld [vmem:[%s3987 + $0x14] sm:$0xf]
  %v3994 = vld [vmem:[%s3987 + $0x18] sm:$0xf]
  %v3995 = vld [vmem:[%s3987 + $0x1c] sm:$0xf]
  %v3996 = vld [vmem:[%s3987 + $0x20] sm:$0xf]
  %v3997 = vld [vmem:[%s3987 + $0x24] sm:$0xf]
  %v3998 = vld [vmem:[%s3987 + $0x28] sm:$0xf]
  %v3999 = vld [vmem:[%s3987 + $0x2c] sm:$0xf]
  %v4000 = vld [vmem:[%s3987 + $0x30] sm:$0xf]
  %v4001 = vld [vmem:[%s3987 + $0x34] sm:$0xf]
  %v4002 = vld [vmem:[%s3987 + $0x38] sm:$0xf]
  %v4003 = vld [vmem:[%s3987 + $0x3c] sm:$0xf]
  %v4020 = vunpack.c.l.b16 %v3988
  %v4021 = vunpack.c.l.b16 %v3989
  %v4022 = vunpack.c.l.b16 %v3990
  %v4023 = vunpack.c.l.b16 %v3991
  %v4024 = vunpack.c.l.b16 %v3992
  %v4025 = vunpack.c.l.b16 %v3993
  %v4026 = vunpack.c.l.b16 %v3994
  %v4027 = vunpack.c.l.b16 %v3995
  %v4028 = vunpack.c.l.b16 %v3996
  %v4029 = vunpack.c.l.b16 %v3997
  %v4030 = vunpack.c.l.b16 %v3998
  %v4031 = vunpack.c.l.b16 %v3999
  %v4032 = vunpack.c.l.b16 %v4000
  %v4033 = vunpack.c.l.b16 %v4001
  %v4034 = vunpack.c.l.b16 %v4002
  %v4035 = vunpack.c.l.b16 %v4003
  %v4036 = vpack.c.b16 %v4021, %v4020
  %v4037 = vpack.c.b16 %v4023, %v4022
  %v4038 = vpack.c.b16 %v4025, %v4024
  %v4039 = vpack.c.b16 %v4027, %v4026
  %v4040 = vpack.c.b16 %v4029, %v4028
  %v4041 = vpack.c.b16 %v4031, %v4030
  %v4042 = vpack.c.b16 %v4033, %v4032
  %v4043 = vpack.c.b16 %v4035, %v4034
  %4052 = vmatpush.bf16.msra.mxu0 %v4043
  %4053 = vmatpush.bf16.msra.mxu0 %v4042
  %4054 = vmatpush.bf16.msra.mxu0 %v4041
  %4055 = vmatpush.bf16.msra.mxu0 %v4040
  %4056 = vmatpush.bf16.msra.mxu0 %v4039
  %4057 = vmatpush.bf16.msra.mxu0 %v4038
  %4058 = vmatpush.bf16.msra.mxu0 %v4037
  %4059 = vmatpush.bf16.msra.mxu0 %v4036
  %4060 = vmatmul.bf16.gmra.mxu0 %v3986
  %v4061 = vpop.f32.mrf.mxu0
  %v4062 = vadd.f32 0.0, %v4061
  %v4063 = vpop.f32.mrf.mxu0
  %v4064 = vadd.f32 0.0, %v4063
  %4065 = vdwg.mxu0
  %v4066 = vadd.f32 %v3984, %v4062
  %v4067 = vadd.f32 %v3985, %v4064
  %v4068 = vpack.c.bf16 %v2824, %v2823
  %s4069 = scalar_lea.vmem %s3, 960
  %v4070 = vld [vmem:[%s4069] sm:$0xf]
  %v4071 = vld [vmem:[%s4069 + $0x4] sm:$0xf]
  %v4072 = vld [vmem:[%s4069 + $0x8] sm:$0xf]
  %v4073 = vld [vmem:[%s4069 + $0xc] sm:$0xf]
  %v4074 = vld [vmem:[%s4069 + $0x10] sm:$0xf]
  %v4075 = vld [vmem:[%s4069 + $0x14] sm:$0xf]
  %v4076 = vld [vmem:[%s4069 + $0x18] sm:$0xf]
  %v4077 = vld [vmem:[%s4069 + $0x1c] sm:$0xf]
  %v4078 = vld [vmem:[%s4069 + $0x20] sm:$0xf]
  %v4079 = vld [vmem:[%s4069 + $0x24] sm:$0xf]
  %v4080 = vld [vmem:[%s4069 + $0x28] sm:$0xf]
  %v4081 = vld [vmem:[%s4069 + $0x2c] sm:$0xf]
  %v4082 = vld [vmem:[%s4069 + $0x30] sm:$0xf]
  %v4083 = vld [vmem:[%s4069 + $0x34] sm:$0xf]
  %v4084 = vld [vmem:[%s4069 + $0x38] sm:$0xf]
  %v4085 = vld [vmem:[%s4069 + $0x3c] sm:$0xf]
  %v4102 = vunpack.c.l.b16 %v4070
  %v4103 = vunpack.c.l.b16 %v4071
  %v4104 = vunpack.c.l.b16 %v4072
  %v4105 = vunpack.c.l.b16 %v4073
  %v4106 = vunpack.c.l.b16 %v4074
  %v4107 = vunpack.c.l.b16 %v4075
  %v4108 = vunpack.c.l.b16 %v4076
  %v4109 = vunpack.c.l.b16 %v4077
  %v4110 = vunpack.c.l.b16 %v4078
  %v4111 = vunpack.c.l.b16 %v4079
  %v4112 = vunpack.c.l.b16 %v4080
  %v4113 = vunpack.c.l.b16 %v4081
  %v4114 = vunpack.c.l.b16 %v4082
  %v4115 = vunpack.c.l.b16 %v4083
  %v4116 = vunpack.c.l.b16 %v4084
  %v4117 = vunpack.c.l.b16 %v4085
  %v4118 = vpack.c.b16 %v4103, %v4102
  %v4119 = vpack.c.b16 %v4105, %v4104
  %v4120 = vpack.c.b16 %v4107, %v4106
  %v4121 = vpack.c.b16 %v4109, %v4108
  %v4122 = vpack.c.b16 %v4111, %v4110
  %v4123 = vpack.c.b16 %v4113, %v4112
  %v4124 = vpack.c.b16 %v4115, %v4114
  %v4125 = vpack.c.b16 %v4117, %v4116
  %4134 = vmatpush.bf16.msra.mxu0 %v4125
  %4135 = vmatpush.bf16.msra.mxu0 %v4124
  %4136 = vmatpush.bf16.msra.mxu0 %v4123
  %4137 = vmatpush.bf16.msra.mxu0 %v4122
  %4138 = vmatpush.bf16.msra.mxu0 %v4121
  %4139 = vmatpush.bf16.msra.mxu0 %v4120
  %4140 = vmatpush.bf16.msra.mxu0 %v4119
  %4141 = vmatpush.bf16.msra.mxu0 %v4118
  %4142 = vmatmul.bf16.gmra.mxu0 %v4068
  %v4143 = vpop.f32.mrf.mxu0
  %v4144 = vadd.f32 0.0, %v4143
  %v4145 = vpop.f32.mrf.mxu0
  %v4146 = vadd.f32 0.0, %v4145
  %4147 = vdwg.mxu0
  %v4148 = vadd.f32 %v4066, %v4144
  %v4149 = vadd.f32 %v4067, %v4146
  %v4150 = vpack.c.bf16 %v2826, %v2825
  %s4151 = scalar_lea.vmem %s3, 1024
  %v4152 = vld [vmem:[%s4151] sm:$0xf]
  %v4153 = vld [vmem:[%s4151 + $0x4] sm:$0xf]
  %v4154 = vld [vmem:[%s4151 + $0x8] sm:$0xf]
  %v4155 = vld [vmem:[%s4151 + $0xc] sm:$0xf]
  %v4156 = vld [vmem:[%s4151 + $0x10] sm:$0xf]
  %v4157 = vld [vmem:[%s4151 + $0x14] sm:$0xf]
  %v4158 = vld [vmem:[%s4151 + $0x18] sm:$0xf]
  %v4159 = vld [vmem:[%s4151 + $0x1c] sm:$0xf]
  %v4160 = vld [vmem:[%s4151 + $0x20] sm:$0xf]
  %v4161 = vld [vmem:[%s4151 + $0x24] sm:$0xf]
  %v4162 = vld [vmem:[%s4151 + $0x28] sm:$0xf]
  %v4163 = vld [vmem:[%s4151 + $0x2c] sm:$0xf]
  %v4164 = vld [vmem:[%s4151 + $0x30] sm:$0xf]
  %v4165 = vld [vmem:[%s4151 + $0x34] sm:$0xf]
  %v4166 = vld [vmem:[%s4151 + $0x38] sm:$0xf]
  %v4167 = vld [vmem:[%s4151 + $0x3c] sm:$0xf]
  %v4184 = vunpack.c.l.b16 %v4152
  %v4185 = vunpack.c.l.b16 %v4153
  %v4186 = vunpack.c.l.b16 %v4154
  %v4187 = vunpack.c.l.b16 %v4155
  %v4188 = vunpack.c.l.b16 %v4156
  %v4189 = vunpack.c.l.b16 %v4157
  %v4190 = vunpack.c.l.b16 %v4158
  %v4191 = vunpack.c.l.b16 %v4159
  %v4192 = vunpack.c.l.b16 %v4160
  %v4193 = vunpack.c.l.b16 %v4161
  %v4194 = vunpack.c.l.b16 %v4162
  %v4195 = vunpack.c.l.b16 %v4163
  %v4196 = vunpack.c.l.b16 %v4164
  %v4197 = vunpack.c.l.b16 %v4165
  %v4198 = vunpack.c.l.b16 %v4166
  %v4199 = vunpack.c.l.b16 %v4167
  %v4200 = vpack.c.b16 %v4185, %v4184
  %v4201 = vpack.c.b16 %v4187, %v4186
  %v4202 = vpack.c.b16 %v4189, %v4188
  %v4203 = vpack.c.b16 %v4191, %v4190
  %v4204 = vpack.c.b16 %v4193, %v4192
  %v4205 = vpack.c.b16 %v4195, %v4194
  %v4206 = vpack.c.b16 %v4197, %v4196
  %v4207 = vpack.c.b16 %v4199, %v4198
  %4216 = vmatpush.bf16.msra.mxu0 %v4207
  %4217 = vmatpush.bf16.msra.mxu0 %v4206
  %4218 = vmatpush.bf16.msra.mxu0 %v4205
  %4219 = vmatpush.bf16.msra.mxu0 %v4204
  %4220 = vmatpush.bf16.msra.mxu0 %v4203
  %4221 = vmatpush.bf16.msra.mxu0 %v4202
  %4222 = vmatpush.bf16.msra.mxu0 %v4201
  %4223 = vmatpush.bf16.msra.mxu0 %v4200
  %4224 = vmatmul.bf16.gmra.mxu0 %v4150
  %v4225 = vpop.f32.mrf.mxu0
  %v4226 = vadd.f32 0.0, %v4225
  %v4227 = vpop.f32.mrf.mxu0
  %v4228 = vadd.f32 0.0, %v4227
  %4229 = vdwg.mxu0
  %v4230 = vadd.f32 %v4148, %v4226
  %v4231 = vadd.f32 %v4149, %v4228
  %v4232 = vpack.c.bf16 %v2828, %v2827
  %s4233 = scalar_lea.vmem %s3, 1088
  %v4234 = vld [vmem:[%s4233] sm:$0xf]
  %v4235 = vld [vmem:[%s4233 + $0x4] sm:$0xf]
  %v4236 = vld [vmem:[%s4233 + $0x8] sm:$0xf]
  %v4237 = vld [vmem:[%s4233 + $0xc] sm:$0xf]
  %v4238 = vld [vmem:[%s4233 + $0x10] sm:$0xf]
  %v4239 = vld [vmem:[%s4233 + $0x14] sm:$0xf]
  %v4240 = vld [vmem:[%s4233 + $0x18] sm:$0xf]
  %v4241 = vld [vmem:[%s4233 + $0x1c] sm:$0xf]
  %v4242 = vld [vmem:[%s4233 + $0x20] sm:$0xf]
  %v4243 = vld [vmem:[%s4233 + $0x24] sm:$0xf]
  %v4244 = vld [vmem:[%s4233 + $0x28] sm:$0xf]
  %v4245 = vld [vmem:[%s4233 + $0x2c] sm:$0xf]
  %v4246 = vld [vmem:[%s4233 + $0x30] sm:$0xf]
  %v4247 = vld [vmem:[%s4233 + $0x34] sm:$0xf]
  %v4248 = vld [vmem:[%s4233 + $0x38] sm:$0xf]
  %v4249 = vld [vmem:[%s4233 + $0x3c] sm:$0xf]
  %v4266 = vunpack.c.l.b16 %v4234
  %v4267 = vunpack.c.l.b16 %v4235
  %v4268 = vunpack.c.l.b16 %v4236
  %v4269 = vunpack.c.l.b16 %v4237
  %v4270 = vunpack.c.l.b16 %v4238
  %v4271 = vunpack.c.l.b16 %v4239
  %v4272 = vunpack.c.l.b16 %v4240
  %v4273 = vunpack.c.l.b16 %v4241
  %v4274 = vunpack.c.l.b16 %v4242
  %v4275 = vunpack.c.l.b16 %v4243
  %v4276 = vunpack.c.l.b16 %v4244
  %v4277 = vunpack.c.l.b16 %v4245
  %v4278 = vunpack.c.l.b16 %v4246
  %v4279 = vunpack.c.l.b16 %v4247
  %v4280 = vunpack.c.l.b16 %v4248
  %v4281 = vunpack.c.l.b16 %v4249
  %v4282 = vpack.c.b16 %v4267, %v4266
  %v4283 = vpack.c.b16 %v4269, %v4268
  %v4284 = vpack.c.b16 %v4271, %v4270
  %v4285 = vpack.c.b16 %v4273, %v4272
  %v4286 = vpack.c.b16 %v4275, %v4274
  %v4287 = vpack.c.b16 %v4277, %v4276
  %v4288 = vpack.c.b16 %v4279, %v4278
  %v4289 = vpack.c.b16 %v4281, %v4280
  %4298 = vmatpush.bf16.msra.mxu0 %v4289
  %4299 = vmatpush.bf16.msra.mxu0 %v4288
  %4300 = vmatpush.bf16.msra.mxu0 %v4287
  %4301 = vmatpush.bf16.msra.mxu0 %v4286
  %4302 = vmatpush.bf16.msra.mxu0 %v4285
  %4303 = vmatpush.bf16.msra.mxu0 %v4284
  %4304 = vmatpush.bf16.msra.mxu0 %v4283
  %4305 = vmatpush.bf16.msra.mxu0 %v4282
  %4306 = vmatmul.bf16.gmra.mxu0 %v4232
  %v4307 = vpop.f32.mrf.mxu0
  %v4308 = vadd.f32 0.0, %v4307
  %v4309 = vpop.f32.mrf.mxu0
  %v4310 = vadd.f32 0.0, %v4309
  %4311 = vdwg.mxu0
  %v4312 = vadd.f32 %v4230, %v4308
  %v4313 = vadd.f32 %v4231, %v4310
  %v4314 = vpack.c.bf16 %v2830, %v2829
  %s4315 = scalar_lea.vmem %s3, 1152
  %v4316 = vld [vmem:[%s4315] sm:$0xf]
  %v4317 = vld [vmem:[%s4315 + $0x4] sm:$0xf]
  %v4318 = vld [vmem:[%s4315 + $0x8] sm:$0xf]
  %v4319 = vld [vmem:[%s4315 + $0xc] sm:$0xf]
  %v4320 = vld [vmem:[%s4315 + $0x10] sm:$0xf]
  %v4321 = vld [vmem:[%s4315 + $0x14] sm:$0xf]
  %v4322 = vld [vmem:[%s4315 + $0x18] sm:$0xf]
  %v4323 = vld [vmem:[%s4315 + $0x1c] sm:$0xf]
  %v4324 = vld [vmem:[%s4315 + $0x20] sm:$0xf]
  %v4325 = vld [vmem:[%s4315 + $0x24] sm:$0xf]
  %v4326 = vld [vmem:[%s4315 + $0x28] sm:$0xf]
  %v4327 = vld [vmem:[%s4315 + $0x2c] sm:$0xf]
  %v4328 = vld [vmem:[%s4315 + $0x30] sm:$0xf]
  %v4329 = vld [vmem:[%s4315 + $0x34] sm:$0xf]
  %v4330 = vld [vmem:[%s4315 + $0x38] sm:$0xf]
  %v4331 = vld [vmem:[%s4315 + $0x3c] sm:$0xf]
  %v4348 = vunpack.c.l.b16 %v4316
  %v4349 = vunpack.c.l.b16 %v4317
  %v4350 = vunpack.c.l.b16 %v4318
  %v4351 = vunpack.c.l.b16 %v4319
  %v4352 = vunpack.c.l.b16 %v4320
  %v4353 = vunpack.c.l.b16 %v4321
  %v4354 = vunpack.c.l.b16 %v4322
  %v4355 = vunpack.c.l.b16 %v4323
  %v4356 = vunpack.c.l.b16 %v4324
  %v4357 = vunpack.c.l.b16 %v4325
  %v4358 = vunpack.c.l.b16 %v4326
  %v4359 = vunpack.c.l.b16 %v4327
  %v4360 = vunpack.c.l.b16 %v4328
  %v4361 = vunpack.c.l.b16 %v4329
  %v4362 = vunpack.c.l.b16 %v4330
  %v4363 = vunpack.c.l.b16 %v4331
  %v4364 = vpack.c.b16 %v4349, %v4348
  %v4365 = vpack.c.b16 %v4351, %v4350
  %v4366 = vpack.c.b16 %v4353, %v4352
  %v4367 = vpack.c.b16 %v4355, %v4354
  %v4368 = vpack.c.b16 %v4357, %v4356
  %v4369 = vpack.c.b16 %v4359, %v4358
  %v4370 = vpack.c.b16 %v4361, %v4360
  %v4371 = vpack.c.b16 %v4363, %v4362
  %4380 = vmatpush.bf16.msra.mxu0 %v4371
  %4381 = vmatpush.bf16.msra.mxu0 %v4370
  %4382 = vmatpush.bf16.msra.mxu0 %v4369
  %4383 = vmatpush.bf16.msra.mxu0 %v4368
  %4384 = vmatpush.bf16.msra.mxu0 %v4367
  %4385 = vmatpush.bf16.msra.mxu0 %v4366
  %4386 = vmatpush.bf16.msra.mxu0 %v4365
  %4387 = vmatpush.bf16.msra.mxu0 %v4364
  %4388 = vmatmul.bf16.gmra.mxu0 %v4314
  %v4389 = vpop.f32.mrf.mxu0
  %v4390 = vadd.f32 0.0, %v4389
  %v4391 = vpop.f32.mrf.mxu0
  %v4392 = vadd.f32 0.0, %v4391
  %4393 = vdwg.mxu0
  %v4394 = vadd.f32 %v4312, %v4390
  %v4395 = vadd.f32 %v4313, %v4392
  %v4396 = vpack.c.bf16 %v2832, %v2831
  %s4397 = scalar_lea.vmem %s3, 1216
  %v4398 = vld [vmem:[%s4397] sm:$0xf]
  %v4399 = vld [vmem:[%s4397 + $0x4] sm:$0xf]
  %v4400 = vld [vmem:[%s4397 + $0x8] sm:$0xf]
  %v4401 = vld [vmem:[%s4397 + $0xc] sm:$0xf]
  %v4402 = vld [vmem:[%s4397 + $0x10] sm:$0xf]
  %v4403 = vld [vmem:[%s4397 + $0x14] sm:$0xf]
  %v4404 = vld [vmem:[%s4397 + $0x18] sm:$0xf]
  %v4405 = vld [vmem:[%s4397 + $0x1c] sm:$0xf]
  %v4406 = vld [vmem:[%s4397 + $0x20] sm:$0xf]
  %v4407 = vld [vmem:[%s4397 + $0x24] sm:$0xf]
  %v4408 = vld [vmem:[%s4397 + $0x28] sm:$0xf]
  %v4409 = vld [vmem:[%s4397 + $0x2c] sm:$0xf]
  %v4410 = vld [vmem:[%s4397 + $0x30] sm:$0xf]
  %v4411 = vld [vmem:[%s4397 + $0x34] sm:$0xf]
  %v4412 = vld [vmem:[%s4397 + $0x38] sm:$0xf]
  %v4413 = vld [vmem:[%s4397 + $0x3c] sm:$0xf]
  %v4430 = vunpack.c.l.b16 %v4398
  %v4431 = vunpack.c.l.b16 %v4399
  %v4432 = vunpack.c.l.b16 %v4400
  %v4433 = vunpack.c.l.b16 %v4401
  %v4434 = vunpack.c.l.b16 %v4402
  %v4435 = vunpack.c.l.b16 %v4403
  %v4436 = vunpack.c.l.b16 %v4404
  %v4437 = vunpack.c.l.b16 %v4405
  %v4438 = vunpack.c.l.b16 %v4406
  %v4439 = vunpack.c.l.b16 %v4407
  %v4440 = vunpack.c.l.b16 %v4408
  %v4441 = vunpack.c.l.b16 %v4409
  %v4442 = vunpack.c.l.b16 %v4410
  %v4443 = vunpack.c.l.b16 %v4411
  %v4444 = vunpack.c.l.b16 %v4412
  %v4445 = vunpack.c.l.b16 %v4413
  %v4446 = vpack.c.b16 %v4431, %v4430
  %v4447 = vpack.c.b16 %v4433, %v4432
  %v4448 = vpack.c.b16 %v4435, %v4434
  %v4449 = vpack.c.b16 %v4437, %v4436
  %v4450 = vpack.c.b16 %v4439, %v4438
  %v4451 = vpack.c.b16 %v4441, %v4440
  %v4452 = vpack.c.b16 %v4443, %v4442
  %v4453 = vpack.c.b16 %v4445, %v4444
  %4462 = vmatpush.bf16.msra.mxu0 %v4453
  %4463 = vmatpush.bf16.msra.mxu0 %v4452
  %4464 = vmatpush.bf16.msra.mxu0 %v4451
  %4465 = vmatpush.bf16.msra.mxu0 %v4450
  %4466 = vmatpush.bf16.msra.mxu0 %v4449
  %4467 = vmatpush.bf16.msra.mxu0 %v4448
  %4468 = vmatpush.bf16.msra.mxu0 %v4447
  %4469 = vmatpush.bf16.msra.mxu0 %v4446
  %4470 = vmatmul.bf16.gmra.mxu0 %v4396
  %v4471 = vpop.f32.mrf.mxu0
  %v4472 = vadd.f32 0.0, %v4471
  %v4473 = vpop.f32.mrf.mxu0
  %v4474 = vadd.f32 0.0, %v4473
  %4475 = vdwg.mxu0
  %v4476 = vadd.f32 %v4394, %v4472
  %v4477 = vadd.f32 %v4395, %v4474
  %v4478 = vpack.c.bf16 %v2834, %v2833
  %s4479 = scalar_lea.vmem %s3, 1280
  %v4480 = vld [vmem:[%s4479] sm:$0xf]
  %v4481 = vld [vmem:[%s4479 + $0x4] sm:$0xf]
  %v4482 = vld [vmem:[%s4479 + $0x8] sm:$0xf]
  %v4483 = vld [vmem:[%s4479 + $0xc] sm:$0xf]
  %v4484 = vld [vmem:[%s4479 + $0x10] sm:$0xf]
  %v4485 = vld [vmem:[%s4479 + $0x14] sm:$0xf]
  %v4486 = vld [vmem:[%s4479 + $0x18] sm:$0xf]
  %v4487 = vld [vmem:[%s4479 + $0x1c] sm:$0xf]
  %v4488 = vld [vmem:[%s4479 + $0x20] sm:$0xf]
  %v4489 = vld [vmem:[%s4479 + $0x24] sm:$0xf]
  %v4490 = vld [vmem:[%s4479 + $0x28] sm:$0xf]
  %v4491 = vld [vmem:[%s4479 + $0x2c] sm:$0xf]
  %v4492 = vld [vmem:[%s4479 + $0x30] sm:$0xf]
  %v4493 = vld [vmem:[%s4479 + $0x34] sm:$0xf]
  %v4494 = vld [vmem:[%s4479 + $0x38] sm:$0xf]
  %v4495 = vld [vmem:[%s4479 + $0x3c] sm:$0xf]
  %v4512 = vunpack.c.l.b16 %v4480
  %v4513 = vunpack.c.l.b16 %v4481
  %v4514 = vunpack.c.l.b16 %v4482
  %v4515 = vunpack.c.l.b16 %v4483
  %v4516 = vunpack.c.l.b16 %v4484
  %v4517 = vunpack.c.l.b16 %v4485
  %v4518 = vunpack.c.l.b16 %v4486
  %v4519 = vunpack.c.l.b16 %v4487
  %v4520 = vunpack.c.l.b16 %v4488
  %v4521 = vunpack.c.l.b16 %v4489
  %v4522 = vunpack.c.l.b16 %v4490
  %v4523 = vunpack.c.l.b16 %v4491
  %v4524 = vunpack.c.l.b16 %v4492
  %v4525 = vunpack.c.l.b16 %v4493
  %v4526 = vunpack.c.l.b16 %v4494
  %v4527 = vunpack.c.l.b16 %v4495
  %v4528 = vpack.c.b16 %v4513, %v4512
  %v4529 = vpack.c.b16 %v4515, %v4514
  %v4530 = vpack.c.b16 %v4517, %v4516
  %v4531 = vpack.c.b16 %v4519, %v4518
  %v4532 = vpack.c.b16 %v4521, %v4520
  %v4533 = vpack.c.b16 %v4523, %v4522
  %v4534 = vpack.c.b16 %v4525, %v4524
  %v4535 = vpack.c.b16 %v4527, %v4526
  %4544 = vmatpush.bf16.msra.mxu0 %v4535
  %4545 = vmatpush.bf16.msra.mxu0 %v4534
  %4546 = vmatpush.bf16.msra.mxu0 %v4533
  %4547 = vmatpush.bf16.msra.mxu0 %v4532
  %4548 = vmatpush.bf16.msra.mxu0 %v4531
  %4549 = vmatpush.bf16.msra.mxu0 %v4530
  %4550 = vmatpush.bf16.msra.mxu0 %v4529
  %4551 = vmatpush.bf16.msra.mxu0 %v4528
  %4552 = vmatmul.bf16.gmra.mxu0 %v4478
  %v4553 = vpop.f32.mrf.mxu0
  %v4554 = vadd.f32 0.0, %v4553
  %v4555 = vpop.f32.mrf.mxu0
  %v4556 = vadd.f32 0.0, %v4555
  %4557 = vdwg.mxu0
  %v4558 = vadd.f32 %v4476, %v4554
  %v4559 = vadd.f32 %v4477, %v4556
  %v4560 = vpack.c.bf16 %v2836, %v2835
  %s4561 = scalar_lea.vmem %s3, 1344
  %v4562 = vld [vmem:[%s4561] sm:$0xf]
  %v4563 = vld [vmem:[%s4561 + $0x4] sm:$0xf]
  %v4564 = vld [vmem:[%s4561 + $0x8] sm:$0xf]
  %v4565 = vld [vmem:[%s4561 + $0xc] sm:$0xf]
  %v4566 = vld [vmem:[%s4561 + $0x10] sm:$0xf]
  %v4567 = vld [vmem:[%s4561 + $0x14] sm:$0xf]
  %v4568 = vld [vmem:[%s4561 + $0x18] sm:$0xf]
  %v4569 = vld [vmem:[%s4561 + $0x1c] sm:$0xf]
  %v4570 = vld [vmem:[%s4561 + $0x20] sm:$0xf]
  %v4571 = vld [vmem:[%s4561 + $0x24] sm:$0xf]
  %v4572 = vld [vmem:[%s4561 + $0x28] sm:$0xf]
  %v4573 = vld [vmem:[%s4561 + $0x2c] sm:$0xf]
  %v4574 = vld [vmem:[%s4561 + $0x30] sm:$0xf]
  %v4575 = vld [vmem:[%s4561 + $0x34] sm:$0xf]
  %v4576 = vld [vmem:[%s4561 + $0x38] sm:$0xf]
  %v4577 = vld [vmem:[%s4561 + $0x3c] sm:$0xf]
  %v4594 = vunpack.c.l.b16 %v4562
  %v4595 = vunpack.c.l.b16 %v4563
  %v4596 = vunpack.c.l.b16 %v4564
  %v4597 = vunpack.c.l.b16 %v4565
  %v4598 = vunpack.c.l.b16 %v4566
  %v4599 = vunpack.c.l.b16 %v4567
  %v4600 = vunpack.c.l.b16 %v4568
  %v4601 = vunpack.c.l.b16 %v4569
  %v4602 = vunpack.c.l.b16 %v4570
  %v4603 = vunpack.c.l.b16 %v4571
  %v4604 = vunpack.c.l.b16 %v4572
  %v4605 = vunpack.c.l.b16 %v4573
  %v4606 = vunpack.c.l.b16 %v4574
  %v4607 = vunpack.c.l.b16 %v4575
  %v4608 = vunpack.c.l.b16 %v4576
  %v4609 = vunpack.c.l.b16 %v4577
  %v4610 = vpack.c.b16 %v4595, %v4594
  %v4611 = vpack.c.b16 %v4597, %v4596
  %v4612 = vpack.c.b16 %v4599, %v4598
  %v4613 = vpack.c.b16 %v4601, %v4600
  %v4614 = vpack.c.b16 %v4603, %v4602
  %v4615 = vpack.c.b16 %v4605, %v4604
  %v4616 = vpack.c.b16 %v4607, %v4606
  %v4617 = vpack.c.b16 %v4609, %v4608
  %4626 = vmatpush.bf16.msra.mxu0 %v4617
  %4627 = vmatpush.bf16.msra.mxu0 %v4616
  %4628 = vmatpush.bf16.msra.mxu0 %v4615
  %4629 = vmatpush.bf16.msra.mxu0 %v4614
  %4630 = vmatpush.bf16.msra.mxu0 %v4613
  %4631 = vmatpush.bf16.msra.mxu0 %v4612
  %4632 = vmatpush.bf16.msra.mxu0 %v4611
  %4633 = vmatpush.bf16.msra.mxu0 %v4610
  %4634 = vmatmul.bf16.gmra.mxu0 %v4560
  %v4635 = vpop.f32.mrf.mxu0
  %v4636 = vadd.f32 0.0, %v4635
  %v4637 = vpop.f32.mrf.mxu0
  %v4638 = vadd.f32 0.0, %v4637
  %4639 = vdwg.mxu0
  %v4640 = vadd.f32 %v4558, %v4636
  %v4641 = vadd.f32 %v4559, %v4638
  %v4642 = vpack.c.bf16 %v2838, %v2837
  %s4643 = scalar_lea.vmem %s3, 1408
  %v4644 = vld [vmem:[%s4643] sm:$0xf]
  %v4645 = vld [vmem:[%s4643 + $0x4] sm:$0xf]
  %v4646 = vld [vmem:[%s4643 + $0x8] sm:$0xf]
  %v4647 = vld [vmem:[%s4643 + $0xc] sm:$0xf]
  %v4648 = vld [vmem:[%s4643 + $0x10] sm:$0xf]
  %v4649 = vld [vmem:[%s4643 + $0x14] sm:$0xf]
  %v4650 = vld [vmem:[%s4643 + $0x18] sm:$0xf]
  %v4651 = vld [vmem:[%s4643 + $0x1c] sm:$0xf]
  %v4652 = vld [vmem:[%s4643 + $0x20] sm:$0xf]
  %v4653 = vld [vmem:[%s4643 + $0x24] sm:$0xf]
  %v4654 = vld [vmem:[%s4643 + $0x28] sm:$0xf]
  %v4655 = vld [vmem:[%s4643 + $0x2c] sm:$0xf]
  %v4656 = vld [vmem:[%s4643 + $0x30] sm:$0xf]
  %v4657 = vld [vmem:[%s4643 + $0x34] sm:$0xf]
  %v4658 = vld [vmem:[%s4643 + $0x38] sm:$0xf]
  %v4659 = vld [vmem:[%s4643 + $0x3c] sm:$0xf]
  %v4676 = vunpack.c.l.b16 %v4644
  %v4677 = vunpack.c.l.b16 %v4645
  %v4678 = vunpack.c.l.b16 %v4646
  %v4679 = vunpack.c.l.b16 %v4647
  %v4680 = vunpack.c.l.b16 %v4648
  %v4681 = vunpack.c.l.b16 %v4649
  %v4682 = vunpack.c.l.b16 %v4650
  %v4683 = vunpack.c.l.b16 %v4651
  %v4684 = vunpack.c.l.b16 %v4652
  %v4685 = vunpack.c.l.b16 %v4653
  %v4686 = vunpack.c.l.b16 %v4654
  %v4687 = vunpack.c.l.b16 %v4655
  %v4688 = vunpack.c.l.b16 %v4656
  %v4689 = vunpack.c.l.b16 %v4657
  %v4690 = vunpack.c.l.b16 %v4658
  %v4691 = vunpack.c.l.b16 %v4659
  %v4692 = vpack.c.b16 %v4677, %v4676
  %v4693 = vpack.c.b16 %v4679, %v4678
  %v4694 = vpack.c.b16 %v4681, %v4680
  %v4695 = vpack.c.b16 %v4683, %v4682
  %v4696 = vpack.c.b16 %v4685, %v4684
  %v4697 = vpack.c.b16 %v4687, %v4686
  %v4698 = vpack.c.b16 %v4689, %v4688
  %v4699 = vpack.c.b16 %v4691, %v4690
  %4708 = vmatpush.bf16.msra.mxu0 %v4699
  %4709 = vmatpush.bf16.msra.mxu0 %v4698
  %4710 = vmatpush.bf16.msra.mxu0 %v4697
  %4711 = vmatpush.bf16.msra.mxu0 %v4696
  %4712 = vmatpush.bf16.msra.mxu0 %v4695
  %4713 = vmatpush.bf16.msra.mxu0 %v4694
  %4714 = vmatpush.bf16.msra.mxu0 %v4693
  %4715 = vmatpush.bf16.msra.mxu0 %v4692
  %4716 = vmatmul.bf16.gmra.mxu0 %v4642
  %v4717 = vpop.f32.mrf.mxu0
  %v4718 = vadd.f32 0.0, %v4717
  %v4719 = vpop.f32.mrf.mxu0
  %v4720 = vadd.f32 0.0, %v4719
  %4721 = vdwg.mxu0
  %v4722 = vadd.f32 %v4640, %v4718
  %v4723 = vadd.f32 %v4641, %v4720
  %v4724 = vpack.c.bf16 %v2840, %v2839
  %s4725 = scalar_lea.vmem %s3, 1472
  %v4726 = vld [vmem:[%s4725] sm:$0xf]
  %v4727 = vld [vmem:[%s4725 + $0x4] sm:$0xf]
  %v4728 = vld [vmem:[%s4725 + $0x8] sm:$0xf]
  %v4729 = vld [vmem:[%s4725 + $0xc] sm:$0xf]
  %v4730 = vld [vmem:[%s4725 + $0x10] sm:$0xf]
  %v4731 = vld [vmem:[%s4725 + $0x14] sm:$0xf]
  %v4732 = vld [vmem:[%s4725 + $0x18] sm:$0xf]
  %v4733 = vld [vmem:[%s4725 + $0x1c] sm:$0xf]
  %v4734 = vld [vmem:[%s4725 + $0x20] sm:$0xf]
  %v4735 = vld [vmem:[%s4725 + $0x24] sm:$0xf]
  %v4736 = vld [vmem:[%s4725 + $0x28] sm:$0xf]
  %v4737 = vld [vmem:[%s4725 + $0x2c] sm:$0xf]
  %v4738 = vld [vmem:[%s4725 + $0x30] sm:$0xf]
  %v4739 = vld [vmem:[%s4725 + $0x34] sm:$0xf]
  %v4740 = vld [vmem:[%s4725 + $0x38] sm:$0xf]
  %v4741 = vld [vmem:[%s4725 + $0x3c] sm:$0xf]
  %v4758 = vunpack.c.l.b16 %v4726
  %v4759 = vunpack.c.l.b16 %v4727
  %v4760 = vunpack.c.l.b16 %v4728
  %v4761 = vunpack.c.l.b16 %v4729
  %v4762 = vunpack.c.l.b16 %v4730
  %v4763 = vunpack.c.l.b16 %v4731
  %v4764 = vunpack.c.l.b16 %v4732
  %v4765 = vunpack.c.l.b16 %v4733
  %v4766 = vunpack.c.l.b16 %v4734
  %v4767 = vunpack.c.l.b16 %v4735
  %v4768 = vunpack.c.l.b16 %v4736
  %v4769 = vunpack.c.l.b16 %v4737
  %v4770 = vunpack.c.l.b16 %v4738
  %v4771 = vunpack.c.l.b16 %v4739
  %v4772 = vunpack.c.l.b16 %v4740
  %v4773 = vunpack.c.l.b16 %v4741
  %v4774 = vpack.c.b16 %v4759, %v4758
  %v4775 = vpack.c.b16 %v4761, %v4760
  %v4776 = vpack.c.b16 %v4763, %v4762
  %v4777 = vpack.c.b16 %v4765, %v4764
  %v4778 = vpack.c.b16 %v4767, %v4766
  %v4779 = vpack.c.b16 %v4769, %v4768
  %v4780 = vpack.c.b16 %v4771, %v4770
  %v4781 = vpack.c.b16 %v4773, %v4772
  %4790 = vmatpush.bf16.msra.mxu0 %v4781
  %4791 = vmatpush.bf16.msra.mxu0 %v4780
  %4792 = vmatpush.bf16.msra.mxu0 %v4779
  %4793 = vmatpush.bf16.msra.mxu0 %v4778
  %4794 = vmatpush.bf16.msra.mxu0 %v4777
  %4795 = vmatpush.bf16.msra.mxu0 %v4776
  %4796 = vmatpush.bf16.msra.mxu0 %v4775
  %4797 = vmatpush.bf16.msra.mxu0 %v4774
  %4798 = vmatmul.bf16.gmra.mxu0 %v4724
  %v4799 = vpop.f32.mrf.mxu0
  %v4800 = vadd.f32 0.0, %v4799
  %v4801 = vpop.f32.mrf.mxu0
  %v4802 = vadd.f32 0.0, %v4801
  %4803 = vdwg.mxu0
  %v4804 = vadd.f32 %v4722, %v4800
  %v4805 = vadd.f32 %v4723, %v4802
  %v4806 = vpack.c.bf16 %v2842, %v2841
  %s4807 = scalar_lea.vmem %s3, 1536
  %v4808 = vld [vmem:[%s4807] sm:$0xf]
  %v4809 = vld [vmem:[%s4807 + $0x4] sm:$0xf]
  %v4810 = vld [vmem:[%s4807 + $0x8] sm:$0xf]
  %v4811 = vld [vmem:[%s4807 + $0xc] sm:$0xf]
  %v4812 = vld [vmem:[%s4807 + $0x10] sm:$0xf]
  %v4813 = vld [vmem:[%s4807 + $0x14] sm:$0xf]
  %v4814 = vld [vmem:[%s4807 + $0x18] sm:$0xf]
  %v4815 = vld [vmem:[%s4807 + $0x1c] sm:$0xf]
  %v4816 = vld [vmem:[%s4807 + $0x20] sm:$0xf]
  %v4817 = vld [vmem:[%s4807 + $0x24] sm:$0xf]
  %v4818 = vld [vmem:[%s4807 + $0x28] sm:$0xf]
  %v4819 = vld [vmem:[%s4807 + $0x2c] sm:$0xf]
  %v4820 = vld [vmem:[%s4807 + $0x30] sm:$0xf]
  %v4821 = vld [vmem:[%s4807 + $0x34] sm:$0xf]
  %v4822 = vld [vmem:[%s4807 + $0x38] sm:$0xf]
  %v4823 = vld [vmem:[%s4807 + $0x3c] sm:$0xf]
  %v4840 = vunpack.c.l.b16 %v4808
  %v4841 = vunpack.c.l.b16 %v4809
  %v4842 = vunpack.c.l.b16 %v4810
  %v4843 = vunpack.c.l.b16 %v4811
  %v4844 = vunpack.c.l.b16 %v4812
  %v4845 = vunpack.c.l.b16 %v4813
  %v4846 = vunpack.c.l.b16 %v4814
  %v4847 = vunpack.c.l.b16 %v4815
  %v4848 = vunpack.c.l.b16 %v4816
  %v4849 = vunpack.c.l.b16 %v4817
  %v4850 = vunpack.c.l.b16 %v4818
  %v4851 = vunpack.c.l.b16 %v4819
  %v4852 = vunpack.c.l.b16 %v4820
  %v4853 = vunpack.c.l.b16 %v4821
  %v4854 = vunpack.c.l.b16 %v4822
  %v4855 = vunpack.c.l.b16 %v4823
  %v4856 = vpack.c.b16 %v4841, %v4840
  %v4857 = vpack.c.b16 %v4843, %v4842
  %v4858 = vpack.c.b16 %v4845, %v4844
  %v4859 = vpack.c.b16 %v4847, %v4846
  %v4860 = vpack.c.b16 %v4849, %v4848
  %v4861 = vpack.c.b16 %v4851, %v4850
  %v4862 = vpack.c.b16 %v4853, %v4852
  %v4863 = vpack.c.b16 %v4855, %v4854
  %4872 = vmatpush.bf16.msra.mxu0 %v4863
  %4873 = vmatpush.bf16.msra.mxu0 %v4862
  %4874 = vmatpush.bf16.msra.mxu0 %v4861
  %4875 = vmatpush.bf16.msra.mxu0 %v4860
  %4876 = vmatpush.bf16.msra.mxu0 %v4859
  %4877 = vmatpush.bf16.msra.mxu0 %v4858
  %4878 = vmatpush.bf16.msra.mxu0 %v4857
  %4879 = vmatpush.bf16.msra.mxu0 %v4856
  %4880 = vmatmul.bf16.gmra.mxu0 %v4806
  %v4881 = vpop.f32.mrf.mxu0
  %v4882 = vadd.f32 0.0, %v4881
  %v4883 = vpop.f32.mrf.mxu0
  %v4884 = vadd.f32 0.0, %v4883
  %4885 = vdwg.mxu0
  %v4886 = vadd.f32 %v4804, %v4882
  %v4887 = vadd.f32 %v4805, %v4884
  %v4888 = vld [vmem:[%s4] sm:$0x1]
  %v4890 = vperm.slane %v4888, 0
  %v4892 = vadd.f32 %v4886, %v4890
  %v4893 = vadd.f32 %v4887, %v4890
  %v4894 = vmax.f32 %v4892, 0.0
  %v4895 = vmax.f32 %v4893, 0.0
  %v4896 = vpack.c.bf16 %v4895, %v4894
  %v4897 = vld [vmem:[%s5] sm:$0xf]
  %v4898 = vld [vmem:[%s5 + $0x4] sm:$0xf]
  %v4899 = vld [vmem:[%s5 + $0x8] sm:$0xf]
  %v4900 = vld [vmem:[%s5 + $0xc] sm:$0xf]
  %v4901 = vld [vmem:[%s5 + $0x10] sm:$0xf]
  %v4902 = vld [vmem:[%s5 + $0x14] sm:$0xf]
  %v4903 = vld [vmem:[%s5 + $0x18] sm:$0xf]
  %v4904 = vld [vmem:[%s5 + $0x1c] sm:$0xf]
  %v4905 = vld [vmem:[%s5 + $0x20] sm:$0xf]
  %v4906 = vld [vmem:[%s5 + $0x24] sm:$0xf]
  %v4907 = vld [vmem:[%s5 + $0x28] sm:$0xf]
  %v4908 = vld [vmem:[%s5 + $0x2c] sm:$0xf]
  %v4909 = vld [vmem:[%s5 + $0x30] sm:$0xf]
  %v4910 = vld [vmem:[%s5 + $0x34] sm:$0xf]
  %v4911 = vld [vmem:[%s5 + $0x38] sm:$0xf]
  %v4912 = vld [vmem:[%s5 + $0x3c] sm:$0xf]
  %v4913 = vld [vmem:[%s6] sm:$0x1]
  %v4915 = vperm.slane %v4913, 0
  %v4933 = vunpack.c.l.b16 %v4897
  %v4934 = vunpack.c.l.b16 %v4898
  %v4935 = vunpack.c.l.b16 %v4899
  %v4936 = vunpack.c.l.b16 %v4900
  %v4937 = vunpack.c.l.b16 %v4901
  %v4938 = vunpack.c.l.b16 %v4902
  %v4939 = vunpack.c.l.b16 %v4903
  %v4940 = vunpack.c.l.b16 %v4904
  %v4941 = vunpack.c.l.b16 %v4905
  %v4942 = vunpack.c.l.b16 %v4906
  %v4943 = vunpack.c.l.b16 %v4907
  %v4944 = vunpack.c.l.b16 %v4908
  %v4945 = vunpack.c.l.b16 %v4909
  %v4946 = vunpack.c.l.b16 %v4910
  %v4947 = vunpack.c.l.b16 %v4911
  %v4948 = vunpack.c.l.b16 %v4912
  %v4949 = vpack.c.b16 %v4934, %v4933
  %v4950 = vpack.c.b16 %v4936, %v4935
  %v4951 = vpack.c.b16 %v4938, %v4937
  %v4952 = vpack.c.b16 %v4940, %v4939
  %v4953 = vpack.c.b16 %v4942, %v4941
  %v4954 = vpack.c.b16 %v4944, %v4943
  %v4955 = vpack.c.b16 %v4946, %v4945
  %v4956 = vpack.c.b16 %v4948, %v4947
  %4965 = vmatpush.bf16.msra.mxu0 %v4956
  %4966 = vmatpush.bf16.msra.mxu0 %v4955
  %4967 = vmatpush.bf16.msra.mxu0 %v4954
  %4968 = vmatpush.bf16.msra.mxu0 %v4953
  %4969 = vmatpush.bf16.msra.mxu0 %v4952
  %4970 = vmatpush.bf16.msra.mxu0 %v4951
  %4971 = vmatpush.bf16.msra.mxu0 %v4950
  %4972 = vmatpush.bf16.msra.mxu0 %v4949
  %4973 = vmatmul.bf16.gmra.mxu0 %v4896
  %v4974 = vpop.f32.mrf.mxu0
  %v4975 = vadd.f32 %v4915, %v4974
  %v4976 = vpop.f32.mrf.mxu0
  %v4977 = vadd.f32 %v4915, %v4976
  %4978 = vdwg.mxu0
  %v4979 = vmax.f32 %v4975, 0.0
  %v4980 = vmax.f32 %v4977, 0.0
  %v4981 = vpack.c.bf16 %v4980, %v4979
  %v4982 = vld [vmem:[%s7] sm:$0xf]
  %v4983 = vld [vmem:[%s7 + $0x4] sm:$0xf]
  %v4984 = vld [vmem:[%s7 + $0x8] sm:$0xf]
  %v4985 = vld [vmem:[%s7 + $0xc] sm:$0xf]
  %v4986 = vld [vmem:[%s7 + $0x10] sm:$0xf]
  %v4987 = vld [vmem:[%s7 + $0x14] sm:$0xf]
  %v4988 = vld [vmem:[%s7 + $0x18] sm:$0xf]
  %v4989 = vld [vmem:[%s7 + $0x1c] sm:$0xf]
  %v4990 = vld [vmem:[%s7 + $0x20] sm:$0xf]
  %v4991 = vld [vmem:[%s7 + $0x24] sm:$0xf]
  %v4992 = vld [vmem:[%s7 + $0x28] sm:$0xf]
  %v4993 = vld [vmem:[%s7 + $0x2c] sm:$0xf]
  %v4994 = vld [vmem:[%s7 + $0x30] sm:$0xf]
  %v4995 = vld [vmem:[%s7 + $0x34] sm:$0xf]
  %v4996 = vld [vmem:[%s7 + $0x38] sm:$0xf]
  %v4997 = vld [vmem:[%s7 + $0x3c] sm:$0xf]
  %v4998 = vld [vmem:[%s8] sm:$0x1]
  %v5000 = vperm.slane %v4998, 0
  %v5018 = vunpack.c.l.b16 %v4982
  %v5019 = vunpack.c.l.b16 %v4983
  %v5020 = vunpack.c.l.b16 %v4984
  %v5021 = vunpack.c.l.b16 %v4985
  %v5022 = vunpack.c.l.b16 %v4986
  %v5023 = vunpack.c.l.b16 %v4987
  %v5024 = vunpack.c.l.b16 %v4988
  %v5025 = vunpack.c.l.b16 %v4989
  %v5026 = vunpack.c.l.b16 %v4990
  %v5027 = vunpack.c.l.b16 %v4991
  %v5028 = vunpack.c.l.b16 %v4992
  %v5029 = vunpack.c.l.b16 %v4993
  %v5030 = vunpack.c.l.b16 %v4994
  %v5031 = vunpack.c.l.b16 %v4995
  %v5032 = vunpack.c.l.b16 %v4996
  %v5033 = vunpack.c.l.b16 %v4997
  %v5034 = vpack.c.b16 %v5019, %v5018
  %v5035 = vpack.c.b16 %v5021, %v5020
  %v5036 = vpack.c.b16 %v5023, %v5022
  %v5037 = vpack.c.b16 %v5025, %v5024
  %v5038 = vpack.c.b16 %v5027, %v5026
  %v5039 = vpack.c.b16 %v5029, %v5028
  %v5040 = vpack.c.b16 %v5031, %v5030
  %v5041 = vpack.c.b16 %v5033, %v5032
  %5050 = vmatpush.bf16.msra.mxu0 %v5041
  %5051 = vmatpush.bf16.msra.mxu0 %v5040
  %5052 = vmatpush.bf16.msra.mxu0 %v5039
  %5053 = vmatpush.bf16.msra.mxu0 %v5038
  %5054 = vmatpush.bf16.msra.mxu0 %v5037
  %5055 = vmatpush.bf16.msra.mxu0 %v5036
  %5056 = vmatpush.bf16.msra.mxu0 %v5035
  %5057 = vmatpush.bf16.msra.mxu0 %v5034
  %5058 = vmatmul.bf16.gmra.mxu0 %v4981
  %v5059 = vpop.f32.mrf.mxu0
  %v5060 = vadd.f32 %v5000, %v5059
  %v5061 = vpop.f32.mrf.mxu0
  %v5062 = vadd.f32 %v5000, %v5061
  %5063 = vdwg.mxu0
  %5064 = vst [vmem:[%s9] sm:$0xff] %v5060
  %5065 = vst [vmem:[%s9 + $0x8] sm:$0xff] %v5062
  // Predicated region
  $region38: #{net_forward.3} parent=0 // pred_check
    _
  $region39: #{net_forward.3} parent=0 // pred_check_branch
    %5067 = sbr.rel (0) target = $region41
  $region40: #{net_forward.3} parent=0 // pred_region
    _
  $region41: #{net_forward.3} parent=0 // pred_fallthru
    _
  // Predicated region
  $region42: #{net_forward.3} parent=0 // pred_check
    _
  $region43: #{net_forward.3} parent=0 // pred_check_branch
    %5069 = sbr.rel (0) target = $region45
  $region44: #{net_forward.3} parent=0 // pred_region
    _
  $region45: #{net_forward.3} parent=0 // pred_fallthru
    _

</llo_original>
